<compile_context>
chip_gen: v7x
topology: tpu7x:2x2x1
jax: 0.10.0
libtpu: 0.0.40
codegen_flags: <defaults>
</compile_context>

<pallas_src>
import functools

import jax
import jax.numpy as jnp
from jax.experimental import pallas as pl
from jax.experimental.pallas import tpu as pltpu


# ----------------------------------------------------------------------------
# Fused forward kernel (one batch element per grid step)
# ----------------------------------------------------------------------------
def _cnn2_kernel(x_ref, w1_ref, b1_ref, w2_ref, b2_ref,
                 fc1w_ref, fc1b_ref, fc2w_ref, fc2b_ref, out_ref):
    f32 = jnp.float32
    _, cin, H, W = x_ref.shape          # (1, 3, 28, 28) block
    nf = b1_ref.shape[0]                # n_feature
    K = 3
    H1, W1 = H - K + 1, W - K + 1       # 26, 26
    P1H, P1W = H1 // 2, W1 // 2         # 13, 13
    H2, W2 = P1H - K + 1, P1W - K + 1   # 11, 11
    P2H, P2W = H2 // 2, W2 // 2         # 5, 5

    def pool_mats(n_r_in, n_r_out, n_c_in, n_c_out):
        # Exact 0/1 selection matrices: R_ph picks rows 2i+ph, C_pw picks
        # columns 2j+pw.  Built from 2-D broadcasted iota (TPU-safe).
        ri = jax.lax.broadcasted_iota(jnp.int32, (n_r_out, n_r_in), 0)
        rk = jax.lax.broadcasted_iota(jnp.int32, (n_r_out, n_r_in), 1)
        r0 = (rk == 2 * ri).astype(f32)
        r1 = (rk == 2 * ri + 1).astype(f32)
        ck = jax.lax.broadcasted_iota(jnp.int32, (n_c_in, n_c_out), 0)
        cj = jax.lax.broadcasted_iota(jnp.int32, (n_c_in, n_c_out), 1)
        c0 = (ck == 2 * cj).astype(f32)
        c1 = (ck == 2 * cj + 1).astype(f32)
        return r0, r1, c0, c1

    def pool2x2(a, mats):
        r0, r1, c0, c1 = mats
        rows = jnp.maximum(jnp.dot(r0, a, preferred_element_type=f32),
                           jnp.dot(r1, a, preferred_element_type=f32))
        return jnp.maximum(jnp.dot(rows, c0, preferred_element_type=f32),
                           jnp.dot(rows, c1, preferred_element_type=f32))

    # ---- conv1 (3x3 valid, direct VPU conv) + ReLU + 2x2 max-pool ----------
    x_sl = []
    for ci in range(cin):
        xc = x_ref[0, ci]                                     # (28, 28)
        x_sl.append([xc[kh:kh + H1, kw:kw + W1]
                     for kh in range(K) for kw in range(K)])  # 9 shifted views
    mats1 = pool_mats(H1, P1H, W1, P1W)
    p1 = []
    for co in range(nf):
        acc = jnp.full((H1, W1), b1_ref[co], dtype=f32)
        for ci in range(cin):
            base = co * cin * 9 + ci * 9
            for t in range(9):
                acc = acc + x_sl[ci][t] * w1_ref[base + t]
        p1.append(pool2x2(jnp.maximum(acc, 0.0), mats1))       # (13, 13)

    # ---- conv2 (3x3 valid, direct VPU conv) + ReLU + 2x2 max-pool ----------
    p1_sl = []
    for ci in range(nf):
        pc = p1[ci]
        p1_sl.append([pc[kh:kh + H2, kw:kw + W2]
                      for kh in range(K) for kw in range(K)])
    mats2 = pool_mats(H2, P2H, W2, P2W)
    p2 = []
    for co in range(nf):
        acc = jnp.full((H2, W2), b2_ref[co], dtype=f32)
        for ci in range(nf):
            base = co * nf * 9 + ci * 9
            for t in range(9):
                acc = acc + p1_sl[ci][t] * w2_ref[base + t]
        p2.append(pool2x2(jnp.maximum(acc, 0.0), mats2))       # (5, 5)

    # ---- fc1 + ReLU (NCHW flatten order c*25 + h*5 + w baked into fc1_w) ----
    acc = fc1b_ref[...]                                        # (1, 50)
    for c in range(nf):
        pc = p2[c]
        for h in range(P2H):
            row = pc[h:h + 1, :]                               # (1, 5)
            r0 = (c * P2H + h) * P2W
            wblk = fc1w_ref[r0:r0 + P2W, :]                    # (5, 50)
            acc = acc + jnp.dot(row, wblk, preferred_element_type=f32)
    h_fc = jnp.maximum(acc, 0.0)

    # ---- fc2 ----------------------------------------------------------------
    out = jnp.dot(h_fc, fc2w_ref[...], preferred_element_type=f32) + fc2b_ref[...]
    out_ref[0] = out.astype(out_ref.dtype)                     # (1, n_cls)


# ----------------------------------------------------------------------------
# One-time parameter layout preparation (hoisted out of the forward path)
# ----------------------------------------------------------------------------
def prepare_params(params):
    f32 = jnp.float32
    return {
        "w1": params["conv1_w"].astype(f32).reshape(-1),     # (nf*3*9,)  SMEM
        "b1": params["conv1_b"].astype(f32),                 # (nf,)      SMEM
        "w2": params["conv2_w"].astype(f32).reshape(-1),     # (nf*nf*9,) SMEM
        "b2": params["conv2_b"].astype(f32),                 # (nf,)      SMEM
        # PyTorch Linear stores (out, in); kernel wants (in, out).  Row order
        # of fc1 input features is already NCHW-flatten (c*25 + h*5 + w).
        "fc1_w": params["fc1_w"].astype(f32).T,              # (nf*25, 50)
        "fc1_b": params["fc1_b"].astype(f32).reshape(1, -1), # (1, 50)
        "fc2_w": params["fc2_w"].astype(f32).T,              # (50, 3)
        "fc2_b": params["fc2_b"].astype(f32).reshape(1, -1), # (1, 3)
    }


# ----------------------------------------------------------------------------
# Fused forward (single pallas_call)
# ----------------------------------------------------------------------------
@functools.partial(jax.jit)
def cnn2_forward(prep, x_nchw):
    x = x_nchw.astype(jnp.float32)
    B, C, H, W = x.shape
    n_cls = prep["fc2_w"].shape[1]

    smem = pl.BlockSpec(memory_space=pltpu.MemorySpace.SMEM)
    out3 = pl.pallas_call(
        _cnn2_kernel,
        grid=(B,),
        out_shape=jax.ShapeDtypeStruct((B, 1, n_cls), jnp.float32),
        in_specs=[
            pl.BlockSpec((1, C, H, W), lambda b: (b, 0, 0, 0)),   # x (per batch)
            smem,                                                 # conv1 w
            smem,                                                 # conv1 b
            smem,                                                 # conv2 w
            smem,                                                 # conv2 b
            pl.BlockSpec(prep["fc1_w"].shape, lambda b: (0, 0)),  # fc1 w
            pl.BlockSpec(prep["fc1_b"].shape, lambda b: (0, 0)),  # fc1 b
            pl.BlockSpec(prep["fc2_w"].shape, lambda b: (0, 0)),  # fc2 w
            pl.BlockSpec(prep["fc2_b"].shape, lambda b: (0, 0)),  # fc2 b
        ],
        out_specs=pl.BlockSpec((1, 1, n_cls), lambda b: (b, 0, 0)),
        compiler_params=pltpu.CompilerParams(
            dimension_semantics=("parallel",)),
    )(x, prep["w1"], prep["b1"], prep["w2"], prep["b2"],
      prep["fc1_w"], prep["fc1_b"], prep["fc2_w"], prep["fc2_b"])
    return out3.reshape(B, n_cls)


# ----------------------------------------------------------------------------
# Pure-JAX (XLA) reference for correctness checking
# ----------------------------------------------------------------------------
def cnn2_reference(params, x):
    dn = ("NCHW", "OIHW", "NCHW")
    h = jax.lax.conv_general_dilated(x, params["conv1_w"], (1, 1), "VALID",
                                     dimension_numbers=dn)
    h = jnp.maximum(h + params["conv1_b"].reshape(1, -1, 1, 1), 0.0)
    h = jax.lax.reduce_window(h, -jnp.inf, jax.lax.max,
                              (1, 1, 2, 2), (1, 1, 2, 2), "VALID")
    h = jax.lax.conv_general_dilated(h, params["conv2_w"], (1, 1), "VALID",
                                     dimension_numbers=dn)
    h = jnp.maximum(h + params["conv2_b"].reshape(1, -1, 1, 1), 0.0)
    h = jax.lax.reduce_window(h, -jnp.inf, jax.lax.max,
                              (1, 1, 2, 2), (1, 1, 2, 2), "VALID")
    feat = h.reshape(h.shape[0], -1)                        # NCHW flatten
    h = jnp.maximum(feat @ params["fc1_w"].T + params["fc1_b"], 0.0)
    return h @ params["fc2_w"].T + params["fc2_b"]


# ----------------------------------------------------------------------------
# Deterministic parameter init (PyTorch-style uniform(-1/sqrt(fan_in), +..))
# ----------------------------------------------------------------------------
def init_params(key, n_feature):
    ks = jax.random.split(key, 8)

    def unif(k, shape, fan_in):
        bound = 1.0 / jnp.sqrt(fan_in)
        return jax.random.uniform(k, shape, jnp.float32, -bound, bound)

    return {
        "conv1_w": unif(ks[0], (n_feature, 3, 3, 3), 3 * 3 * 3),
        "conv1_b": unif(ks[1], (n_feature,), 3 * 3 * 3),
        "conv2_w": unif(ks[2], (n_feature, n_feature, 3, 3), n_feature * 9),
        "conv2_b": unif(ks[3], (n_feature,), n_feature * 9),
        "fc1_w": unif(ks[4], (50, n_feature * 5 * 5), n_feature * 25),
        "fc1_b": unif(ks[5], (50,), n_feature * 25),
        "fc2_w": unif(ks[6], (3, 50), 50),
        "fc2_b": unif(ks[7], (3,), 50),
    }


if __name__ == "__main__":
    key = jax.random.PRNGKey(0)
    k_param, k_x = jax.random.split(key)

    n_feature = 4
    batch = 2
    # Two 3x3 valid convs + two 2x2 pools -> 5x5 features implies 28x28 RGB.
    x = jax.random.normal(k_x, (batch, 3, 28, 28), dtype=jnp.float32)

    params = init_params(k_param, n_feature)
    prep = prepare_params(params)           # one-time layout conversion

    out = jax.block_until_ready(cnn2_forward(prep, x))
    assert out.shape == (batch, 3), out.shape

    ref = jax.block_until_ready(cnn2_reference(params, x))
    err = float(jnp.max(jnp.abs(out - ref)))
    assert err < 1e-3, f"mismatch vs XLA reference: max abs err = {err}"

    print("KERNEL_OK")
</pallas_src>

<mosaic_0001>
module attributes {stable_mosaic.version = 11 : i64} {
  func.func @_cnn2_kernel(%arg0: i32, %arg1: memref<1x3x28x28xf32, #tpu.memory_space<vmem>>, %arg2: memref<108xf32, #tpu.memory_space<smem>>, %arg3: memref<4xf32, #tpu.memory_space<smem>>, %arg4: memref<144xf32, #tpu.memory_space<smem>>, %arg5: memref<4xf32, #tpu.memory_space<smem>>, %arg6: memref<100x50xf32, #tpu.memory_space<vmem>>, %arg7: memref<1x50xf32, #tpu.memory_space<vmem>>, %arg8: memref<50x3xf32, #tpu.memory_space<vmem>>, %arg9: memref<1x3xf32, #tpu.memory_space<vmem>>, %arg10: memref<1x1x3xf32, #tpu.memory_space<vmem>>) attributes {dimension_semantics = [#tpu.dimension_semantics<parallel>], iteration_bounds = array<i64: 2>, scalar_prefetch = 0 : i64, scratch_operands = 0 : i64, tpu.core_type = #tpu.core_type<tc>, window_params = [{transform_indices = @transform_0, window_bounds = array<i64: 1, 3, 28, 28>}, {transform_indices = @transform_1, window_bounds = array<i64: 108>}, {transform_indices = @transform_2, window_bounds = array<i64: 4>}, {transform_indices = @transform_3, window_bounds = array<i64: 144>}, {transform_indices = @transform_4, window_bounds = array<i64: 4>}, {pipeline_mode = #tpu.pipeline_mode<synchronous>, transform_indices = @transform_5, window_bounds = array<i64: 100, 50>}, {pipeline_mode = #tpu.pipeline_mode<synchronous>, transform_indices = @transform_6, window_bounds = array<i64: 1, 50>}, {pipeline_mode = #tpu.pipeline_mode<synchronous>, transform_indices = @transform_7, window_bounds = array<i64: 50, 3>}, {pipeline_mode = #tpu.pipeline_mode<synchronous>, transform_indices = @transform_8, window_bounds = array<i64: 1, 3>}, {transform_indices = @transform_9, window_bounds = array<i64: 1, 1, 3>}]} {
    %c0 = arith.constant 0 : index
    %c0_0 = arith.constant 0 : index
    %c0_1 = arith.constant 0 : index
    %c0_2 = arith.constant 0 : index
    %0 = vector.load %arg1[%c0, %c0_0, %c0_1, %c0_2] : memref<1x3x28x28xf32, #tpu.memory_space<vmem>>, vector<1x1x28x28xf32>
    %1 = vector.shape_cast %0 : vector<1x1x28x28xf32> to vector<28x28xf32>
    %2 = vector.extract_strided_slice %1 {offsets = [0, 0], sizes = [26, 26], strides = [1, 1]} : vector<28x28xf32> to vector<26x26xf32>
    %3 = vector.extract_strided_slice %1 {offsets = [0, 1], sizes = [26, 26], strides = [1, 1]} : vector<28x28xf32> to vector<26x26xf32>
    %4 = vector.extract_strided_slice %1 {offsets = [0, 2], sizes = [26, 26], strides = [1, 1]} : vector<28x28xf32> to vector<26x26xf32>
    %5 = vector.extract_strided_slice %1 {offsets = [1, 0], sizes = [26, 26], strides = [1, 1]} : vector<28x28xf32> to vector<26x26xf32>
    %6 = vector.extract_strided_slice %1 {offsets = [1, 1], sizes = [26, 26], strides = [1, 1]} : vector<28x28xf32> to vector<26x26xf32>
    %7 = vector.extract_strided_slice %1 {offsets = [1, 2], sizes = [26, 26], strides = [1, 1]} : vector<28x28xf32> to vector<26x26xf32>
    %8 = vector.extract_strided_slice %1 {offsets = [2, 0], sizes = [26, 26], strides = [1, 1]} : vector<28x28xf32> to vector<26x26xf32>
    %9 = vector.extract_strided_slice %1 {offsets = [2, 1], sizes = [26, 26], strides = [1, 1]} : vector<28x28xf32> to vector<26x26xf32>
    %10 = vector.extract_strided_slice %1 {offsets = [2, 2], sizes = [26, 26], strides = [1, 1]} : vector<28x28xf32> to vector<26x26xf32>
    %c0_3 = arith.constant 0 : index
    %c1 = arith.constant 1 : index
    %c0_4 = arith.constant 0 : index
    %c0_5 = arith.constant 0 : index
    %11 = vector.load %arg1[%c0_3, %c1, %c0_4, %c0_5] : memref<1x3x28x28xf32, #tpu.memory_space<vmem>>, vector<1x1x28x28xf32>
    %12 = vector.shape_cast %11 : vector<1x1x28x28xf32> to vector<28x28xf32>
    %13 = vector.extract_strided_slice %12 {offsets = [0, 0], sizes = [26, 26], strides = [1, 1]} : vector<28x28xf32> to vector<26x26xf32>
    %14 = vector.extract_strided_slice %12 {offsets = [0, 1], sizes = [26, 26], strides = [1, 1]} : vector<28x28xf32> to vector<26x26xf32>
    %15 = vector.extract_strided_slice %12 {offsets = [0, 2], sizes = [26, 26], strides = [1, 1]} : vector<28x28xf32> to vector<26x26xf32>
    %16 = vector.extract_strided_slice %12 {offsets = [1, 0], sizes = [26, 26], strides = [1, 1]} : vector<28x28xf32> to vector<26x26xf32>
    %17 = vector.extract_strided_slice %12 {offsets = [1, 1], sizes = [26, 26], strides = [1, 1]} : vector<28x28xf32> to vector<26x26xf32>
    %18 = vector.extract_strided_slice %12 {offsets = [1, 2], sizes = [26, 26], strides = [1, 1]} : vector<28x28xf32> to vector<26x26xf32>
    %19 = vector.extract_strided_slice %12 {offsets = [2, 0], sizes = [26, 26], strides = [1, 1]} : vector<28x28xf32> to vector<26x26xf32>
    %20 = vector.extract_strided_slice %12 {offsets = [2, 1], sizes = [26, 26], strides = [1, 1]} : vector<28x28xf32> to vector<26x26xf32>
    %21 = vector.extract_strided_slice %12 {offsets = [2, 2], sizes = [26, 26], strides = [1, 1]} : vector<28x28xf32> to vector<26x26xf32>
    %c0_6 = arith.constant 0 : index
    %c2 = arith.constant 2 : index
    %c0_7 = arith.constant 0 : index
    %c0_8 = arith.constant 0 : index
    %22 = vector.load %arg1[%c0_6, %c2, %c0_7, %c0_8] : memref<1x3x28x28xf32, #tpu.memory_space<vmem>>, vector<1x1x28x28xf32>
    %23 = vector.shape_cast %22 : vector<1x1x28x28xf32> to vector<28x28xf32>
    %24 = vector.extract_strided_slice %23 {offsets = [0, 0], sizes = [26, 26], strides = [1, 1]} : vector<28x28xf32> to vector<26x26xf32>
    %25 = vector.extract_strided_slice %23 {offsets = [0, 1], sizes = [26, 26], strides = [1, 1]} : vector<28x28xf32> to vector<26x26xf32>
    %26 = vector.extract_strided_slice %23 {offsets = [0, 2], sizes = [26, 26], strides = [1, 1]} : vector<28x28xf32> to vector<26x26xf32>
    %27 = vector.extract_strided_slice %23 {offsets = [1, 0], sizes = [26, 26], strides = [1, 1]} : vector<28x28xf32> to vector<26x26xf32>
    %28 = vector.extract_strided_slice %23 {offsets = [1, 1], sizes = [26, 26], strides = [1, 1]} : vector<28x28xf32> to vector<26x26xf32>
    %29 = vector.extract_strided_slice %23 {offsets = [1, 2], sizes = [26, 26], strides = [1, 1]} : vector<28x28xf32> to vector<26x26xf32>
    %30 = vector.extract_strided_slice %23 {offsets = [2, 0], sizes = [26, 26], strides = [1, 1]} : vector<28x28xf32> to vector<26x26xf32>
    %31 = vector.extract_strided_slice %23 {offsets = [2, 1], sizes = [26, 26], strides = [1, 1]} : vector<28x28xf32> to vector<26x26xf32>
    %32 = vector.extract_strided_slice %23 {offsets = [2, 2], sizes = [26, 26], strides = [1, 1]} : vector<28x28xf32> to vector<26x26xf32>
    %33 = tpu.iota {dimensions = array<i32: 0>} : vector<13x26xi32>
    %34 = tpu.iota {dimensions = array<i32: 1>} : vector<13x26xi32>
    %c2_i32 = arith.constant 2 : i32
    %35 = vector.broadcast %c2_i32 : i32 to vector<13x26xi32>
    %36 = arith.muli %35, %33 : vector<13x26xi32>
    %37 = arith.cmpi eq, %34, %36 : vector<13x26xi32>
    %38 = arith.extui %37 : vector<13x26xi1> to vector<13x26xi32>
    %39 = arith.sitofp %38 : vector<13x26xi32> to vector<13x26xf32>
    %c2_i32_9 = arith.constant 2 : i32
    %40 = vector.broadcast %c2_i32_9 : i32 to vector<13x26xi32>
    %41 = arith.muli %40, %33 : vector<13x26xi32>
    %c1_i32 = arith.constant 1 : i32
    %42 = vector.broadcast %c1_i32 : i32 to vector<13x26xi32>
    %43 = arith.addi %41, %42 : vector<13x26xi32>
    %44 = arith.cmpi eq, %34, %43 : vector<13x26xi32>
    %45 = arith.extui %44 : vector<13x26xi1> to vector<13x26xi32>
    %46 = arith.sitofp %45 : vector<13x26xi32> to vector<13x26xf32>
    %47 = tpu.iota {dimensions = array<i32: 0>} : vector<26x13xi32>
    %48 = tpu.iota {dimensions = array<i32: 1>} : vector<26x13xi32>
    %c2_i32_10 = arith.constant 2 : i32
    %49 = vector.broadcast %c2_i32_10 : i32 to vector<26x13xi32>
    %50 = arith.muli %49, %48 : vector<26x13xi32>
    %51 = arith.cmpi eq, %47, %50 : vector<26x13xi32>
    %52 = arith.extui %51 : vector<26x13xi1> to vector<26x13xi32>
    %53 = arith.sitofp %52 : vector<26x13xi32> to vector<26x13xf32>
    %c2_i32_11 = arith.constant 2 : i32
    %54 = vector.broadcast %c2_i32_11 : i32 to vector<26x13xi32>
    %55 = arith.muli %54, %48 : vector<26x13xi32>
    %c1_i32_12 = arith.constant 1 : i32
    %56 = vector.broadcast %c1_i32_12 : i32 to vector<26x13xi32>
    %57 = arith.addi %55, %56 : vector<26x13xi32>
    %58 = arith.cmpi eq, %47, %57 : vector<26x13xi32>
    %59 = arith.extui %58 : vector<26x13xi1> to vector<26x13xi32>
    %60 = arith.sitofp %59 : vector<26x13xi32> to vector<26x13xf32>
    %c0_13 = arith.constant 0 : index
    %61 = memref.load %arg3[%c0_13] : memref<4xf32, #tpu.memory_space<smem>>
    %62 = vector.broadcast %61 : f32 to vector<26x26xf32>
    %c0_14 = arith.constant 0 : index
    %63 = memref.load %arg2[%c0_14] : memref<108xf32, #tpu.memory_space<smem>>
    %64 = vector.broadcast %63 : f32 to vector<26x26xf32>
    %65 = arith.mulf %2, %64 : vector<26x26xf32>
    %66 = arith.addf %62, %65 : vector<26x26xf32>
    %c1_15 = arith.constant 1 : index
    %67 = memref.load %arg2[%c1_15] : memref<108xf32, #tpu.memory_space<smem>>
    %68 = vector.broadcast %67 : f32 to vector<26x26xf32>
    %69 = arith.mulf %3, %68 : vector<26x26xf32>
    %70 = arith.addf %66, %69 : vector<26x26xf32>
    %c2_16 = arith.constant 2 : index
    %71 = memref.load %arg2[%c2_16] : memref<108xf32, #tpu.memory_space<smem>>
    %72 = vector.broadcast %71 : f32 to vector<26x26xf32>
    %73 = arith.mulf %4, %72 : vector<26x26xf32>
    %74 = arith.addf %70, %73 : vector<26x26xf32>
    %c3 = arith.constant 3 : index
    %75 = memref.load %arg2[%c3] : memref<108xf32, #tpu.memory_space<smem>>
    %76 = vector.broadcast %75 : f32 to vector<26x26xf32>
    %77 = arith.mulf %5, %76 : vector<26x26xf32>
    %78 = arith.addf %74, %77 : vector<26x26xf32>
    %c4 = arith.constant 4 : index
    %79 = memref.load %arg2[%c4] : memref<108xf32, #tpu.memory_space<smem>>
    %80 = vector.broadcast %79 : f32 to vector<26x26xf32>
    %81 = arith.mulf %6, %80 : vector<26x26xf32>
    %82 = arith.addf %78, %81 : vector<26x26xf32>
    %c5 = arith.constant 5 : index
    %83 = memref.load %arg2[%c5] : memref<108xf32, #tpu.memory_space<smem>>
    %84 = vector.broadcast %83 : f32 to vector<26x26xf32>
    %85 = arith.mulf %7, %84 : vector<26x26xf32>
    %86 = arith.addf %82, %85 : vector<26x26xf32>
    %c6 = arith.constant 6 : index
    %87 = memref.load %arg2[%c6] : memref<108xf32, #tpu.memory_space<smem>>
    %88 = vector.broadcast %87 : f32 to vector<26x26xf32>
    %89 = arith.mulf %8, %88 : vector<26x26xf32>
    %90 = arith.addf %86, %89 : vector<26x26xf32>
    %c7 = arith.constant 7 : index
    %91 = memref.load %arg2[%c7] : memref<108xf32, #tpu.memory_space<smem>>
    %92 = vector.broadcast %91 : f32 to vector<26x26xf32>
    %93 = arith.mulf %9, %92 : vector<26x26xf32>
    %94 = arith.addf %90, %93 : vector<26x26xf32>
    %c8 = arith.constant 8 : index
    %95 = memref.load %arg2[%c8] : memref<108xf32, #tpu.memory_space<smem>>
    %96 = vector.broadcast %95 : f32 to vector<26x26xf32>
    %97 = arith.mulf %10, %96 : vector<26x26xf32>
    %98 = arith.addf %94, %97 : vector<26x26xf32>
    %c9 = arith.constant 9 : index
    %99 = memref.load %arg2[%c9] : memref<108xf32, #tpu.memory_space<smem>>
    %100 = vector.broadcast %99 : f32 to vector<26x26xf32>
    %101 = arith.mulf %13, %100 : vector<26x26xf32>
    %102 = arith.addf %98, %101 : vector<26x26xf32>
    %c10 = arith.constant 10 : index
    %103 = memref.load %arg2[%c10] : memref<108xf32, #tpu.memory_space<smem>>
    %104 = vector.broadcast %103 : f32 to vector<26x26xf32>
    %105 = arith.mulf %14, %104 : vector<26x26xf32>
    %106 = arith.addf %102, %105 : vector<26x26xf32>
    %c11 = arith.constant 11 : index
    %107 = memref.load %arg2[%c11] : memref<108xf32, #tpu.memory_space<smem>>
    %108 = vector.broadcast %107 : f32 to vector<26x26xf32>
    %109 = arith.mulf %15, %108 : vector<26x26xf32>
    %110 = arith.addf %106, %109 : vector<26x26xf32>
    %c12 = arith.constant 12 : index
    %111 = memref.load %arg2[%c12] : memref<108xf32, #tpu.memory_space<smem>>
    %112 = vector.broadcast %111 : f32 to vector<26x26xf32>
    %113 = arith.mulf %16, %112 : vector<26x26xf32>
    %114 = arith.addf %110, %113 : vector<26x26xf32>
    %c13 = arith.constant 13 : index
    %115 = memref.load %arg2[%c13] : memref<108xf32, #tpu.memory_space<smem>>
    %116 = vector.broadcast %115 : f32 to vector<26x26xf32>
    %117 = arith.mulf %17, %116 : vector<26x26xf32>
    %118 = arith.addf %114, %117 : vector<26x26xf32>
    %c14 = arith.constant 14 : index
    %119 = memref.load %arg2[%c14] : memref<108xf32, #tpu.memory_space<smem>>
    %120 = vector.broadcast %119 : f32 to vector<26x26xf32>
    %121 = arith.mulf %18, %120 : vector<26x26xf32>
    %122 = arith.addf %118, %121 : vector<26x26xf32>
    %c15 = arith.constant 15 : index
    %123 = memref.load %arg2[%c15] : memref<108xf32, #tpu.memory_space<smem>>
    %124 = vector.broadcast %123 : f32 to vector<26x26xf32>
    %125 = arith.mulf %19, %124 : vector<26x26xf32>
    %126 = arith.addf %122, %125 : vector<26x26xf32>
    %c16 = arith.constant 16 : index
    %127 = memref.load %arg2[%c16] : memref<108xf32, #tpu.memory_space<smem>>
    %128 = vector.broadcast %127 : f32 to vector<26x26xf32>
    %129 = arith.mulf %20, %128 : vector<26x26xf32>
    %130 = arith.addf %126, %129 : vector<26x26xf32>
    %c17 = arith.constant 17 : index
    %131 = memref.load %arg2[%c17] : memref<108xf32, #tpu.memory_space<smem>>
    %132 = vector.broadcast %131 : f32 to vector<26x26xf32>
    %133 = arith.mulf %21, %132 : vector<26x26xf32>
    %134 = arith.addf %130, %133 : vector<26x26xf32>
    %c18 = arith.constant 18 : index
    %135 = memref.load %arg2[%c18] : memref<108xf32, #tpu.memory_space<smem>>
    %136 = vector.broadcast %135 : f32 to vector<26x26xf32>
    %137 = arith.mulf %24, %136 : vector<26x26xf32>
    %138 = arith.addf %134, %137 : vector<26x26xf32>
    %c19 = arith.constant 19 : index
    %139 = memref.load %arg2[%c19] : memref<108xf32, #tpu.memory_space<smem>>
    %140 = vector.broadcast %139 : f32 to vector<26x26xf32>
    %141 = arith.mulf %25, %140 : vector<26x26xf32>
    %142 = arith.addf %138, %141 : vector<26x26xf32>
    %c20 = arith.constant 20 : index
    %143 = memref.load %arg2[%c20] : memref<108xf32, #tpu.memory_space<smem>>
    %144 = vector.broadcast %143 : f32 to vector<26x26xf32>
    %145 = arith.mulf %26, %144 : vector<26x26xf32>
    %146 = arith.addf %142, %145 : vector<26x26xf32>
    %c21 = arith.constant 21 : index
    %147 = memref.load %arg2[%c21] : memref<108xf32, #tpu.memory_space<smem>>
    %148 = vector.broadcast %147 : f32 to vector<26x26xf32>
    %149 = arith.mulf %27, %148 : vector<26x26xf32>
    %150 = arith.addf %146, %149 : vector<26x26xf32>
    %c22 = arith.constant 22 : index
    %151 = memref.load %arg2[%c22] : memref<108xf32, #tpu.memory_space<smem>>
    %152 = vector.broadcast %151 : f32 to vector<26x26xf32>
    %153 = arith.mulf %28, %152 : vector<26x26xf32>
    %154 = arith.addf %150, %153 : vector<26x26xf32>
    %c23 = arith.constant 23 : index
    %155 = memref.load %arg2[%c23] : memref<108xf32, #tpu.memory_space<smem>>
    %156 = vector.broadcast %155 : f32 to vector<26x26xf32>
    %157 = arith.mulf %29, %156 : vector<26x26xf32>
    %158 = arith.addf %154, %157 : vector<26x26xf32>
    %c24 = arith.constant 24 : index
    %159 = memref.load %arg2[%c24] : memref<108xf32, #tpu.memory_space<smem>>
    %160 = vector.broadcast %159 : f32 to vector<26x26xf32>
    %161 = arith.mulf %30, %160 : vector<26x26xf32>
    %162 = arith.addf %158, %161 : vector<26x26xf32>
    %c25 = arith.constant 25 : index
    %163 = memref.load %arg2[%c25] : memref<108xf32, #tpu.memory_space<smem>>
    %164 = vector.broadcast %163 : f32 to vector<26x26xf32>
    %165 = arith.mulf %31, %164 : vector<26x26xf32>
    %166 = arith.addf %162, %165 : vector<26x26xf32>
    %c26 = arith.constant 26 : index
    %167 = memref.load %arg2[%c26] : memref<108xf32, #tpu.memory_space<smem>>
    %168 = vector.broadcast %167 : f32 to vector<26x26xf32>
    %169 = arith.mulf %32, %168 : vector<26x26xf32>
    %170 = arith.addf %166, %169 : vector<26x26xf32>
    %cst = arith.constant 0.000000e+00 : f32
    %171 = vector.broadcast %cst : f32 to vector<26x26xf32>
    %172 = arith.maximumf %170, %171 : vector<26x26xf32>
    %cst_17 = arith.constant dense<0.000000e+00> : vector<13x26xf32>
    %173 = tpu.matmul %39, %172, %cst_17 {dimension_numbers = #tpu.dot_dimension_numbers<[1], [0], [0], [1], [0, 0, 1, 1], [], []>} : vector<13x26xf32>, vector<26x26xf32>, vector<13x26xf32> -> vector<13x26xf32>
    %cst_18 = arith.constant dense<0.000000e+00> : vector<13x26xf32>
    %174 = tpu.matmul %46, %172, %cst_18 {dimension_numbers = #tpu.dot_dimension_numbers<[1], [0], [0], [1], [0, 0, 1, 1], [], []>} : vector<13x26xf32>, vector<26x26xf32>, vector<13x26xf32> -> vector<13x26xf32>
    %175 = arith.maximumf %173, %174 : vector<13x26xf32>
    %cst_19 = arith.constant dense<0.000000e+00> : vector<13x13xf32>
    %176 = tpu.matmul %175, %53, %cst_19 {dimension_numbers = #tpu.dot_dimension_numbers<[1], [0], [0], [1], [0, 0, 1, 1], [], []>} : vector<13x26xf32>, vector<26x13xf32>, vector<13x13xf32> -> vector<13x13xf32>
    %cst_20 = arith.constant dense<0.000000e+00> : vector<13x13xf32>
    %177 = tpu.matmul %175, %60, %cst_20 {dimension_numbers = #tpu.dot_dimension_numbers<[1], [0], [0], [1], [0, 0, 1, 1], [], []>} : vector<13x26xf32>, vector<26x13xf32>, vector<13x13xf32> -> vector<13x13xf32>
    %178 = arith.maximumf %176, %177 : vector<13x13xf32>
    %c1_21 = arith.constant 1 : index
    %179 = memref.load %arg3[%c1_21] : memref<4xf32, #tpu.memory_space<smem>>
    %180 = vector.broadcast %179 : f32 to vector<26x26xf32>
    %c27 = arith.constant 27 : index
    %181 = memref.load %arg2[%c27] : memref<108xf32, #tpu.memory_space<smem>>
    %182 = vector.broadcast %181 : f32 to vector<26x26xf32>
    %183 = arith.mulf %2, %182 : vector<26x26xf32>
    %184 = arith.addf %180, %183 : vector<26x26xf32>
    %c28 = arith.constant 28 : index
    %185 = memref.load %arg2[%c28] : memref<108xf32, #tpu.memory_space<smem>>
    %186 = vector.broadcast %185 : f32 to vector<26x26xf32>
    %187 = arith.mulf %3, %186 : vector<26x26xf32>
    %188 = arith.addf %184, %187 : vector<26x26xf32>
    %c29 = arith.constant 29 : index
    %189 = memref.load %arg2[%c29] : memref<108xf32, #tpu.memory_space<smem>>
    %190 = vector.broadcast %189 : f32 to vector<26x26xf32>
    %191 = arith.mulf %4, %190 : vector<26x26xf32>
    %192 = arith.addf %188, %191 : vector<26x26xf32>
    %c30 = arith.constant 30 : index
    %193 = memref.load %arg2[%c30] : memref<108xf32, #tpu.memory_space<smem>>
    %194 = vector.broadcast %193 : f32 to vector<26x26xf32>
    %195 = arith.mulf %5, %194 : vector<26x26xf32>
    %196 = arith.addf %192, %195 : vector<26x26xf32>
    %c31 = arith.constant 31 : index
    %197 = memref.load %arg2[%c31] : memref<108xf32, #tpu.memory_space<smem>>
    %198 = vector.broadcast %197 : f32 to vector<26x26xf32>
    %199 = arith.mulf %6, %198 : vector<26x26xf32>
    %200 = arith.addf %196, %199 : vector<26x26xf32>
    %c32 = arith.constant 32 : index
    %201 = memref.load %arg2[%c32] : memref<108xf32, #tpu.memory_space<smem>>
    %202 = vector.broadcast %201 : f32 to vector<26x26xf32>
    %203 = arith.mulf %7, %202 : vector<26x26xf32>
    %204 = arith.addf %200, %203 : vector<26x26xf32>
    %c33 = arith.constant 33 : index
    %205 = memref.load %arg2[%c33] : memref<108xf32, #tpu.memory_space<smem>>
    %206 = vector.broadcast %205 : f32 to vector<26x26xf32>
    %207 = arith.mulf %8, %206 : vector<26x26xf32>
    %208 = arith.addf %204, %207 : vector<26x26xf32>
    %c34 = arith.constant 34 : index
    %209 = memref.load %arg2[%c34] : memref<108xf32, #tpu.memory_space<smem>>
    %210 = vector.broadcast %209 : f32 to vector<26x26xf32>
    %211 = arith.mulf %9, %210 : vector<26x26xf32>
    %212 = arith.addf %208, %211 : vector<26x26xf32>
    %c35 = arith.constant 35 : index
    %213 = memref.load %arg2[%c35] : memref<108xf32, #tpu.memory_space<smem>>
    %214 = vector.broadcast %213 : f32 to vector<26x26xf32>
    %215 = arith.mulf %10, %214 : vector<26x26xf32>
    %216 = arith.addf %212, %215 : vector<26x26xf32>
    %c36 = arith.constant 36 : index
    %217 = memref.load %arg2[%c36] : memref<108xf32, #tpu.memory_space<smem>>
    %218 = vector.broadcast %217 : f32 to vector<26x26xf32>
    %219 = arith.mulf %13, %218 : vector<26x26xf32>
    %220 = arith.addf %216, %219 : vector<26x26xf32>
    %c37 = arith.constant 37 : index
    %221 = memref.load %arg2[%c37] : memref<108xf32, #tpu.memory_space<smem>>
    %222 = vector.broadcast %221 : f32 to vector<26x26xf32>
    %223 = arith.mulf %14, %222 : vector<26x26xf32>
    %224 = arith.addf %220, %223 : vector<26x26xf32>
    %c38 = arith.constant 38 : index
    %225 = memref.load %arg2[%c38] : memref<108xf32, #tpu.memory_space<smem>>
    %226 = vector.broadcast %225 : f32 to vector<26x26xf32>
    %227 = arith.mulf %15, %226 : vector<26x26xf32>
    %228 = arith.addf %224, %227 : vector<26x26xf32>
    %c39 = arith.constant 39 : index
    %229 = memref.load %arg2[%c39] : memref<108xf32, #tpu.memory_space<smem>>
    %230 = vector.broadcast %229 : f32 to vector<26x26xf32>
    %231 = arith.mulf %16, %230 : vector<26x26xf32>
    %232 = arith.addf %228, %231 : vector<26x26xf32>
    %c40 = arith.constant 40 : index
    %233 = memref.load %arg2[%c40] : memref<108xf32, #tpu.memory_space<smem>>
    %234 = vector.broadcast %233 : f32 to vector<26x26xf32>
    %235 = arith.mulf %17, %234 : vector<26x26xf32>
    %236 = arith.addf %232, %235 : vector<26x26xf32>
    %c41 = arith.constant 41 : index
    %237 = memref.load %arg2[%c41] : memref<108xf32, #tpu.memory_space<smem>>
    %238 = vector.broadcast %237 : f32 to vector<26x26xf32>
    %239 = arith.mulf %18, %238 : vector<26x26xf32>
    %240 = arith.addf %236, %239 : vector<26x26xf32>
    %c42 = arith.constant 42 : index
    %241 = memref.load %arg2[%c42] : memref<108xf32, #tpu.memory_space<smem>>
    %242 = vector.broadcast %241 : f32 to vector<26x26xf32>
    %243 = arith.mulf %19, %242 : vector<26x26xf32>
    %244 = arith.addf %240, %243 : vector<26x26xf32>
    %c43 = arith.constant 43 : index
    %245 = memref.load %arg2[%c43] : memref<108xf32, #tpu.memory_space<smem>>
    %246 = vector.broadcast %245 : f32 to vector<26x26xf32>
    %247 = arith.mulf %20, %246 : vector<26x26xf32>
    %248 = arith.addf %244, %247 : vector<26x26xf32>
    %c44 = arith.constant 44 : index
    %249 = memref.load %arg2[%c44] : memref<108xf32, #tpu.memory_space<smem>>
    %250 = vector.broadcast %249 : f32 to vector<26x26xf32>
    %251 = arith.mulf %21, %250 : vector<26x26xf32>
    %252 = arith.addf %248, %251 : vector<26x26xf32>
    %c45 = arith.constant 45 : index
    %253 = memref.load %arg2[%c45] : memref<108xf32, #tpu.memory_space<smem>>
    %254 = vector.broadcast %253 : f32 to vector<26x26xf32>
    %255 = arith.mulf %24, %254 : vector<26x26xf32>
    %256 = arith.addf %252, %255 : vector<26x26xf32>
    %c46 = arith.constant 46 : index
    %257 = memref.load %arg2[%c46] : memref<108xf32, #tpu.memory_space<smem>>
    %258 = vector.broadcast %257 : f32 to vector<26x26xf32>
    %259 = arith.mulf %25, %258 : vector<26x26xf32>
    %260 = arith.addf %256, %259 : vector<26x26xf32>
    %c47 = arith.constant 47 : index
    %261 = memref.load %arg2[%c47] : memref<108xf32, #tpu.memory_space<smem>>
    %262 = vector.broadcast %261 : f32 to vector<26x26xf32>
    %263 = arith.mulf %26, %262 : vector<26x26xf32>
    %264 = arith.addf %260, %263 : vector<26x26xf32>
    %c48 = arith.constant 48 : index
    %265 = memref.load %arg2[%c48] : memref<108xf32, #tpu.memory_space<smem>>
    %266 = vector.broadcast %265 : f32 to vector<26x26xf32>
    %267 = arith.mulf %27, %266 : vector<26x26xf32>
    %268 = arith.addf %264, %267 : vector<26x26xf32>
    %c49 = arith.constant 49 : index
    %269 = memref.load %arg2[%c49] : memref<108xf32, #tpu.memory_space<smem>>
    %270 = vector.broadcast %269 : f32 to vector<26x26xf32>
    %271 = arith.mulf %28, %270 : vector<26x26xf32>
    %272 = arith.addf %268, %271 : vector<26x26xf32>
    %c50 = arith.constant 50 : index
    %273 = memref.load %arg2[%c50] : memref<108xf32, #tpu.memory_space<smem>>
    %274 = vector.broadcast %273 : f32 to vector<26x26xf32>
    %275 = arith.mulf %29, %274 : vector<26x26xf32>
    %276 = arith.addf %272, %275 : vector<26x26xf32>
    %c51 = arith.constant 51 : index
    %277 = memref.load %arg2[%c51] : memref<108xf32, #tpu.memory_space<smem>>
    %278 = vector.broadcast %277 : f32 to vector<26x26xf32>
    %279 = arith.mulf %30, %278 : vector<26x26xf32>
    %280 = arith.addf %276, %279 : vector<26x26xf32>
    %c52 = arith.constant 52 : index
    %281 = memref.load %arg2[%c52] : memref<108xf32, #tpu.memory_space<smem>>
    %282 = vector.broadcast %281 : f32 to vector<26x26xf32>
    %283 = arith.mulf %31, %282 : vector<26x26xf32>
    %284 = arith.addf %280, %283 : vector<26x26xf32>
    %c53 = arith.constant 53 : index
    %285 = memref.load %arg2[%c53] : memref<108xf32, #tpu.memory_space<smem>>
    %286 = vector.broadcast %285 : f32 to vector<26x26xf32>
    %287 = arith.mulf %32, %286 : vector<26x26xf32>
    %288 = arith.addf %284, %287 : vector<26x26xf32>
    %cst_22 = arith.constant 0.000000e+00 : f32
    %289 = vector.broadcast %cst_22 : f32 to vector<26x26xf32>
    %290 = arith.maximumf %288, %289 : vector<26x26xf32>
    %cst_23 = arith.constant dense<0.000000e+00> : vector<13x26xf32>
    %291 = tpu.matmul %39, %290, %cst_23 {dimension_numbers = #tpu.dot_dimension_numbers<[1], [0], [0], [1], [0, 0, 1, 1], [], []>} : vector<13x26xf32>, vector<26x26xf32>, vector<13x26xf32> -> vector<13x26xf32>
    %cst_24 = arith.constant dense<0.000000e+00> : vector<13x26xf32>
    %292 = tpu.matmul %46, %290, %cst_24 {dimension_numbers = #tpu.dot_dimension_numbers<[1], [0], [0], [1], [0, 0, 1, 1], [], []>} : vector<13x26xf32>, vector<26x26xf32>, vector<13x26xf32> -> vector<13x26xf32>
    %293 = arith.maximumf %291, %292 : vector<13x26xf32>
    %cst_25 = arith.constant dense<0.000000e+00> : vector<13x13xf32>
    %294 = tpu.matmul %293, %53, %cst_25 {dimension_numbers = #tpu.dot_dimension_numbers<[1], [0], [0], [1], [0, 0, 1, 1], [], []>} : vector<13x26xf32>, vector<26x13xf32>, vector<13x13xf32> -> vector<13x13xf32>
    %cst_26 = arith.constant dense<0.000000e+00> : vector<13x13xf32>
    %295 = tpu.matmul %293, %60, %cst_26 {dimension_numbers = #tpu.dot_dimension_numbers<[1], [0], [0], [1], [0, 0, 1, 1], [], []>} : vector<13x26xf32>, vector<26x13xf32>, vector<13x13xf32> -> vector<13x13xf32>
    %296 = arith.maximumf %294, %295 : vector<13x13xf32>
    %c2_27 = arith.constant 2 : index
    %297 = memref.load %arg3[%c2_27] : memref<4xf32, #tpu.memory_space<smem>>
    %298 = vector.broadcast %297 : f32 to vector<26x26xf32>
    %c54 = arith.constant 54 : index
    %299 = memref.load %arg2[%c54] : memref<108xf32, #tpu.memory_space<smem>>
    %300 = vector.broadcast %299 : f32 to vector<26x26xf32>
    %301 = arith.mulf %2, %300 : vector<26x26xf32>
    %302 = arith.addf %298, %301 : vector<26x26xf32>
    %c55 = arith.constant 55 : index
    %303 = memref.load %arg2[%c55] : memref<108xf32, #tpu.memory_space<smem>>
    %304 = vector.broadcast %303 : f32 to vector<26x26xf32>
    %305 = arith.mulf %3, %304 : vector<26x26xf32>
    %306 = arith.addf %302, %305 : vector<26x26xf32>
    %c56 = arith.constant 56 : index
    %307 = memref.load %arg2[%c56] : memref<108xf32, #tpu.memory_space<smem>>
    %308 = vector.broadcast %307 : f32 to vector<26x26xf32>
    %309 = arith.mulf %4, %308 : vector<26x26xf32>
    %310 = arith.addf %306, %309 : vector<26x26xf32>
    %c57 = arith.constant 57 : index
    %311 = memref.load %arg2[%c57] : memref<108xf32, #tpu.memory_space<smem>>
    %312 = vector.broadcast %311 : f32 to vector<26x26xf32>
    %313 = arith.mulf %5, %312 : vector<26x26xf32>
    %314 = arith.addf %310, %313 : vector<26x26xf32>
    %c58 = arith.constant 58 : index
    %315 = memref.load %arg2[%c58] : memref<108xf32, #tpu.memory_space<smem>>
    %316 = vector.broadcast %315 : f32 to vector<26x26xf32>
    %317 = arith.mulf %6, %316 : vector<26x26xf32>
    %318 = arith.addf %314, %317 : vector<26x26xf32>
    %c59 = arith.constant 59 : index
    %319 = memref.load %arg2[%c59] : memref<108xf32, #tpu.memory_space<smem>>
    %320 = vector.broadcast %319 : f32 to vector<26x26xf32>
    %321 = arith.mulf %7, %320 : vector<26x26xf32>
    %322 = arith.addf %318, %321 : vector<26x26xf32>
    %c60 = arith.constant 60 : index
    %323 = memref.load %arg2[%c60] : memref<108xf32, #tpu.memory_space<smem>>
    %324 = vector.broadcast %323 : f32 to vector<26x26xf32>
    %325 = arith.mulf %8, %324 : vector<26x26xf32>
    %326 = arith.addf %322, %325 : vector<26x26xf32>
    %c61 = arith.constant 61 : index
    %327 = memref.load %arg2[%c61] : memref<108xf32, #tpu.memory_space<smem>>
    %328 = vector.broadcast %327 : f32 to vector<26x26xf32>
    %329 = arith.mulf %9, %328 : vector<26x26xf32>
    %330 = arith.addf %326, %329 : vector<26x26xf32>
    %c62 = arith.constant 62 : index
    %331 = memref.load %arg2[%c62] : memref<108xf32, #tpu.memory_space<smem>>
    %332 = vector.broadcast %331 : f32 to vector<26x26xf32>
    %333 = arith.mulf %10, %332 : vector<26x26xf32>
    %334 = arith.addf %330, %333 : vector<26x26xf32>
    %c63 = arith.constant 63 : index
    %335 = memref.load %arg2[%c63] : memref<108xf32, #tpu.memory_space<smem>>
    %336 = vector.broadcast %335 : f32 to vector<26x26xf32>
    %337 = arith.mulf %13, %336 : vector<26x26xf32>
    %338 = arith.addf %334, %337 : vector<26x26xf32>
    %c64 = arith.constant 64 : index
    %339 = memref.load %arg2[%c64] : memref<108xf32, #tpu.memory_space<smem>>
    %340 = vector.broadcast %339 : f32 to vector<26x26xf32>
    %341 = arith.mulf %14, %340 : vector<26x26xf32>
    %342 = arith.addf %338, %341 : vector<26x26xf32>
    %c65 = arith.constant 65 : index
    %343 = memref.load %arg2[%c65] : memref<108xf32, #tpu.memory_space<smem>>
    %344 = vector.broadcast %343 : f32 to vector<26x26xf32>
    %345 = arith.mulf %15, %344 : vector<26x26xf32>
    %346 = arith.addf %342, %345 : vector<26x26xf32>
    %c66 = arith.constant 66 : index
    %347 = memref.load %arg2[%c66] : memref<108xf32, #tpu.memory_space<smem>>
    %348 = vector.broadcast %347 : f32 to vector<26x26xf32>
    %349 = arith.mulf %16, %348 : vector<26x26xf32>
    %350 = arith.addf %346, %349 : vector<26x26xf32>
    %c67 = arith.constant 67 : index
    %351 = memref.load %arg2[%c67] : memref<108xf32, #tpu.memory_space<smem>>
    %352 = vector.broadcast %351 : f32 to vector<26x26xf32>
    %353 = arith.mulf %17, %352 : vector<26x26xf32>
    %354 = arith.addf %350, %353 : vector<26x26xf32>
    %c68 = arith.constant 68 : index
    %355 = memref.load %arg2[%c68] : memref<108xf32, #tpu.memory_space<smem>>
    %356 = vector.broadcast %355 : f32 to vector<26x26xf32>
    %357 = arith.mulf %18, %356 : vector<26x26xf32>
    %358 = arith.addf %354, %357 : vector<26x26xf32>
    %c69 = arith.constant 69 : index
    %359 = memref.load %arg2[%c69] : memref<108xf32, #tpu.memory_space<smem>>
    %360 = vector.broadcast %359 : f32 to vector<26x26xf32>
    %361 = arith.mulf %19, %360 : vector<26x26xf32>
    %362 = arith.addf %358, %361 : vector<26x26xf32>
    %c70 = arith.constant 70 : index
    %363 = memref.load %arg2[%c70] : memref<108xf32, #tpu.memory_space<smem>>
    %364 = vector.broadcast %363 : f32 to vector<26x26xf32>
    %365 = arith.mulf %20, %364 : vector<26x26xf32>
    %366 = arith.addf %362, %365 : vector<26x26xf32>
    %c71 = arith.constant 71 : index
    %367 = memref.load %arg2[%c71] : memref<108xf32, #tpu.memory_space<smem>>
    %368 = vector.broadcast %367 : f32 to vector<26x26xf32>
    %369 = arith.mulf %21, %368 : vector<26x26xf32>
    %370 = arith.addf %366, %369 : vector<26x26xf32>
    %c72 = arith.constant 72 : index
    %371 = memref.load %arg2[%c72] : memref<108xf32, #tpu.memory_space<smem>>
    %372 = vector.broadcast %371 : f32 to vector<26x26xf32>
    %373 = arith.mulf %24, %372 : vector<26x26xf32>
    %374 = arith.addf %370, %373 : vector<26x26xf32>
    %c73 = arith.constant 73 : index
    %375 = memref.load %arg2[%c73] : memref<108xf32, #tpu.memory_space<smem>>
    %376 = vector.broadcast %375 : f32 to vector<26x26xf32>
    %377 = arith.mulf %25, %376 : vector<26x26xf32>
    %378 = arith.addf %374, %377 : vector<26x26xf32>
    %c74 = arith.constant 74 : index
    %379 = memref.load %arg2[%c74] : memref<108xf32, #tpu.memory_space<smem>>
    %380 = vector.broadcast %379 : f32 to vector<26x26xf32>
    %381 = arith.mulf %26, %380 : vector<26x26xf32>
    %382 = arith.addf %378, %381 : vector<26x26xf32>
    %c75 = arith.constant 75 : index
    %383 = memref.load %arg2[%c75] : memref<108xf32, #tpu.memory_space<smem>>
    %384 = vector.broadcast %383 : f32 to vector<26x26xf32>
    %385 = arith.mulf %27, %384 : vector<26x26xf32>
    %386 = arith.addf %382, %385 : vector<26x26xf32>
    %c76 = arith.constant 76 : index
    %387 = memref.load %arg2[%c76] : memref<108xf32, #tpu.memory_space<smem>>
    %388 = vector.broadcast %387 : f32 to vector<26x26xf32>
    %389 = arith.mulf %28, %388 : vector<26x26xf32>
    %390 = arith.addf %386, %389 : vector<26x26xf32>
    %c77 = arith.constant 77 : index
    %391 = memref.load %arg2[%c77] : memref<108xf32, #tpu.memory_space<smem>>
    %392 = vector.broadcast %391 : f32 to vector<26x26xf32>
    %393 = arith.mulf %29, %392 : vector<26x26xf32>
    %394 = arith.addf %390, %393 : vector<26x26xf32>
    %c78 = arith.constant 78 : index
    %395 = memref.load %arg2[%c78] : memref<108xf32, #tpu.memory_space<smem>>
    %396 = vector.broadcast %395 : f32 to vector<26x26xf32>
    %397 = arith.mulf %30, %396 : vector<26x26xf32>
    %398 = arith.addf %394, %397 : vector<26x26xf32>
    %c79 = arith.constant 79 : index
    %399 = memref.load %arg2[%c79] : memref<108xf32, #tpu.memory_space<smem>>
    %400 = vector.broadcast %399 : f32 to vector<26x26xf32>
    %401 = arith.mulf %31, %400 : vector<26x26xf32>
    %402 = arith.addf %398, %401 : vector<26x26xf32>
    %c80 = arith.constant 80 : index
    %403 = memref.load %arg2[%c80] : memref<108xf32, #tpu.memory_space<smem>>
    %404 = vector.broadcast %403 : f32 to vector<26x26xf32>
    %405 = arith.mulf %32, %404 : vector<26x26xf32>
    %406 = arith.addf %402, %405 : vector<26x26xf32>
    %cst_28 = arith.constant 0.000000e+00 : f32
    %407 = vector.broadcast %cst_28 : f32 to vector<26x26xf32>
    %408 = arith.maximumf %406, %407 : vector<26x26xf32>
    %cst_29 = arith.constant dense<0.000000e+00> : vector<13x26xf32>
    %409 = tpu.matmul %39, %408, %cst_29 {dimension_numbers = #tpu.dot_dimension_numbers<[1], [0], [0], [1], [0, 0, 1, 1], [], []>} : vector<13x26xf32>, vector<26x26xf32>, vector<13x26xf32> -> vector<13x26xf32>
    %cst_30 = arith.constant dense<0.000000e+00> : vector<13x26xf32>
    %410 = tpu.matmul %46, %408, %cst_30 {dimension_numbers = #tpu.dot_dimension_numbers<[1], [0], [0], [1], [0, 0, 1, 1], [], []>} : vector<13x26xf32>, vector<26x26xf32>, vector<13x26xf32> -> vector<13x26xf32>
    %411 = arith.maximumf %409, %410 : vector<13x26xf32>
    %cst_31 = arith.constant dense<0.000000e+00> : vector<13x13xf32>
    %412 = tpu.matmul %411, %53, %cst_31 {dimension_numbers = #tpu.dot_dimension_numbers<[1], [0], [0], [1], [0, 0, 1, 1], [], []>} : vector<13x26xf32>, vector<26x13xf32>, vector<13x13xf32> -> vector<13x13xf32>
    %cst_32 = arith.constant dense<0.000000e+00> : vector<13x13xf32>
    %413 = tpu.matmul %411, %60, %cst_32 {dimension_numbers = #tpu.dot_dimension_numbers<[1], [0], [0], [1], [0, 0, 1, 1], [], []>} : vector<13x26xf32>, vector<26x13xf32>, vector<13x13xf32> -> vector<13x13xf32>
    %414 = arith.maximumf %412, %413 : vector<13x13xf32>
    %c3_33 = arith.constant 3 : index
    %415 = memref.load %arg3[%c3_33] : memref<4xf32, #tpu.memory_space<smem>>
    %416 = vector.broadcast %415 : f32 to vector<26x26xf32>
    %c81 = arith.constant 81 : index
    %417 = memref.load %arg2[%c81] : memref<108xf32, #tpu.memory_space<smem>>
    %418 = vector.broadcast %417 : f32 to vector<26x26xf32>
    %419 = arith.mulf %2, %418 : vector<26x26xf32>
    %420 = arith.addf %416, %419 : vector<26x26xf32>
    %c82 = arith.constant 82 : index
    %421 = memref.load %arg2[%c82] : memref<108xf32, #tpu.memory_space<smem>>
    %422 = vector.broadcast %421 : f32 to vector<26x26xf32>
    %423 = arith.mulf %3, %422 : vector<26x26xf32>
    %424 = arith.addf %420, %423 : vector<26x26xf32>
    %c83 = arith.constant 83 : index
    %425 = memref.load %arg2[%c83] : memref<108xf32, #tpu.memory_space<smem>>
    %426 = vector.broadcast %425 : f32 to vector<26x26xf32>
    %427 = arith.mulf %4, %426 : vector<26x26xf32>
    %428 = arith.addf %424, %427 : vector<26x26xf32>
    %c84 = arith.constant 84 : index
    %429 = memref.load %arg2[%c84] : memref<108xf32, #tpu.memory_space<smem>>
    %430 = vector.broadcast %429 : f32 to vector<26x26xf32>
    %431 = arith.mulf %5, %430 : vector<26x26xf32>
    %432 = arith.addf %428, %431 : vector<26x26xf32>
    %c85 = arith.constant 85 : index
    %433 = memref.load %arg2[%c85] : memref<108xf32, #tpu.memory_space<smem>>
    %434 = vector.broadcast %433 : f32 to vector<26x26xf32>
    %435 = arith.mulf %6, %434 : vector<26x26xf32>
    %436 = arith.addf %432, %435 : vector<26x26xf32>
    %c86 = arith.constant 86 : index
    %437 = memref.load %arg2[%c86] : memref<108xf32, #tpu.memory_space<smem>>
    %438 = vector.broadcast %437 : f32 to vector<26x26xf32>
    %439 = arith.mulf %7, %438 : vector<26x26xf32>
    %440 = arith.addf %436, %439 : vector<26x26xf32>
    %c87 = arith.constant 87 : index
    %441 = memref.load %arg2[%c87] : memref<108xf32, #tpu.memory_space<smem>>
    %442 = vector.broadcast %441 : f32 to vector<26x26xf32>
    %443 = arith.mulf %8, %442 : vector<26x26xf32>
    %444 = arith.addf %440, %443 : vector<26x26xf32>
    %c88 = arith.constant 88 : index
    %445 = memref.load %arg2[%c88] : memref<108xf32, #tpu.memory_space<smem>>
    %446 = vector.broadcast %445 : f32 to vector<26x26xf32>
    %447 = arith.mulf %9, %446 : vector<26x26xf32>
    %448 = arith.addf %444, %447 : vector<26x26xf32>
    %c89 = arith.constant 89 : index
    %449 = memref.load %arg2[%c89] : memref<108xf32, #tpu.memory_space<smem>>
    %450 = vector.broadcast %449 : f32 to vector<26x26xf32>
    %451 = arith.mulf %10, %450 : vector<26x26xf32>
    %452 = arith.addf %448, %451 : vector<26x26xf32>
    %c90 = arith.constant 90 : index
    %453 = memref.load %arg2[%c90] : memref<108xf32, #tpu.memory_space<smem>>
    %454 = vector.broadcast %453 : f32 to vector<26x26xf32>
    %455 = arith.mulf %13, %454 : vector<26x26xf32>
    %456 = arith.addf %452, %455 : vector<26x26xf32>
    %c91 = arith.constant 91 : index
    %457 = memref.load %arg2[%c91] : memref<108xf32, #tpu.memory_space<smem>>
    %458 = vector.broadcast %457 : f32 to vector<26x26xf32>
    %459 = arith.mulf %14, %458 : vector<26x26xf32>
    %460 = arith.addf %456, %459 : vector<26x26xf32>
    %c92 = arith.constant 92 : index
    %461 = memref.load %arg2[%c92] : memref<108xf32, #tpu.memory_space<smem>>
    %462 = vector.broadcast %461 : f32 to vector<26x26xf32>
    %463 = arith.mulf %15, %462 : vector<26x26xf32>
    %464 = arith.addf %460, %463 : vector<26x26xf32>
    %c93 = arith.constant 93 : index
    %465 = memref.load %arg2[%c93] : memref<108xf32, #tpu.memory_space<smem>>
    %466 = vector.broadcast %465 : f32 to vector<26x26xf32>
    %467 = arith.mulf %16, %466 : vector<26x26xf32>
    %468 = arith.addf %464, %467 : vector<26x26xf32>
    %c94 = arith.constant 94 : index
    %469 = memref.load %arg2[%c94] : memref<108xf32, #tpu.memory_space<smem>>
    %470 = vector.broadcast %469 : f32 to vector<26x26xf32>
    %471 = arith.mulf %17, %470 : vector<26x26xf32>
    %472 = arith.addf %468, %471 : vector<26x26xf32>
    %c95 = arith.constant 95 : index
    %473 = memref.load %arg2[%c95] : memref<108xf32, #tpu.memory_space<smem>>
    %474 = vector.broadcast %473 : f32 to vector<26x26xf32>
    %475 = arith.mulf %18, %474 : vector<26x26xf32>
    %476 = arith.addf %472, %475 : vector<26x26xf32>
    %c96 = arith.constant 96 : index
    %477 = memref.load %arg2[%c96] : memref<108xf32, #tpu.memory_space<smem>>
    %478 = vector.broadcast %477 : f32 to vector<26x26xf32>
    %479 = arith.mulf %19, %478 : vector<26x26xf32>
    %480 = arith.addf %476, %479 : vector<26x26xf32>
    %c97 = arith.constant 97 : index
    %481 = memref.load %arg2[%c97] : memref<108xf32, #tpu.memory_space<smem>>
    %482 = vector.broadcast %481 : f32 to vector<26x26xf32>
    %483 = arith.mulf %20, %482 : vector<26x26xf32>
    %484 = arith.addf %480, %483 : vector<26x26xf32>
    %c98 = arith.constant 98 : index
    %485 = memref.load %arg2[%c98] : memref<108xf32, #tpu.memory_space<smem>>
    %486 = vector.broadcast %485 : f32 to vector<26x26xf32>
    %487 = arith.mulf %21, %486 : vector<26x26xf32>
    %488 = arith.addf %484, %487 : vector<26x26xf32>
    %c99 = arith.constant 99 : index
    %489 = memref.load %arg2[%c99] : memref<108xf32, #tpu.memory_space<smem>>
    %490 = vector.broadcast %489 : f32 to vector<26x26xf32>
    %491 = arith.mulf %24, %490 : vector<26x26xf32>
    %492 = arith.addf %488, %491 : vector<26x26xf32>
    %c100 = arith.constant 100 : index
    %493 = memref.load %arg2[%c100] : memref<108xf32, #tpu.memory_space<smem>>
    %494 = vector.broadcast %493 : f32 to vector<26x26xf32>
    %495 = arith.mulf %25, %494 : vector<26x26xf32>
    %496 = arith.addf %492, %495 : vector<26x26xf32>
    %c101 = arith.constant 101 : index
    %497 = memref.load %arg2[%c101] : memref<108xf32, #tpu.memory_space<smem>>
    %498 = vector.broadcast %497 : f32 to vector<26x26xf32>
    %499 = arith.mulf %26, %498 : vector<26x26xf32>
    %500 = arith.addf %496, %499 : vector<26x26xf32>
    %c102 = arith.constant 102 : index
    %501 = memref.load %arg2[%c102] : memref<108xf32, #tpu.memory_space<smem>>
    %502 = vector.broadcast %501 : f32 to vector<26x26xf32>
    %503 = arith.mulf %27, %502 : vector<26x26xf32>
    %504 = arith.addf %500, %503 : vector<26x26xf32>
    %c103 = arith.constant 103 : index
    %505 = memref.load %arg2[%c103] : memref<108xf32, #tpu.memory_space<smem>>
    %506 = vector.broadcast %505 : f32 to vector<26x26xf32>
    %507 = arith.mulf %28, %506 : vector<26x26xf32>
    %508 = arith.addf %504, %507 : vector<26x26xf32>
    %c104 = arith.constant 104 : index
    %509 = memref.load %arg2[%c104] : memref<108xf32, #tpu.memory_space<smem>>
    %510 = vector.broadcast %509 : f32 to vector<26x26xf32>
    %511 = arith.mulf %29, %510 : vector<26x26xf32>
    %512 = arith.addf %508, %511 : vector<26x26xf32>
    %c105 = arith.constant 105 : index
    %513 = memref.load %arg2[%c105] : memref<108xf32, #tpu.memory_space<smem>>
    %514 = vector.broadcast %513 : f32 to vector<26x26xf32>
    %515 = arith.mulf %30, %514 : vector<26x26xf32>
    %516 = arith.addf %512, %515 : vector<26x26xf32>
    %c106 = arith.constant 106 : index
    %517 = memref.load %arg2[%c106] : memref<108xf32, #tpu.memory_space<smem>>
    %518 = vector.broadcast %517 : f32 to vector<26x26xf32>
    %519 = arith.mulf %31, %518 : vector<26x26xf32>
    %520 = arith.addf %516, %519 : vector<26x26xf32>
    %c107 = arith.constant 107 : index
    %521 = memref.load %arg2[%c107] : memref<108xf32, #tpu.memory_space<smem>>
    %522 = vector.broadcast %521 : f32 to vector<26x26xf32>
    %523 = arith.mulf %32, %522 : vector<26x26xf32>
    %524 = arith.addf %520, %523 : vector<26x26xf32>
    %cst_34 = arith.constant 0.000000e+00 : f32
    %525 = vector.broadcast %cst_34 : f32 to vector<26x26xf32>
    %526 = arith.maximumf %524, %525 : vector<26x26xf32>
    %cst_35 = arith.constant dense<0.000000e+00> : vector<13x26xf32>
    %527 = tpu.matmul %39, %526, %cst_35 {dimension_numbers = #tpu.dot_dimension_numbers<[1], [0], [0], [1], [0, 0, 1, 1], [], []>} : vector<13x26xf32>, vector<26x26xf32>, vector<13x26xf32> -> vector<13x26xf32>
    %cst_36 = arith.constant dense<0.000000e+00> : vector<13x26xf32>
    %528 = tpu.matmul %46, %526, %cst_36 {dimension_numbers = #tpu.dot_dimension_numbers<[1], [0], [0], [1], [0, 0, 1, 1], [], []>} : vector<13x26xf32>, vector<26x26xf32>, vector<13x26xf32> -> vector<13x26xf32>
    %529 = arith.maximumf %527, %528 : vector<13x26xf32>
    %cst_37 = arith.constant dense<0.000000e+00> : vector<13x13xf32>
    %530 = tpu.matmul %529, %53, %cst_37 {dimension_numbers = #tpu.dot_dimension_numbers<[1], [0], [0], [1], [0, 0, 1, 1], [], []>} : vector<13x26xf32>, vector<26x13xf32>, vector<13x13xf32> -> vector<13x13xf32>
    %cst_38 = arith.constant dense<0.000000e+00> : vector<13x13xf32>
    %531 = tpu.matmul %529, %60, %cst_38 {dimension_numbers = #tpu.dot_dimension_numbers<[1], [0], [0], [1], [0, 0, 1, 1], [], []>} : vector<13x26xf32>, vector<26x13xf32>, vector<13x13xf32> -> vector<13x13xf32>
    %532 = arith.maximumf %530, %531 : vector<13x13xf32>
    %533 = vector.extract_strided_slice %178 {offsets = [0, 0], sizes = [11, 11], strides = [1, 1]} : vector<13x13xf32> to vector<11x11xf32>
    %534 = vector.extract_strided_slice %178 {offsets = [0, 1], sizes = [11, 11], strides = [1, 1]} : vector<13x13xf32> to vector<11x11xf32>
    %535 = vector.extract_strided_slice %178 {offsets = [0, 2], sizes = [11, 11], strides = [1, 1]} : vector<13x13xf32> to vector<11x11xf32>
    %536 = vector.extract_strided_slice %178 {offsets = [1, 0], sizes = [11, 11], strides = [1, 1]} : vector<13x13xf32> to vector<11x11xf32>
    %537 = vector.extract_strided_slice %178 {offsets = [1, 1], sizes = [11, 11], strides = [1, 1]} : vector<13x13xf32> to vector<11x11xf32>
    %538 = vector.extract_strided_slice %178 {offsets = [1, 2], sizes = [11, 11], strides = [1, 1]} : vector<13x13xf32> to vector<11x11xf32>
    %539 = vector.extract_strided_slice %178 {offsets = [2, 0], sizes = [11, 11], strides = [1, 1]} : vector<13x13xf32> to vector<11x11xf32>
    %540 = vector.extract_strided_slice %178 {offsets = [2, 1], sizes = [11, 11], strides = [1, 1]} : vector<13x13xf32> to vector<11x11xf32>
    %541 = vector.extract_strided_slice %178 {offsets = [2, 2], sizes = [11, 11], strides = [1, 1]} : vector<13x13xf32> to vector<11x11xf32>
    %542 = vector.extract_strided_slice %296 {offsets = [0, 0], sizes = [11, 11], strides = [1, 1]} : vector<13x13xf32> to vector<11x11xf32>
    %543 = vector.extract_strided_slice %296 {offsets = [0, 1], sizes = [11, 11], strides = [1, 1]} : vector<13x13xf32> to vector<11x11xf32>
    %544 = vector.extract_strided_slice %296 {offsets = [0, 2], sizes = [11, 11], strides = [1, 1]} : vector<13x13xf32> to vector<11x11xf32>
    %545 = vector.extract_strided_slice %296 {offsets = [1, 0], sizes = [11, 11], strides = [1, 1]} : vector<13x13xf32> to vector<11x11xf32>
    %546 = vector.extract_strided_slice %296 {offsets = [1, 1], sizes = [11, 11], strides = [1, 1]} : vector<13x13xf32> to vector<11x11xf32>
    %547 = vector.extract_strided_slice %296 {offsets = [1, 2], sizes = [11, 11], strides = [1, 1]} : vector<13x13xf32> to vector<11x11xf32>
    %548 = vector.extract_strided_slice %296 {offsets = [2, 0], sizes = [11, 11], strides = [1, 1]} : vector<13x13xf32> to vector<11x11xf32>
    %549 = vector.extract_strided_slice %296 {offsets = [2, 1], sizes = [11, 11], strides = [1, 1]} : vector<13x13xf32> to vector<11x11xf32>
    %550 = vector.extract_strided_slice %296 {offsets = [2, 2], sizes = [11, 11], strides = [1, 1]} : vector<13x13xf32> to vector<11x11xf32>
    %551 = vector.extract_strided_slice %414 {offsets = [0, 0], sizes = [11, 11], strides = [1, 1]} : vector<13x13xf32> to vector<11x11xf32>
    %552 = vector.extract_strided_slice %414 {offsets = [0, 1], sizes = [11, 11], strides = [1, 1]} : vector<13x13xf32> to vector<11x11xf32>
    %553 = vector.extract_strided_slice %414 {offsets = [0, 2], sizes = [11, 11], strides = [1, 1]} : vector<13x13xf32> to vector<11x11xf32>
    %554 = vector.extract_strided_slice %414 {offsets = [1, 0], sizes = [11, 11], strides = [1, 1]} : vector<13x13xf32> to vector<11x11xf32>
    %555 = vector.extract_strided_slice %414 {offsets = [1, 1], sizes = [11, 11], strides = [1, 1]} : vector<13x13xf32> to vector<11x11xf32>
    %556 = vector.extract_strided_slice %414 {offsets = [1, 2], sizes = [11, 11], strides = [1, 1]} : vector<13x13xf32> to vector<11x11xf32>
    %557 = vector.extract_strided_slice %414 {offsets = [2, 0], sizes = [11, 11], strides = [1, 1]} : vector<13x13xf32> to vector<11x11xf32>
    %558 = vector.extract_strided_slice %414 {offsets = [2, 1], sizes = [11, 11], strides = [1, 1]} : vector<13x13xf32> to vector<11x11xf32>
    %559 = vector.extract_strided_slice %414 {offsets = [2, 2], sizes = [11, 11], strides = [1, 1]} : vector<13x13xf32> to vector<11x11xf32>
    %560 = vector.extract_strided_slice %532 {offsets = [0, 0], sizes = [11, 11], strides = [1, 1]} : vector<13x13xf32> to vector<11x11xf32>
    %561 = vector.extract_strided_slice %532 {offsets = [0, 1], sizes = [11, 11], strides = [1, 1]} : vector<13x13xf32> to vector<11x11xf32>
    %562 = vector.extract_strided_slice %532 {offsets = [0, 2], sizes = [11, 11], strides = [1, 1]} : vector<13x13xf32> to vector<11x11xf32>
    %563 = vector.extract_strided_slice %532 {offsets = [1, 0], sizes = [11, 11], strides = [1, 1]} : vector<13x13xf32> to vector<11x11xf32>
    %564 = vector.extract_strided_slice %532 {offsets = [1, 1], sizes = [11, 11], strides = [1, 1]} : vector<13x13xf32> to vector<11x11xf32>
    %565 = vector.extract_strided_slice %532 {offsets = [1, 2], sizes = [11, 11], strides = [1, 1]} : vector<13x13xf32> to vector<11x11xf32>
    %566 = vector.extract_strided_slice %532 {offsets = [2, 0], sizes = [11, 11], strides = [1, 1]} : vector<13x13xf32> to vector<11x11xf32>
    %567 = vector.extract_strided_slice %532 {offsets = [2, 1], sizes = [11, 11], strides = [1, 1]} : vector<13x13xf32> to vector<11x11xf32>
    %568 = vector.extract_strided_slice %532 {offsets = [2, 2], sizes = [11, 11], strides = [1, 1]} : vector<13x13xf32> to vector<11x11xf32>
    %569 = tpu.iota {dimensions = array<i32: 0>} : vector<5x11xi32>
    %570 = tpu.iota {dimensions = array<i32: 1>} : vector<5x11xi32>
    %c2_i32_39 = arith.constant 2 : i32
    %571 = vector.broadcast %c2_i32_39 : i32 to vector<5x11xi32>
    %572 = arith.muli %571, %569 : vector<5x11xi32>
    %573 = arith.cmpi eq, %570, %572 : vector<5x11xi32>
    %574 = arith.extui %573 : vector<5x11xi1> to vector<5x11xi32>
    %575 = arith.sitofp %574 : vector<5x11xi32> to vector<5x11xf32>
    %c2_i32_40 = arith.constant 2 : i32
    %576 = vector.broadcast %c2_i32_40 : i32 to vector<5x11xi32>
    %577 = arith.muli %576, %569 : vector<5x11xi32>
    %c1_i32_41 = arith.constant 1 : i32
    %578 = vector.broadcast %c1_i32_41 : i32 to vector<5x11xi32>
    %579 = arith.addi %577, %578 : vector<5x11xi32>
    %580 = arith.cmpi eq, %570, %579 : vector<5x11xi32>
    %581 = arith.extui %580 : vector<5x11xi1> to vector<5x11xi32>
    %582 = arith.sitofp %581 : vector<5x11xi32> to vector<5x11xf32>
    %583 = tpu.iota {dimensions = array<i32: 0>} : vector<11x5xi32>
    %584 = tpu.iota {dimensions = array<i32: 1>} : vector<11x5xi32>
    %c2_i32_42 = arith.constant 2 : i32
    %585 = vector.broadcast %c2_i32_42 : i32 to vector<11x5xi32>
    %586 = arith.muli %585, %584 : vector<11x5xi32>
    %587 = arith.cmpi eq, %583, %586 : vector<11x5xi32>
    %588 = arith.extui %587 : vector<11x5xi1> to vector<11x5xi32>
    %589 = arith.sitofp %588 : vector<11x5xi32> to vector<11x5xf32>
    %c2_i32_43 = arith.constant 2 : i32
    %590 = vector.broadcast %c2_i32_43 : i32 to vector<11x5xi32>
    %591 = arith.muli %590, %584 : vector<11x5xi32>
    %c1_i32_44 = arith.constant 1 : i32
    %592 = vector.broadcast %c1_i32_44 : i32 to vector<11x5xi32>
    %593 = arith.addi %591, %592 : vector<11x5xi32>
    %594 = arith.cmpi eq, %583, %593 : vector<11x5xi32>
    %595 = arith.extui %594 : vector<11x5xi1> to vector<11x5xi32>
    %596 = arith.sitofp %595 : vector<11x5xi32> to vector<11x5xf32>
    %c0_45 = arith.constant 0 : index
    %597 = memref.load %arg5[%c0_45] : memref<4xf32, #tpu.memory_space<smem>>
    %598 = vector.broadcast %597 : f32 to vector<11x11xf32>
    %c0_46 = arith.constant 0 : index
    %599 = memref.load %arg4[%c0_46] : memref<144xf32, #tpu.memory_space<smem>>
    %600 = vector.broadcast %599 : f32 to vector<11x11xf32>
    %601 = arith.mulf %533, %600 : vector<11x11xf32>
    %602 = arith.addf %598, %601 : vector<11x11xf32>
    %c1_47 = arith.constant 1 : index
    %603 = memref.load %arg4[%c1_47] : memref<144xf32, #tpu.memory_space<smem>>
    %604 = vector.broadcast %603 : f32 to vector<11x11xf32>
    %605 = arith.mulf %534, %604 : vector<11x11xf32>
    %606 = arith.addf %602, %605 : vector<11x11xf32>
    %c2_48 = arith.constant 2 : index
    %607 = memref.load %arg4[%c2_48] : memref<144xf32, #tpu.memory_space<smem>>
    %608 = vector.broadcast %607 : f32 to vector<11x11xf32>
    %609 = arith.mulf %535, %608 : vector<11x11xf32>
    %610 = arith.addf %606, %609 : vector<11x11xf32>
    %c3_49 = arith.constant 3 : index
    %611 = memref.load %arg4[%c3_49] : memref<144xf32, #tpu.memory_space<smem>>
    %612 = vector.broadcast %611 : f32 to vector<11x11xf32>
    %613 = arith.mulf %536, %612 : vector<11x11xf32>
    %614 = arith.addf %610, %613 : vector<11x11xf32>
    %c4_50 = arith.constant 4 : index
    %615 = memref.load %arg4[%c4_50] : memref<144xf32, #tpu.memory_space<smem>>
    %616 = vector.broadcast %615 : f32 to vector<11x11xf32>
    %617 = arith.mulf %537, %616 : vector<11x11xf32>
    %618 = arith.addf %614, %617 : vector<11x11xf32>
    %c5_51 = arith.constant 5 : index
    %619 = memref.load %arg4[%c5_51] : memref<144xf32, #tpu.memory_space<smem>>
    %620 = vector.broadcast %619 : f32 to vector<11x11xf32>
    %621 = arith.mulf %538, %620 : vector<11x11xf32>
    %622 = arith.addf %618, %621 : vector<11x11xf32>
    %c6_52 = arith.constant 6 : index
    %623 = memref.load %arg4[%c6_52] : memref<144xf32, #tpu.memory_space<smem>>
    %624 = vector.broadcast %623 : f32 to vector<11x11xf32>
    %625 = arith.mulf %539, %624 : vector<11x11xf32>
    %626 = arith.addf %622, %625 : vector<11x11xf32>
    %c7_53 = arith.constant 7 : index
    %627 = memref.load %arg4[%c7_53] : memref<144xf32, #tpu.memory_space<smem>>
    %628 = vector.broadcast %627 : f32 to vector<11x11xf32>
    %629 = arith.mulf %540, %628 : vector<11x11xf32>
    %630 = arith.addf %626, %629 : vector<11x11xf32>
    %c8_54 = arith.constant 8 : index
    %631 = memref.load %arg4[%c8_54] : memref<144xf32, #tpu.memory_space<smem>>
    %632 = vector.broadcast %631 : f32 to vector<11x11xf32>
    %633 = arith.mulf %541, %632 : vector<11x11xf32>
    %634 = arith.addf %630, %633 : vector<11x11xf32>
    %c9_55 = arith.constant 9 : index
    %635 = memref.load %arg4[%c9_55] : memref<144xf32, #tpu.memory_space<smem>>
    %636 = vector.broadcast %635 : f32 to vector<11x11xf32>
    %637 = arith.mulf %542, %636 : vector<11x11xf32>
    %638 = arith.addf %634, %637 : vector<11x11xf32>
    %c10_56 = arith.constant 10 : index
    %639 = memref.load %arg4[%c10_56] : memref<144xf32, #tpu.memory_space<smem>>
    %640 = vector.broadcast %639 : f32 to vector<11x11xf32>
    %641 = arith.mulf %543, %640 : vector<11x11xf32>
    %642 = arith.addf %638, %641 : vector<11x11xf32>
    %c11_57 = arith.constant 11 : index
    %643 = memref.load %arg4[%c11_57] : memref<144xf32, #tpu.memory_space<smem>>
    %644 = vector.broadcast %643 : f32 to vector<11x11xf32>
    %645 = arith.mulf %544, %644 : vector<11x11xf32>
    %646 = arith.addf %642, %645 : vector<11x11xf32>
    %c12_58 = arith.constant 12 : index
    %647 = memref.load %arg4[%c12_58] : memref<144xf32, #tpu.memory_space<smem>>
    %648 = vector.broadcast %647 : f32 to vector<11x11xf32>
    %649 = arith.mulf %545, %648 : vector<11x11xf32>
    %650 = arith.addf %646, %649 : vector<11x11xf32>
    %c13_59 = arith.constant 13 : index
    %651 = memref.load %arg4[%c13_59] : memref<144xf32, #tpu.memory_space<smem>>
    %652 = vector.broadcast %651 : f32 to vector<11x11xf32>
    %653 = arith.mulf %546, %652 : vector<11x11xf32>
    %654 = arith.addf %650, %653 : vector<11x11xf32>
    %c14_60 = arith.constant 14 : index
    %655 = memref.load %arg4[%c14_60] : memref<144xf32, #tpu.memory_space<smem>>
    %656 = vector.broadcast %655 : f32 to vector<11x11xf32>
    %657 = arith.mulf %547, %656 : vector<11x11xf32>
    %658 = arith.addf %654, %657 : vector<11x11xf32>
    %c15_61 = arith.constant 15 : index
    %659 = memref.load %arg4[%c15_61] : memref<144xf32, #tpu.memory_space<smem>>
    %660 = vector.broadcast %659 : f32 to vector<11x11xf32>
    %661 = arith.mulf %548, %660 : vector<11x11xf32>
    %662 = arith.addf %658, %661 : vector<11x11xf32>
    %c16_62 = arith.constant 16 : index
    %663 = memref.load %arg4[%c16_62] : memref<144xf32, #tpu.memory_space<smem>>
    %664 = vector.broadcast %663 : f32 to vector<11x11xf32>
    %665 = arith.mulf %549, %664 : vector<11x11xf32>
    %666 = arith.addf %662, %665 : vector<11x11xf32>
    %c17_63 = arith.constant 17 : index
    %667 = memref.load %arg4[%c17_63] : memref<144xf32, #tpu.memory_space<smem>>
    %668 = vector.broadcast %667 : f32 to vector<11x11xf32>
    %669 = arith.mulf %550, %668 : vector<11x11xf32>
    %670 = arith.addf %666, %669 : vector<11x11xf32>
    %c18_64 = arith.constant 18 : index
    %671 = memref.load %arg4[%c18_64] : memref<144xf32, #tpu.memory_space<smem>>
    %672 = vector.broadcast %671 : f32 to vector<11x11xf32>
    %673 = arith.mulf %551, %672 : vector<11x11xf32>
    %674 = arith.addf %670, %673 : vector<11x11xf32>
    %c19_65 = arith.constant 19 : index
    %675 = memref.load %arg4[%c19_65] : memref<144xf32, #tpu.memory_space<smem>>
    %676 = vector.broadcast %675 : f32 to vector<11x11xf32>
    %677 = arith.mulf %552, %676 : vector<11x11xf32>
    %678 = arith.addf %674, %677 : vector<11x11xf32>
    %c20_66 = arith.constant 20 : index
    %679 = memref.load %arg4[%c20_66] : memref<144xf32, #tpu.memory_space<smem>>
    %680 = vector.broadcast %679 : f32 to vector<11x11xf32>
    %681 = arith.mulf %553, %680 : vector<11x11xf32>
    %682 = arith.addf %678, %681 : vector<11x11xf32>
    %c21_67 = arith.constant 21 : index
    %683 = memref.load %arg4[%c21_67] : memref<144xf32, #tpu.memory_space<smem>>
    %684 = vector.broadcast %683 : f32 to vector<11x11xf32>
    %685 = arith.mulf %554, %684 : vector<11x11xf32>
    %686 = arith.addf %682, %685 : vector<11x11xf32>
    %c22_68 = arith.constant 22 : index
    %687 = memref.load %arg4[%c22_68] : memref<144xf32, #tpu.memory_space<smem>>
    %688 = vector.broadcast %687 : f32 to vector<11x11xf32>
    %689 = arith.mulf %555, %688 : vector<11x11xf32>
    %690 = arith.addf %686, %689 : vector<11x11xf32>
    %c23_69 = arith.constant 23 : index
    %691 = memref.load %arg4[%c23_69] : memref<144xf32, #tpu.memory_space<smem>>
    %692 = vector.broadcast %691 : f32 to vector<11x11xf32>
    %693 = arith.mulf %556, %692 : vector<11x11xf32>
    %694 = arith.addf %690, %693 : vector<11x11xf32>
    %c24_70 = arith.constant 24 : index
    %695 = memref.load %arg4[%c24_70] : memref<144xf32, #tpu.memory_space<smem>>
    %696 = vector.broadcast %695 : f32 to vector<11x11xf32>
    %697 = arith.mulf %557, %696 : vector<11x11xf32>
    %698 = arith.addf %694, %697 : vector<11x11xf32>
    %c25_71 = arith.constant 25 : index
    %699 = memref.load %arg4[%c25_71] : memref<144xf32, #tpu.memory_space<smem>>
    %700 = vector.broadcast %699 : f32 to vector<11x11xf32>
    %701 = arith.mulf %558, %700 : vector<11x11xf32>
    %702 = arith.addf %698, %701 : vector<11x11xf32>
    %c26_72 = arith.constant 26 : index
    %703 = memref.load %arg4[%c26_72] : memref<144xf32, #tpu.memory_space<smem>>
    %704 = vector.broadcast %703 : f32 to vector<11x11xf32>
    %705 = arith.mulf %559, %704 : vector<11x11xf32>
    %706 = arith.addf %702, %705 : vector<11x11xf32>
    %c27_73 = arith.constant 27 : index
    %707 = memref.load %arg4[%c27_73] : memref<144xf32, #tpu.memory_space<smem>>
    %708 = vector.broadcast %707 : f32 to vector<11x11xf32>
    %709 = arith.mulf %560, %708 : vector<11x11xf32>
    %710 = arith.addf %706, %709 : vector<11x11xf32>
    %c28_74 = arith.constant 28 : index
    %711 = memref.load %arg4[%c28_74] : memref<144xf32, #tpu.memory_space<smem>>
    %712 = vector.broadcast %711 : f32 to vector<11x11xf32>
    %713 = arith.mulf %561, %712 : vector<11x11xf32>
    %714 = arith.addf %710, %713 : vector<11x11xf32>
    %c29_75 = arith.constant 29 : index
    %715 = memref.load %arg4[%c29_75] : memref<144xf32, #tpu.memory_space<smem>>
    %716 = vector.broadcast %715 : f32 to vector<11x11xf32>
    %717 = arith.mulf %562, %716 : vector<11x11xf32>
    %718 = arith.addf %714, %717 : vector<11x11xf32>
    %c30_76 = arith.constant 30 : index
    %719 = memref.load %arg4[%c30_76] : memref<144xf32, #tpu.memory_space<smem>>
    %720 = vector.broadcast %719 : f32 to vector<11x11xf32>
    %721 = arith.mulf %563, %720 : vector<11x11xf32>
    %722 = arith.addf %718, %721 : vector<11x11xf32>
    %c31_77 = arith.constant 31 : index
    %723 = memref.load %arg4[%c31_77] : memref<144xf32, #tpu.memory_space<smem>>
    %724 = vector.broadcast %723 : f32 to vector<11x11xf32>
    %725 = arith.mulf %564, %724 : vector<11x11xf32>
    %726 = arith.addf %722, %725 : vector<11x11xf32>
    %c32_78 = arith.constant 32 : index
    %727 = memref.load %arg4[%c32_78] : memref<144xf32, #tpu.memory_space<smem>>
    %728 = vector.broadcast %727 : f32 to vector<11x11xf32>
    %729 = arith.mulf %565, %728 : vector<11x11xf32>
    %730 = arith.addf %726, %729 : vector<11x11xf32>
    %c33_79 = arith.constant 33 : index
    %731 = memref.load %arg4[%c33_79] : memref<144xf32, #tpu.memory_space<smem>>
    %732 = vector.broadcast %731 : f32 to vector<11x11xf32>
    %733 = arith.mulf %566, %732 : vector<11x11xf32>
    %734 = arith.addf %730, %733 : vector<11x11xf32>
    %c34_80 = arith.constant 34 : index
    %735 = memref.load %arg4[%c34_80] : memref<144xf32, #tpu.memory_space<smem>>
    %736 = vector.broadcast %735 : f32 to vector<11x11xf32>
    %737 = arith.mulf %567, %736 : vector<11x11xf32>
    %738 = arith.addf %734, %737 : vector<11x11xf32>
    %c35_81 = arith.constant 35 : index
    %739 = memref.load %arg4[%c35_81] : memref<144xf32, #tpu.memory_space<smem>>
    %740 = vector.broadcast %739 : f32 to vector<11x11xf32>
    %741 = arith.mulf %568, %740 : vector<11x11xf32>
    %742 = arith.addf %738, %741 : vector<11x11xf32>
    %cst_82 = arith.constant 0.000000e+00 : f32
    %743 = vector.broadcast %cst_82 : f32 to vector<11x11xf32>
    %744 = arith.maximumf %742, %743 : vector<11x11xf32>
    %cst_83 = arith.constant dense<0.000000e+00> : vector<5x11xf32>
    %745 = tpu.matmul %575, %744, %cst_83 {dimension_numbers = #tpu.dot_dimension_numbers<[1], [0], [0], [1], [0, 0, 1, 1], [], []>} : vector<5x11xf32>, vector<11x11xf32>, vector<5x11xf32> -> vector<5x11xf32>
    %cst_84 = arith.constant dense<0.000000e+00> : vector<5x11xf32>
    %746 = tpu.matmul %582, %744, %cst_84 {dimension_numbers = #tpu.dot_dimension_numbers<[1], [0], [0], [1], [0, 0, 1, 1], [], []>} : vector<5x11xf32>, vector<11x11xf32>, vector<5x11xf32> -> vector<5x11xf32>
    %747 = arith.maximumf %745, %746 : vector<5x11xf32>
    %cst_85 = arith.constant dense<0.000000e+00> : vector<5x5xf32>
    %748 = tpu.matmul %747, %589, %cst_85 {dimension_numbers = #tpu.dot_dimension_numbers<[1], [0], [0], [1], [0, 0, 1, 1], [], []>} : vector<5x11xf32>, vector<11x5xf32>, vector<5x5xf32> -> vector<5x5xf32>
    %cst_86 = arith.constant dense<0.000000e+00> : vector<5x5xf32>
    %749 = tpu.matmul %747, %596, %cst_86 {dimension_numbers = #tpu.dot_dimension_numbers<[1], [0], [0], [1], [0, 0, 1, 1], [], []>} : vector<5x11xf32>, vector<11x5xf32>, vector<5x5xf32> -> vector<5x5xf32>
    %750 = arith.maximumf %748, %749 : vector<5x5xf32>
    %c1_87 = arith.constant 1 : index
    %751 = memref.load %arg5[%c1_87] : memref<4xf32, #tpu.memory_space<smem>>
    %752 = vector.broadcast %751 : f32 to vector<11x11xf32>
    %c36_88 = arith.constant 36 : index
    %753 = memref.load %arg4[%c36_88] : memref<144xf32, #tpu.memory_space<smem>>
    %754 = vector.broadcast %753 : f32 to vector<11x11xf32>
    %755 = arith.mulf %533, %754 : vector<11x11xf32>
    %756 = arith.addf %752, %755 : vector<11x11xf32>
    %c37_89 = arith.constant 37 : index
    %757 = memref.load %arg4[%c37_89] : memref<144xf32, #tpu.memory_space<smem>>
    %758 = vector.broadcast %757 : f32 to vector<11x11xf32>
    %759 = arith.mulf %534, %758 : vector<11x11xf32>
    %760 = arith.addf %756, %759 : vector<11x11xf32>
    %c38_90 = arith.constant 38 : index
    %761 = memref.load %arg4[%c38_90] : memref<144xf32, #tpu.memory_space<smem>>
    %762 = vector.broadcast %761 : f32 to vector<11x11xf32>
    %763 = arith.mulf %535, %762 : vector<11x11xf32>
    %764 = arith.addf %760, %763 : vector<11x11xf32>
    %c39_91 = arith.constant 39 : index
    %765 = memref.load %arg4[%c39_91] : memref<144xf32, #tpu.memory_space<smem>>
    %766 = vector.broadcast %765 : f32 to vector<11x11xf32>
    %767 = arith.mulf %536, %766 : vector<11x11xf32>
    %768 = arith.addf %764, %767 : vector<11x11xf32>
    %c40_92 = arith.constant 40 : index
    %769 = memref.load %arg4[%c40_92] : memref<144xf32, #tpu.memory_space<smem>>
    %770 = vector.broadcast %769 : f32 to vector<11x11xf32>
    %771 = arith.mulf %537, %770 : vector<11x11xf32>
    %772 = arith.addf %768, %771 : vector<11x11xf32>
    %c41_93 = arith.constant 41 : index
    %773 = memref.load %arg4[%c41_93] : memref<144xf32, #tpu.memory_space<smem>>
    %774 = vector.broadcast %773 : f32 to vector<11x11xf32>
    %775 = arith.mulf %538, %774 : vector<11x11xf32>
    %776 = arith.addf %772, %775 : vector<11x11xf32>
    %c42_94 = arith.constant 42 : index
    %777 = memref.load %arg4[%c42_94] : memref<144xf32, #tpu.memory_space<smem>>
    %778 = vector.broadcast %777 : f32 to vector<11x11xf32>
    %779 = arith.mulf %539, %778 : vector<11x11xf32>
    %780 = arith.addf %776, %779 : vector<11x11xf32>
    %c43_95 = arith.constant 43 : index
    %781 = memref.load %arg4[%c43_95] : memref<144xf32, #tpu.memory_space<smem>>
    %782 = vector.broadcast %781 : f32 to vector<11x11xf32>
    %783 = arith.mulf %540, %782 : vector<11x11xf32>
    %784 = arith.addf %780, %783 : vector<11x11xf32>
    %c44_96 = arith.constant 44 : index
    %785 = memref.load %arg4[%c44_96] : memref<144xf32, #tpu.memory_space<smem>>
    %786 = vector.broadcast %785 : f32 to vector<11x11xf32>
    %787 = arith.mulf %541, %786 : vector<11x11xf32>
    %788 = arith.addf %784, %787 : vector<11x11xf32>
    %c45_97 = arith.constant 45 : index
    %789 = memref.load %arg4[%c45_97] : memref<144xf32, #tpu.memory_space<smem>>
    %790 = vector.broadcast %789 : f32 to vector<11x11xf32>
    %791 = arith.mulf %542, %790 : vector<11x11xf32>
    %792 = arith.addf %788, %791 : vector<11x11xf32>
    %c46_98 = arith.constant 46 : index
    %793 = memref.load %arg4[%c46_98] : memref<144xf32, #tpu.memory_space<smem>>
    %794 = vector.broadcast %793 : f32 to vector<11x11xf32>
    %795 = arith.mulf %543, %794 : vector<11x11xf32>
    %796 = arith.addf %792, %795 : vector<11x11xf32>
    %c47_99 = arith.constant 47 : index
    %797 = memref.load %arg4[%c47_99] : memref<144xf32, #tpu.memory_space<smem>>
    %798 = vector.broadcast %797 : f32 to vector<11x11xf32>
    %799 = arith.mulf %544, %798 : vector<11x11xf32>
    %800 = arith.addf %796, %799 : vector<11x11xf32>
    %c48_100 = arith.constant 48 : index
    %801 = memref.load %arg4[%c48_100] : memref<144xf32, #tpu.memory_space<smem>>
    %802 = vector.broadcast %801 : f32 to vector<11x11xf32>
    %803 = arith.mulf %545, %802 : vector<11x11xf32>
    %804 = arith.addf %800, %803 : vector<11x11xf32>
    %c49_101 = arith.constant 49 : index
    %805 = memref.load %arg4[%c49_101] : memref<144xf32, #tpu.memory_space<smem>>
    %806 = vector.broadcast %805 : f32 to vector<11x11xf32>
    %807 = arith.mulf %546, %806 : vector<11x11xf32>
    %808 = arith.addf %804, %807 : vector<11x11xf32>
    %c50_102 = arith.constant 50 : index
    %809 = memref.load %arg4[%c50_102] : memref<144xf32, #tpu.memory_space<smem>>
    %810 = vector.broadcast %809 : f32 to vector<11x11xf32>
    %811 = arith.mulf %547, %810 : vector<11x11xf32>
    %812 = arith.addf %808, %811 : vector<11x11xf32>
    %c51_103 = arith.constant 51 : index
    %813 = memref.load %arg4[%c51_103] : memref<144xf32, #tpu.memory_space<smem>>
    %814 = vector.broadcast %813 : f32 to vector<11x11xf32>
    %815 = arith.mulf %548, %814 : vector<11x11xf32>
    %816 = arith.addf %812, %815 : vector<11x11xf32>
    %c52_104 = arith.constant 52 : index
    %817 = memref.load %arg4[%c52_104] : memref<144xf32, #tpu.memory_space<smem>>
    %818 = vector.broadcast %817 : f32 to vector<11x11xf32>
    %819 = arith.mulf %549, %818 : vector<11x11xf32>
    %820 = arith.addf %816, %819 : vector<11x11xf32>
    %c53_105 = arith.constant 53 : index
    %821 = memref.load %arg4[%c53_105] : memref<144xf32, #tpu.memory_space<smem>>
    %822 = vector.broadcast %821 : f32 to vector<11x11xf32>
    %823 = arith.mulf %550, %822 : vector<11x11xf32>
    %824 = arith.addf %820, %823 : vector<11x11xf32>
    %c54_106 = arith.constant 54 : index
    %825 = memref.load %arg4[%c54_106] : memref<144xf32, #tpu.memory_space<smem>>
    %826 = vector.broadcast %825 : f32 to vector<11x11xf32>
    %827 = arith.mulf %551, %826 : vector<11x11xf32>
    %828 = arith.addf %824, %827 : vector<11x11xf32>
    %c55_107 = arith.constant 55 : index
    %829 = memref.load %arg4[%c55_107] : memref<144xf32, #tpu.memory_space<smem>>
    %830 = vector.broadcast %829 : f32 to vector<11x11xf32>
    %831 = arith.mulf %552, %830 : vector<11x11xf32>
    %832 = arith.addf %828, %831 : vector<11x11xf32>
    %c56_108 = arith.constant 56 : index
    %833 = memref.load %arg4[%c56_108] : memref<144xf32, #tpu.memory_space<smem>>
    %834 = vector.broadcast %833 : f32 to vector<11x11xf32>
    %835 = arith.mulf %553, %834 : vector<11x11xf32>
    %836 = arith.addf %832, %835 : vector<11x11xf32>
    %c57_109 = arith.constant 57 : index
    %837 = memref.load %arg4[%c57_109] : memref<144xf32, #tpu.memory_space<smem>>
    %838 = vector.broadcast %837 : f32 to vector<11x11xf32>
    %839 = arith.mulf %554, %838 : vector<11x11xf32>
    %840 = arith.addf %836, %839 : vector<11x11xf32>
    %c58_110 = arith.constant 58 : index
    %841 = memref.load %arg4[%c58_110] : memref<144xf32, #tpu.memory_space<smem>>
    %842 = vector.broadcast %841 : f32 to vector<11x11xf32>
    %843 = arith.mulf %555, %842 : vector<11x11xf32>
    %844 = arith.addf %840, %843 : vector<11x11xf32>
    %c59_111 = arith.constant 59 : index
    %845 = memref.load %arg4[%c59_111] : memref<144xf32, #tpu.memory_space<smem>>
    %846 = vector.broadcast %845 : f32 to vector<11x11xf32>
    %847 = arith.mulf %556, %846 : vector<11x11xf32>
    %848 = arith.addf %844, %847 : vector<11x11xf32>
    %c60_112 = arith.constant 60 : index
    %849 = memref.load %arg4[%c60_112] : memref<144xf32, #tpu.memory_space<smem>>
    %850 = vector.broadcast %849 : f32 to vector<11x11xf32>
    %851 = arith.mulf %557, %850 : vector<11x11xf32>
    %852 = arith.addf %848, %851 : vector<11x11xf32>
    %c61_113 = arith.constant 61 : index
    %853 = memref.load %arg4[%c61_113] : memref<144xf32, #tpu.memory_space<smem>>
    %854 = vector.broadcast %853 : f32 to vector<11x11xf32>
    %855 = arith.mulf %558, %854 : vector<11x11xf32>
    %856 = arith.addf %852, %855 : vector<11x11xf32>
    %c62_114 = arith.constant 62 : index
    %857 = memref.load %arg4[%c62_114] : memref<144xf32, #tpu.memory_space<smem>>
    %858 = vector.broadcast %857 : f32 to vector<11x11xf32>
    %859 = arith.mulf %559, %858 : vector<11x11xf32>
    %860 = arith.addf %856, %859 : vector<11x11xf32>
    %c63_115 = arith.constant 63 : index
    %861 = memref.load %arg4[%c63_115] : memref<144xf32, #tpu.memory_space<smem>>
    %862 = vector.broadcast %861 : f32 to vector<11x11xf32>
    %863 = arith.mulf %560, %862 : vector<11x11xf32>
    %864 = arith.addf %860, %863 : vector<11x11xf32>
    %c64_116 = arith.constant 64 : index
    %865 = memref.load %arg4[%c64_116] : memref<144xf32, #tpu.memory_space<smem>>
    %866 = vector.broadcast %865 : f32 to vector<11x11xf32>
    %867 = arith.mulf %561, %866 : vector<11x11xf32>
    %868 = arith.addf %864, %867 : vector<11x11xf32>
    %c65_117 = arith.constant 65 : index
    %869 = memref.load %arg4[%c65_117] : memref<144xf32, #tpu.memory_space<smem>>
    %870 = vector.broadcast %869 : f32 to vector<11x11xf32>
    %871 = arith.mulf %562, %870 : vector<11x11xf32>
    %872 = arith.addf %868, %871 : vector<11x11xf32>
    %c66_118 = arith.constant 66 : index
    %873 = memref.load %arg4[%c66_118] : memref<144xf32, #tpu.memory_space<smem>>
    %874 = vector.broadcast %873 : f32 to vector<11x11xf32>
    %875 = arith.mulf %563, %874 : vector<11x11xf32>
    %876 = arith.addf %872, %875 : vector<11x11xf32>
    %c67_119 = arith.constant 67 : index
    %877 = memref.load %arg4[%c67_119] : memref<144xf32, #tpu.memory_space<smem>>
    %878 = vector.broadcast %877 : f32 to vector<11x11xf32>
    %879 = arith.mulf %564, %878 : vector<11x11xf32>
    %880 = arith.addf %876, %879 : vector<11x11xf32>
    %c68_120 = arith.constant 68 : index
    %881 = memref.load %arg4[%c68_120] : memref<144xf32, #tpu.memory_space<smem>>
    %882 = vector.broadcast %881 : f32 to vector<11x11xf32>
    %883 = arith.mulf %565, %882 : vector<11x11xf32>
    %884 = arith.addf %880, %883 : vector<11x11xf32>
    %c69_121 = arith.constant 69 : index
    %885 = memref.load %arg4[%c69_121] : memref<144xf32, #tpu.memory_space<smem>>
    %886 = vector.broadcast %885 : f32 to vector<11x11xf32>
    %887 = arith.mulf %566, %886 : vector<11x11xf32>
    %888 = arith.addf %884, %887 : vector<11x11xf32>
    %c70_122 = arith.constant 70 : index
    %889 = memref.load %arg4[%c70_122] : memref<144xf32, #tpu.memory_space<smem>>
    %890 = vector.broadcast %889 : f32 to vector<11x11xf32>
    %891 = arith.mulf %567, %890 : vector<11x11xf32>
    %892 = arith.addf %888, %891 : vector<11x11xf32>
    %c71_123 = arith.constant 71 : index
    %893 = memref.load %arg4[%c71_123] : memref<144xf32, #tpu.memory_space<smem>>
    %894 = vector.broadcast %893 : f32 to vector<11x11xf32>
    %895 = arith.mulf %568, %894 : vector<11x11xf32>
    %896 = arith.addf %892, %895 : vector<11x11xf32>
    %cst_124 = arith.constant 0.000000e+00 : f32
    %897 = vector.broadcast %cst_124 : f32 to vector<11x11xf32>
    %898 = arith.maximumf %896, %897 : vector<11x11xf32>
    %cst_125 = arith.constant dense<0.000000e+00> : vector<5x11xf32>
    %899 = tpu.matmul %575, %898, %cst_125 {dimension_numbers = #tpu.dot_dimension_numbers<[1], [0], [0], [1], [0, 0, 1, 1], [], []>} : vector<5x11xf32>, vector<11x11xf32>, vector<5x11xf32> -> vector<5x11xf32>
    %cst_126 = arith.constant dense<0.000000e+00> : vector<5x11xf32>
    %900 = tpu.matmul %582, %898, %cst_126 {dimension_numbers = #tpu.dot_dimension_numbers<[1], [0], [0], [1], [0, 0, 1, 1], [], []>} : vector<5x11xf32>, vector<11x11xf32>, vector<5x11xf32> -> vector<5x11xf32>
    %901 = arith.maximumf %899, %900 : vector<5x11xf32>
    %cst_127 = arith.constant dense<0.000000e+00> : vector<5x5xf32>
    %902 = tpu.matmul %901, %589, %cst_127 {dimension_numbers = #tpu.dot_dimension_numbers<[1], [0], [0], [1], [0, 0, 1, 1], [], []>} : vector<5x11xf32>, vector<11x5xf32>, vector<5x5xf32> -> vector<5x5xf32>
    %cst_128 = arith.constant dense<0.000000e+00> : vector<5x5xf32>
    %903 = tpu.matmul %901, %596, %cst_128 {dimension_numbers = #tpu.dot_dimension_numbers<[1], [0], [0], [1], [0, 0, 1, 1], [], []>} : vector<5x11xf32>, vector<11x5xf32>, vector<5x5xf32> -> vector<5x5xf32>
    %904 = arith.maximumf %902, %903 : vector<5x5xf32>
    %c2_129 = arith.constant 2 : index
    %905 = memref.load %arg5[%c2_129] : memref<4xf32, #tpu.memory_space<smem>>
    %906 = vector.broadcast %905 : f32 to vector<11x11xf32>
    %c72_130 = arith.constant 72 : index
    %907 = memref.load %arg4[%c72_130] : memref<144xf32, #tpu.memory_space<smem>>
    %908 = vector.broadcast %907 : f32 to vector<11x11xf32>
    %909 = arith.mulf %533, %908 : vector<11x11xf32>
    %910 = arith.addf %906, %909 : vector<11x11xf32>
    %c73_131 = arith.constant 73 : index
    %911 = memref.load %arg4[%c73_131] : memref<144xf32, #tpu.memory_space<smem>>
    %912 = vector.broadcast %911 : f32 to vector<11x11xf32>
    %913 = arith.mulf %534, %912 : vector<11x11xf32>
    %914 = arith.addf %910, %913 : vector<11x11xf32>
    %c74_132 = arith.constant 74 : index
    %915 = memref.load %arg4[%c74_132] : memref<144xf32, #tpu.memory_space<smem>>
    %916 = vector.broadcast %915 : f32 to vector<11x11xf32>
    %917 = arith.mulf %535, %916 : vector<11x11xf32>
    %918 = arith.addf %914, %917 : vector<11x11xf32>
    %c75_133 = arith.constant 75 : index
    %919 = memref.load %arg4[%c75_133] : memref<144xf32, #tpu.memory_space<smem>>
    %920 = vector.broadcast %919 : f32 to vector<11x11xf32>
    %921 = arith.mulf %536, %920 : vector<11x11xf32>
    %922 = arith.addf %918, %921 : vector<11x11xf32>
    %c76_134 = arith.constant 76 : index
    %923 = memref.load %arg4[%c76_134] : memref<144xf32, #tpu.memory_space<smem>>
    %924 = vector.broadcast %923 : f32 to vector<11x11xf32>
    %925 = arith.mulf %537, %924 : vector<11x11xf32>
    %926 = arith.addf %922, %925 : vector<11x11xf32>
    %c77_135 = arith.constant 77 : index
    %927 = memref.load %arg4[%c77_135] : memref<144xf32, #tpu.memory_space<smem>>
    %928 = vector.broadcast %927 : f32 to vector<11x11xf32>
    %929 = arith.mulf %538, %928 : vector<11x11xf32>
    %930 = arith.addf %926, %929 : vector<11x11xf32>
    %c78_136 = arith.constant 78 : index
    %931 = memref.load %arg4[%c78_136] : memref<144xf32, #tpu.memory_space<smem>>
    %932 = vector.broadcast %931 : f32 to vector<11x11xf32>
    %933 = arith.mulf %539, %932 : vector<11x11xf32>
    %934 = arith.addf %930, %933 : vector<11x11xf32>
    %c79_137 = arith.constant 79 : index
    %935 = memref.load %arg4[%c79_137] : memref<144xf32, #tpu.memory_space<smem>>
    %936 = vector.broadcast %935 : f32 to vector<11x11xf32>
    %937 = arith.mulf %540, %936 : vector<11x11xf32>
    %938 = arith.addf %934, %937 : vector<11x11xf32>
    %c80_138 = arith.constant 80 : index
    %939 = memref.load %arg4[%c80_138] : memref<144xf32, #tpu.memory_space<smem>>
    %940 = vector.broadcast %939 : f32 to vector<11x11xf32>
    %941 = arith.mulf %541, %940 : vector<11x11xf32>
    %942 = arith.addf %938, %941 : vector<11x11xf32>
    %c81_139 = arith.constant 81 : index
    %943 = memref.load %arg4[%c81_139] : memref<144xf32, #tpu.memory_space<smem>>
    %944 = vector.broadcast %943 : f32 to vector<11x11xf32>
    %945 = arith.mulf %542, %944 : vector<11x11xf32>
    %946 = arith.addf %942, %945 : vector<11x11xf32>
    %c82_140 = arith.constant 82 : index
    %947 = memref.load %arg4[%c82_140] : memref<144xf32, #tpu.memory_space<smem>>
    %948 = vector.broadcast %947 : f32 to vector<11x11xf32>
    %949 = arith.mulf %543, %948 : vector<11x11xf32>
    %950 = arith.addf %946, %949 : vector<11x11xf32>
    %c83_141 = arith.constant 83 : index
    %951 = memref.load %arg4[%c83_141] : memref<144xf32, #tpu.memory_space<smem>>
    %952 = vector.broadcast %951 : f32 to vector<11x11xf32>
    %953 = arith.mulf %544, %952 : vector<11x11xf32>
    %954 = arith.addf %950, %953 : vector<11x11xf32>
    %c84_142 = arith.constant 84 : index
    %955 = memref.load %arg4[%c84_142] : memref<144xf32, #tpu.memory_space<smem>>
    %956 = vector.broadcast %955 : f32 to vector<11x11xf32>
    %957 = arith.mulf %545, %956 : vector<11x11xf32>
    %958 = arith.addf %954, %957 : vector<11x11xf32>
    %c85_143 = arith.constant 85 : index
    %959 = memref.load %arg4[%c85_143] : memref<144xf32, #tpu.memory_space<smem>>
    %960 = vector.broadcast %959 : f32 to vector<11x11xf32>
    %961 = arith.mulf %546, %960 : vector<11x11xf32>
    %962 = arith.addf %958, %961 : vector<11x11xf32>
    %c86_144 = arith.constant 86 : index
    %963 = memref.load %arg4[%c86_144] : memref<144xf32, #tpu.memory_space<smem>>
    %964 = vector.broadcast %963 : f32 to vector<11x11xf32>
    %965 = arith.mulf %547, %964 : vector<11x11xf32>
    %966 = arith.addf %962, %965 : vector<11x11xf32>
    %c87_145 = arith.constant 87 : index
    %967 = memref.load %arg4[%c87_145] : memref<144xf32, #tpu.memory_space<smem>>
    %968 = vector.broadcast %967 : f32 to vector<11x11xf32>
    %969 = arith.mulf %548, %968 : vector<11x11xf32>
    %970 = arith.addf %966, %969 : vector<11x11xf32>
    %c88_146 = arith.constant 88 : index
    %971 = memref.load %arg4[%c88_146] : memref<144xf32, #tpu.memory_space<smem>>
    %972 = vector.broadcast %971 : f32 to vector<11x11xf32>
    %973 = arith.mulf %549, %972 : vector<11x11xf32>
    %974 = arith.addf %970, %973 : vector<11x11xf32>
    %c89_147 = arith.constant 89 : index
    %975 = memref.load %arg4[%c89_147] : memref<144xf32, #tpu.memory_space<smem>>
    %976 = vector.broadcast %975 : f32 to vector<11x11xf32>
    %977 = arith.mulf %550, %976 : vector<11x11xf32>
    %978 = arith.addf %974, %977 : vector<11x11xf32>
    %c90_148 = arith.constant 90 : index
    %979 = memref.load %arg4[%c90_148] : memref<144xf32, #tpu.memory_space<smem>>
    %980 = vector.broadcast %979 : f32 to vector<11x11xf32>
    %981 = arith.mulf %551, %980 : vector<11x11xf32>
    %982 = arith.addf %978, %981 : vector<11x11xf32>
    %c91_149 = arith.constant 91 : index
    %983 = memref.load %arg4[%c91_149] : memref<144xf32, #tpu.memory_space<smem>>
    %984 = vector.broadcast %983 : f32 to vector<11x11xf32>
    %985 = arith.mulf %552, %984 : vector<11x11xf32>
    %986 = arith.addf %982, %985 : vector<11x11xf32>
    %c92_150 = arith.constant 92 : index
    %987 = memref.load %arg4[%c92_150] : memref<144xf32, #tpu.memory_space<smem>>
    %988 = vector.broadcast %987 : f32 to vector<11x11xf32>
    %989 = arith.mulf %553, %988 : vector<11x11xf32>
    %990 = arith.addf %986, %989 : vector<11x11xf32>
    %c93_151 = arith.constant 93 : index
    %991 = memref.load %arg4[%c93_151] : memref<144xf32, #tpu.memory_space<smem>>
    %992 = vector.broadcast %991 : f32 to vector<11x11xf32>
    %993 = arith.mulf %554, %992 : vector<11x11xf32>
    %994 = arith.addf %990, %993 : vector<11x11xf32>
    %c94_152 = arith.constant 94 : index
    %995 = memref.load %arg4[%c94_152] : memref<144xf32, #tpu.memory_space<smem>>
    %996 = vector.broadcast %995 : f32 to vector<11x11xf32>
    %997 = arith.mulf %555, %996 : vector<11x11xf32>
    %998 = arith.addf %994, %997 : vector<11x11xf32>
    %c95_153 = arith.constant 95 : index
    %999 = memref.load %arg4[%c95_153] : memref<144xf32, #tpu.memory_space<smem>>
    %1000 = vector.broadcast %999 : f32 to vector<11x11xf32>
    %1001 = arith.mulf %556, %1000 : vector<11x11xf32>
    %1002 = arith.addf %998, %1001 : vector<11x11xf32>
    %c96_154 = arith.constant 96 : index
    %1003 = memref.load %arg4[%c96_154] : memref<144xf32, #tpu.memory_space<smem>>
    %1004 = vector.broadcast %1003 : f32 to vector<11x11xf32>
    %1005 = arith.mulf %557, %1004 : vector<11x11xf32>
    %1006 = arith.addf %1002, %1005 : vector<11x11xf32>
    %c97_155 = arith.constant 97 : index
    %1007 = memref.load %arg4[%c97_155] : memref<144xf32, #tpu.memory_space<smem>>
    %1008 = vector.broadcast %1007 : f32 to vector<11x11xf32>
    %1009 = arith.mulf %558, %1008 : vector<11x11xf32>
    %1010 = arith.addf %1006, %1009 : vector<11x11xf32>
    %c98_156 = arith.constant 98 : index
    %1011 = memref.load %arg4[%c98_156] : memref<144xf32, #tpu.memory_space<smem>>
    %1012 = vector.broadcast %1011 : f32 to vector<11x11xf32>
    %1013 = arith.mulf %559, %1012 : vector<11x11xf32>
    %1014 = arith.addf %1010, %1013 : vector<11x11xf32>
    %c99_157 = arith.constant 99 : index
    %1015 = memref.load %arg4[%c99_157] : memref<144xf32, #tpu.memory_space<smem>>
    %1016 = vector.broadcast %1015 : f32 to vector<11x11xf32>
    %1017 = arith.mulf %560, %1016 : vector<11x11xf32>
    %1018 = arith.addf %1014, %1017 : vector<11x11xf32>
    %c100_158 = arith.constant 100 : index
    %1019 = memref.load %arg4[%c100_158] : memref<144xf32, #tpu.memory_space<smem>>
    %1020 = vector.broadcast %1019 : f32 to vector<11x11xf32>
    %1021 = arith.mulf %561, %1020 : vector<11x11xf32>
    %1022 = arith.addf %1018, %1021 : vector<11x11xf32>
    %c101_159 = arith.constant 101 : index
    %1023 = memref.load %arg4[%c101_159] : memref<144xf32, #tpu.memory_space<smem>>
    %1024 = vector.broadcast %1023 : f32 to vector<11x11xf32>
    %1025 = arith.mulf %562, %1024 : vector<11x11xf32>
    %1026 = arith.addf %1022, %1025 : vector<11x11xf32>
    %c102_160 = arith.constant 102 : index
    %1027 = memref.load %arg4[%c102_160] : memref<144xf32, #tpu.memory_space<smem>>
    %1028 = vector.broadcast %1027 : f32 to vector<11x11xf32>
    %1029 = arith.mulf %563, %1028 : vector<11x11xf32>
    %1030 = arith.addf %1026, %1029 : vector<11x11xf32>
    %c103_161 = arith.constant 103 : index
    %1031 = memref.load %arg4[%c103_161] : memref<144xf32, #tpu.memory_space<smem>>
    %1032 = vector.broadcast %1031 : f32 to vector<11x11xf32>
    %1033 = arith.mulf %564, %1032 : vector<11x11xf32>
    %1034 = arith.addf %1030, %1033 : vector<11x11xf32>
    %c104_162 = arith.constant 104 : index
    %1035 = memref.load %arg4[%c104_162] : memref<144xf32, #tpu.memory_space<smem>>
    %1036 = vector.broadcast %1035 : f32 to vector<11x11xf32>
    %1037 = arith.mulf %565, %1036 : vector<11x11xf32>
    %1038 = arith.addf %1034, %1037 : vector<11x11xf32>
    %c105_163 = arith.constant 105 : index
    %1039 = memref.load %arg4[%c105_163] : memref<144xf32, #tpu.memory_space<smem>>
    %1040 = vector.broadcast %1039 : f32 to vector<11x11xf32>
    %1041 = arith.mulf %566, %1040 : vector<11x11xf32>
    %1042 = arith.addf %1038, %1041 : vector<11x11xf32>
    %c106_164 = arith.constant 106 : index
    %1043 = memref.load %arg4[%c106_164] : memref<144xf32, #tpu.memory_space<smem>>
    %1044 = vector.broadcast %1043 : f32 to vector<11x11xf32>
    %1045 = arith.mulf %567, %1044 : vector<11x11xf32>
    %1046 = arith.addf %1042, %1045 : vector<11x11xf32>
    %c107_165 = arith.constant 107 : index
    %1047 = memref.load %arg4[%c107_165] : memref<144xf32, #tpu.memory_space<smem>>
    %1048 = vector.broadcast %1047 : f32 to vector<11x11xf32>
    %1049 = arith.mulf %568, %1048 : vector<11x11xf32>
    %1050 = arith.addf %1046, %1049 : vector<11x11xf32>
    %cst_166 = arith.constant 0.000000e+00 : f32
    %1051 = vector.broadcast %cst_166 : f32 to vector<11x11xf32>
    %1052 = arith.maximumf %1050, %1051 : vector<11x11xf32>
    %cst_167 = arith.constant dense<0.000000e+00> : vector<5x11xf32>
    %1053 = tpu.matmul %575, %1052, %cst_167 {dimension_numbers = #tpu.dot_dimension_numbers<[1], [0], [0], [1], [0, 0, 1, 1], [], []>} : vector<5x11xf32>, vector<11x11xf32>, vector<5x11xf32> -> vector<5x11xf32>
    %cst_168 = arith.constant dense<0.000000e+00> : vector<5x11xf32>
    %1054 = tpu.matmul %582, %1052, %cst_168 {dimension_numbers = #tpu.dot_dimension_numbers<[1], [0], [0], [1], [0, 0, 1, 1], [], []>} : vector<5x11xf32>, vector<11x11xf32>, vector<5x11xf32> -> vector<5x11xf32>
    %1055 = arith.maximumf %1053, %1054 : vector<5x11xf32>
    %cst_169 = arith.constant dense<0.000000e+00> : vector<5x5xf32>
    %1056 = tpu.matmul %1055, %589, %cst_169 {dimension_numbers = #tpu.dot_dimension_numbers<[1], [0], [0], [1], [0, 0, 1, 1], [], []>} : vector<5x11xf32>, vector<11x5xf32>, vector<5x5xf32> -> vector<5x5xf32>
    %cst_170 = arith.constant dense<0.000000e+00> : vector<5x5xf32>
    %1057 = tpu.matmul %1055, %596, %cst_170 {dimension_numbers = #tpu.dot_dimension_numbers<[1], [0], [0], [1], [0, 0, 1, 1], [], []>} : vector<5x11xf32>, vector<11x5xf32>, vector<5x5xf32> -> vector<5x5xf32>
    %1058 = arith.maximumf %1056, %1057 : vector<5x5xf32>
    %c3_171 = arith.constant 3 : index
    %1059 = memref.load %arg5[%c3_171] : memref<4xf32, #tpu.memory_space<smem>>
    %1060 = vector.broadcast %1059 : f32 to vector<11x11xf32>
    %c108 = arith.constant 108 : index
    %1061 = memref.load %arg4[%c108] : memref<144xf32, #tpu.memory_space<smem>>
    %1062 = vector.broadcast %1061 : f32 to vector<11x11xf32>
    %1063 = arith.mulf %533, %1062 : vector<11x11xf32>
    %1064 = arith.addf %1060, %1063 : vector<11x11xf32>
    %c109 = arith.constant 109 : index
    %1065 = memref.load %arg4[%c109] : memref<144xf32, #tpu.memory_space<smem>>
    %1066 = vector.broadcast %1065 : f32 to vector<11x11xf32>
    %1067 = arith.mulf %534, %1066 : vector<11x11xf32>
    %1068 = arith.addf %1064, %1067 : vector<11x11xf32>
    %c110 = arith.constant 110 : index
    %1069 = memref.load %arg4[%c110] : memref<144xf32, #tpu.memory_space<smem>>
    %1070 = vector.broadcast %1069 : f32 to vector<11x11xf32>
    %1071 = arith.mulf %535, %1070 : vector<11x11xf32>
    %1072 = arith.addf %1068, %1071 : vector<11x11xf32>
    %c111 = arith.constant 111 : index
    %1073 = memref.load %arg4[%c111] : memref<144xf32, #tpu.memory_space<smem>>
    %1074 = vector.broadcast %1073 : f32 to vector<11x11xf32>
    %1075 = arith.mulf %536, %1074 : vector<11x11xf32>
    %1076 = arith.addf %1072, %1075 : vector<11x11xf32>
    %c112 = arith.constant 112 : index
    %1077 = memref.load %arg4[%c112] : memref<144xf32, #tpu.memory_space<smem>>
    %1078 = vector.broadcast %1077 : f32 to vector<11x11xf32>
    %1079 = arith.mulf %537, %1078 : vector<11x11xf32>
    %1080 = arith.addf %1076, %1079 : vector<11x11xf32>
    %c113 = arith.constant 113 : index
    %1081 = memref.load %arg4[%c113] : memref<144xf32, #tpu.memory_space<smem>>
    %1082 = vector.broadcast %1081 : f32 to vector<11x11xf32>
    %1083 = arith.mulf %538, %1082 : vector<11x11xf32>
    %1084 = arith.addf %1080, %1083 : vector<11x11xf32>
    %c114 = arith.constant 114 : index
    %1085 = memref.load %arg4[%c114] : memref<144xf32, #tpu.memory_space<smem>>
    %1086 = vector.broadcast %1085 : f32 to vector<11x11xf32>
    %1087 = arith.mulf %539, %1086 : vector<11x11xf32>
    %1088 = arith.addf %1084, %1087 : vector<11x11xf32>
    %c115 = arith.constant 115 : index
    %1089 = memref.load %arg4[%c115] : memref<144xf32, #tpu.memory_space<smem>>
    %1090 = vector.broadcast %1089 : f32 to vector<11x11xf32>
    %1091 = arith.mulf %540, %1090 : vector<11x11xf32>
    %1092 = arith.addf %1088, %1091 : vector<11x11xf32>
    %c116 = arith.constant 116 : index
    %1093 = memref.load %arg4[%c116] : memref<144xf32, #tpu.memory_space<smem>>
    %1094 = vector.broadcast %1093 : f32 to vector<11x11xf32>
    %1095 = arith.mulf %541, %1094 : vector<11x11xf32>
    %1096 = arith.addf %1092, %1095 : vector<11x11xf32>
    %c117 = arith.constant 117 : index
    %1097 = memref.load %arg4[%c117] : memref<144xf32, #tpu.memory_space<smem>>
    %1098 = vector.broadcast %1097 : f32 to vector<11x11xf32>
    %1099 = arith.mulf %542, %1098 : vector<11x11xf32>
    %1100 = arith.addf %1096, %1099 : vector<11x11xf32>
    %c118 = arith.constant 118 : index
    %1101 = memref.load %arg4[%c118] : memref<144xf32, #tpu.memory_space<smem>>
    %1102 = vector.broadcast %1101 : f32 to vector<11x11xf32>
    %1103 = arith.mulf %543, %1102 : vector<11x11xf32>
    %1104 = arith.addf %1100, %1103 : vector<11x11xf32>
    %c119 = arith.constant 119 : index
    %1105 = memref.load %arg4[%c119] : memref<144xf32, #tpu.memory_space<smem>>
    %1106 = vector.broadcast %1105 : f32 to vector<11x11xf32>
    %1107 = arith.mulf %544, %1106 : vector<11x11xf32>
    %1108 = arith.addf %1104, %1107 : vector<11x11xf32>
    %c120 = arith.constant 120 : index
    %1109 = memref.load %arg4[%c120] : memref<144xf32, #tpu.memory_space<smem>>
    %1110 = vector.broadcast %1109 : f32 to vector<11x11xf32>
    %1111 = arith.mulf %545, %1110 : vector<11x11xf32>
    %1112 = arith.addf %1108, %1111 : vector<11x11xf32>
    %c121 = arith.constant 121 : index
    %1113 = memref.load %arg4[%c121] : memref<144xf32, #tpu.memory_space<smem>>
    %1114 = vector.broadcast %1113 : f32 to vector<11x11xf32>
    %1115 = arith.mulf %546, %1114 : vector<11x11xf32>
    %1116 = arith.addf %1112, %1115 : vector<11x11xf32>
    %c122 = arith.constant 122 : index
    %1117 = memref.load %arg4[%c122] : memref<144xf32, #tpu.memory_space<smem>>
    %1118 = vector.broadcast %1117 : f32 to vector<11x11xf32>
    %1119 = arith.mulf %547, %1118 : vector<11x11xf32>
    %1120 = arith.addf %1116, %1119 : vector<11x11xf32>
    %c123 = arith.constant 123 : index
    %1121 = memref.load %arg4[%c123] : memref<144xf32, #tpu.memory_space<smem>>
    %1122 = vector.broadcast %1121 : f32 to vector<11x11xf32>
    %1123 = arith.mulf %548, %1122 : vector<11x11xf32>
    %1124 = arith.addf %1120, %1123 : vector<11x11xf32>
    %c124 = arith.constant 124 : index
    %1125 = memref.load %arg4[%c124] : memref<144xf32, #tpu.memory_space<smem>>
    %1126 = vector.broadcast %1125 : f32 to vector<11x11xf32>
    %1127 = arith.mulf %549, %1126 : vector<11x11xf32>
    %1128 = arith.addf %1124, %1127 : vector<11x11xf32>
    %c125 = arith.constant 125 : index
    %1129 = memref.load %arg4[%c125] : memref<144xf32, #tpu.memory_space<smem>>
    %1130 = vector.broadcast %1129 : f32 to vector<11x11xf32>
    %1131 = arith.mulf %550, %1130 : vector<11x11xf32>
    %1132 = arith.addf %1128, %1131 : vector<11x11xf32>
    %c126 = arith.constant 126 : index
    %1133 = memref.load %arg4[%c126] : memref<144xf32, #tpu.memory_space<smem>>
    %1134 = vector.broadcast %1133 : f32 to vector<11x11xf32>
    %1135 = arith.mulf %551, %1134 : vector<11x11xf32>
    %1136 = arith.addf %1132, %1135 : vector<11x11xf32>
    %c127 = arith.constant 127 : index
    %1137 = memref.load %arg4[%c127] : memref<144xf32, #tpu.memory_space<smem>>
    %1138 = vector.broadcast %1137 : f32 to vector<11x11xf32>
    %1139 = arith.mulf %552, %1138 : vector<11x11xf32>
    %1140 = arith.addf %1136, %1139 : vector<11x11xf32>
    %c128 = arith.constant 128 : index
    %1141 = memref.load %arg4[%c128] : memref<144xf32, #tpu.memory_space<smem>>
    %1142 = vector.broadcast %1141 : f32 to vector<11x11xf32>
    %1143 = arith.mulf %553, %1142 : vector<11x11xf32>
    %1144 = arith.addf %1140, %1143 : vector<11x11xf32>
    %c129 = arith.constant 129 : index
    %1145 = memref.load %arg4[%c129] : memref<144xf32, #tpu.memory_space<smem>>
    %1146 = vector.broadcast %1145 : f32 to vector<11x11xf32>
    %1147 = arith.mulf %554, %1146 : vector<11x11xf32>
    %1148 = arith.addf %1144, %1147 : vector<11x11xf32>
    %c130 = arith.constant 130 : index
    %1149 = memref.load %arg4[%c130] : memref<144xf32, #tpu.memory_space<smem>>
    %1150 = vector.broadcast %1149 : f32 to vector<11x11xf32>
    %1151 = arith.mulf %555, %1150 : vector<11x11xf32>
    %1152 = arith.addf %1148, %1151 : vector<11x11xf32>
    %c131 = arith.constant 131 : index
    %1153 = memref.load %arg4[%c131] : memref<144xf32, #tpu.memory_space<smem>>
    %1154 = vector.broadcast %1153 : f32 to vector<11x11xf32>
    %1155 = arith.mulf %556, %1154 : vector<11x11xf32>
    %1156 = arith.addf %1152, %1155 : vector<11x11xf32>
    %c132 = arith.constant 132 : index
    %1157 = memref.load %arg4[%c132] : memref<144xf32, #tpu.memory_space<smem>>
    %1158 = vector.broadcast %1157 : f32 to vector<11x11xf32>
    %1159 = arith.mulf %557, %1158 : vector<11x11xf32>
    %1160 = arith.addf %1156, %1159 : vector<11x11xf32>
    %c133 = arith.constant 133 : index
    %1161 = memref.load %arg4[%c133] : memref<144xf32, #tpu.memory_space<smem>>
    %1162 = vector.broadcast %1161 : f32 to vector<11x11xf32>
    %1163 = arith.mulf %558, %1162 : vector<11x11xf32>
    %1164 = arith.addf %1160, %1163 : vector<11x11xf32>
    %c134 = arith.constant 134 : index
    %1165 = memref.load %arg4[%c134] : memref<144xf32, #tpu.memory_space<smem>>
    %1166 = vector.broadcast %1165 : f32 to vector<11x11xf32>
    %1167 = arith.mulf %559, %1166 : vector<11x11xf32>
    %1168 = arith.addf %1164, %1167 : vector<11x11xf32>
    %c135 = arith.constant 135 : index
    %1169 = memref.load %arg4[%c135] : memref<144xf32, #tpu.memory_space<smem>>
    %1170 = vector.broadcast %1169 : f32 to vector<11x11xf32>
    %1171 = arith.mulf %560, %1170 : vector<11x11xf32>
    %1172 = arith.addf %1168, %1171 : vector<11x11xf32>
    %c136 = arith.constant 136 : index
    %1173 = memref.load %arg4[%c136] : memref<144xf32, #tpu.memory_space<smem>>
    %1174 = vector.broadcast %1173 : f32 to vector<11x11xf32>
    %1175 = arith.mulf %561, %1174 : vector<11x11xf32>
    %1176 = arith.addf %1172, %1175 : vector<11x11xf32>
    %c137 = arith.constant 137 : index
    %1177 = memref.load %arg4[%c137] : memref<144xf32, #tpu.memory_space<smem>>
    %1178 = vector.broadcast %1177 : f32 to vector<11x11xf32>
    %1179 = arith.mulf %562, %1178 : vector<11x11xf32>
    %1180 = arith.addf %1176, %1179 : vector<11x11xf32>
    %c138 = arith.constant 138 : index
    %1181 = memref.load %arg4[%c138] : memref<144xf32, #tpu.memory_space<smem>>
    %1182 = vector.broadcast %1181 : f32 to vector<11x11xf32>
    %1183 = arith.mulf %563, %1182 : vector<11x11xf32>
    %1184 = arith.addf %1180, %1183 : vector<11x11xf32>
    %c139 = arith.constant 139 : index
    %1185 = memref.load %arg4[%c139] : memref<144xf32, #tpu.memory_space<smem>>
    %1186 = vector.broadcast %1185 : f32 to vector<11x11xf32>
    %1187 = arith.mulf %564, %1186 : vector<11x11xf32>
    %1188 = arith.addf %1184, %1187 : vector<11x11xf32>
    %c140 = arith.constant 140 : index
    %1189 = memref.load %arg4[%c140] : memref<144xf32, #tpu.memory_space<smem>>
    %1190 = vector.broadcast %1189 : f32 to vector<11x11xf32>
    %1191 = arith.mulf %565, %1190 : vector<11x11xf32>
    %1192 = arith.addf %1188, %1191 : vector<11x11xf32>
    %c141 = arith.constant 141 : index
    %1193 = memref.load %arg4[%c141] : memref<144xf32, #tpu.memory_space<smem>>
    %1194 = vector.broadcast %1193 : f32 to vector<11x11xf32>
    %1195 = arith.mulf %566, %1194 : vector<11x11xf32>
    %1196 = arith.addf %1192, %1195 : vector<11x11xf32>
    %c142 = arith.constant 142 : index
    %1197 = memref.load %arg4[%c142] : memref<144xf32, #tpu.memory_space<smem>>
    %1198 = vector.broadcast %1197 : f32 to vector<11x11xf32>
    %1199 = arith.mulf %567, %1198 : vector<11x11xf32>
    %1200 = arith.addf %1196, %1199 : vector<11x11xf32>
    %c143 = arith.constant 143 : index
    %1201 = memref.load %arg4[%c143] : memref<144xf32, #tpu.memory_space<smem>>
    %1202 = vector.broadcast %1201 : f32 to vector<11x11xf32>
    %1203 = arith.mulf %568, %1202 : vector<11x11xf32>
    %1204 = arith.addf %1200, %1203 : vector<11x11xf32>
    %cst_172 = arith.constant 0.000000e+00 : f32
    %1205 = vector.broadcast %cst_172 : f32 to vector<11x11xf32>
    %1206 = arith.maximumf %1204, %1205 : vector<11x11xf32>
    %cst_173 = arith.constant dense<0.000000e+00> : vector<5x11xf32>
    %1207 = tpu.matmul %575, %1206, %cst_173 {dimension_numbers = #tpu.dot_dimension_numbers<[1], [0], [0], [1], [0, 0, 1, 1], [], []>} : vector<5x11xf32>, vector<11x11xf32>, vector<5x11xf32> -> vector<5x11xf32>
    %cst_174 = arith.constant dense<0.000000e+00> : vector<5x11xf32>
    %1208 = tpu.matmul %582, %1206, %cst_174 {dimension_numbers = #tpu.dot_dimension_numbers<[1], [0], [0], [1], [0, 0, 1, 1], [], []>} : vector<5x11xf32>, vector<11x11xf32>, vector<5x11xf32> -> vector<5x11xf32>
    %1209 = arith.maximumf %1207, %1208 : vector<5x11xf32>
    %cst_175 = arith.constant dense<0.000000e+00> : vector<5x5xf32>
    %1210 = tpu.matmul %1209, %589, %cst_175 {dimension_numbers = #tpu.dot_dimension_numbers<[1], [0], [0], [1], [0, 0, 1, 1], [], []>} : vector<5x11xf32>, vector<11x5xf32>, vector<5x5xf32> -> vector<5x5xf32>
    %cst_176 = arith.constant dense<0.000000e+00> : vector<5x5xf32>
    %1211 = tpu.matmul %1209, %596, %cst_176 {dimension_numbers = #tpu.dot_dimension_numbers<[1], [0], [0], [1], [0, 0, 1, 1], [], []>} : vector<5x11xf32>, vector<11x5xf32>, vector<5x5xf32> -> vector<5x5xf32>
    %1212 = arith.maximumf %1210, %1211 : vector<5x5xf32>
    %c0_177 = arith.constant 0 : index
    %c0_178 = arith.constant 0 : index
    %1213 = vector.load %arg7[%c0_177, %c0_178] : memref<1x50xf32, #tpu.memory_space<vmem>>, vector<1x50xf32>
    %1214 = vector.extract_strided_slice %750 {offsets = [0, 0], sizes = [1, 5], strides = [1, 1]} : vector<5x5xf32> to vector<1x5xf32>
    %c0_179 = arith.constant 0 : index
    %c0_180 = arith.constant 0 : index
    %1215 = vector.load %arg6[%c0_179, %c0_180] : memref<100x50xf32, #tpu.memory_space<vmem>>, vector<5x50xf32>
    %cst_181 = arith.constant dense<0.000000e+00> : vector<1x50xf32>
    %1216 = tpu.matmul %1214, %1215, %cst_181 {dimension_numbers = #tpu.dot_dimension_numbers<[1], [0], [0], [1], [0, 0, 1, 1], [], []>} : vector<1x5xf32>, vector<5x50xf32>, vector<1x50xf32> -> vector<1x50xf32>
    %1217 = arith.addf %1213, %1216 : vector<1x50xf32>
    %1218 = vector.extract_strided_slice %750 {offsets = [1, 0], sizes = [1, 5], strides = [1, 1]} : vector<5x5xf32> to vector<1x5xf32>
    %c5_182 = arith.constant 5 : index
    %c0_183 = arith.constant 0 : index
    %1219 = vector.load %arg6[%c5_182, %c0_183] : memref<100x50xf32, #tpu.memory_space<vmem>>, vector<5x50xf32>
    %cst_184 = arith.constant dense<0.000000e+00> : vector<1x50xf32>
    %1220 = tpu.matmul %1218, %1219, %cst_184 {dimension_numbers = #tpu.dot_dimension_numbers<[1], [0], [0], [1], [0, 0, 1, 1], [], []>} : vector<1x5xf32>, vector<5x50xf32>, vector<1x50xf32> -> vector<1x50xf32>
    %1221 = arith.addf %1217, %1220 : vector<1x50xf32>
    %1222 = vector.extract_strided_slice %750 {offsets = [2, 0], sizes = [1, 5], strides = [1, 1]} : vector<5x5xf32> to vector<1x5xf32>
    %c10_185 = arith.constant 10 : index
    %c0_186 = arith.constant 0 : index
    %1223 = vector.load %arg6[%c10_185, %c0_186] : memref<100x50xf32, #tpu.memory_space<vmem>>, vector<5x50xf32>
    %cst_187 = arith.constant dense<0.000000e+00> : vector<1x50xf32>
    %1224 = tpu.matmul %1222, %1223, %cst_187 {dimension_numbers = #tpu.dot_dimension_numbers<[1], [0], [0], [1], [0, 0, 1, 1], [], []>} : vector<1x5xf32>, vector<5x50xf32>, vector<1x50xf32> -> vector<1x50xf32>
    %1225 = arith.addf %1221, %1224 : vector<1x50xf32>
    %1226 = vector.extract_strided_slice %750 {offsets = [3, 0], sizes = [1, 5], strides = [1, 1]} : vector<5x5xf32> to vector<1x5xf32>
    %c15_188 = arith.constant 15 : index
    %c0_189 = arith.constant 0 : index
    %1227 = vector.load %arg6[%c15_188, %c0_189] : memref<100x50xf32, #tpu.memory_space<vmem>>, vector<5x50xf32>
    %cst_190 = arith.constant dense<0.000000e+00> : vector<1x50xf32>
    %1228 = tpu.matmul %1226, %1227, %cst_190 {dimension_numbers = #tpu.dot_dimension_numbers<[1], [0], [0], [1], [0, 0, 1, 1], [], []>} : vector<1x5xf32>, vector<5x50xf32>, vector<1x50xf32> -> vector<1x50xf32>
    %1229 = arith.addf %1225, %1228 : vector<1x50xf32>
    %1230 = vector.extract_strided_slice %750 {offsets = [4, 0], sizes = [1, 5], strides = [1, 1]} : vector<5x5xf32> to vector<1x5xf32>
    %c20_191 = arith.constant 20 : index
    %c0_192 = arith.constant 0 : index
    %1231 = vector.load %arg6[%c20_191, %c0_192] : memref<100x50xf32, #tpu.memory_space<vmem>>, vector<5x50xf32>
    %cst_193 = arith.constant dense<0.000000e+00> : vector<1x50xf32>
    %1232 = tpu.matmul %1230, %1231, %cst_193 {dimension_numbers = #tpu.dot_dimension_numbers<[1], [0], [0], [1], [0, 0, 1, 1], [], []>} : vector<1x5xf32>, vector<5x50xf32>, vector<1x50xf32> -> vector<1x50xf32>
    %1233 = arith.addf %1229, %1232 : vector<1x50xf32>
    %1234 = vector.extract_strided_slice %904 {offsets = [0, 0], sizes = [1, 5], strides = [1, 1]} : vector<5x5xf32> to vector<1x5xf32>
    %c25_194 = arith.constant 25 : index
    %c0_195 = arith.constant 0 : index
    %1235 = vector.load %arg6[%c25_194, %c0_195] : memref<100x50xf32, #tpu.memory_space<vmem>>, vector<5x50xf32>
    %cst_196 = arith.constant dense<0.000000e+00> : vector<1x50xf32>
    %1236 = tpu.matmul %1234, %1235, %cst_196 {dimension_numbers = #tpu.dot_dimension_numbers<[1], [0], [0], [1], [0, 0, 1, 1], [], []>} : vector<1x5xf32>, vector<5x50xf32>, vector<1x50xf32> -> vector<1x50xf32>
    %1237 = arith.addf %1233, %1236 : vector<1x50xf32>
    %1238 = vector.extract_strided_slice %904 {offsets = [1, 0], sizes = [1, 5], strides = [1, 1]} : vector<5x5xf32> to vector<1x5xf32>
    %c30_197 = arith.constant 30 : index
    %c0_198 = arith.constant 0 : index
    %1239 = vector.load %arg6[%c30_197, %c0_198] : memref<100x50xf32, #tpu.memory_space<vmem>>, vector<5x50xf32>
    %cst_199 = arith.constant dense<0.000000e+00> : vector<1x50xf32>
    %1240 = tpu.matmul %1238, %1239, %cst_199 {dimension_numbers = #tpu.dot_dimension_numbers<[1], [0], [0], [1], [0, 0, 1, 1], [], []>} : vector<1x5xf32>, vector<5x50xf32>, vector<1x50xf32> -> vector<1x50xf32>
    %1241 = arith.addf %1237, %1240 : vector<1x50xf32>
    %1242 = vector.extract_strided_slice %904 {offsets = [2, 0], sizes = [1, 5], strides = [1, 1]} : vector<5x5xf32> to vector<1x5xf32>
    %c35_200 = arith.constant 35 : index
    %c0_201 = arith.constant 0 : index
    %1243 = vector.load %arg6[%c35_200, %c0_201] : memref<100x50xf32, #tpu.memory_space<vmem>>, vector<5x50xf32>
    %cst_202 = arith.constant dense<0.000000e+00> : vector<1x50xf32>
    %1244 = tpu.matmul %1242, %1243, %cst_202 {dimension_numbers = #tpu.dot_dimension_numbers<[1], [0], [0], [1], [0, 0, 1, 1], [], []>} : vector<1x5xf32>, vector<5x50xf32>, vector<1x50xf32> -> vector<1x50xf32>
    %1245 = arith.addf %1241, %1244 : vector<1x50xf32>
    %1246 = vector.extract_strided_slice %904 {offsets = [3, 0], sizes = [1, 5], strides = [1, 1]} : vector<5x5xf32> to vector<1x5xf32>
    %c40_203 = arith.constant 40 : index
    %c0_204 = arith.constant 0 : index
    %1247 = vector.load %arg6[%c40_203, %c0_204] : memref<100x50xf32, #tpu.memory_space<vmem>>, vector<5x50xf32>
    %cst_205 = arith.constant dense<0.000000e+00> : vector<1x50xf32>
    %1248 = tpu.matmul %1246, %1247, %cst_205 {dimension_numbers = #tpu.dot_dimension_numbers<[1], [0], [0], [1], [0, 0, 1, 1], [], []>} : vector<1x5xf32>, vector<5x50xf32>, vector<1x50xf32> -> vector<1x50xf32>
    %1249 = arith.addf %1245, %1248 : vector<1x50xf32>
    %1250 = vector.extract_strided_slice %904 {offsets = [4, 0], sizes = [1, 5], strides = [1, 1]} : vector<5x5xf32> to vector<1x5xf32>
    %c45_206 = arith.constant 45 : index
    %c0_207 = arith.constant 0 : index
    %1251 = vector.load %arg6[%c45_206, %c0_207] : memref<100x50xf32, #tpu.memory_space<vmem>>, vector<5x50xf32>
    %cst_208 = arith.constant dense<0.000000e+00> : vector<1x50xf32>
    %1252 = tpu.matmul %1250, %1251, %cst_208 {dimension_numbers = #tpu.dot_dimension_numbers<[1], [0], [0], [1], [0, 0, 1, 1], [], []>} : vector<1x5xf32>, vector<5x50xf32>, vector<1x50xf32> -> vector<1x50xf32>
    %1253 = arith.addf %1249, %1252 : vector<1x50xf32>
    %1254 = vector.extract_strided_slice %1058 {offsets = [0, 0], sizes = [1, 5], strides = [1, 1]} : vector<5x5xf32> to vector<1x5xf32>
    %c50_209 = arith.constant 50 : index
    %c0_210 = arith.constant 0 : index
    %1255 = vector.load %arg6[%c50_209, %c0_210] : memref<100x50xf32, #tpu.memory_space<vmem>>, vector<5x50xf32>
    %cst_211 = arith.constant dense<0.000000e+00> : vector<1x50xf32>
    %1256 = tpu.matmul %1254, %1255, %cst_211 {dimension_numbers = #tpu.dot_dimension_numbers<[1], [0], [0], [1], [0, 0, 1, 1], [], []>} : vector<1x5xf32>, vector<5x50xf32>, vector<1x50xf32> -> vector<1x50xf32>
    %1257 = arith.addf %1253, %1256 : vector<1x50xf32>
    %1258 = vector.extract_strided_slice %1058 {offsets = [1, 0], sizes = [1, 5], strides = [1, 1]} : vector<5x5xf32> to vector<1x5xf32>
    %c55_212 = arith.constant 55 : index
    %c0_213 = arith.constant 0 : index
    %1259 = vector.load %arg6[%c55_212, %c0_213] : memref<100x50xf32, #tpu.memory_space<vmem>>, vector<5x50xf32>
    %cst_214 = arith.constant dense<0.000000e+00> : vector<1x50xf32>
    %1260 = tpu.matmul %1258, %1259, %cst_214 {dimension_numbers = #tpu.dot_dimension_numbers<[1], [0], [0], [1], [0, 0, 1, 1], [], []>} : vector<1x5xf32>, vector<5x50xf32>, vector<1x50xf32> -> vector<1x50xf32>
    %1261 = arith.addf %1257, %1260 : vector<1x50xf32>
    %1262 = vector.extract_strided_slice %1058 {offsets = [2, 0], sizes = [1, 5], strides = [1, 1]} : vector<5x5xf32> to vector<1x5xf32>
    %c60_215 = arith.constant 60 : index
    %c0_216 = arith.constant 0 : index
    %1263 = vector.load %arg6[%c60_215, %c0_216] : memref<100x50xf32, #tpu.memory_space<vmem>>, vector<5x50xf32>
    %cst_217 = arith.constant dense<0.000000e+00> : vector<1x50xf32>
    %1264 = tpu.matmul %1262, %1263, %cst_217 {dimension_numbers = #tpu.dot_dimension_numbers<[1], [0], [0], [1], [0, 0, 1, 1], [], []>} : vector<1x5xf32>, vector<5x50xf32>, vector<1x50xf32> -> vector<1x50xf32>
    %1265 = arith.addf %1261, %1264 : vector<1x50xf32>
    %1266 = vector.extract_strided_slice %1058 {offsets = [3, 0], sizes = [1, 5], strides = [1, 1]} : vector<5x5xf32> to vector<1x5xf32>
    %c65_218 = arith.constant 65 : index
    %c0_219 = arith.constant 0 : index
    %1267 = vector.load %arg6[%c65_218, %c0_219] : memref<100x50xf32, #tpu.memory_space<vmem>>, vector<5x50xf32>
    %cst_220 = arith.constant dense<0.000000e+00> : vector<1x50xf32>
    %1268 = tpu.matmul %1266, %1267, %cst_220 {dimension_numbers = #tpu.dot_dimension_numbers<[1], [0], [0], [1], [0, 0, 1, 1], [], []>} : vector<1x5xf32>, vector<5x50xf32>, vector<1x50xf32> -> vector<1x50xf32>
    %1269 = arith.addf %1265, %1268 : vector<1x50xf32>
    %1270 = vector.extract_strided_slice %1058 {offsets = [4, 0], sizes = [1, 5], strides = [1, 1]} : vector<5x5xf32> to vector<1x5xf32>
    %c70_221 = arith.constant 70 : index
    %c0_222 = arith.constant 0 : index
    %1271 = vector.load %arg6[%c70_221, %c0_222] : memref<100x50xf32, #tpu.memory_space<vmem>>, vector<5x50xf32>
    %cst_223 = arith.constant dense<0.000000e+00> : vector<1x50xf32>
    %1272 = tpu.matmul %1270, %1271, %cst_223 {dimension_numbers = #tpu.dot_dimension_numbers<[1], [0], [0], [1], [0, 0, 1, 1], [], []>} : vector<1x5xf32>, vector<5x50xf32>, vector<1x50xf32> -> vector<1x50xf32>
    %1273 = arith.addf %1269, %1272 : vector<1x50xf32>
    %1274 = vector.extract_strided_slice %1212 {offsets = [0, 0], sizes = [1, 5], strides = [1, 1]} : vector<5x5xf32> to vector<1x5xf32>
    %c75_224 = arith.constant 75 : index
    %c0_225 = arith.constant 0 : index
    %1275 = vector.load %arg6[%c75_224, %c0_225] : memref<100x50xf32, #tpu.memory_space<vmem>>, vector<5x50xf32>
    %cst_226 = arith.constant dense<0.000000e+00> : vector<1x50xf32>
    %1276 = tpu.matmul %1274, %1275, %cst_226 {dimension_numbers = #tpu.dot_dimension_numbers<[1], [0], [0], [1], [0, 0, 1, 1], [], []>} : vector<1x5xf32>, vector<5x50xf32>, vector<1x50xf32> -> vector<1x50xf32>
    %1277 = arith.addf %1273, %1276 : vector<1x50xf32>
    %1278 = vector.extract_strided_slice %1212 {offsets = [1, 0], sizes = [1, 5], strides = [1, 1]} : vector<5x5xf32> to vector<1x5xf32>
    %c80_227 = arith.constant 80 : index
    %c0_228 = arith.constant 0 : index
    %1279 = vector.load %arg6[%c80_227, %c0_228] : memref<100x50xf32, #tpu.memory_space<vmem>>, vector<5x50xf32>
    %cst_229 = arith.constant dense<0.000000e+00> : vector<1x50xf32>
    %1280 = tpu.matmul %1278, %1279, %cst_229 {dimension_numbers = #tpu.dot_dimension_numbers<[1], [0], [0], [1], [0, 0, 1, 1], [], []>} : vector<1x5xf32>, vector<5x50xf32>, vector<1x50xf32> -> vector<1x50xf32>
    %1281 = arith.addf %1277, %1280 : vector<1x50xf32>
    %1282 = vector.extract_strided_slice %1212 {offsets = [2, 0], sizes = [1, 5], strides = [1, 1]} : vector<5x5xf32> to vector<1x5xf32>
    %c85_230 = arith.constant 85 : index
    %c0_231 = arith.constant 0 : index
    %1283 = vector.load %arg6[%c85_230, %c0_231] : memref<100x50xf32, #tpu.memory_space<vmem>>, vector<5x50xf32>
    %cst_232 = arith.constant dense<0.000000e+00> : vector<1x50xf32>
    %1284 = tpu.matmul %1282, %1283, %cst_232 {dimension_numbers = #tpu.dot_dimension_numbers<[1], [0], [0], [1], [0, 0, 1, 1], [], []>} : vector<1x5xf32>, vector<5x50xf32>, vector<1x50xf32> -> vector<1x50xf32>
    %1285 = arith.addf %1281, %1284 : vector<1x50xf32>
    %1286 = vector.extract_strided_slice %1212 {offsets = [3, 0], sizes = [1, 5], strides = [1, 1]} : vector<5x5xf32> to vector<1x5xf32>
    %c90_233 = arith.constant 90 : index
    %c0_234 = arith.constant 0 : index
    %1287 = vector.load %arg6[%c90_233, %c0_234] : memref<100x50xf32, #tpu.memory_space<vmem>>, vector<5x50xf32>
    %cst_235 = arith.constant dense<0.000000e+00> : vector<1x50xf32>
    %1288 = tpu.matmul %1286, %1287, %cst_235 {dimension_numbers = #tpu.dot_dimension_numbers<[1], [0], [0], [1], [0, 0, 1, 1], [], []>} : vector<1x5xf32>, vector<5x50xf32>, vector<1x50xf32> -> vector<1x50xf32>
    %1289 = arith.addf %1285, %1288 : vector<1x50xf32>
    %1290 = vector.extract_strided_slice %1212 {offsets = [4, 0], sizes = [1, 5], strides = [1, 1]} : vector<5x5xf32> to vector<1x5xf32>
    %c95_236 = arith.constant 95 : index
    %c0_237 = arith.constant 0 : index
    %1291 = vector.load %arg6[%c95_236, %c0_237] : memref<100x50xf32, #tpu.memory_space<vmem>>, vector<5x50xf32>
    %cst_238 = arith.constant dense<0.000000e+00> : vector<1x50xf32>
    %1292 = tpu.matmul %1290, %1291, %cst_238 {dimension_numbers = #tpu.dot_dimension_numbers<[1], [0], [0], [1], [0, 0, 1, 1], [], []>} : vector<1x5xf32>, vector<5x50xf32>, vector<1x50xf32> -> vector<1x50xf32>
    %1293 = arith.addf %1289, %1292 : vector<1x50xf32>
    %cst_239 = arith.constant 0.000000e+00 : f32
    %1294 = vector.broadcast %cst_239 : f32 to vector<1x50xf32>
    %1295 = arith.maximumf %1293, %1294 : vector<1x50xf32>
    %c0_240 = arith.constant 0 : index
    %c0_241 = arith.constant 0 : index
    %1296 = vector.load %arg8[%c0_240, %c0_241] : memref<50x3xf32, #tpu.memory_space<vmem>>, vector<50x3xf32>
    %cst_242 = arith.constant dense<0.000000e+00> : vector<1x3xf32>
    %1297 = tpu.matmul %1295, %1296, %cst_242 {dimension_numbers = #tpu.dot_dimension_numbers<[1], [0], [0], [1], [0, 0, 1, 1], [], []>} : vector<1x50xf32>, vector<50x3xf32>, vector<1x3xf32> -> vector<1x3xf32>
    %c0_243 = arith.constant 0 : index
    %c0_244 = arith.constant 0 : index
    %1298 = vector.load %arg9[%c0_243, %c0_244] : memref<1x3xf32, #tpu.memory_space<vmem>>, vector<1x3xf32>
    %1299 = arith.addf %1297, %1298 : vector<1x3xf32>
    %c0_245 = arith.constant 0 : index
    %c0_246 = arith.constant 0 : index
    %c0_247 = arith.constant 0 : index
    %1300 = vector.load %arg10[%c0_245, %c0_246, %c0_247] : memref<1x1x3xf32, #tpu.memory_space<vmem>>, vector<1x1x3xf32>
    %1301 = vector.shape_cast %1300 : vector<1x1x3xf32> to vector<1x3xf32>
    %1302 = vector.shape_cast %1299 : vector<1x3xf32> to vector<1x1x3xf32>
    tpu.vector_store %arg10[%c0_245, %c0_246, %c0_247], %1302 {strides = array<i32>} : memref<1x1x3xf32, #tpu.memory_space<vmem>>, vector<1x1x3xf32>,
    return
  }
  func.func @transform_0(%arg0: i32) -> (i32, i32, i32, i32) {
    %c0_i32 = arith.constant 0 : i32
    %c0_i32_0 = arith.constant 0 : i32
    %c0_i32_1 = arith.constant 0 : i32
    %c0_i32_2 = arith.constant 0 : i32
    return %arg0, %c0_i32, %c0_i32_0, %c0_i32_1 : i32, i32, i32, i32
  }
  func.func @transform_1(%arg0: i32) -> i32 {
    %c0_i32 = arith.constant 0 : i32
    %c0_i32_0 = arith.constant 0 : i32
    return %c0_i32 : i32
  }
  func.func @transform_2(%arg0: i32) -> i32 {
    %c0_i32 = arith.constant 0 : i32
    %c0_i32_0 = arith.constant 0 : i32
    return %c0_i32 : i32
  }
  func.func @transform_3(%arg0: i32) -> i32 {
    %c0_i32 = arith.constant 0 : i32
    %c0_i32_0 = arith.constant 0 : i32
    return %c0_i32 : i32
  }
  func.func @transform_4(%arg0: i32) -> i32 {
    %c0_i32 = arith.constant 0 : i32
    %c0_i32_0 = arith.constant 0 : i32
    return %c0_i32 : i32
  }
  func.func @transform_5(%arg0: i32) -> (i32, i32) {
    %c0_i32 = arith.constant 0 : i32
    %c0_i32_0 = arith.constant 0 : i32
    %c0_i32_1 = arith.constant 0 : i32
    return %c0_i32, %c0_i32_0 : i32, i32
  }
  func.func @transform_6(%arg0: i32) -> (i32, i32) {
    %c0_i32 = arith.constant 0 : i32
    %c0_i32_0 = arith.constant 0 : i32
    %c0_i32_1 = arith.constant 0 : i32
    return %c0_i32, %c0_i32_0 : i32, i32
  }
  func.func @transform_7(%arg0: i32) -> (i32, i32) {
    %c0_i32 = arith.constant 0 : i32
    %c0_i32_0 = arith.constant 0 : i32
    %c0_i32_1 = arith.constant 0 : i32
    return %c0_i32, %c0_i32_0 : i32, i32
  }
  func.func @transform_8(%arg0: i32) -> (i32, i32) {
    %c0_i32 = arith.constant 0 : i32
    %c0_i32_0 = arith.constant 0 : i32
    %c0_i32_1 = arith.constant 0 : i32
    return %c0_i32, %c0_i32_0 : i32, i32
  }
  func.func @transform_9(%arg0: i32) -> (i32, i32, i32) {
    %c0_i32 = arith.constant 0 : i32
    %c0_i32_0 = arith.constant 0 : i32
    %c0_i32_1 = arith.constant 0 : i32
    return %arg0, %c0_i32, %c0_i32_0 : i32, i32, i32
  }
}

</mosaic_0001>

<llo_original>
// kernel: cnn2_forward.1
$region0: #{cnn2_forward.1}
  #allocation0 [shape = 'u32[]', space=smem, size = 0x4, offset = 0x4, fixed_abs, tag = 'smem constant byte address 0x4 - core index']
  #allocation1 [shape = 'u32[144,128]{1,0:T(1,128)}', space=vmem, size = 0x12000, scoped, tag = 'internal scratch']
  %s0 = inlined_call_operand.vmem [shape: f32[2,3,28,28], index: 0, kind: input, shape index: {}]
  %s1 = inlined_call_operand.vmem [shape: f32[108], index: 1, kind: input, shape index: {}]
  %s2 = inlined_call_operand.vmem [shape: f32[4], index: 2, kind: input, shape index: {}]
  %s3 = inlined_call_operand.vmem [shape: f32[144], index: 3, kind: input, shape index: {}]
  %s4 = inlined_call_operand.vmem [shape: f32[4], index: 4, kind: input, shape index: {}]
  %s5 = inlined_call_operand.vmem [shape: f32[100,50], index: 5, kind: input, shape index: {}]
  %s6 = inlined_call_operand.vmem [shape: f32[1,50], index: 6, kind: input, shape index: {}]
  %s7 = inlined_call_operand.vmem [shape: f32[50,3], index: 7, kind: input, shape index: {}]
  %s8 = inlined_call_operand.vmem [shape: f32[1,3], index: 8, kind: input, shape index: {}]
  %s9 = inlined_call_operand.hbm [shape: f32[2,1,3], index: 9, kind: output, shape index: {}]
  %s10 = sld [smem:[#allocation0]]
  $region85: #{cnn2_forward.1} parent=0
    _
  %s12 = ssub.s32 1, %s10
  %s13 = scalar_select 0, %s12, %s10
  $region1: #{cnn2_forward.1} parent=0
    #allocation2 [shape = 'u8[512]{0}', space=smem, size = 0x200, scoped, tag = 'input window, operand 1, single buffered']
    #allocation3 [shape = 's32[2]{0}', space=sflag, size = 0x8, scoped, tag = 'scoped memory for cnn2_forward.1']
    #allocation4 [shape = 's32[2]{0}', space=sflag, size = 0x8, scoped, tag = 'scoped memory for cnn2_forward.1']
    #allocation5 [shape = 'u8[512]{0}', space=smem, size = 0x200, scoped, tag = 'input window, operand 2, single buffered']
    #allocation6 [shape = 's32[1]{0}', space=sflag, size = 0x4, scoped, tag = 'scoped memory for cnn2_forward.1']
    #allocation7 [shape = 'u8[1024]{0}', space=smem, size = 0x400, scoped, tag = 'input window, operand 3, single buffered']
    #allocation8 [shape = 'u8[512]{0}', space=smem, size = 0x200, scoped, tag = 'input window, operand 4, single buffered']
    #allocation9 [shape = 's32[1]{0}', space=sflag, size = 0x4, scoped, tag = 'scoped memory for cnn2_forward.1']
    #allocation10 [shape = 'u8[1024]{0}', space=vmem, size = 0x400, scoped, tag = 'output window, operand 0']
    %14 = vsyncpa [#allocation4], 0
    %15 = vsyncpa [#allocation6], 0
    %16 = vsyncpa [#allocation9], 0
    %17 = vsyncpa [#allocation3], 0
    %s18 = scalar_lea.sflag [#allocation3], 1
    %19 = vsyncpa %s18, 0
    loop: start=0, step=1, limit=4
    $region2: #{cnn2_forward.1} parent=1 // loop_pre_header
      _
    $region3: #{cnn2_forward.1} parent=1 // loop_header
      %s21 = sphi 0, %s25
      %p22 = scmp.ge.s32.totalorder %s21, 4
      %s31 = sphi 0, %s33
      %s34 = sphi 0, %s31
      %s35 = sphi 0, %s34
      %s51 = sphi 0, %s35
      %s55 = sphi 0, %s55
      %s57 = sphi 0, %s55
      %s58 = sphi 0, %s57
      %s72 = sphi 0, %s58
      %s76 = sphi 0, %s76
      %s78 = sphi 0, %s76
      %s79 = sphi 0, %s78
      %s93 = sphi 0, %s79
      %s97 = sphi 0, %s97
      %s99 = sphi 0, %s97
      %s100 = sphi 0, %s99
      %s114 = sphi 0, %s100
      %s118 = sphi 0, %s118
      %s120 = sphi 0, %s118
      %s121 = sphi 0, %s120
      %s135 = sphi 0, %s121
      %s139 = sphi 0, %s139
      %s141 = sphi 0, %s139
      %s142 = sphi 0, %s141
      %s156 = sphi 0, %s142
      %s160 = sphi 0, %s160
      %s162 = sphi 0, %s160
      %s163 = sphi 0, %s162
      %s177 = sphi 0, %s163
      %s181 = sphi 0, %s181
      %s183 = sphi 0, %s181
      %s184 = sphi 0, %s183
      %s198 = sphi 0, %s184
      %s202 = sphi 0, %s202
      %s204 = sphi 0, %s202
      %s205 = sphi 0, %s204
      %s219 = sphi 0, %s205
      %s225 = sphi 0, %s227
      %s228 = sphi 0, %s225
      %s229 = sphi 0, %s228
      %s245 = sphi 0, %s229
    $region4: #{cnn2_forward.1} parent=1 // loop_header_branch
      %24 = sbr.rel (%p22) target = $region8
    $region5: #{cnn2_forward.1} parent=1 // loop_body
      %s26 = ssub.s32 %s21, 1
      %s27 = ssub.s32 %s21, 2
      %s28 = sadd.s32 %s21, 1
      %s29 = ssub.s32 %s21, %s28
      %p30 = scmp.eq.s32.totalorder %s29, 0
      %s32 = sadd.s32 %s31, 1
      %s33 = scalar_select %p30, %s31, %s32
      %p36 = pneg %p30
      %p37 = scmp.eq.s32.totalorder %s21, 1
      %p38 = por %p36, %p37
      %p39 = scmp.ne.s32.totalorder %s31, %s34
      %p40 = scmp.eq.s32.totalorder %s21, 0
      %p41 = por %p39, %p40
      %p42 = scmp.ne.s32.totalorder %s31, %s34
      %p43 = scmp.eq.s32.totalorder %s26, 1
      %p44 = por %p42, %p43
      %p45 = scmp.ne.s32.totalorder %s34, %s35
      %p46 = scmp.eq.s32.totalorder %s26, 0
      %p47 = por %p45, %p46
      %p48 = scmp.ne.s32.totalorder %s34, %s35
      %p49 = scmp.eq.s32.totalorder %s27, 1
      %p50 = por %p48, %p49
      %p52 = scmp.ne.s32.totalorder %s35, %s51
      %p53 = scmp.eq.s32.totalorder %s27, 0
      %p54 = por %p52, %p53
      %s56 = sadd.s32 %s55, 1
      %p59 = scmp.eq.s32.totalorder %s21, 1
      %p60 = scmp.ne.s32.totalorder %s55, %s57
      %p61 = scmp.eq.s32.totalorder %s21, 0
      %p62 = por %p60, %p61
      %p63 = scmp.ne.s32.totalorder %s55, %s57
      %p64 = scmp.eq.s32.totalorder %s26, 1
      %p65 = por %p63, %p64
      %p66 = scmp.ne.s32.totalorder %s57, %s58
      %p67 = scmp.eq.s32.totalorder %s26, 0
      %p68 = por %p66, %p67
      %p69 = scmp.ne.s32.totalorder %s57, %s58
      %p70 = scmp.eq.s32.totalorder %s27, 1
      %p71 = por %p69, %p70
      %p73 = scmp.ne.s32.totalorder %s58, %s72
      %p74 = scmp.eq.s32.totalorder %s27, 0
      %p75 = por %p73, %p74
      %s77 = sadd.s32 %s76, 1
      %p80 = scmp.eq.s32.totalorder %s21, 1
      %p81 = scmp.ne.s32.totalorder %s76, %s78
      %p82 = scmp.eq.s32.totalorder %s21, 0
      %p83 = por %p81, %p82
      %p84 = scmp.ne.s32.totalorder %s76, %s78
      %p85 = scmp.eq.s32.totalorder %s26, 1
      %p86 = por %p84, %p85
      %p87 = scmp.ne.s32.totalorder %s78, %s79
      %p88 = scmp.eq.s32.totalorder %s26, 0
      %p89 = por %p87, %p88
      %p90 = scmp.ne.s32.totalorder %s78, %s79
      %p91 = scmp.eq.s32.totalorder %s27, 1
      %p92 = por %p90, %p91
      %p94 = scmp.ne.s32.totalorder %s79, %s93
      %p95 = scmp.eq.s32.totalorder %s27, 0
      %p96 = por %p94, %p95
      %s98 = sadd.s32 %s97, 1
      %p101 = scmp.eq.s32.totalorder %s21, 1
      %p102 = scmp.ne.s32.totalorder %s97, %s99
      %p103 = scmp.eq.s32.totalorder %s21, 0
      %p104 = por %p102, %p103
      %p105 = scmp.ne.s32.totalorder %s97, %s99
      %p106 = scmp.eq.s32.totalorder %s26, 1
      %p107 = por %p105, %p106
      %p108 = scmp.ne.s32.totalorder %s99, %s100
      %p109 = scmp.eq.s32.totalorder %s26, 0
      %p110 = por %p108, %p109
      %p111 = scmp.ne.s32.totalorder %s99, %s100
      %p112 = scmp.eq.s32.totalorder %s27, 1
      %p113 = por %p111, %p112
      %p115 = scmp.ne.s32.totalorder %s100, %s114
      %p116 = scmp.eq.s32.totalorder %s27, 0
      %p117 = por %p115, %p116
      %s119 = sadd.s32 %s118, 1
      %p122 = scmp.eq.s32.totalorder %s21, 1
      %p123 = scmp.ne.s32.totalorder %s118, %s120
      %p124 = scmp.eq.s32.totalorder %s21, 0
      %p125 = por %p123, %p124
      %p126 = scmp.ne.s32.totalorder %s118, %s120
      %p127 = scmp.eq.s32.totalorder %s26, 1
      %p128 = por %p126, %p127
      %p129 = scmp.ne.s32.totalorder %s120, %s121
      %p130 = scmp.eq.s32.totalorder %s26, 0
      %p131 = por %p129, %p130
      %p132 = scmp.ne.s32.totalorder %s120, %s121
      %p133 = scmp.eq.s32.totalorder %s27, 1
      %p134 = por %p132, %p133
      %p136 = scmp.ne.s32.totalorder %s121, %s135
      %p137 = scmp.eq.s32.totalorder %s27, 0
      %p138 = por %p136, %p137
      %s140 = sadd.s32 %s139, 1
      %p143 = scmp.eq.s32.totalorder %s21, 1
      %p144 = scmp.ne.s32.totalorder %s139, %s141
      %p145 = scmp.eq.s32.totalorder %s21, 0
      %p146 = por %p144, %p145
      %p147 = scmp.ne.s32.totalorder %s139, %s141
      %p148 = scmp.eq.s32.totalorder %s26, 1
      %p149 = por %p147, %p148
      %p150 = scmp.ne.s32.totalorder %s141, %s142
      %p151 = scmp.eq.s32.totalorder %s26, 0
      %p152 = por %p150, %p151
      %p153 = scmp.ne.s32.totalorder %s141, %s142
      %p154 = scmp.eq.s32.totalorder %s27, 1
      %p155 = por %p153, %p154
      %p157 = scmp.ne.s32.totalorder %s142, %s156
      %p158 = scmp.eq.s32.totalorder %s27, 0
      %p159 = por %p157, %p158
      %s161 = sadd.s32 %s160, 1
      %p164 = scmp.eq.s32.totalorder %s21, 1
      %p165 = scmp.ne.s32.totalorder %s160, %s162
      %p166 = scmp.eq.s32.totalorder %s21, 0
      %p167 = por %p165, %p166
      %p168 = scmp.ne.s32.totalorder %s160, %s162
      %p169 = scmp.eq.s32.totalorder %s26, 1
      %p170 = por %p168, %p169
      %p171 = scmp.ne.s32.totalorder %s162, %s163
      %p172 = scmp.eq.s32.totalorder %s26, 0
      %p173 = por %p171, %p172
      %p174 = scmp.ne.s32.totalorder %s162, %s163
      %p175 = scmp.eq.s32.totalorder %s27, 1
      %p176 = por %p174, %p175
      %p178 = scmp.ne.s32.totalorder %s163, %s177
      %p179 = scmp.eq.s32.totalorder %s27, 0
      %p180 = por %p178, %p179
      %s182 = sadd.s32 %s181, 1
      %p185 = scmp.eq.s32.totalorder %s21, 1
      %p186 = scmp.ne.s32.totalorder %s181, %s183
      %p187 = scmp.eq.s32.totalorder %s21, 0
      %p188 = por %p186, %p187
      %p189 = scmp.ne.s32.totalorder %s181, %s183
      %p190 = scmp.eq.s32.totalorder %s26, 1
      %p191 = por %p189, %p190
      %p192 = scmp.ne.s32.totalorder %s183, %s184
      %p193 = scmp.eq.s32.totalorder %s26, 0
      %p194 = por %p192, %p193
      %p195 = scmp.ne.s32.totalorder %s183, %s184
      %p196 = scmp.eq.s32.totalorder %s27, 1
      %p197 = por %p195, %p196
      %p199 = scmp.ne.s32.totalorder %s184, %s198
      %p200 = scmp.eq.s32.totalorder %s27, 0
      %p201 = por %p199, %p200
      %s203 = sadd.s32 %s202, 1
      %p206 = scmp.eq.s32.totalorder %s21, 1
      %p207 = scmp.ne.s32.totalorder %s202, %s204
      %p208 = scmp.eq.s32.totalorder %s21, 0
      %p209 = por %p207, %p208
      %p210 = scmp.ne.s32.totalorder %s202, %s204
      %p211 = scmp.eq.s32.totalorder %s26, 1
      %p212 = por %p210, %p211
      %p213 = scmp.ne.s32.totalorder %s204, %s205
      %p214 = scmp.eq.s32.totalorder %s26, 0
      %p215 = por %p213, %p214
      %p216 = scmp.ne.s32.totalorder %s204, %s205
      %p217 = scmp.eq.s32.totalorder %s27, 1
      %p218 = por %p216, %p217
      %p220 = scmp.ne.s32.totalorder %s205, %s219
      %p221 = scmp.eq.s32.totalorder %s27, 0
      %p222 = por %p220, %p221
      %s223 = ssub.s32 %s21, %s28
      %p224 = scmp.eq.s32.totalorder %s223, 0
      %s226 = sadd.s32 %s225, 1
      %s227 = scalar_select %p224, %s225, %s226
      %p230 = pneg %p224
      %p231 = scmp.eq.s32.totalorder %s21, 1
      %p232 = por %p230, %p231
      %p233 = scmp.ne.s32.totalorder %s225, %s228
      %p234 = scmp.eq.s32.totalorder %s21, 0
      %p235 = por %p233, %p234
      %p236 = scmp.ne.s32.totalorder %s225, %s228
      %p237 = scmp.eq.s32.totalorder %s26, 1
      %p238 = por %p236, %p237
      %p239 = scmp.ne.s32.totalorder %s228, %s229
      %p240 = scmp.eq.s32.totalorder %s26, 0
      %p241 = por %p239, %p240
      %p242 = scmp.ne.s32.totalorder %s228, %s229
      %p243 = scmp.eq.s32.totalorder %s27, 1
      %p244 = por %p242, %p243
      %p246 = scmp.ne.s32.totalorder %s229, %s245
      %p247 = scmp.eq.s32.totalorder %s27, 0
      %p248 = por %p246, %p247
      %p249 = scmp.le.s32.totalorder 1, %s21
      %p250 = scmp.lt.s32.totalorder %s21, 3
      %p251 = pnand %p249, %p250
      %p252 = pneg %p251
      // Predicated region
      $region9: #{cnn2_forward.1} parent=5 // pred_check
        _
      $region10: #{cnn2_forward.1} parent=5 // pred_check_branch
        %254 = sbr.rel (%p251) target = $region12
      $region11: #{cnn2_forward.1} parent=5 // pred_region
        %s255 = ssub.s32 %s21, 1
        // Predicated region
        $region13: #{cnn2_forward.1} parent=11 // pred_check
          %p256 = pneg %p68
        $region14: #{cnn2_forward.1} parent=11 // pred_check_branch
          %258 = sbr.rel (%p256) target = $region16
        $region15: #{cnn2_forward.1} parent=11 // pred_region
          %s260 = ssub.s32 16, 16
          %261 = vsyncadd [#allocation4], %s260
          %s263 = sshll.u32 %s1, 4
          %s264 = int_to_ptr.vmem [resolvable:$true] %s263
          %266 = dma.vmem_to_smem %s264, 16, [#allocation2], [#allocation4]
        $region16: #{cnn2_forward.1} parent=11 // pred_fallthru
          _
        // Predicated region
        $region17: #{cnn2_forward.1} parent=11 // pred_check
          %p267 = pneg %p89
        $region18: #{cnn2_forward.1} parent=11 // pred_check_branch
          %269 = sbr.rel (%p267) target = $region20
        $region19: #{cnn2_forward.1} parent=11 // pred_region
          %s271 = ssub.s32 16, 16
          %272 = vsyncadd [#allocation6], %s271
          %s274 = sshll.u32 %s2, 4
          %s275 = int_to_ptr.vmem [resolvable:$true] %s274
          %277 = dma.vmem_to_smem %s275, 16, [#allocation5], [#allocation6]
        $region20: #{cnn2_forward.1} parent=11 // pred_fallthru
          _
        // Predicated region
        $region21: #{cnn2_forward.1} parent=11 // pred_check
          %p278 = pneg %p110
        $region22: #{cnn2_forward.1} parent=11 // pred_check_branch
          %280 = sbr.rel (%p278) target = $region24
        $region23: #{cnn2_forward.1} parent=11 // pred_region
          %s282 = ssub.s32 32, 32
          %283 = vsyncadd [#allocation6], %s282
          %s285 = sshll.u32 %s3, 4
          %s286 = int_to_ptr.vmem [resolvable:$true] %s285
          %288 = dma.vmem_to_smem %s286, 32, [#allocation7], [#allocation6]
        $region24: #{cnn2_forward.1} parent=11 // pred_fallthru
          _
        // Predicated region
        $region25: #{cnn2_forward.1} parent=11 // pred_check
          %p289 = pneg %p131
        $region26: #{cnn2_forward.1} parent=11 // pred_check_branch
          %291 = sbr.rel (%p289) target = $region28
        $region27: #{cnn2_forward.1} parent=11 // pred_region
          %s293 = ssub.s32 16, 16
          %294 = vsyncadd [#allocation9], %s293
          %s296 = sshll.u32 %s4, 4
          %s297 = int_to_ptr.vmem [resolvable:$true] %s296
          %299 = dma.vmem_to_smem %s297, 16, [#allocation8], [#allocation9]
        $region28: #{cnn2_forward.1} parent=11 // pred_fallthru
          _
        // Predicated region
        $region29: #{cnn2_forward.1} parent=11 // pred_check
          %p300 = pneg %p152
        $region30: #{cnn2_forward.1} parent=11 // pred_check_branch
          %302 = sbr.rel (%p300) target = $region32
        $region31: #{cnn2_forward.1} parent=11 // pred_region
          _
        $region32: #{cnn2_forward.1} parent=11 // pred_fallthru
          _
        // Predicated region
        $region33: #{cnn2_forward.1} parent=11 // pred_check
          %p303 = pneg %p173
        $region34: #{cnn2_forward.1} parent=11 // pred_check_branch
          %305 = sbr.rel (%p303) target = $region36
        $region35: #{cnn2_forward.1} parent=11 // pred_region
          _
        $region36: #{cnn2_forward.1} parent=11 // pred_fallthru
          _
        // Predicated region
        $region37: #{cnn2_forward.1} parent=11 // pred_check
          %p306 = pneg %p194
        $region38: #{cnn2_forward.1} parent=11 // pred_check_branch
          %308 = sbr.rel (%p306) target = $region40
        $region39: #{cnn2_forward.1} parent=11 // pred_region
          _
        $region40: #{cnn2_forward.1} parent=11 // pred_fallthru
          _
        // Predicated region
        $region41: #{cnn2_forward.1} parent=11 // pred_check
          %p309 = pneg %p215
        $region42: #{cnn2_forward.1} parent=11 // pred_check_branch
          %311 = sbr.rel (%p309) target = $region44
        $region43: #{cnn2_forward.1} parent=11 // pred_region
          _
        $region44: #{cnn2_forward.1} parent=11 // pred_fallthru
          _
      $region12: #{cnn2_forward.1} parent=5 // pred_fallthru
        _
      %p312 = scmp.lt.s32.totalorder %s21, 2
      // Predicated region
      $region45: #{cnn2_forward.1} parent=5 // pred_check
        %p313 = pneg %p312
      $region46: #{cnn2_forward.1} parent=5 // pred_check_branch
        %315 = sbr.rel (%p313) target = $region48
      $region47: #{cnn2_forward.1} parent=5 // pred_region
        // Predicated region
        $region49: #{cnn2_forward.1} parent=47 // pred_check
          %p316 = pneg %p41
        $region50: #{cnn2_forward.1} parent=47 // pred_check_branch
          %318 = sbr.rel (%p316) target = $region52
        $region51: #{cnn2_forward.1} parent=47 // pred_region
          %p319 = scmp.lt.s32.totalorder %s21, 1
          %s320 = scalar_select %p319, %s21, 1
          %s321 = smul.addr %s320, 12
          %s322 = smul.addr %s321, 8
          %s323 = scalar_lea.vmem %s0, %s322
        $region52: #{cnn2_forward.1} parent=47 // pred_fallthru
          _
      $region48: #{cnn2_forward.1} parent=5 // pred_fallthru
        _
      %p324 = scmp.le.s32.totalorder 1, %s21
      %p325 = scmp.lt.s32.totalorder %s21, 3
      %p326 = pnand %p324, %p325
      %p327 = pneg %p326
      // Predicated region
      $region53: #{cnn2_forward.1} parent=5 // pred_check
        _
      $region54: #{cnn2_forward.1} parent=5 // pred_check_branch
        %329 = sbr.rel (%p326) target = $region56
      $region55: #{cnn2_forward.1} parent=5 // pred_region
        %s330 = ssub.s32 %s21, 1
        // Predicated region
        $region57: #{cnn2_forward.1} parent=55 // pred_check
          %p331 = pneg %p68
        $region58: #{cnn2_forward.1} parent=55 // pred_check_branch
          %333 = sbr.rel (%p331) target = $region60
        $region59: #{cnn2_forward.1} parent=55 // pred_region
          %334 = dma.done [#allocation4], 16
        $region60: #{cnn2_forward.1} parent=55 // pred_fallthru
          _
        // Predicated region
        $region61: #{cnn2_forward.1} parent=55 // pred_check
          %p335 = pneg %p89
        $region62: #{cnn2_forward.1} parent=55 // pred_check_branch
          %337 = sbr.rel (%p335) target = $region64
        $region63: #{cnn2_forward.1} parent=55 // pred_region
          %338 = dma.done [#allocation6], 16
        $region64: #{cnn2_forward.1} parent=55 // pred_fallthru
          _
        // Predicated region
        $region65: #{cnn2_forward.1} parent=55 // pred_check
          %p339 = pneg %p110
        $region66: #{cnn2_forward.1} parent=55 // pred_check_branch
          %341 = sbr.rel (%p339) target = $region68
        $region67: #{cnn2_forward.1} parent=55 // pred_region
          %342 = dma.done [#allocation6], 32
        $region68: #{cnn2_forward.1} parent=55 // pred_fallthru
          _
        // Predicated region
        $region69: #{cnn2_forward.1} parent=55 // pred_check
          %p343 = pneg %p131
        $region70: #{cnn2_forward.1} parent=55 // pred_check_branch
          %345 = sbr.rel (%p343) target = $region72
        $region71: #{cnn2_forward.1} parent=55 // pred_region
          %346 = dma.done [#allocation9], 16
        $region72: #{cnn2_forward.1} parent=55 // pred_fallthru
          _
        %347 = sfence
        %p348 = scmp.lt.s32.totalorder %s26, 1
        %s349 = scalar_select %p348, %s26, 1
        %s350 = smul.addr %s349, 12
        %s351 = smul.addr %s350, 8
        %s352 = scalar_lea.vmem %s0, %s351
        %p353 = pneg %p47
        %p354 = pneg %p44
        %p355 = pneg %p68
        %p356 = pneg %p65
        %p357 = pneg %p89
        %p358 = pneg %p86
        %p359 = pneg %p110
        %p360 = pneg %p107
        %p361 = pneg %p131
        %p362 = pneg %p128
        %p363 = pneg %p152
        %p364 = pneg %p149
        %p365 = pneg %p173
        %p366 = pneg %p170
        %p367 = pneg %p194
        %p368 = pneg %p191
        %p369 = pneg %p215
        %p370 = pneg %p212
        %p371 = pneg %p241
        %p372 = pneg %p238
        %s373 = sand.u32 %s228, 1
        %s374 = scalar_lea.sflag [#allocation3], %s373
        %s375 = sand.u32 %s228, 1
        %s376 = scalar_lea.vmem [#allocation10], %s375
        %p377 = scmp.lt.s32.totalorder %s26, 1
        %s378 = scalar_select %p377, %s26, 1
        %s379 = smul.addr %s378, 12
        %s380 = smul.addr %s379, 8
        %s381 = scalar_lea.vmem %s0, %s380
        %v382 = vld [vmem:[%s381] sm:$0xff]
        %v383 = vld [vmem:[%s381 + $0x8] sm:$0xff]
        %v384 = vld [vmem:[%s381 + $0x10] sm:$0xff]
        %v385 = vld [vmem:[%s381 + $0x18] sm:$0xf]
        %s386 = scalar_lea.vmem %s381, 32
        %v387 = vld [vmem:[%s386] sm:$0xff]
        %v388 = vld [vmem:[%s386 + $0x8] sm:$0xff]
        %v389 = vld [vmem:[%s386 + $0x10] sm:$0xff]
        %v390 = vld [vmem:[%s386 + $0x18] sm:$0xf]
        %s391 = scalar_lea.vmem %s381, 64
        %v392 = vld [vmem:[%s391] sm:$0xff]
        %v393 = vld [vmem:[%s391 + $0x8] sm:$0xff]
        %v394 = vld [vmem:[%s391 + $0x10] sm:$0xff]
        %v395 = vld [vmem:[%s391 + $0x18] sm:$0xf]
        %v396 = vlaneseq
        %v397 = vshrl.u32 %v396, 7
        %v398 = vadd.s32 %v397, 8
        %v399 = vlaneseq
        %v400 = vand.u32 %v399, 127
        %v401 = vmul.u32 %v397, 2
        %v402 = vmul.u32 %v398, 2
        %vm403 = vcmp.eq.s32.totalorder %v400, %v401
        %vm404 = vcmp.eq.s32.totalorder %v400, %v402
        %v405 = vsel %vm403, 1, 0
        %v406 = vsel %vm404, 1, 0
        %v407 = vcvt.s32.f32 %v405
        %v408 = vcvt.s32.f32 %v406
        %v409 = vadd.s32 %v401, 1
        %v410 = vadd.s32 %v402, 1
        %vm411 = vcmp.eq.s32.totalorder %v400, %v409
        %vm412 = vcmp.eq.s32.totalorder %v400, %v410
        %v413 = vsel %vm411, 1, 0
        %v414 = vsel %vm412, 1, 0
        %v415 = vcvt.s32.f32 %v413
        %v416 = vcvt.s32.f32 %v414
        %v417 = vadd.s32 %v397, 16
        %v418 = vadd.s32 %v397, 24
        %v419 = vmul.u32 %v400, 2
        %vm420 = vcmp.eq.s32.totalorder %v397, %v419
        %vm421 = vcmp.eq.s32.totalorder %v398, %v419
        %vm422 = vcmp.eq.s32.totalorder %v417, %v419
        %vm423 = vcmp.eq.s32.totalorder %v418, %v419
        %v424 = vsel %vm420, 1, 0
        %v425 = vsel %vm421, 1, 0
        %v426 = vsel %vm422, 1, 0
        %v427 = vsel %vm423, 1, 0
        %v428 = vcvt.s32.f32 %v424
        %v429 = vcvt.s32.f32 %v425
        %v430 = vcvt.s32.f32 %v426
        %v431 = vcvt.s32.f32 %v427
        %v432 = vadd.s32 %v419, 1
        %vm433 = vcmp.eq.s32.totalorder %v397, %v432
        %vm434 = vcmp.eq.s32.totalorder %v398, %v432
        %vm435 = vcmp.eq.s32.totalorder %v417, %v432
        %vm436 = vcmp.eq.s32.totalorder %v418, %v432
        %v437 = vsel %vm433, 1, 0
        %v438 = vsel %vm434, 1, 0
        %v439 = vsel %vm435, 1, 0
        %v440 = vsel %vm436, 1, 0
        %v441 = vcvt.s32.f32 %v437
        %v442 = vcvt.s32.f32 %v438
        %v443 = vcvt.s32.f32 %v439
        %v444 = vcvt.s32.f32 %v440
        %s445 = sld [smem:[#allocation5]]
        %v446 = vstv %s445
        %s447 = sld [smem:[#allocation2]]
        %v448 = vstv %s447
        %v449 = vmul.f32 %v382, %v448
        %v450 = vmul.f32 %v383, %v448
        %v451 = vmul.f32 %v384, %v448
        %v452 = vmul.f32 %v385, %v448
        %v453 = vadd.f32 %v446, %v449
        %v454 = vadd.f32 %v446, %v450
        %v455 = vadd.f32 %v446, %v451
        %v456 = vadd.f32 %v446, %v452
        %s457 = sld [smem:[#allocation2 + $0x1]]
        %v458 = vstv %s457
        %v459 = vmul.f32 %v382, %v458
        %v460 = vmul.f32 %v383, %v458
        %v461 = vmul.f32 %v384, %v458
        %v462 = vmul.f32 %v385, %v458
        %467 = vrot.lane.b32.xlu0 %v459, 127
        %v468 = vpop.permute.xlu0 %467
        %469 = vrot.lane.b32.xlu0 %v460, 127
        %v470 = vpop.permute.xlu0 %469
        %471 = vrot.lane.b32.xlu0 %v461, 127
        %v472 = vpop.permute.xlu0 %471
        %473 = vrot.lane.b32.xlu0 %v462, 127
        %v474 = vpop.permute.xlu0 %473
        %v479 = vadd.f32 %v453, %v468
        %v480 = vadd.f32 %v454, %v470
        %v481 = vadd.f32 %v455, %v472
        %v482 = vadd.f32 %v456, %v474
        %s483 = sld [smem:[#allocation2 + $0x2]]
        %v484 = vstv %s483
        %v485 = vmul.f32 %v382, %v484
        %v486 = vmul.f32 %v383, %v484
        %v487 = vmul.f32 %v384, %v484
        %v488 = vmul.f32 %v385, %v484
        %493 = vrot.lane.b32.xlu0 %v485, 126
        %v494 = vpop.permute.xlu0 %493
        %495 = vrot.lane.b32.xlu0 %v486, 126
        %v496 = vpop.permute.xlu0 %495
        %497 = vrot.lane.b32.xlu0 %v487, 126
        %v498 = vpop.permute.xlu0 %497
        %499 = vrot.lane.b32.xlu0 %v488, 126
        %v500 = vpop.permute.xlu0 %499
        %v505 = vadd.f32 %v479, %v494
        %v506 = vadd.f32 %v480, %v496
        %v507 = vadd.f32 %v481, %v498
        %v508 = vadd.f32 %v482, %v500
        %s509 = sld [smem:[#allocation2 + $0x3]]
        %v510 = vstv %s509
        %v511 = vmul.f32 %v382, %v510
        %v512 = vmul.f32 %v383, %v510
        %v513 = vmul.f32 %v384, %v510
        %v514 = vmul.f32 %v385, %v510
        %vm519 = vcmask 1046528
        %v520 = vrot.slane %v511, 1
        %v521 = vrot.slane %v512, 1
        %v522 = vsel %vm519, %v520, %v521
        %v523 = vrot.slane %v513, 1
        %v524 = vsel %vm519, %v521, %v523
        %v525 = vrot.slane %v514, 1
        %v526 = vsel %vm519, %v523, %v525
        %v531 = vadd.f32 %v505, %v522
        %v532 = vadd.f32 %v506, %v524
        %v533 = vadd.f32 %v507, %v526
        %v534 = vadd.f32 %v508, %v525
        %s535 = sld [smem:[#allocation2 + $0x4]]
        %v536 = vstv %s535
        %v537 = vmul.f32 %v382, %v536
        %v538 = vmul.f32 %v383, %v536
        %v539 = vmul.f32 %v384, %v536
        %v540 = vmul.f32 %v385, %v536
        %v545 = vrot.slane %v537, 1
        %v546 = vrot.slane %v538, 1
        %v547 = vsel %vm519, %v545, %v546
        %v548 = vrot.slane %v539, 1
        %v549 = vsel %vm519, %v546, %v548
        %v550 = vrot.slane %v540, 1
        %v551 = vsel %vm519, %v548, %v550
        %552 = vrot.lane.b32.xlu0 %v547, 127
        %v553 = vpop.permute.xlu0 %552
        %554 = vrot.lane.b32.xlu0 %v549, 127
        %v555 = vpop.permute.xlu0 %554
        %556 = vrot.lane.b32.xlu0 %v551, 127
        %v557 = vpop.permute.xlu0 %556
        %558 = vrot.lane.b32.xlu0 %v550, 127
        %v559 = vpop.permute.xlu0 %558
        %v564 = vadd.f32 %v531, %v553
        %v565 = vadd.f32 %v532, %v555
        %v566 = vadd.f32 %v533, %v557
        %v567 = vadd.f32 %v534, %v559
        %s568 = sld [smem:[#allocation2 + $0x5]]
        %v569 = vstv %s568
        %v570 = vmul.f32 %v382, %v569
        %v571 = vmul.f32 %v383, %v569
        %v572 = vmul.f32 %v384, %v569
        %v573 = vmul.f32 %v385, %v569
        %v578 = vrot.slane %v570, 1
        %v579 = vrot.slane %v571, 1
        %v580 = vsel %vm519, %v578, %v579
        %v581 = vrot.slane %v572, 1
        %v582 = vsel %vm519, %v579, %v581
        %v583 = vrot.slane %v573, 1
        %v584 = vsel %vm519, %v581, %v583
        %585 = vrot.lane.b32.xlu0 %v580, 126
        %v586 = vpop.permute.xlu0 %585
        %587 = vrot.lane.b32.xlu0 %v582, 126
        %v588 = vpop.permute.xlu0 %587
        %589 = vrot.lane.b32.xlu0 %v584, 126
        %v590 = vpop.permute.xlu0 %589
        %591 = vrot.lane.b32.xlu0 %v583, 126
        %v592 = vpop.permute.xlu0 %591
        %v597 = vadd.f32 %v564, %v586
        %v598 = vadd.f32 %v565, %v588
        %v599 = vadd.f32 %v566, %v590
        %v600 = vadd.f32 %v567, %v592
        %s601 = sld [smem:[#allocation2 + $0x6]]
        %v602 = vstv %s601
        %v603 = vmul.f32 %v382, %v602
        %v604 = vmul.f32 %v383, %v602
        %v605 = vmul.f32 %v384, %v602
        %v606 = vmul.f32 %v385, %v602
        %vm611 = vcmask 1045504
        %v612 = vrot.slane %v603, 2
        %v613 = vrot.slane %v604, 2
        %v614 = vsel %vm611, %v612, %v613
        %v615 = vrot.slane %v605, 2
        %v616 = vsel %vm611, %v613, %v615
        %v617 = vrot.slane %v606, 2
        %v618 = vsel %vm611, %v615, %v617
        %v623 = vadd.f32 %v597, %v614
        %v624 = vadd.f32 %v598, %v616
        %v625 = vadd.f32 %v599, %v618
        %v626 = vadd.f32 %v600, %v617
        %s627 = sld [smem:[#allocation2 + $0x7]]
        %v628 = vstv %s627
        %v629 = vmul.f32 %v382, %v628
        %v630 = vmul.f32 %v383, %v628
        %v631 = vmul.f32 %v384, %v628
        %v632 = vmul.f32 %v385, %v628
        %v637 = vrot.slane %v629, 2
        %v638 = vrot.slane %v630, 2
        %v639 = vsel %vm611, %v637, %v638
        %v640 = vrot.slane %v631, 2
        %v641 = vsel %vm611, %v638, %v640
        %v642 = vrot.slane %v632, 2
        %v643 = vsel %vm611, %v640, %v642
        %644 = vrot.lane.b32.xlu0 %v639, 127
        %v645 = vpop.permute.xlu0 %644
        %646 = vrot.lane.b32.xlu0 %v641, 127
        %v647 = vpop.permute.xlu0 %646
        %648 = vrot.lane.b32.xlu0 %v643, 127
        %v649 = vpop.permute.xlu0 %648
        %650 = vrot.lane.b32.xlu0 %v642, 127
        %v651 = vpop.permute.xlu0 %650
        %v656 = vadd.f32 %v623, %v645
        %v657 = vadd.f32 %v624, %v647
        %v658 = vadd.f32 %v625, %v649
        %v659 = vadd.f32 %v626, %v651
        %s660 = sld [smem:[#allocation2 + $0x8]]
        %v661 = vstv %s660
        %v662 = vmul.f32 %v382, %v661
        %v663 = vmul.f32 %v383, %v661
        %v664 = vmul.f32 %v384, %v661
        %v665 = vmul.f32 %v385, %v661
        %v670 = vrot.slane %v662, 2
        %v671 = vrot.slane %v663, 2
        %v672 = vsel %vm611, %v670, %v671
        %v673 = vrot.slane %v664, 2
        %v674 = vsel %vm611, %v671, %v673
        %v675 = vrot.slane %v665, 2
        %v676 = vsel %vm611, %v673, %v675
        %677 = vrot.lane.b32.xlu0 %v672, 126
        %v678 = vpop.permute.xlu0 %677
        %679 = vrot.lane.b32.xlu0 %v674, 126
        %v680 = vpop.permute.xlu0 %679
        %681 = vrot.lane.b32.xlu0 %v676, 126
        %v682 = vpop.permute.xlu0 %681
        %683 = vrot.lane.b32.xlu0 %v675, 126
        %v684 = vpop.permute.xlu0 %683
        %v689 = vadd.f32 %v656, %v678
        %v690 = vadd.f32 %v657, %v680
        %v691 = vadd.f32 %v658, %v682
        %v692 = vadd.f32 %v659, %v684
        %s693 = sld [smem:[#allocation2 + $0x9]]
        %v694 = vstv %s693
        %v695 = vmul.f32 %v387, %v694
        %v696 = vmul.f32 %v388, %v694
        %v697 = vmul.f32 %v389, %v694
        %v698 = vmul.f32 %v390, %v694
        %v699 = vadd.f32 %v689, %v695
        %v700 = vadd.f32 %v690, %v696
        %v701 = vadd.f32 %v691, %v697
        %v702 = vadd.f32 %v692, %v698
        %s703 = sld [smem:[#allocation2 + $0xa]]
        %v704 = vstv %s703
        %v705 = vmul.f32 %v387, %v704
        %v706 = vmul.f32 %v388, %v704
        %v707 = vmul.f32 %v389, %v704
        %v708 = vmul.f32 %v390, %v704
        %713 = vrot.lane.b32.xlu0 %v705, 127
        %v714 = vpop.permute.xlu0 %713
        %715 = vrot.lane.b32.xlu0 %v706, 127
        %v716 = vpop.permute.xlu0 %715
        %717 = vrot.lane.b32.xlu0 %v707, 127
        %v718 = vpop.permute.xlu0 %717
        %719 = vrot.lane.b32.xlu0 %v708, 127
        %v720 = vpop.permute.xlu0 %719
        %v725 = vadd.f32 %v699, %v714
        %v726 = vadd.f32 %v700, %v716
        %v727 = vadd.f32 %v701, %v718
        %v728 = vadd.f32 %v702, %v720
        %s729 = sld [smem:[#allocation2 + $0xb]]
        %v730 = vstv %s729
        %v731 = vmul.f32 %v387, %v730
        %v732 = vmul.f32 %v388, %v730
        %v733 = vmul.f32 %v389, %v730
        %v734 = vmul.f32 %v390, %v730
        %739 = vrot.lane.b32.xlu0 %v731, 126
        %v740 = vpop.permute.xlu0 %739
        %741 = vrot.lane.b32.xlu0 %v732, 126
        %v742 = vpop.permute.xlu0 %741
        %743 = vrot.lane.b32.xlu0 %v733, 126
        %v744 = vpop.permute.xlu0 %743
        %745 = vrot.lane.b32.xlu0 %v734, 126
        %v746 = vpop.permute.xlu0 %745
        %v751 = vadd.f32 %v725, %v740
        %v752 = vadd.f32 %v726, %v742
        %v753 = vadd.f32 %v727, %v744
        %v754 = vadd.f32 %v728, %v746
        %s755 = sld [smem:[#allocation2 + $0xc]]
        %v756 = vstv %s755
        %v757 = vmul.f32 %v387, %v756
        %v758 = vmul.f32 %v388, %v756
        %v759 = vmul.f32 %v389, %v756
        %v760 = vmul.f32 %v390, %v756
        %v765 = vrot.slane %v757, 1
        %v766 = vrot.slane %v758, 1
        %v767 = vsel %vm519, %v765, %v766
        %v768 = vrot.slane %v759, 1
        %v769 = vsel %vm519, %v766, %v768
        %v770 = vrot.slane %v760, 1
        %v771 = vsel %vm519, %v768, %v770
        %v776 = vadd.f32 %v751, %v767
        %v777 = vadd.f32 %v752, %v769
        %v778 = vadd.f32 %v753, %v771
        %v779 = vadd.f32 %v754, %v770
        %s780 = sld [smem:[#allocation2 + $0xd]]
        %v781 = vstv %s780
        %v782 = vmul.f32 %v387, %v781
        %v783 = vmul.f32 %v388, %v781
        %v784 = vmul.f32 %v389, %v781
        %v785 = vmul.f32 %v390, %v781
        %v790 = vrot.slane %v782, 1
        %v791 = vrot.slane %v783, 1
        %v792 = vsel %vm519, %v790, %v791
        %v793 = vrot.slane %v784, 1
        %v794 = vsel %vm519, %v791, %v793
        %v795 = vrot.slane %v785, 1
        %v796 = vsel %vm519, %v793, %v795
        %797 = vrot.lane.b32.xlu0 %v792, 127
        %v798 = vpop.permute.xlu0 %797
        %799 = vrot.lane.b32.xlu0 %v794, 127
        %v800 = vpop.permute.xlu0 %799
        %801 = vrot.lane.b32.xlu0 %v796, 127
        %v802 = vpop.permute.xlu0 %801
        %803 = vrot.lane.b32.xlu0 %v795, 127
        %v804 = vpop.permute.xlu0 %803
        %v809 = vadd.f32 %v776, %v798
        %v810 = vadd.f32 %v777, %v800
        %v811 = vadd.f32 %v778, %v802
        %v812 = vadd.f32 %v779, %v804
        %s813 = sld [smem:[#allocation2 + $0xe]]
        %v814 = vstv %s813
        %v815 = vmul.f32 %v387, %v814
        %v816 = vmul.f32 %v388, %v814
        %v817 = vmul.f32 %v389, %v814
        %v818 = vmul.f32 %v390, %v814
        %v823 = vrot.slane %v815, 1
        %v824 = vrot.slane %v816, 1
        %v825 = vsel %vm519, %v823, %v824
        %v826 = vrot.slane %v817, 1
        %v827 = vsel %vm519, %v824, %v826
        %v828 = vrot.slane %v818, 1
        %v829 = vsel %vm519, %v826, %v828
        %830 = vrot.lane.b32.xlu0 %v825, 126
        %v831 = vpop.permute.xlu0 %830
        %832 = vrot.lane.b32.xlu0 %v827, 126
        %v833 = vpop.permute.xlu0 %832
        %834 = vrot.lane.b32.xlu0 %v829, 126
        %v835 = vpop.permute.xlu0 %834
        %836 = vrot.lane.b32.xlu0 %v828, 126
        %v837 = vpop.permute.xlu0 %836
        %v842 = vadd.f32 %v809, %v831
        %v843 = vadd.f32 %v810, %v833
        %v844 = vadd.f32 %v811, %v835
        %v845 = vadd.f32 %v812, %v837
        %s846 = sld [smem:[#allocation2 + $0xf]]
        %v847 = vstv %s846
        %v848 = vmul.f32 %v387, %v847
        %v849 = vmul.f32 %v388, %v847
        %v850 = vmul.f32 %v389, %v847
        %v851 = vmul.f32 %v390, %v847
        %v856 = vrot.slane %v848, 2
        %v857 = vrot.slane %v849, 2
        %v858 = vsel %vm611, %v856, %v857
        %v859 = vrot.slane %v850, 2
        %v860 = vsel %vm611, %v857, %v859
        %v861 = vrot.slane %v851, 2
        %v862 = vsel %vm611, %v859, %v861
        %v867 = vadd.f32 %v842, %v858
        %v868 = vadd.f32 %v843, %v860
        %v869 = vadd.f32 %v844, %v862
        %v870 = vadd.f32 %v845, %v861
        %s871 = sld [smem:[#allocation2 + $0x10]]
        %v872 = vstv %s871
        %v873 = vmul.f32 %v387, %v872
        %v874 = vmul.f32 %v388, %v872
        %v875 = vmul.f32 %v389, %v872
        %v876 = vmul.f32 %v390, %v872
        %v881 = vrot.slane %v873, 2
        %v882 = vrot.slane %v874, 2
        %v883 = vsel %vm611, %v881, %v882
        %v884 = vrot.slane %v875, 2
        %v885 = vsel %vm611, %v882, %v884
        %v886 = vrot.slane %v876, 2
        %v887 = vsel %vm611, %v884, %v886
        %888 = vrot.lane.b32.xlu0 %v883, 127
        %v889 = vpop.permute.xlu0 %888
        %890 = vrot.lane.b32.xlu0 %v885, 127
        %v891 = vpop.permute.xlu0 %890
        %892 = vrot.lane.b32.xlu0 %v887, 127
        %v893 = vpop.permute.xlu0 %892
        %894 = vrot.lane.b32.xlu0 %v886, 127
        %v895 = vpop.permute.xlu0 %894
        %v900 = vadd.f32 %v867, %v889
        %v901 = vadd.f32 %v868, %v891
        %v902 = vadd.f32 %v869, %v893
        %v903 = vadd.f32 %v870, %v895
        %s904 = sld [smem:[#allocation2 + $0x11]]
        %v905 = vstv %s904
        %v906 = vmul.f32 %v387, %v905
        %v907 = vmul.f32 %v388, %v905
        %v908 = vmul.f32 %v389, %v905
        %v909 = vmul.f32 %v390, %v905
        %v914 = vrot.slane %v906, 2
        %v915 = vrot.slane %v907, 2
        %v916 = vsel %vm611, %v914, %v915
        %v917 = vrot.slane %v908, 2
        %v918 = vsel %vm611, %v915, %v917
        %v919 = vrot.slane %v909, 2
        %v920 = vsel %vm611, %v917, %v919
        %921 = vrot.lane.b32.xlu0 %v916, 126
        %v922 = vpop.permute.xlu0 %921
        %923 = vrot.lane.b32.xlu0 %v918, 126
        %v924 = vpop.permute.xlu0 %923
        %925 = vrot.lane.b32.xlu0 %v920, 126
        %v926 = vpop.permute.xlu0 %925
        %927 = vrot.lane.b32.xlu0 %v919, 126
        %v928 = vpop.permute.xlu0 %927
        %v933 = vadd.f32 %v900, %v922
        %v934 = vadd.f32 %v901, %v924
        %v935 = vadd.f32 %v902, %v926
        %v936 = vadd.f32 %v903, %v928
        %s937 = sld [smem:[#allocation2 + $0x12]]
        %v938 = vstv %s937
        %v939 = vmul.f32 %v392, %v938
        %v940 = vmul.f32 %v393, %v938
        %v941 = vmul.f32 %v394, %v938
        %v942 = vmul.f32 %v395, %v938
        %v943 = vadd.f32 %v933, %v939
        %v944 = vadd.f32 %v934, %v940
        %v945 = vadd.f32 %v935, %v941
        %v946 = vadd.f32 %v936, %v942
        %s947 = sld [smem:[#allocation2 + $0x13]]
        %v948 = vstv %s947
        %v949 = vmul.f32 %v392, %v948
        %v950 = vmul.f32 %v393, %v948
        %v951 = vmul.f32 %v394, %v948
        %v952 = vmul.f32 %v395, %v948
        %957 = vrot.lane.b32.xlu0 %v949, 127
        %v958 = vpop.permute.xlu0 %957
        %959 = vrot.lane.b32.xlu0 %v950, 127
        %v960 = vpop.permute.xlu0 %959
        %961 = vrot.lane.b32.xlu0 %v951, 127
        %v962 = vpop.permute.xlu0 %961
        %963 = vrot.lane.b32.xlu0 %v952, 127
        %v964 = vpop.permute.xlu0 %963
        %v969 = vadd.f32 %v943, %v958
        %v970 = vadd.f32 %v944, %v960
        %v971 = vadd.f32 %v945, %v962
        %v972 = vadd.f32 %v946, %v964
        %s973 = sld [smem:[#allocation2 + $0x14]]
        %v974 = vstv %s973
        %v975 = vmul.f32 %v392, %v974
        %v976 = vmul.f32 %v393, %v974
        %v977 = vmul.f32 %v394, %v974
        %v978 = vmul.f32 %v395, %v974
        %983 = vrot.lane.b32.xlu0 %v975, 126
        %v984 = vpop.permute.xlu0 %983
        %985 = vrot.lane.b32.xlu0 %v976, 126
        %v986 = vpop.permute.xlu0 %985
        %987 = vrot.lane.b32.xlu0 %v977, 126
        %v988 = vpop.permute.xlu0 %987
        %989 = vrot.lane.b32.xlu0 %v978, 126
        %v990 = vpop.permute.xlu0 %989
        %v995 = vadd.f32 %v969, %v984
        %v996 = vadd.f32 %v970, %v986
        %v997 = vadd.f32 %v971, %v988
        %v998 = vadd.f32 %v972, %v990
        %s999 = sld [smem:[#allocation2 + $0x15]]
        %v1000 = vstv %s999
        %v1001 = vmul.f32 %v392, %v1000
        %v1002 = vmul.f32 %v393, %v1000
        %v1003 = vmul.f32 %v394, %v1000
        %v1004 = vmul.f32 %v395, %v1000
        %v1009 = vrot.slane %v1001, 1
        %v1010 = vrot.slane %v1002, 1
        %v1011 = vsel %vm519, %v1009, %v1010
        %v1012 = vrot.slane %v1003, 1
        %v1013 = vsel %vm519, %v1010, %v1012
        %v1014 = vrot.slane %v1004, 1
        %v1015 = vsel %vm519, %v1012, %v1014
        %v1020 = vadd.f32 %v995, %v1011
        %v1021 = vadd.f32 %v996, %v1013
        %v1022 = vadd.f32 %v997, %v1015
        %v1023 = vadd.f32 %v998, %v1014
        %s1024 = sld [smem:[#allocation2 + $0x16]]
        %v1025 = vstv %s1024
        %v1026 = vmul.f32 %v392, %v1025
        %v1027 = vmul.f32 %v393, %v1025
        %v1028 = vmul.f32 %v394, %v1025
        %v1029 = vmul.f32 %v395, %v1025
        %v1034 = vrot.slane %v1026, 1
        %v1035 = vrot.slane %v1027, 1
        %v1036 = vsel %vm519, %v1034, %v1035
        %v1037 = vrot.slane %v1028, 1
        %v1038 = vsel %vm519, %v1035, %v1037
        %v1039 = vrot.slane %v1029, 1
        %v1040 = vsel %vm519, %v1037, %v1039
        %1041 = vrot.lane.b32.xlu0 %v1036, 127
        %v1042 = vpop.permute.xlu0 %1041
        %1043 = vrot.lane.b32.xlu0 %v1038, 127
        %v1044 = vpop.permute.xlu0 %1043
        %1045 = vrot.lane.b32.xlu0 %v1040, 127
        %v1046 = vpop.permute.xlu0 %1045
        %1047 = vrot.lane.b32.xlu0 %v1039, 127
        %v1048 = vpop.permute.xlu0 %1047
        %v1053 = vadd.f32 %v1020, %v1042
        %v1054 = vadd.f32 %v1021, %v1044
        %v1055 = vadd.f32 %v1022, %v1046
        %v1056 = vadd.f32 %v1023, %v1048
        %s1057 = sld [smem:[#allocation2 + $0x17]]
        %v1058 = vstv %s1057
        %v1059 = vmul.f32 %v392, %v1058
        %v1060 = vmul.f32 %v393, %v1058
        %v1061 = vmul.f32 %v394, %v1058
        %v1062 = vmul.f32 %v395, %v1058
        %v1067 = vrot.slane %v1059, 1
        %v1068 = vrot.slane %v1060, 1
        %v1069 = vsel %vm519, %v1067, %v1068
        %v1070 = vrot.slane %v1061, 1
        %v1071 = vsel %vm519, %v1068, %v1070
        %v1072 = vrot.slane %v1062, 1
        %v1073 = vsel %vm519, %v1070, %v1072
        %1074 = vrot.lane.b32.xlu0 %v1069, 126
        %v1075 = vpop.permute.xlu0 %1074
        %1076 = vrot.lane.b32.xlu0 %v1071, 126
        %v1077 = vpop.permute.xlu0 %1076
        %1078 = vrot.lane.b32.xlu0 %v1073, 126
        %v1079 = vpop.permute.xlu0 %1078
        %1080 = vrot.lane.b32.xlu0 %v1072, 126
        %v1081 = vpop.permute.xlu0 %1080
        %v1086 = vadd.f32 %v1053, %v1075
        %v1087 = vadd.f32 %v1054, %v1077
        %v1088 = vadd.f32 %v1055, %v1079
        %v1089 = vadd.f32 %v1056, %v1081
        %s1090 = sld [smem:[#allocation2 + $0x18]]
        %v1091 = vstv %s1090
        %v1092 = vmul.f32 %v392, %v1091
        %v1093 = vmul.f32 %v393, %v1091
        %v1094 = vmul.f32 %v394, %v1091
        %v1095 = vmul.f32 %v395, %v1091
        %v1100 = vrot.slane %v1092, 2
        %v1101 = vrot.slane %v1093, 2
        %v1102 = vsel %vm611, %v1100, %v1101
        %v1103 = vrot.slane %v1094, 2
        %v1104 = vsel %vm611, %v1101, %v1103
        %v1105 = vrot.slane %v1095, 2
        %v1106 = vsel %vm611, %v1103, %v1105
        %v1111 = vadd.f32 %v1086, %v1102
        %v1112 = vadd.f32 %v1087, %v1104
        %v1113 = vadd.f32 %v1088, %v1106
        %v1114 = vadd.f32 %v1089, %v1105
        %s1115 = sld [smem:[#allocation2 + $0x19]]
        %v1116 = vstv %s1115
        %v1117 = vmul.f32 %v392, %v1116
        %v1118 = vmul.f32 %v393, %v1116
        %v1119 = vmul.f32 %v394, %v1116
        %v1120 = vmul.f32 %v395, %v1116
        %v1125 = vrot.slane %v1117, 2
        %v1126 = vrot.slane %v1118, 2
        %v1127 = vsel %vm611, %v1125, %v1126
        %v1128 = vrot.slane %v1119, 2
        %v1129 = vsel %vm611, %v1126, %v1128
        %v1130 = vrot.slane %v1120, 2
        %v1131 = vsel %vm611, %v1128, %v1130
        %1132 = vrot.lane.b32.xlu0 %v1127, 127
        %v1133 = vpop.permute.xlu0 %1132
        %1134 = vrot.lane.b32.xlu0 %v1129, 127
        %v1135 = vpop.permute.xlu0 %1134
        %1136 = vrot.lane.b32.xlu0 %v1131, 127
        %v1137 = vpop.permute.xlu0 %1136
        %1138 = vrot.lane.b32.xlu0 %v1130, 127
        %v1139 = vpop.permute.xlu0 %1138
        %v1144 = vadd.f32 %v1111, %v1133
        %v1145 = vadd.f32 %v1112, %v1135
        %v1146 = vadd.f32 %v1113, %v1137
        %v1147 = vadd.f32 %v1114, %v1139
        %s1148 = sld [smem:[#allocation2 + $0x1a]]
        %v1149 = vstv %s1148
        %v1150 = vmul.f32 %v392, %v1149
        %v1151 = vmul.f32 %v393, %v1149
        %v1152 = vmul.f32 %v394, %v1149
        %v1153 = vmul.f32 %v395, %v1149
        %v1158 = vrot.slane %v1150, 2
        %v1159 = vrot.slane %v1151, 2
        %v1160 = vsel %vm611, %v1158, %v1159
        %v1161 = vrot.slane %v1152, 2
        %v1162 = vsel %vm611, %v1159, %v1161
        %v1163 = vrot.slane %v1153, 2
        %v1164 = vsel %vm611, %v1161, %v1163
        %1165 = vrot.lane.b32.xlu0 %v1160, 126
        %v1166 = vpop.permute.xlu0 %1165
        %1167 = vrot.lane.b32.xlu0 %v1162, 126
        %v1168 = vpop.permute.xlu0 %1167
        %1169 = vrot.lane.b32.xlu0 %v1164, 126
        %v1170 = vpop.permute.xlu0 %1169
        %1171 = vrot.lane.b32.xlu0 %v1163, 126
        %v1172 = vpop.permute.xlu0 %1171
        %v1177 = vadd.f32 %v1144, %v1166
        %v1178 = vadd.f32 %v1145, %v1168
        %v1179 = vadd.f32 %v1146, %v1170
        %v1180 = vadd.f32 %v1147, %v1172
        %v1181 = vmax.f32 %v1177, 0.0
        %v1182 = vmax.f32 %v1178, 0.0
        %v1183 = vmax.f32 %v1179, 0.0
        %v1184 = vmax.f32 %v1180, 0.0
        %vm1185 = vcmask 211968
        %v1187 = vsel %vm1185, %v407, 0
        %v1190 = vsel %vm1185, %v408, 0
        %vm1192 = vcmask 1041408
        %v1194 = vsel %vm1192, %v1184, 0
        %1196 = vmatprep.subr.mxu0 0.0
        %1197 = vmatpush1.msra.mxu0 %v1181
        %1198 = vmatprep.subr.mxu0 0.0
        %1199 = vmatpush1.msra.mxu0 %v1182
        %1200 = vmatprep.subr.mxu0 0.0
        %1201 = vmatpush1.msra.mxu0 %v1183
        %1202 = vmatprep.subr.mxu0 0.0
        %1203 = vmatpush1.msra.mxu0 %v1194
        %1204 = vmatprep.subr.mxu0 0.0
        %1205 = vmatpush1.msra.mxu0 0.0
        %1206 = vmatprep.subr.mxu0 0.0
        %1207 = vmatpush1.msra.mxu0 0.0
        %1208 = vmatprep.subr.mxu0 0.0
        %1209 = vmatpush1.msra.mxu0 0.0
        %1210 = vmatprep.subr.mxu0 0.0
        %1211 = vmatpush1.msra.mxu0 0.0
        %1212 = vmatprep.subr.mxu0 0.0
        %1213 = vmatpush1.msra.mxu0 0.0
        %1214 = vmatprep.subr.mxu0 0.0
        %1215 = vmatpush1.msra.mxu0 0.0
        %1216 = vmatprep.subr.mxu0 0.0
        %1217 = vmatpush1.msra.mxu0 0.0
        %1218 = vmatprep.subr.mxu0 0.0
        %1219 = vmatpush1.msra.mxu0 0.0
        %1220 = vmatprep.subr.mxu0 0.0
        %1221 = vmatpush1.msra.mxu0 0.0
        %1222 = vmatprep.subr.mxu0 0.0
        %1223 = vmatpush1.msra.mxu0 0.0
        %1224 = vmatprep.subr.mxu0 0.0
        %1225 = vmatpush1.msra.mxu0 0.0
        %1226 = vmatprep.subr.mxu0 0.0
        %1227 = vmatpush1.msra.mxu0 0.0
        %1228 = vmatprep.subr.mxu0 0.0
        %1229 = vmatpush1.msra.mxu0 0.0
        %1230 = vmatprep.subr.mxu0 0.0
        %1231 = vmatpush1.msra.mxu0 0.0
        %1232 = vmatprep.subr.mxu0 0.0
        %1233 = vmatpush1.msra.mxu0 0.0
        %1234 = vmatprep.subr.mxu0 0.0
        %1235 = vmatpush1.msra.mxu0 0.0
        %1236 = vmatprep.subr.mxu0 0.0
        %1237 = vmatpush1.msra.mxu0 0.0
        %1238 = vmatprep.subr.mxu0 0.0
        %1239 = vmatpush1.msra.mxu0 0.0
        %1240 = vmatprep.subr.mxu0 0.0
        %1241 = vmatpush1.msra.mxu0 0.0
        %1242 = vmatprep.subr.mxu0 0.0
        %1243 = vmatpush1.msra.mxu0 0.0
        %1244 = vmatprep.subr.mxu0 0.0
        %1245 = vmatpush1.msra.mxu0 0.0
        %1246 = vmatprep.subr.mxu0 0.0
        %1247 = vmatpush1.msra.mxu0 0.0
        %1248 = vmatprep.subr.mxu0 0.0
        %1249 = vmatpush1.msra.mxu0 0.0
        %1250 = vmatprep.subr.mxu0 0.0
        %1251 = vmatpush1.msra.mxu0 0.0
        %1252 = vmatprep.subr.mxu0 0.0
        %1253 = vmatpush1.msra.mxu0 0.0
        %1254 = vmatprep.subr.mxu0 0.0
        %1255 = vmatpush1.msra.mxu0 0.0
        %1256 = vmatprep.subr.mxu0 0.0
        %1257 = vmatpush1.msra.mxu0 0.0
        %1258 = vmatprep.subr.mxu0 0.0
        %1259 = vmatpush1.msra.mxu0 0.0
        %1260 = vmatprep.mubr.f32.mxu0 0.0
        %1261 = vmatmul.mubr.f32.gmra.mrb[0].mxu0 %v1187
        %v1262 = vpop.f32.mrb[0].mxu0
        %v1263 = vadd.f32 0.0, %v1262
        %v1264 = vpop.f32.mrb[0].mxu0
        %1265 = vmatprep.mubr.f32.mxu0 0.0
        %1266 = vmatmul.mubr.f32.gmra.mrb[0].mxu0 %v1190
        %v1267 = vpop.f32.mrb[0].mxu0
        %v1268 = vadd.f32 0.0, %v1267
        %v1269 = vpop.f32.mrb[0].mxu0
        %1270 = vdwg.mxu0
        %v1272 = vsel %vm1185, %v415, 0
        %v1275 = vsel %vm1185, %v416, 0
        %1277 = vmatprep.subr.mxu0 0.0
        %1278 = vmatpush1.msra.mxu0 %v1181
        %1279 = vmatprep.subr.mxu0 0.0
        %1280 = vmatpush1.msra.mxu0 %v1182
        %1281 = vmatprep.subr.mxu0 0.0
        %1282 = vmatpush1.msra.mxu0 %v1183
        %1283 = vmatprep.subr.mxu0 0.0
        %1284 = vmatpush1.msra.mxu0 %v1194
        %1285 = vmatprep.subr.mxu0 0.0
        %1286 = vmatpush1.msra.mxu0 0.0
        %1287 = vmatprep.subr.mxu0 0.0
        %1288 = vmatpush1.msra.mxu0 0.0
        %1289 = vmatprep.subr.mxu0 0.0
        %1290 = vmatpush1.msra.mxu0 0.0
        %1291 = vmatprep.subr.mxu0 0.0
        %1292 = vmatpush1.msra.mxu0 0.0
        %1293 = vmatprep.subr.mxu0 0.0
        %1294 = vmatpush1.msra.mxu0 0.0
        %1295 = vmatprep.subr.mxu0 0.0
        %1296 = vmatpush1.msra.mxu0 0.0
        %1297 = vmatprep.subr.mxu0 0.0
        %1298 = vmatpush1.msra.mxu0 0.0
        %1299 = vmatprep.subr.mxu0 0.0
        %1300 = vmatpush1.msra.mxu0 0.0
        %1301 = vmatprep.subr.mxu0 0.0
        %1302 = vmatpush1.msra.mxu0 0.0
        %1303 = vmatprep.subr.mxu0 0.0
        %1304 = vmatpush1.msra.mxu0 0.0
        %1305 = vmatprep.subr.mxu0 0.0
        %1306 = vmatpush1.msra.mxu0 0.0
        %1307 = vmatprep.subr.mxu0 0.0
        %1308 = vmatpush1.msra.mxu0 0.0
        %1309 = vmatprep.subr.mxu0 0.0
        %1310 = vmatpush1.msra.mxu0 0.0
        %1311 = vmatprep.subr.mxu0 0.0
        %1312 = vmatpush1.msra.mxu0 0.0
        %1313 = vmatprep.subr.mxu0 0.0
        %1314 = vmatpush1.msra.mxu0 0.0
        %1315 = vmatprep.subr.mxu0 0.0
        %1316 = vmatpush1.msra.mxu0 0.0
        %1317 = vmatprep.subr.mxu0 0.0
        %1318 = vmatpush1.msra.mxu0 0.0
        %1319 = vmatprep.subr.mxu0 0.0
        %1320 = vmatpush1.msra.mxu0 0.0
        %1321 = vmatprep.subr.mxu0 0.0
        %1322 = vmatpush1.msra.mxu0 0.0
        %1323 = vmatprep.subr.mxu0 0.0
        %1324 = vmatpush1.msra.mxu0 0.0
        %1325 = vmatprep.subr.mxu0 0.0
        %1326 = vmatpush1.msra.mxu0 0.0
        %1327 = vmatprep.subr.mxu0 0.0
        %1328 = vmatpush1.msra.mxu0 0.0
        %1329 = vmatprep.subr.mxu0 0.0
        %1330 = vmatpush1.msra.mxu0 0.0
        %1331 = vmatprep.subr.mxu0 0.0
        %1332 = vmatpush1.msra.mxu0 0.0
        %1333 = vmatprep.subr.mxu0 0.0
        %1334 = vmatpush1.msra.mxu0 0.0
        %1335 = vmatprep.subr.mxu0 0.0
        %1336 = vmatpush1.msra.mxu0 0.0
        %1337 = vmatprep.subr.mxu0 0.0
        %1338 = vmatpush1.msra.mxu0 0.0
        %1339 = vmatprep.subr.mxu0 0.0
        %1340 = vmatpush1.msra.mxu0 0.0
        %1341 = vmatprep.mubr.f32.mxu0 0.0
        %1342 = vmatmul.mubr.f32.gmra.mrb[0].mxu0 %v1272
        %v1343 = vpop.f32.mrb[0].mxu0
        %v1344 = vadd.f32 0.0, %v1343
        %v1345 = vpop.f32.mrb[0].mxu0
        %1346 = vmatprep.mubr.f32.mxu0 0.0
        %1347 = vmatmul.mubr.f32.gmra.mrb[0].mxu0 %v1275
        %v1348 = vpop.f32.mrb[0].mxu0
        %v1349 = vadd.f32 0.0, %v1348
        %v1350 = vpop.f32.mrb[0].mxu0
        %1351 = vdwg.mxu0
        %v1352 = vmax.f32 %v1263, %v1344
        %v1353 = vmax.f32 %v1268, %v1349
        %v1355 = vsel %vm1185, %v1352, 0
        %v1358 = vsel %vm1185, %v1353, 0
        %v1361 = vsel %vm1192, %v431, 0
        %1363 = vmatprep.subr.mxu0 0.0
        %1364 = vmatpush1.msra.mxu0 %v428
        %1365 = vmatprep.subr.mxu0 0.0
        %1366 = vmatpush1.msra.mxu0 %v429
        %1367 = vmatprep.subr.mxu0 0.0
        %1368 = vmatpush1.msra.mxu0 %v430
        %1369 = vmatprep.subr.mxu0 0.0
        %1370 = vmatpush1.msra.mxu0 %v1361
        %1371 = vmatprep.subr.mxu0 0.0
        %1372 = vmatpush1.msra.mxu0 0.0
        %1373 = vmatprep.subr.mxu0 0.0
        %1374 = vmatpush1.msra.mxu0 0.0
        %1375 = vmatprep.subr.mxu0 0.0
        %1376 = vmatpush1.msra.mxu0 0.0
        %1377 = vmatprep.subr.mxu0 0.0
        %1378 = vmatpush1.msra.mxu0 0.0
        %1379 = vmatprep.subr.mxu0 0.0
        %1380 = vmatpush1.msra.mxu0 0.0
        %1381 = vmatprep.subr.mxu0 0.0
        %1382 = vmatpush1.msra.mxu0 0.0
        %1383 = vmatprep.subr.mxu0 0.0
        %1384 = vmatpush1.msra.mxu0 0.0
        %1385 = vmatprep.subr.mxu0 0.0
        %1386 = vmatpush1.msra.mxu0 0.0
        %1387 = vmatprep.subr.mxu0 0.0
        %1388 = vmatpush1.msra.mxu0 0.0
        %1389 = vmatprep.subr.mxu0 0.0
        %1390 = vmatpush1.msra.mxu0 0.0
        %1391 = vmatprep.subr.mxu0 0.0
        %1392 = vmatpush1.msra.mxu0 0.0
        %1393 = vmatprep.subr.mxu0 0.0
        %1394 = vmatpush1.msra.mxu0 0.0
        %1395 = vmatprep.subr.mxu0 0.0
        %1396 = vmatpush1.msra.mxu0 0.0
        %1397 = vmatprep.subr.mxu0 0.0
        %1398 = vmatpush1.msra.mxu0 0.0
        %1399 = vmatprep.subr.mxu0 0.0
        %1400 = vmatpush1.msra.mxu0 0.0
        %1401 = vmatprep.subr.mxu0 0.0
        %1402 = vmatpush1.msra.mxu0 0.0
        %1403 = vmatprep.subr.mxu0 0.0
        %1404 = vmatpush1.msra.mxu0 0.0
        %1405 = vmatprep.subr.mxu0 0.0
        %1406 = vmatpush1.msra.mxu0 0.0
        %1407 = vmatprep.subr.mxu0 0.0
        %1408 = vmatpush1.msra.mxu0 0.0
        %1409 = vmatprep.subr.mxu0 0.0
        %1410 = vmatpush1.msra.mxu0 0.0
        %1411 = vmatprep.subr.mxu0 0.0
        %1412 = vmatpush1.msra.mxu0 0.0
        %1413 = vmatprep.subr.mxu0 0.0
        %1414 = vmatpush1.msra.mxu0 0.0
        %1415 = vmatprep.subr.mxu0 0.0
        %1416 = vmatpush1.msra.mxu0 0.0
        %1417 = vmatprep.subr.mxu0 0.0
        %1418 = vmatpush1.msra.mxu0 0.0
        %1419 = vmatprep.subr.mxu0 0.0
        %1420 = vmatpush1.msra.mxu0 0.0
        %1421 = vmatprep.subr.mxu0 0.0
        %1422 = vmatpush1.msra.mxu0 0.0
        %1423 = vmatprep.subr.mxu0 0.0
        %1424 = vmatpush1.msra.mxu0 0.0
        %1425 = vmatprep.subr.mxu0 0.0
        %1426 = vmatpush1.msra.mxu0 0.0
        %1427 = vmatprep.mubr.f32.mxu0 0.0
        %1428 = vmatmul.mubr.f32.gmra.mrb[0].mxu0 %v1355
        %v1429 = vpop.f32.mrb[0].mxu0
        %v1430 = vadd.f32 0.0, %v1429
        %v1431 = vpop.f32.mrb[0].mxu0
        %1432 = vmatprep.mubr.f32.mxu0 0.0
        %1433 = vmatmul.mubr.f32.gmra.mrb[0].mxu0 %v1358
        %v1434 = vpop.f32.mrb[0].mxu0
        %v1435 = vadd.f32 0.0, %v1434
        %v1436 = vpop.f32.mrb[0].mxu0
        %1437 = vdwg.mxu0
        %v1439 = vsel %vm1192, %v444, 0
        %1441 = vmatprep.subr.mxu0 0.0
        %1442 = vmatpush1.msra.mxu0 %v441
        %1443 = vmatprep.subr.mxu0 0.0
        %1444 = vmatpush1.msra.mxu0 %v442
        %1445 = vmatprep.subr.mxu0 0.0
        %1446 = vmatpush1.msra.mxu0 %v443
        %1447 = vmatprep.subr.mxu0 0.0
        %1448 = vmatpush1.msra.mxu0 %v1439
        %1449 = vmatprep.subr.mxu0 0.0
        %1450 = vmatpush1.msra.mxu0 0.0
        %1451 = vmatprep.subr.mxu0 0.0
        %1452 = vmatpush1.msra.mxu0 0.0
        %1453 = vmatprep.subr.mxu0 0.0
        %1454 = vmatpush1.msra.mxu0 0.0
        %1455 = vmatprep.subr.mxu0 0.0
        %1456 = vmatpush1.msra.mxu0 0.0
        %1457 = vmatprep.subr.mxu0 0.0
        %1458 = vmatpush1.msra.mxu0 0.0
        %1459 = vmatprep.subr.mxu0 0.0
        %1460 = vmatpush1.msra.mxu0 0.0
        %1461 = vmatprep.subr.mxu0 0.0
        %1462 = vmatpush1.msra.mxu0 0.0
        %1463 = vmatprep.subr.mxu0 0.0
        %1464 = vmatpush1.msra.mxu0 0.0
        %1465 = vmatprep.subr.mxu0 0.0
        %1466 = vmatpush1.msra.mxu0 0.0
        %1467 = vmatprep.subr.mxu0 0.0
        %1468 = vmatpush1.msra.mxu0 0.0
        %1469 = vmatprep.subr.mxu0 0.0
        %1470 = vmatpush1.msra.mxu0 0.0
        %1471 = vmatprep.subr.mxu0 0.0
        %1472 = vmatpush1.msra.mxu0 0.0
        %1473 = vmatprep.subr.mxu0 0.0
        %1474 = vmatpush1.msra.mxu0 0.0
        %1475 = vmatprep.subr.mxu0 0.0
        %1476 = vmatpush1.msra.mxu0 0.0
        %1477 = vmatprep.subr.mxu0 0.0
        %1478 = vmatpush1.msra.mxu0 0.0
        %1479 = vmatprep.subr.mxu0 0.0
        %1480 = vmatpush1.msra.mxu0 0.0
        %1481 = vmatprep.subr.mxu0 0.0
        %1482 = vmatpush1.msra.mxu0 0.0
        %1483 = vmatprep.subr.mxu0 0.0
        %1484 = vmatpush1.msra.mxu0 0.0
        %1485 = vmatprep.subr.mxu0 0.0
        %1486 = vmatpush1.msra.mxu0 0.0
        %1487 = vmatprep.subr.mxu0 0.0
        %1488 = vmatpush1.msra.mxu0 0.0
        %1489 = vmatprep.subr.mxu0 0.0
        %1490 = vmatpush1.msra.mxu0 0.0
        %1491 = vmatprep.subr.mxu0 0.0
        %1492 = vmatpush1.msra.mxu0 0.0
        %1493 = vmatprep.subr.mxu0 0.0
        %1494 = vmatpush1.msra.mxu0 0.0
        %1495 = vmatprep.subr.mxu0 0.0
        %1496 = vmatpush1.msra.mxu0 0.0
        %1497 = vmatprep.subr.mxu0 0.0
        %1498 = vmatpush1.msra.mxu0 0.0
        %1499 = vmatprep.subr.mxu0 0.0
        %1500 = vmatpush1.msra.mxu0 0.0
        %1501 = vmatprep.subr.mxu0 0.0
        %1502 = vmatpush1.msra.mxu0 0.0
        %1503 = vmatprep.subr.mxu0 0.0
        %1504 = vmatpush1.msra.mxu0 0.0
        %1505 = vmatprep.mubr.f32.mxu0 0.0
        %1506 = vmatmul.mubr.f32.gmra.mrb[0].mxu0 %v1355
        %v1507 = vpop.f32.mrb[0].mxu0
        %v1508 = vadd.f32 0.0, %v1507
        %v1509 = vpop.f32.mrb[0].mxu0
        %1510 = vmatprep.mubr.f32.mxu0 0.0
        %1511 = vmatmul.mubr.f32.gmra.mrb[0].mxu0 %v1358
        %v1512 = vpop.f32.mrb[0].mxu0
        %v1513 = vadd.f32 0.0, %v1512
        %v1514 = vpop.f32.mrb[0].mxu0
        %1515 = vdwg.mxu0
        %v1516 = vmax.f32 %v1430, %v1508
        %v1517 = vmax.f32 %v1435, %v1513
        %s1518 = sld [smem:[#allocation5 + $0x1]]
        %v1519 = vstv %s1518
        %s1520 = sld [smem:[#allocation2 + $0x1b]]
        %v1521 = vstv %s1520
        %v1522 = vmul.f32 %v382, %v1521
        %v1523 = vmul.f32 %v383, %v1521
        %v1524 = vmul.f32 %v384, %v1521
        %v1525 = vmul.f32 %v385, %v1521
        %v1526 = vadd.f32 %v1519, %v1522
        %v1527 = vadd.f32 %v1519, %v1523
        %v1528 = vadd.f32 %v1519, %v1524
        %v1529 = vadd.f32 %v1519, %v1525
        %s1530 = sld [smem:[#allocation2 + $0x1c]]
        %v1531 = vstv %s1530
        %v1532 = vmul.f32 %v382, %v1531
        %v1533 = vmul.f32 %v383, %v1531
        %v1534 = vmul.f32 %v384, %v1531
        %v1535 = vmul.f32 %v385, %v1531
        %1540 = vrot.lane.b32.xlu0 %v1532, 127
        %v1541 = vpop.permute.xlu0 %1540
        %1542 = vrot.lane.b32.xlu0 %v1533, 127
        %v1543 = vpop.permute.xlu0 %1542
        %1544 = vrot.lane.b32.xlu0 %v1534, 127
        %v1545 = vpop.permute.xlu0 %1544
        %1546 = vrot.lane.b32.xlu0 %v1535, 127
        %v1547 = vpop.permute.xlu0 %1546
        %v1552 = vadd.f32 %v1526, %v1541
        %v1553 = vadd.f32 %v1527, %v1543
        %v1554 = vadd.f32 %v1528, %v1545
        %v1555 = vadd.f32 %v1529, %v1547
        %s1556 = sld [smem:[#allocation2 + $0x1d]]
        %v1557 = vstv %s1556
        %v1558 = vmul.f32 %v382, %v1557
        %v1559 = vmul.f32 %v383, %v1557
        %v1560 = vmul.f32 %v384, %v1557
        %v1561 = vmul.f32 %v385, %v1557
        %1566 = vrot.lane.b32.xlu0 %v1558, 126
        %v1567 = vpop.permute.xlu0 %1566
        %1568 = vrot.lane.b32.xlu0 %v1559, 126
        %v1569 = vpop.permute.xlu0 %1568
        %1570 = vrot.lane.b32.xlu0 %v1560, 126
        %v1571 = vpop.permute.xlu0 %1570
        %1572 = vrot.lane.b32.xlu0 %v1561, 126
        %v1573 = vpop.permute.xlu0 %1572
        %v1578 = vadd.f32 %v1552, %v1567
        %v1579 = vadd.f32 %v1553, %v1569
        %v1580 = vadd.f32 %v1554, %v1571
        %v1581 = vadd.f32 %v1555, %v1573
        %s1582 = sld [smem:[#allocation2 + $0x1e]]
        %v1583 = vstv %s1582
        %v1584 = vmul.f32 %v382, %v1583
        %v1585 = vmul.f32 %v383, %v1583
        %v1586 = vmul.f32 %v384, %v1583
        %v1587 = vmul.f32 %v385, %v1583
        %v1592 = vrot.slane %v1584, 1
        %v1593 = vrot.slane %v1585, 1
        %v1594 = vsel %vm519, %v1592, %v1593
        %v1595 = vrot.slane %v1586, 1
        %v1596 = vsel %vm519, %v1593, %v1595
        %v1597 = vrot.slane %v1587, 1
        %v1598 = vsel %vm519, %v1595, %v1597
        %v1603 = vadd.f32 %v1578, %v1594
        %v1604 = vadd.f32 %v1579, %v1596
        %v1605 = vadd.f32 %v1580, %v1598
        %v1606 = vadd.f32 %v1581, %v1597
        %s1607 = sld [smem:[#allocation2 + $0x1f]]
        %v1608 = vstv %s1607
        %v1609 = vmul.f32 %v382, %v1608
        %v1610 = vmul.f32 %v383, %v1608
        %v1611 = vmul.f32 %v384, %v1608
        %v1612 = vmul.f32 %v385, %v1608
        %v1617 = vrot.slane %v1609, 1
        %v1618 = vrot.slane %v1610, 1
        %v1619 = vsel %vm519, %v1617, %v1618
        %v1620 = vrot.slane %v1611, 1
        %v1621 = vsel %vm519, %v1618, %v1620
        %v1622 = vrot.slane %v1612, 1
        %v1623 = vsel %vm519, %v1620, %v1622
        %1624 = vrot.lane.b32.xlu0 %v1619, 127
        %v1625 = vpop.permute.xlu0 %1624
        %1626 = vrot.lane.b32.xlu0 %v1621, 127
        %v1627 = vpop.permute.xlu0 %1626
        %1628 = vrot.lane.b32.xlu0 %v1623, 127
        %v1629 = vpop.permute.xlu0 %1628
        %1630 = vrot.lane.b32.xlu0 %v1622, 127
        %v1631 = vpop.permute.xlu0 %1630
        %v1636 = vadd.f32 %v1603, %v1625
        %v1637 = vadd.f32 %v1604, %v1627
        %v1638 = vadd.f32 %v1605, %v1629
        %v1639 = vadd.f32 %v1606, %v1631
        %s1640 = sld [smem:[#allocation2 + $0x20]]
        %v1641 = vstv %s1640
        %v1642 = vmul.f32 %v382, %v1641
        %v1643 = vmul.f32 %v383, %v1641
        %v1644 = vmul.f32 %v384, %v1641
        %v1645 = vmul.f32 %v385, %v1641
        %v1650 = vrot.slane %v1642, 1
        %v1651 = vrot.slane %v1643, 1
        %v1652 = vsel %vm519, %v1650, %v1651
        %v1653 = vrot.slane %v1644, 1
        %v1654 = vsel %vm519, %v1651, %v1653
        %v1655 = vrot.slane %v1645, 1
        %v1656 = vsel %vm519, %v1653, %v1655
        %1657 = vrot.lane.b32.xlu0 %v1652, 126
        %v1658 = vpop.permute.xlu0 %1657
        %1659 = vrot.lane.b32.xlu0 %v1654, 126
        %v1660 = vpop.permute.xlu0 %1659
        %1661 = vrot.lane.b32.xlu0 %v1656, 126
        %v1662 = vpop.permute.xlu0 %1661
        %1663 = vrot.lane.b32.xlu0 %v1655, 126
        %v1664 = vpop.permute.xlu0 %1663
        %v1669 = vadd.f32 %v1636, %v1658
        %v1670 = vadd.f32 %v1637, %v1660
        %v1671 = vadd.f32 %v1638, %v1662
        %v1672 = vadd.f32 %v1639, %v1664
        %s1673 = sld [smem:[#allocation2 + $0x21]]
        %v1674 = vstv %s1673
        %v1675 = vmul.f32 %v382, %v1674
        %v1676 = vmul.f32 %v383, %v1674
        %v1677 = vmul.f32 %v384, %v1674
        %v1678 = vmul.f32 %v385, %v1674
        %v1683 = vrot.slane %v1675, 2
        %v1684 = vrot.slane %v1676, 2
        %v1685 = vsel %vm611, %v1683, %v1684
        %v1686 = vrot.slane %v1677, 2
        %v1687 = vsel %vm611, %v1684, %v1686
        %v1688 = vrot.slane %v1678, 2
        %v1689 = vsel %vm611, %v1686, %v1688
        %v1694 = vadd.f32 %v1669, %v1685
        %v1695 = vadd.f32 %v1670, %v1687
        %v1696 = vadd.f32 %v1671, %v1689
        %v1697 = vadd.f32 %v1672, %v1688
        %s1698 = sld [smem:[#allocation2 + $0x22]]
        %v1699 = vstv %s1698
        %v1700 = vmul.f32 %v382, %v1699
        %v1701 = vmul.f32 %v383, %v1699
        %v1702 = vmul.f32 %v384, %v1699
        %v1703 = vmul.f32 %v385, %v1699
        %v1708 = vrot.slane %v1700, 2
        %v1709 = vrot.slane %v1701, 2
        %v1710 = vsel %vm611, %v1708, %v1709
        %v1711 = vrot.slane %v1702, 2
        %v1712 = vsel %vm611, %v1709, %v1711
        %v1713 = vrot.slane %v1703, 2
        %v1714 = vsel %vm611, %v1711, %v1713
        %1715 = vrot.lane.b32.xlu0 %v1710, 127
        %v1716 = vpop.permute.xlu0 %1715
        %1717 = vrot.lane.b32.xlu0 %v1712, 127
        %v1718 = vpop.permute.xlu0 %1717
        %1719 = vrot.lane.b32.xlu0 %v1714, 127
        %v1720 = vpop.permute.xlu0 %1719
        %1721 = vrot.lane.b32.xlu0 %v1713, 127
        %v1722 = vpop.permute.xlu0 %1721
        %v1727 = vadd.f32 %v1694, %v1716
        %v1728 = vadd.f32 %v1695, %v1718
        %v1729 = vadd.f32 %v1696, %v1720
        %v1730 = vadd.f32 %v1697, %v1722
        %s1731 = sld [smem:[#allocation2 + $0x23]]
        %v1732 = vstv %s1731
        %v1733 = vmul.f32 %v382, %v1732
        %v1734 = vmul.f32 %v383, %v1732
        %v1735 = vmul.f32 %v384, %v1732
        %v1736 = vmul.f32 %v385, %v1732
        %v1741 = vrot.slane %v1733, 2
        %v1742 = vrot.slane %v1734, 2
        %v1743 = vsel %vm611, %v1741, %v1742
        %v1744 = vrot.slane %v1735, 2
        %v1745 = vsel %vm611, %v1742, %v1744
        %v1746 = vrot.slane %v1736, 2
        %v1747 = vsel %vm611, %v1744, %v1746
        %1748 = vrot.lane.b32.xlu0 %v1743, 126
        %v1749 = vpop.permute.xlu0 %1748
        %1750 = vrot.lane.b32.xlu0 %v1745, 126
        %v1751 = vpop.permute.xlu0 %1750
        %1752 = vrot.lane.b32.xlu0 %v1747, 126
        %v1753 = vpop.permute.xlu0 %1752
        %1754 = vrot.lane.b32.xlu0 %v1746, 126
        %v1755 = vpop.permute.xlu0 %1754
        %v1760 = vadd.f32 %v1727, %v1749
        %v1761 = vadd.f32 %v1728, %v1751
        %v1762 = vadd.f32 %v1729, %v1753
        %v1763 = vadd.f32 %v1730, %v1755
        %s1764 = sld [smem:[#allocation2 + $0x24]]
        %v1765 = vstv %s1764
        %v1766 = vmul.f32 %v387, %v1765
        %v1767 = vmul.f32 %v388, %v1765
        %v1768 = vmul.f32 %v389, %v1765
        %v1769 = vmul.f32 %v390, %v1765
        %v1770 = vadd.f32 %v1760, %v1766
        %v1771 = vadd.f32 %v1761, %v1767
        %v1772 = vadd.f32 %v1762, %v1768
        %v1773 = vadd.f32 %v1763, %v1769
        %s1774 = sld [smem:[#allocation2 + $0x25]]
        %v1775 = vstv %s1774
        %v1776 = vmul.f32 %v387, %v1775
        %v1777 = vmul.f32 %v388, %v1775
        %v1778 = vmul.f32 %v389, %v1775
        %v1779 = vmul.f32 %v390, %v1775
        %1784 = vrot.lane.b32.xlu0 %v1776, 127
        %v1785 = vpop.permute.xlu0 %1784
        %1786 = vrot.lane.b32.xlu0 %v1777, 127
        %v1787 = vpop.permute.xlu0 %1786
        %1788 = vrot.lane.b32.xlu0 %v1778, 127
        %v1789 = vpop.permute.xlu0 %1788
        %1790 = vrot.lane.b32.xlu0 %v1779, 127
        %v1791 = vpop.permute.xlu0 %1790
        %v1796 = vadd.f32 %v1770, %v1785
        %v1797 = vadd.f32 %v1771, %v1787
        %v1798 = vadd.f32 %v1772, %v1789
        %v1799 = vadd.f32 %v1773, %v1791
        %s1800 = sld [smem:[#allocation2 + $0x26]]
        %v1801 = vstv %s1800
        %v1802 = vmul.f32 %v387, %v1801
        %v1803 = vmul.f32 %v388, %v1801
        %v1804 = vmul.f32 %v389, %v1801
        %v1805 = vmul.f32 %v390, %v1801
        %1810 = vrot.lane.b32.xlu0 %v1802, 126
        %v1811 = vpop.permute.xlu0 %1810
        %1812 = vrot.lane.b32.xlu0 %v1803, 126
        %v1813 = vpop.permute.xlu0 %1812
        %1814 = vrot.lane.b32.xlu0 %v1804, 126
        %v1815 = vpop.permute.xlu0 %1814
        %1816 = vrot.lane.b32.xlu0 %v1805, 126
        %v1817 = vpop.permute.xlu0 %1816
        %v1822 = vadd.f32 %v1796, %v1811
        %v1823 = vadd.f32 %v1797, %v1813
        %v1824 = vadd.f32 %v1798, %v1815
        %v1825 = vadd.f32 %v1799, %v1817
        %s1826 = sld [smem:[#allocation2 + $0x27]]
        %v1827 = vstv %s1826
        %v1828 = vmul.f32 %v387, %v1827
        %v1829 = vmul.f32 %v388, %v1827
        %v1830 = vmul.f32 %v389, %v1827
        %v1831 = vmul.f32 %v390, %v1827
        %v1836 = vrot.slane %v1828, 1
        %v1837 = vrot.slane %v1829, 1
        %v1838 = vsel %vm519, %v1836, %v1837
        %v1839 = vrot.slane %v1830, 1
        %v1840 = vsel %vm519, %v1837, %v1839
        %v1841 = vrot.slane %v1831, 1
        %v1842 = vsel %vm519, %v1839, %v1841
        %v1847 = vadd.f32 %v1822, %v1838
        %v1848 = vadd.f32 %v1823, %v1840
        %v1849 = vadd.f32 %v1824, %v1842
        %v1850 = vadd.f32 %v1825, %v1841
        %s1851 = sld [smem:[#allocation2 + $0x28]]
        %v1852 = vstv %s1851
        %v1853 = vmul.f32 %v387, %v1852
        %v1854 = vmul.f32 %v388, %v1852
        %v1855 = vmul.f32 %v389, %v1852
        %v1856 = vmul.f32 %v390, %v1852
        %v1861 = vrot.slane %v1853, 1
        %v1862 = vrot.slane %v1854, 1
        %v1863 = vsel %vm519, %v1861, %v1862
        %v1864 = vrot.slane %v1855, 1
        %v1865 = vsel %vm519, %v1862, %v1864
        %v1866 = vrot.slane %v1856, 1
        %v1867 = vsel %vm519, %v1864, %v1866
        %1868 = vrot.lane.b32.xlu0 %v1863, 127
        %v1869 = vpop.permute.xlu0 %1868
        %1870 = vrot.lane.b32.xlu0 %v1865, 127
        %v1871 = vpop.permute.xlu0 %1870
        %1872 = vrot.lane.b32.xlu0 %v1867, 127
        %v1873 = vpop.permute.xlu0 %1872
        %1874 = vrot.lane.b32.xlu0 %v1866, 127
        %v1875 = vpop.permute.xlu0 %1874
        %v1880 = vadd.f32 %v1847, %v1869
        %v1881 = vadd.f32 %v1848, %v1871
        %v1882 = vadd.f32 %v1849, %v1873
        %v1883 = vadd.f32 %v1850, %v1875
        %s1884 = sld [smem:[#allocation2 + $0x29]]
        %v1885 = vstv %s1884
        %v1886 = vmul.f32 %v387, %v1885
        %v1887 = vmul.f32 %v388, %v1885
        %v1888 = vmul.f32 %v389, %v1885
        %v1889 = vmul.f32 %v390, %v1885
        %v1894 = vrot.slane %v1886, 1
        %v1895 = vrot.slane %v1887, 1
        %v1896 = vsel %vm519, %v1894, %v1895
        %v1897 = vrot.slane %v1888, 1
        %v1898 = vsel %vm519, %v1895, %v1897
        %v1899 = vrot.slane %v1889, 1
        %v1900 = vsel %vm519, %v1897, %v1899
        %1901 = vrot.lane.b32.xlu0 %v1896, 126
        %v1902 = vpop.permute.xlu0 %1901
        %1903 = vrot.lane.b32.xlu0 %v1898, 126
        %v1904 = vpop.permute.xlu0 %1903
        %1905 = vrot.lane.b32.xlu0 %v1900, 126
        %v1906 = vpop.permute.xlu0 %1905
        %1907 = vrot.lane.b32.xlu0 %v1899, 126
        %v1908 = vpop.permute.xlu0 %1907
        %v1913 = vadd.f32 %v1880, %v1902
        %v1914 = vadd.f32 %v1881, %v1904
        %v1915 = vadd.f32 %v1882, %v1906
        %v1916 = vadd.f32 %v1883, %v1908
        %s1917 = sld [smem:[#allocation2 + $0x2a]]
        %v1918 = vstv %s1917
        %v1919 = vmul.f32 %v387, %v1918
        %v1920 = vmul.f32 %v388, %v1918
        %v1921 = vmul.f32 %v389, %v1918
        %v1922 = vmul.f32 %v390, %v1918
        %v1927 = vrot.slane %v1919, 2
        %v1928 = vrot.slane %v1920, 2
        %v1929 = vsel %vm611, %v1927, %v1928
        %v1930 = vrot.slane %v1921, 2
        %v1931 = vsel %vm611, %v1928, %v1930
        %v1932 = vrot.slane %v1922, 2
        %v1933 = vsel %vm611, %v1930, %v1932
        %v1938 = vadd.f32 %v1913, %v1929
        %v1939 = vadd.f32 %v1914, %v1931
        %v1940 = vadd.f32 %v1915, %v1933
        %v1941 = vadd.f32 %v1916, %v1932
        %s1942 = sld [smem:[#allocation2 + $0x2b]]
        %v1943 = vstv %s1942
        %v1944 = vmul.f32 %v387, %v1943
        %v1945 = vmul.f32 %v388, %v1943
        %v1946 = vmul.f32 %v389, %v1943
        %v1947 = vmul.f32 %v390, %v1943
        %v1952 = vrot.slane %v1944, 2
        %v1953 = vrot.slane %v1945, 2
        %v1954 = vsel %vm611, %v1952, %v1953
        %v1955 = vrot.slane %v1946, 2
        %v1956 = vsel %vm611, %v1953, %v1955
        %v1957 = vrot.slane %v1947, 2
        %v1958 = vsel %vm611, %v1955, %v1957
        %1959 = vrot.lane.b32.xlu0 %v1954, 127
        %v1960 = vpop.permute.xlu0 %1959
        %1961 = vrot.lane.b32.xlu0 %v1956, 127
        %v1962 = vpop.permute.xlu0 %1961
        %1963 = vrot.lane.b32.xlu0 %v1958, 127
        %v1964 = vpop.permute.xlu0 %1963
        %1965 = vrot.lane.b32.xlu0 %v1957, 127
        %v1966 = vpop.permute.xlu0 %1965
        %v1971 = vadd.f32 %v1938, %v1960
        %v1972 = vadd.f32 %v1939, %v1962
        %v1973 = vadd.f32 %v1940, %v1964
        %v1974 = vadd.f32 %v1941, %v1966
        %s1975 = sld [smem:[#allocation2 + $0x2c]]
        %v1976 = vstv %s1975
        %v1977 = vmul.f32 %v387, %v1976
        %v1978 = vmul.f32 %v388, %v1976
        %v1979 = vmul.f32 %v389, %v1976
        %v1980 = vmul.f32 %v390, %v1976
        %v1985 = vrot.slane %v1977, 2
        %v1986 = vrot.slane %v1978, 2
        %v1987 = vsel %vm611, %v1985, %v1986
        %v1988 = vrot.slane %v1979, 2
        %v1989 = vsel %vm611, %v1986, %v1988
        %v1990 = vrot.slane %v1980, 2
        %v1991 = vsel %vm611, %v1988, %v1990
        %1992 = vrot.lane.b32.xlu0 %v1987, 126
        %v1993 = vpop.permute.xlu0 %1992
        %1994 = vrot.lane.b32.xlu0 %v1989, 126
        %v1995 = vpop.permute.xlu0 %1994
        %1996 = vrot.lane.b32.xlu0 %v1991, 126
        %v1997 = vpop.permute.xlu0 %1996
        %1998 = vrot.lane.b32.xlu0 %v1990, 126
        %v1999 = vpop.permute.xlu0 %1998
        %v2004 = vadd.f32 %v1971, %v1993
        %v2005 = vadd.f32 %v1972, %v1995
        %v2006 = vadd.f32 %v1973, %v1997
        %v2007 = vadd.f32 %v1974, %v1999
        %s2008 = sld [smem:[#allocation2 + $0x2d]]
        %v2009 = vstv %s2008
        %v2010 = vmul.f32 %v392, %v2009
        %v2011 = vmul.f32 %v393, %v2009
        %v2012 = vmul.f32 %v394, %v2009
        %v2013 = vmul.f32 %v395, %v2009
        %v2014 = vadd.f32 %v2004, %v2010
        %v2015 = vadd.f32 %v2005, %v2011
        %v2016 = vadd.f32 %v2006, %v2012
        %v2017 = vadd.f32 %v2007, %v2013
        %s2018 = sld [smem:[#allocation2 + $0x2e]]
        %v2019 = vstv %s2018
        %v2020 = vmul.f32 %v392, %v2019
        %v2021 = vmul.f32 %v393, %v2019
        %v2022 = vmul.f32 %v394, %v2019
        %v2023 = vmul.f32 %v395, %v2019
        %2028 = vrot.lane.b32.xlu0 %v2020, 127
        %v2029 = vpop.permute.xlu0 %2028
        %2030 = vrot.lane.b32.xlu0 %v2021, 127
        %v2031 = vpop.permute.xlu0 %2030
        %2032 = vrot.lane.b32.xlu0 %v2022, 127
        %v2033 = vpop.permute.xlu0 %2032
        %2034 = vrot.lane.b32.xlu0 %v2023, 127
        %v2035 = vpop.permute.xlu0 %2034
        %v2040 = vadd.f32 %v2014, %v2029
        %v2041 = vadd.f32 %v2015, %v2031
        %v2042 = vadd.f32 %v2016, %v2033
        %v2043 = vadd.f32 %v2017, %v2035
        %s2044 = sld [smem:[#allocation2 + $0x2f]]
        %v2045 = vstv %s2044
        %v2046 = vmul.f32 %v392, %v2045
        %v2047 = vmul.f32 %v393, %v2045
        %v2048 = vmul.f32 %v394, %v2045
        %v2049 = vmul.f32 %v395, %v2045
        %2054 = vrot.lane.b32.xlu0 %v2046, 126
        %v2055 = vpop.permute.xlu0 %2054
        %2056 = vrot.lane.b32.xlu0 %v2047, 126
        %v2057 = vpop.permute.xlu0 %2056
        %2058 = vrot.lane.b32.xlu0 %v2048, 126
        %v2059 = vpop.permute.xlu0 %2058
        %2060 = vrot.lane.b32.xlu0 %v2049, 126
        %v2061 = vpop.permute.xlu0 %2060
        %v2066 = vadd.f32 %v2040, %v2055
        %v2067 = vadd.f32 %v2041, %v2057
        %v2068 = vadd.f32 %v2042, %v2059
        %v2069 = vadd.f32 %v2043, %v2061
        %s2070 = sld [smem:[#allocation2 + $0x30]]
        %v2071 = vstv %s2070
        %v2072 = vmul.f32 %v392, %v2071
        %v2073 = vmul.f32 %v393, %v2071
        %v2074 = vmul.f32 %v394, %v2071
        %v2075 = vmul.f32 %v395, %v2071
        %v2080 = vrot.slane %v2072, 1
        %v2081 = vrot.slane %v2073, 1
        %v2082 = vsel %vm519, %v2080, %v2081
        %v2083 = vrot.slane %v2074, 1
        %v2084 = vsel %vm519, %v2081, %v2083
        %v2085 = vrot.slane %v2075, 1
        %v2086 = vsel %vm519, %v2083, %v2085
        %v2091 = vadd.f32 %v2066, %v2082
        %v2092 = vadd.f32 %v2067, %v2084
        %v2093 = vadd.f32 %v2068, %v2086
        %v2094 = vadd.f32 %v2069, %v2085
        %s2095 = sld [smem:[#allocation2 + $0x31]]
        %v2096 = vstv %s2095
        %v2097 = vmul.f32 %v392, %v2096
        %v2098 = vmul.f32 %v393, %v2096
        %v2099 = vmul.f32 %v394, %v2096
        %v2100 = vmul.f32 %v395, %v2096
        %v2105 = vrot.slane %v2097, 1
        %v2106 = vrot.slane %v2098, 1
        %v2107 = vsel %vm519, %v2105, %v2106
        %v2108 = vrot.slane %v2099, 1
        %v2109 = vsel %vm519, %v2106, %v2108
        %v2110 = vrot.slane %v2100, 1
        %v2111 = vsel %vm519, %v2108, %v2110
        %2112 = vrot.lane.b32.xlu0 %v2107, 127
        %v2113 = vpop.permute.xlu0 %2112
        %2114 = vrot.lane.b32.xlu0 %v2109, 127
        %v2115 = vpop.permute.xlu0 %2114
        %2116 = vrot.lane.b32.xlu0 %v2111, 127
        %v2117 = vpop.permute.xlu0 %2116
        %2118 = vrot.lane.b32.xlu0 %v2110, 127
        %v2119 = vpop.permute.xlu0 %2118
        %v2124 = vadd.f32 %v2091, %v2113
        %v2125 = vadd.f32 %v2092, %v2115
        %v2126 = vadd.f32 %v2093, %v2117
        %v2127 = vadd.f32 %v2094, %v2119
        %s2128 = sld [smem:[#allocation2 + $0x32]]
        %v2129 = vstv %s2128
        %v2130 = vmul.f32 %v392, %v2129
        %v2131 = vmul.f32 %v393, %v2129
        %v2132 = vmul.f32 %v394, %v2129
        %v2133 = vmul.f32 %v395, %v2129
        %v2138 = vrot.slane %v2130, 1
        %v2139 = vrot.slane %v2131, 1
        %v2140 = vsel %vm519, %v2138, %v2139
        %v2141 = vrot.slane %v2132, 1
        %v2142 = vsel %vm519, %v2139, %v2141
        %v2143 = vrot.slane %v2133, 1
        %v2144 = vsel %vm519, %v2141, %v2143
        %2145 = vrot.lane.b32.xlu0 %v2140, 126
        %v2146 = vpop.permute.xlu0 %2145
        %2147 = vrot.lane.b32.xlu0 %v2142, 126
        %v2148 = vpop.permute.xlu0 %2147
        %2149 = vrot.lane.b32.xlu0 %v2144, 126
        %v2150 = vpop.permute.xlu0 %2149
        %2151 = vrot.lane.b32.xlu0 %v2143, 126
        %v2152 = vpop.permute.xlu0 %2151
        %v2157 = vadd.f32 %v2124, %v2146
        %v2158 = vadd.f32 %v2125, %v2148
        %v2159 = vadd.f32 %v2126, %v2150
        %v2160 = vadd.f32 %v2127, %v2152
        %s2161 = sld [smem:[#allocation2 + $0x33]]
        %v2162 = vstv %s2161
        %v2163 = vmul.f32 %v392, %v2162
        %v2164 = vmul.f32 %v393, %v2162
        %v2165 = vmul.f32 %v394, %v2162
        %v2166 = vmul.f32 %v395, %v2162
        %v2171 = vrot.slane %v2163, 2
        %v2172 = vrot.slane %v2164, 2
        %v2173 = vsel %vm611, %v2171, %v2172
        %v2174 = vrot.slane %v2165, 2
        %v2175 = vsel %vm611, %v2172, %v2174
        %v2176 = vrot.slane %v2166, 2
        %v2177 = vsel %vm611, %v2174, %v2176
        %v2182 = vadd.f32 %v2157, %v2173
        %v2183 = vadd.f32 %v2158, %v2175
        %v2184 = vadd.f32 %v2159, %v2177
        %v2185 = vadd.f32 %v2160, %v2176
        %s2186 = sld [smem:[#allocation2 + $0x34]]
        %v2187 = vstv %s2186
        %v2188 = vmul.f32 %v392, %v2187
        %v2189 = vmul.f32 %v393, %v2187
        %v2190 = vmul.f32 %v394, %v2187
        %v2191 = vmul.f32 %v395, %v2187
        %v2196 = vrot.slane %v2188, 2
        %v2197 = vrot.slane %v2189, 2
        %v2198 = vsel %vm611, %v2196, %v2197
        %v2199 = vrot.slane %v2190, 2
        %v2200 = vsel %vm611, %v2197, %v2199
        %v2201 = vrot.slane %v2191, 2
        %v2202 = vsel %vm611, %v2199, %v2201
        %2203 = vrot.lane.b32.xlu0 %v2198, 127
        %v2204 = vpop.permute.xlu0 %2203
        %2205 = vrot.lane.b32.xlu0 %v2200, 127
        %v2206 = vpop.permute.xlu0 %2205
        %2207 = vrot.lane.b32.xlu0 %v2202, 127
        %v2208 = vpop.permute.xlu0 %2207
        %2209 = vrot.lane.b32.xlu0 %v2201, 127
        %v2210 = vpop.permute.xlu0 %2209
        %v2215 = vadd.f32 %v2182, %v2204
        %v2216 = vadd.f32 %v2183, %v2206
        %v2217 = vadd.f32 %v2184, %v2208
        %v2218 = vadd.f32 %v2185, %v2210
        %s2219 = sld [smem:[#allocation2 + $0x35]]
        %v2220 = vstv %s2219
        %v2221 = vmul.f32 %v392, %v2220
        %v2222 = vmul.f32 %v393, %v2220
        %v2223 = vmul.f32 %v394, %v2220
        %v2224 = vmul.f32 %v395, %v2220
        %v2229 = vrot.slane %v2221, 2
        %v2230 = vrot.slane %v2222, 2
        %v2231 = vsel %vm611, %v2229, %v2230
        %v2232 = vrot.slane %v2223, 2
        %v2233 = vsel %vm611, %v2230, %v2232
        %v2234 = vrot.slane %v2224, 2
        %v2235 = vsel %vm611, %v2232, %v2234
        %2236 = vrot.lane.b32.xlu0 %v2231, 126
        %v2237 = vpop.permute.xlu0 %2236
        %2238 = vrot.lane.b32.xlu0 %v2233, 126
        %v2239 = vpop.permute.xlu0 %2238
        %2240 = vrot.lane.b32.xlu0 %v2235, 126
        %v2241 = vpop.permute.xlu0 %2240
        %2242 = vrot.lane.b32.xlu0 %v2234, 126
        %v2243 = vpop.permute.xlu0 %2242
        %v2248 = vadd.f32 %v2215, %v2237
        %v2249 = vadd.f32 %v2216, %v2239
        %v2250 = vadd.f32 %v2217, %v2241
        %v2251 = vadd.f32 %v2218, %v2243
        %v2252 = vmax.f32 %v2248, 0.0
        %v2253 = vmax.f32 %v2249, 0.0
        %v2254 = vmax.f32 %v2250, 0.0
        %v2255 = vmax.f32 %v2251, 0.0
        %v2257 = vsel %vm1192, %v2255, 0
        %2259 = vmatprep.subr.mxu0 0.0
        %2260 = vmatpush1.msra.mxu0 %v2252
        %2261 = vmatprep.subr.mxu0 0.0
        %2262 = vmatpush1.msra.mxu0 %v2253
        %2263 = vmatprep.subr.mxu0 0.0
        %2264 = vmatpush1.msra.mxu0 %v2254
        %2265 = vmatprep.subr.mxu0 0.0
        %2266 = vmatpush1.msra.mxu0 %v2257
        %2267 = vmatprep.subr.mxu0 0.0
        %2268 = vmatpush1.msra.mxu0 0.0
        %2269 = vmatprep.subr.mxu0 0.0
        %2270 = vmatpush1.msra.mxu0 0.0
        %2271 = vmatprep.subr.mxu0 0.0
        %2272 = vmatpush1.msra.mxu0 0.0
        %2273 = vmatprep.subr.mxu0 0.0
        %2274 = vmatpush1.msra.mxu0 0.0
        %2275 = vmatprep.subr.mxu0 0.0
        %2276 = vmatpush1.msra.mxu0 0.0
        %2277 = vmatprep.subr.mxu0 0.0
        %2278 = vmatpush1.msra.mxu0 0.0
        %2279 = vmatprep.subr.mxu0 0.0
        %2280 = vmatpush1.msra.mxu0 0.0
        %2281 = vmatprep.subr.mxu0 0.0
        %2282 = vmatpush1.msra.mxu0 0.0
        %2283 = vmatprep.subr.mxu0 0.0
        %2284 = vmatpush1.msra.mxu0 0.0
        %2285 = vmatprep.subr.mxu0 0.0
        %2286 = vmatpush1.msra.mxu0 0.0
        %2287 = vmatprep.subr.mxu0 0.0
        %2288 = vmatpush1.msra.mxu0 0.0
        %2289 = vmatprep.subr.mxu0 0.0
        %2290 = vmatpush1.msra.mxu0 0.0
        %2291 = vmatprep.subr.mxu0 0.0
        %2292 = vmatpush1.msra.mxu0 0.0
        %2293 = vmatprep.subr.mxu0 0.0
        %2294 = vmatpush1.msra.mxu0 0.0
        %2295 = vmatprep.subr.mxu0 0.0
        %2296 = vmatpush1.msra.mxu0 0.0
        %2297 = vmatprep.subr.mxu0 0.0
        %2298 = vmatpush1.msra.mxu0 0.0
        %2299 = vmatprep.subr.mxu0 0.0
        %2300 = vmatpush1.msra.mxu0 0.0
        %2301 = vmatprep.subr.mxu0 0.0
        %2302 = vmatpush1.msra.mxu0 0.0
        %2303 = vmatprep.subr.mxu0 0.0
        %2304 = vmatpush1.msra.mxu0 0.0
        %2305 = vmatprep.subr.mxu0 0.0
        %2306 = vmatpush1.msra.mxu0 0.0
        %2307 = vmatprep.subr.mxu0 0.0
        %2308 = vmatpush1.msra.mxu0 0.0
        %2309 = vmatprep.subr.mxu0 0.0
        %2310 = vmatpush1.msra.mxu0 0.0
        %2311 = vmatprep.subr.mxu0 0.0
        %2312 = vmatpush1.msra.mxu0 0.0
        %2313 = vmatprep.subr.mxu0 0.0
        %2314 = vmatpush1.msra.mxu0 0.0
        %2315 = vmatprep.subr.mxu0 0.0
        %2316 = vmatpush1.msra.mxu0 0.0
        %2317 = vmatprep.subr.mxu0 0.0
        %2318 = vmatpush1.msra.mxu0 0.0
        %2319 = vmatprep.subr.mxu0 0.0
        %2320 = vmatpush1.msra.mxu0 0.0
        %2321 = vmatprep.subr.mxu0 0.0
        %2322 = vmatpush1.msra.mxu0 0.0
        %2323 = vmatprep.mubr.f32.mxu0 0.0
        %2324 = vmatmul.mubr.f32.gmra.mrb[0].mxu0 %v1187
        %v2325 = vpop.f32.mrb[0].mxu0
        %v2326 = vadd.f32 0.0, %v2325
        %v2327 = vpop.f32.mrb[0].mxu0
        %2328 = vmatprep.mubr.f32.mxu0 0.0
        %2329 = vmatmul.mubr.f32.gmra.mrb[0].mxu0 %v1190
        %v2330 = vpop.f32.mrb[0].mxu0
        %v2331 = vadd.f32 0.0, %v2330
        %v2332 = vpop.f32.mrb[0].mxu0
        %2333 = vdwg.mxu0
        %2334 = vmatprep.subr.mxu0 0.0
        %2335 = vmatpush1.msra.mxu0 %v2252
        %2336 = vmatprep.subr.mxu0 0.0
        %2337 = vmatpush1.msra.mxu0 %v2253
        %2338 = vmatprep.subr.mxu0 0.0
        %2339 = vmatpush1.msra.mxu0 %v2254
        %2340 = vmatprep.subr.mxu0 0.0
        %2341 = vmatpush1.msra.mxu0 %v2257
        %2342 = vmatprep.subr.mxu0 0.0
        %2343 = vmatpush1.msra.mxu0 0.0
        %2344 = vmatprep.subr.mxu0 0.0
        %2345 = vmatpush1.msra.mxu0 0.0
        %2346 = vmatprep.subr.mxu0 0.0
        %2347 = vmatpush1.msra.mxu0 0.0
        %2348 = vmatprep.subr.mxu0 0.0
        %2349 = vmatpush1.msra.mxu0 0.0
        %2350 = vmatprep.subr.mxu0 0.0
        %2351 = vmatpush1.msra.mxu0 0.0
        %2352 = vmatprep.subr.mxu0 0.0
        %2353 = vmatpush1.msra.mxu0 0.0
        %2354 = vmatprep.subr.mxu0 0.0
        %2355 = vmatpush1.msra.mxu0 0.0
        %2356 = vmatprep.subr.mxu0 0.0
        %2357 = vmatpush1.msra.mxu0 0.0
        %2358 = vmatprep.subr.mxu0 0.0
        %2359 = vmatpush1.msra.mxu0 0.0
        %2360 = vmatprep.subr.mxu0 0.0
        %2361 = vmatpush1.msra.mxu0 0.0
        %2362 = vmatprep.subr.mxu0 0.0
        %2363 = vmatpush1.msra.mxu0 0.0
        %2364 = vmatprep.subr.mxu0 0.0
        %2365 = vmatpush1.msra.mxu0 0.0
        %2366 = vmatprep.subr.mxu0 0.0
        %2367 = vmatpush1.msra.mxu0 0.0
        %2368 = vmatprep.subr.mxu0 0.0
        %2369 = vmatpush1.msra.mxu0 0.0
        %2370 = vmatprep.subr.mxu0 0.0
        %2371 = vmatpush1.msra.mxu0 0.0
        %2372 = vmatprep.subr.mxu0 0.0
        %2373 = vmatpush1.msra.mxu0 0.0
        %2374 = vmatprep.subr.mxu0 0.0
        %2375 = vmatpush1.msra.mxu0 0.0
        %2376 = vmatprep.subr.mxu0 0.0
        %2377 = vmatpush1.msra.mxu0 0.0
        %2378 = vmatprep.subr.mxu0 0.0
        %2379 = vmatpush1.msra.mxu0 0.0
        %2380 = vmatprep.subr.mxu0 0.0
        %2381 = vmatpush1.msra.mxu0 0.0
        %2382 = vmatprep.subr.mxu0 0.0
        %2383 = vmatpush1.msra.mxu0 0.0
        %2384 = vmatprep.subr.mxu0 0.0
        %2385 = vmatpush1.msra.mxu0 0.0
        %2386 = vmatprep.subr.mxu0 0.0
        %2387 = vmatpush1.msra.mxu0 0.0
        %2388 = vmatprep.subr.mxu0 0.0
        %2389 = vmatpush1.msra.mxu0 0.0
        %2390 = vmatprep.subr.mxu0 0.0
        %2391 = vmatpush1.msra.mxu0 0.0
        %2392 = vmatprep.subr.mxu0 0.0
        %2393 = vmatpush1.msra.mxu0 0.0
        %2394 = vmatprep.subr.mxu0 0.0
        %2395 = vmatpush1.msra.mxu0 0.0
        %2396 = vmatprep.subr.mxu0 0.0
        %2397 = vmatpush1.msra.mxu0 0.0
        %2398 = vmatprep.mubr.f32.mxu0 0.0
        %2399 = vmatmul.mubr.f32.gmra.mrb[0].mxu0 %v1272
        %v2400 = vpop.f32.mrb[0].mxu0
        %v2401 = vadd.f32 0.0, %v2400
        %v2402 = vpop.f32.mrb[0].mxu0
        %2403 = vmatprep.mubr.f32.mxu0 0.0
        %2404 = vmatmul.mubr.f32.gmra.mrb[0].mxu0 %v1275
        %v2405 = vpop.f32.mrb[0].mxu0
        %v2406 = vadd.f32 0.0, %v2405
        %v2407 = vpop.f32.mrb[0].mxu0
        %2408 = vdwg.mxu0
        %v2409 = vmax.f32 %v2326, %v2401
        %v2410 = vmax.f32 %v2331, %v2406
        %v2412 = vsel %vm1185, %v2409, 0
        %v2415 = vsel %vm1185, %v2410, 0
        %2417 = vmatprep.subr.mxu0 0.0
        %2418 = vmatpush1.msra.mxu0 %v428
        %2419 = vmatprep.subr.mxu0 0.0
        %2420 = vmatpush1.msra.mxu0 %v429
        %2421 = vmatprep.subr.mxu0 0.0
        %2422 = vmatpush1.msra.mxu0 %v430
        %2423 = vmatprep.subr.mxu0 0.0
        %2424 = vmatpush1.msra.mxu0 %v1361
        %2425 = vmatprep.subr.mxu0 0.0
        %2426 = vmatpush1.msra.mxu0 0.0
        %2427 = vmatprep.subr.mxu0 0.0
        %2428 = vmatpush1.msra.mxu0 0.0
        %2429 = vmatprep.subr.mxu0 0.0
        %2430 = vmatpush1.msra.mxu0 0.0
        %2431 = vmatprep.subr.mxu0 0.0
        %2432 = vmatpush1.msra.mxu0 0.0
        %2433 = vmatprep.subr.mxu0 0.0
        %2434 = vmatpush1.msra.mxu0 0.0
        %2435 = vmatprep.subr.mxu0 0.0
        %2436 = vmatpush1.msra.mxu0 0.0
        %2437 = vmatprep.subr.mxu0 0.0
        %2438 = vmatpush1.msra.mxu0 0.0
        %2439 = vmatprep.subr.mxu0 0.0
        %2440 = vmatpush1.msra.mxu0 0.0
        %2441 = vmatprep.subr.mxu0 0.0
        %2442 = vmatpush1.msra.mxu0 0.0
        %2443 = vmatprep.subr.mxu0 0.0
        %2444 = vmatpush1.msra.mxu0 0.0
        %2445 = vmatprep.subr.mxu0 0.0
        %2446 = vmatpush1.msra.mxu0 0.0
        %2447 = vmatprep.subr.mxu0 0.0
        %2448 = vmatpush1.msra.mxu0 0.0
        %2449 = vmatprep.subr.mxu0 0.0
        %2450 = vmatpush1.msra.mxu0 0.0
        %2451 = vmatprep.subr.mxu0 0.0
        %2452 = vmatpush1.msra.mxu0 0.0
        %2453 = vmatprep.subr.mxu0 0.0
        %2454 = vmatpush1.msra.mxu0 0.0
        %2455 = vmatprep.subr.mxu0 0.0
        %2456 = vmatpush1.msra.mxu0 0.0
        %2457 = vmatprep.subr.mxu0 0.0
        %2458 = vmatpush1.msra.mxu0 0.0
        %2459 = vmatprep.subr.mxu0 0.0
        %2460 = vmatpush1.msra.mxu0 0.0
        %2461 = vmatprep.subr.mxu0 0.0
        %2462 = vmatpush1.msra.mxu0 0.0
        %2463 = vmatprep.subr.mxu0 0.0
        %2464 = vmatpush1.msra.mxu0 0.0
        %2465 = vmatprep.subr.mxu0 0.0
        %2466 = vmatpush1.msra.mxu0 0.0
        %2467 = vmatprep.subr.mxu0 0.0
        %2468 = vmatpush1.msra.mxu0 0.0
        %2469 = vmatprep.subr.mxu0 0.0
        %2470 = vmatpush1.msra.mxu0 0.0
        %2471 = vmatprep.subr.mxu0 0.0
        %2472 = vmatpush1.msra.mxu0 0.0
        %2473 = vmatprep.subr.mxu0 0.0
        %2474 = vmatpush1.msra.mxu0 0.0
        %2475 = vmatprep.subr.mxu0 0.0
        %2476 = vmatpush1.msra.mxu0 0.0
        %2477 = vmatprep.subr.mxu0 0.0
        %2478 = vmatpush1.msra.mxu0 0.0
        %2479 = vmatprep.subr.mxu0 0.0
        %2480 = vmatpush1.msra.mxu0 0.0
        %2481 = vmatprep.mubr.f32.mxu0 0.0
        %2482 = vmatmul.mubr.f32.gmra.mrb[0].mxu0 %v2412
        %v2483 = vpop.f32.mrb[0].mxu0
        %v2484 = vadd.f32 0.0, %v2483
        %v2485 = vpop.f32.mrb[0].mxu0
        %2486 = vmatprep.mubr.f32.mxu0 0.0
        %2487 = vmatmul.mubr.f32.gmra.mrb[0].mxu0 %v2415
        %v2488 = vpop.f32.mrb[0].mxu0
        %v2489 = vadd.f32 0.0, %v2488
        %v2490 = vpop.f32.mrb[0].mxu0
        %2491 = vdwg.mxu0
        %2492 = vmatprep.subr.mxu0 0.0
        %2493 = vmatpush1.msra.mxu0 %v441
        %2494 = vmatprep.subr.mxu0 0.0
        %2495 = vmatpush1.msra.mxu0 %v442
        %2496 = vmatprep.subr.mxu0 0.0
        %2497 = vmatpush1.msra.mxu0 %v443
        %2498 = vmatprep.subr.mxu0 0.0
        %2499 = vmatpush1.msra.mxu0 %v1439
        %2500 = vmatprep.subr.mxu0 0.0
        %2501 = vmatpush1.msra.mxu0 0.0
        %2502 = vmatprep.subr.mxu0 0.0
        %2503 = vmatpush1.msra.mxu0 0.0
        %2504 = vmatprep.subr.mxu0 0.0
        %2505 = vmatpush1.msra.mxu0 0.0
        %2506 = vmatprep.subr.mxu0 0.0
        %2507 = vmatpush1.msra.mxu0 0.0
        %2508 = vmatprep.subr.mxu0 0.0
        %2509 = vmatpush1.msra.mxu0 0.0
        %2510 = vmatprep.subr.mxu0 0.0
        %2511 = vmatpush1.msra.mxu0 0.0
        %2512 = vmatprep.subr.mxu0 0.0
        %2513 = vmatpush1.msra.mxu0 0.0
        %2514 = vmatprep.subr.mxu0 0.0
        %2515 = vmatpush1.msra.mxu0 0.0
        %2516 = vmatprep.subr.mxu0 0.0
        %2517 = vmatpush1.msra.mxu0 0.0
        %2518 = vmatprep.subr.mxu0 0.0
        %2519 = vmatpush1.msra.mxu0 0.0
        %2520 = vmatprep.subr.mxu0 0.0
        %2521 = vmatpush1.msra.mxu0 0.0
        %2522 = vmatprep.subr.mxu0 0.0
        %2523 = vmatpush1.msra.mxu0 0.0
        %2524 = vmatprep.subr.mxu0 0.0
        %2525 = vmatpush1.msra.mxu0 0.0
        %2526 = vmatprep.subr.mxu0 0.0
        %2527 = vmatpush1.msra.mxu0 0.0
        %2528 = vmatprep.subr.mxu0 0.0
        %2529 = vmatpush1.msra.mxu0 0.0
        %2530 = vmatprep.subr.mxu0 0.0
        %2531 = vmatpush1.msra.mxu0 0.0
        %2532 = vmatprep.subr.mxu0 0.0
        %2533 = vmatpush1.msra.mxu0 0.0
        %2534 = vmatprep.subr.mxu0 0.0
        %2535 = vmatpush1.msra.mxu0 0.0
        %2536 = vmatprep.subr.mxu0 0.0
        %2537 = vmatpush1.msra.mxu0 0.0
        %2538 = vmatprep.subr.mxu0 0.0
        %2539 = vmatpush1.msra.mxu0 0.0
        %2540 = vmatprep.subr.mxu0 0.0
        %2541 = vmatpush1.msra.mxu0 0.0
        %2542 = vmatprep.subr.mxu0 0.0
        %2543 = vmatpush1.msra.mxu0 0.0
        %2544 = vmatprep.subr.mxu0 0.0
        %2545 = vmatpush1.msra.mxu0 0.0
        %2546 = vmatprep.subr.mxu0 0.0
        %2547 = vmatpush1.msra.mxu0 0.0
        %2548 = vmatprep.subr.mxu0 0.0
        %2549 = vmatpush1.msra.mxu0 0.0
        %2550 = vmatprep.subr.mxu0 0.0
        %2551 = vmatpush1.msra.mxu0 0.0
        %2552 = vmatprep.subr.mxu0 0.0
        %2553 = vmatpush1.msra.mxu0 0.0
        %2554 = vmatprep.subr.mxu0 0.0
        %2555 = vmatpush1.msra.mxu0 0.0
        %2556 = vmatprep.mubr.f32.mxu0 0.0
        %2557 = vmatmul.mubr.f32.gmra.mrb[0].mxu0 %v2412
        %v2558 = vpop.f32.mrb[0].mxu0
        %v2559 = vadd.f32 0.0, %v2558
        %v2560 = vpop.f32.mrb[0].mxu0
        %2561 = vmatprep.mubr.f32.mxu0 0.0
        %2562 = vmatmul.mubr.f32.gmra.mrb[0].mxu0 %v2415
        %v2563 = vpop.f32.mrb[0].mxu0
        %v2564 = vadd.f32 0.0, %v2563
        %v2565 = vpop.f32.mrb[0].mxu0
        %2566 = vdwg.mxu0
        %v2567 = vmax.f32 %v2484, %v2559
        %v2568 = vmax.f32 %v2489, %v2564
        %s2569 = sld [smem:[#allocation5 + $0x2]]
        %v2570 = vstv %s2569
        %s2571 = sld [smem:[#allocation2 + $0x36]]
        %v2572 = vstv %s2571
        %v2573 = vmul.f32 %v382, %v2572
        %v2574 = vmul.f32 %v383, %v2572
        %v2575 = vmul.f32 %v384, %v2572
        %v2576 = vmul.f32 %v385, %v2572
        %v2577 = vadd.f32 %v2570, %v2573
        %v2578 = vadd.f32 %v2570, %v2574
        %v2579 = vadd.f32 %v2570, %v2575
        %v2580 = vadd.f32 %v2570, %v2576
        %s2581 = sld [smem:[#allocation2 + $0x37]]
        %v2582 = vstv %s2581
        %v2583 = vmul.f32 %v382, %v2582
        %v2584 = vmul.f32 %v383, %v2582
        %v2585 = vmul.f32 %v384, %v2582
        %v2586 = vmul.f32 %v385, %v2582
        %2591 = vrot.lane.b32.xlu0 %v2583, 127
        %v2592 = vpop.permute.xlu0 %2591
        %2593 = vrot.lane.b32.xlu0 %v2584, 127
        %v2594 = vpop.permute.xlu0 %2593
        %2595 = vrot.lane.b32.xlu0 %v2585, 127
        %v2596 = vpop.permute.xlu0 %2595
        %2597 = vrot.lane.b32.xlu0 %v2586, 127
        %v2598 = vpop.permute.xlu0 %2597
        %v2603 = vadd.f32 %v2577, %v2592
        %v2604 = vadd.f32 %v2578, %v2594
        %v2605 = vadd.f32 %v2579, %v2596
        %v2606 = vadd.f32 %v2580, %v2598
        %s2607 = sld [smem:[#allocation2 + $0x38]]
        %v2608 = vstv %s2607
        %v2609 = vmul.f32 %v382, %v2608
        %v2610 = vmul.f32 %v383, %v2608
        %v2611 = vmul.f32 %v384, %v2608
        %v2612 = vmul.f32 %v385, %v2608
        %2617 = vrot.lane.b32.xlu0 %v2609, 126
        %v2618 = vpop.permute.xlu0 %2617
        %2619 = vrot.lane.b32.xlu0 %v2610, 126
        %v2620 = vpop.permute.xlu0 %2619
        %2621 = vrot.lane.b32.xlu0 %v2611, 126
        %v2622 = vpop.permute.xlu0 %2621
        %2623 = vrot.lane.b32.xlu0 %v2612, 126
        %v2624 = vpop.permute.xlu0 %2623
        %v2629 = vadd.f32 %v2603, %v2618
        %v2630 = vadd.f32 %v2604, %v2620
        %v2631 = vadd.f32 %v2605, %v2622
        %v2632 = vadd.f32 %v2606, %v2624
        %s2633 = sld [smem:[#allocation2 + $0x39]]
        %v2634 = vstv %s2633
        %v2635 = vmul.f32 %v382, %v2634
        %v2636 = vmul.f32 %v383, %v2634
        %v2637 = vmul.f32 %v384, %v2634
        %v2638 = vmul.f32 %v385, %v2634
        %v2643 = vrot.slane %v2635, 1
        %v2644 = vrot.slane %v2636, 1
        %v2645 = vsel %vm519, %v2643, %v2644
        %v2646 = vrot.slane %v2637, 1
        %v2647 = vsel %vm519, %v2644, %v2646
        %v2648 = vrot.slane %v2638, 1
        %v2649 = vsel %vm519, %v2646, %v2648
        %v2654 = vadd.f32 %v2629, %v2645
        %v2655 = vadd.f32 %v2630, %v2647
        %v2656 = vadd.f32 %v2631, %v2649
        %v2657 = vadd.f32 %v2632, %v2648
        %s2658 = sld [smem:[#allocation2 + $0x3a]]
        %v2659 = vstv %s2658
        %v2660 = vmul.f32 %v382, %v2659
        %v2661 = vmul.f32 %v383, %v2659
        %v2662 = vmul.f32 %v384, %v2659
        %v2663 = vmul.f32 %v385, %v2659
        %v2668 = vrot.slane %v2660, 1
        %v2669 = vrot.slane %v2661, 1
        %v2670 = vsel %vm519, %v2668, %v2669
        %v2671 = vrot.slane %v2662, 1
        %v2672 = vsel %vm519, %v2669, %v2671
        %v2673 = vrot.slane %v2663, 1
        %v2674 = vsel %vm519, %v2671, %v2673
        %2675 = vrot.lane.b32.xlu0 %v2670, 127
        %v2676 = vpop.permute.xlu0 %2675
        %2677 = vrot.lane.b32.xlu0 %v2672, 127
        %v2678 = vpop.permute.xlu0 %2677
        %2679 = vrot.lane.b32.xlu0 %v2674, 127
        %v2680 = vpop.permute.xlu0 %2679
        %2681 = vrot.lane.b32.xlu0 %v2673, 127
        %v2682 = vpop.permute.xlu0 %2681
        %v2687 = vadd.f32 %v2654, %v2676
        %v2688 = vadd.f32 %v2655, %v2678
        %v2689 = vadd.f32 %v2656, %v2680
        %v2690 = vadd.f32 %v2657, %v2682
        %s2691 = sld [smem:[#allocation2 + $0x3b]]
        %v2692 = vstv %s2691
        %v2693 = vmul.f32 %v382, %v2692
        %v2694 = vmul.f32 %v383, %v2692
        %v2695 = vmul.f32 %v384, %v2692
        %v2696 = vmul.f32 %v385, %v2692
        %v2701 = vrot.slane %v2693, 1
        %v2702 = vrot.slane %v2694, 1
        %v2703 = vsel %vm519, %v2701, %v2702
        %v2704 = vrot.slane %v2695, 1
        %v2705 = vsel %vm519, %v2702, %v2704
        %v2706 = vrot.slane %v2696, 1
        %v2707 = vsel %vm519, %v2704, %v2706
        %2708 = vrot.lane.b32.xlu0 %v2703, 126
        %v2709 = vpop.permute.xlu0 %2708
        %2710 = vrot.lane.b32.xlu0 %v2705, 126
        %v2711 = vpop.permute.xlu0 %2710
        %2712 = vrot.lane.b32.xlu0 %v2707, 126
        %v2713 = vpop.permute.xlu0 %2712
        %2714 = vrot.lane.b32.xlu0 %v2706, 126
        %v2715 = vpop.permute.xlu0 %2714
        %v2720 = vadd.f32 %v2687, %v2709
        %v2721 = vadd.f32 %v2688, %v2711
        %v2722 = vadd.f32 %v2689, %v2713
        %v2723 = vadd.f32 %v2690, %v2715
        %s2724 = sld [smem:[#allocation2 + $0x3c]]
        %v2725 = vstv %s2724
        %v2726 = vmul.f32 %v382, %v2725
        %v2727 = vmul.f32 %v383, %v2725
        %v2728 = vmul.f32 %v384, %v2725
        %v2729 = vmul.f32 %v385, %v2725
        %v2734 = vrot.slane %v2726, 2
        %v2735 = vrot.slane %v2727, 2
        %v2736 = vsel %vm611, %v2734, %v2735
        %v2737 = vrot.slane %v2728, 2
        %v2738 = vsel %vm611, %v2735, %v2737
        %v2739 = vrot.slane %v2729, 2
        %v2740 = vsel %vm611, %v2737, %v2739
        %v2745 = vadd.f32 %v2720, %v2736
        %v2746 = vadd.f32 %v2721, %v2738
        %v2747 = vadd.f32 %v2722, %v2740
        %v2748 = vadd.f32 %v2723, %v2739
        %s2749 = sld [smem:[#allocation2 + $0x3d]]
        %v2750 = vstv %s2749
        %v2751 = vmul.f32 %v382, %v2750
        %v2752 = vmul.f32 %v383, %v2750
        %v2753 = vmul.f32 %v384, %v2750
        %v2754 = vmul.f32 %v385, %v2750
        %v2759 = vrot.slane %v2751, 2
        %v2760 = vrot.slane %v2752, 2
        %v2761 = vsel %vm611, %v2759, %v2760
        %v2762 = vrot.slane %v2753, 2
        %v2763 = vsel %vm611, %v2760, %v2762
        %v2764 = vrot.slane %v2754, 2
        %v2765 = vsel %vm611, %v2762, %v2764
        %2766 = vrot.lane.b32.xlu0 %v2761, 127
        %v2767 = vpop.permute.xlu0 %2766
        %2768 = vrot.lane.b32.xlu0 %v2763, 127
        %v2769 = vpop.permute.xlu0 %2768
        %2770 = vrot.lane.b32.xlu0 %v2765, 127
        %v2771 = vpop.permute.xlu0 %2770
        %2772 = vrot.lane.b32.xlu0 %v2764, 127
        %v2773 = vpop.permute.xlu0 %2772
        %v2778 = vadd.f32 %v2745, %v2767
        %v2779 = vadd.f32 %v2746, %v2769
        %v2780 = vadd.f32 %v2747, %v2771
        %v2781 = vadd.f32 %v2748, %v2773
        %s2782 = sld [smem:[#allocation2 + $0x3e]]
        %v2783 = vstv %s2782
        %v2784 = vmul.f32 %v382, %v2783
        %v2785 = vmul.f32 %v383, %v2783
        %v2786 = vmul.f32 %v384, %v2783
        %v2787 = vmul.f32 %v385, %v2783
        %v2792 = vrot.slane %v2784, 2
        %v2793 = vrot.slane %v2785, 2
        %v2794 = vsel %vm611, %v2792, %v2793
        %v2795 = vrot.slane %v2786, 2
        %v2796 = vsel %vm611, %v2793, %v2795
        %v2797 = vrot.slane %v2787, 2
        %v2798 = vsel %vm611, %v2795, %v2797
        %2799 = vrot.lane.b32.xlu0 %v2794, 126
        %v2800 = vpop.permute.xlu0 %2799
        %2801 = vrot.lane.b32.xlu0 %v2796, 126
        %v2802 = vpop.permute.xlu0 %2801
        %2803 = vrot.lane.b32.xlu0 %v2798, 126
        %v2804 = vpop.permute.xlu0 %2803
        %2805 = vrot.lane.b32.xlu0 %v2797, 126
        %v2806 = vpop.permute.xlu0 %2805
        %v2811 = vadd.f32 %v2778, %v2800
        %v2812 = vadd.f32 %v2779, %v2802
        %v2813 = vadd.f32 %v2780, %v2804
        %v2814 = vadd.f32 %v2781, %v2806
        %s2815 = sld [smem:[#allocation2 + $0x3f]]
        %v2816 = vstv %s2815
        %v2817 = vmul.f32 %v387, %v2816
        %v2818 = vmul.f32 %v388, %v2816
        %v2819 = vmul.f32 %v389, %v2816
        %v2820 = vmul.f32 %v390, %v2816
        %v2821 = vadd.f32 %v2811, %v2817
        %v2822 = vadd.f32 %v2812, %v2818
        %v2823 = vadd.f32 %v2813, %v2819
        %v2824 = vadd.f32 %v2814, %v2820
        %s2825 = sld [smem:[#allocation2 + $0x40]]
        %v2826 = vstv %s2825
        %v2827 = vmul.f32 %v387, %v2826
        %v2828 = vmul.f32 %v388, %v2826
        %v2829 = vmul.f32 %v389, %v2826
        %v2830 = vmul.f32 %v390, %v2826
        %2835 = vrot.lane.b32.xlu0 %v2827, 127
        %v2836 = vpop.permute.xlu0 %2835
        %2837 = vrot.lane.b32.xlu0 %v2828, 127
        %v2838 = vpop.permute.xlu0 %2837
        %2839 = vrot.lane.b32.xlu0 %v2829, 127
        %v2840 = vpop.permute.xlu0 %2839
        %2841 = vrot.lane.b32.xlu0 %v2830, 127
        %v2842 = vpop.permute.xlu0 %2841
        %v2847 = vadd.f32 %v2821, %v2836
        %v2848 = vadd.f32 %v2822, %v2838
        %v2849 = vadd.f32 %v2823, %v2840
        %v2850 = vadd.f32 %v2824, %v2842
        %s2851 = sld [smem:[#allocation2 + $0x41]]
        %v2852 = vstv %s2851
        %v2853 = vmul.f32 %v387, %v2852
        %v2854 = vmul.f32 %v388, %v2852
        %v2855 = vmul.f32 %v389, %v2852
        %v2856 = vmul.f32 %v390, %v2852
        %2861 = vrot.lane.b32.xlu0 %v2853, 126
        %v2862 = vpop.permute.xlu0 %2861
        %2863 = vrot.lane.b32.xlu0 %v2854, 126
        %v2864 = vpop.permute.xlu0 %2863
        %2865 = vrot.lane.b32.xlu0 %v2855, 126
        %v2866 = vpop.permute.xlu0 %2865
        %2867 = vrot.lane.b32.xlu0 %v2856, 126
        %v2868 = vpop.permute.xlu0 %2867
        %v2873 = vadd.f32 %v2847, %v2862
        %v2874 = vadd.f32 %v2848, %v2864
        %v2875 = vadd.f32 %v2849, %v2866
        %v2876 = vadd.f32 %v2850, %v2868
        %s2877 = sld [smem:[#allocation2 + $0x42]]
        %v2878 = vstv %s2877
        %v2879 = vmul.f32 %v387, %v2878
        %v2880 = vmul.f32 %v388, %v2878
        %v2881 = vmul.f32 %v389, %v2878
        %v2882 = vmul.f32 %v390, %v2878
        %v2887 = vrot.slane %v2879, 1
        %v2888 = vrot.slane %v2880, 1
        %v2889 = vsel %vm519, %v2887, %v2888
        %v2890 = vrot.slane %v2881, 1
        %v2891 = vsel %vm519, %v2888, %v2890
        %v2892 = vrot.slane %v2882, 1
        %v2893 = vsel %vm519, %v2890, %v2892
        %v2898 = vadd.f32 %v2873, %v2889
        %v2899 = vadd.f32 %v2874, %v2891
        %v2900 = vadd.f32 %v2875, %v2893
        %v2901 = vadd.f32 %v2876, %v2892
        %s2902 = sld [smem:[#allocation2 + $0x43]]
        %v2903 = vstv %s2902
        %v2904 = vmul.f32 %v387, %v2903
        %v2905 = vmul.f32 %v388, %v2903
        %v2906 = vmul.f32 %v389, %v2903
        %v2907 = vmul.f32 %v390, %v2903
        %v2912 = vrot.slane %v2904, 1
        %v2913 = vrot.slane %v2905, 1
        %v2914 = vsel %vm519, %v2912, %v2913
        %v2915 = vrot.slane %v2906, 1
        %v2916 = vsel %vm519, %v2913, %v2915
        %v2917 = vrot.slane %v2907, 1
        %v2918 = vsel %vm519, %v2915, %v2917
        %2919 = vrot.lane.b32.xlu0 %v2914, 127
        %v2920 = vpop.permute.xlu0 %2919
        %2921 = vrot.lane.b32.xlu0 %v2916, 127
        %v2922 = vpop.permute.xlu0 %2921
        %2923 = vrot.lane.b32.xlu0 %v2918, 127
        %v2924 = vpop.permute.xlu0 %2923
        %2925 = vrot.lane.b32.xlu0 %v2917, 127
        %v2926 = vpop.permute.xlu0 %2925
        %v2931 = vadd.f32 %v2898, %v2920
        %v2932 = vadd.f32 %v2899, %v2922
        %v2933 = vadd.f32 %v2900, %v2924
        %v2934 = vadd.f32 %v2901, %v2926
        %s2935 = sld [smem:[#allocation2 + $0x44]]
        %v2936 = vstv %s2935
        %v2937 = vmul.f32 %v387, %v2936
        %v2938 = vmul.f32 %v388, %v2936
        %v2939 = vmul.f32 %v389, %v2936
        %v2940 = vmul.f32 %v390, %v2936
        %v2945 = vrot.slane %v2937, 1
        %v2946 = vrot.slane %v2938, 1
        %v2947 = vsel %vm519, %v2945, %v2946
        %v2948 = vrot.slane %v2939, 1
        %v2949 = vsel %vm519, %v2946, %v2948
        %v2950 = vrot.slane %v2940, 1
        %v2951 = vsel %vm519, %v2948, %v2950
        %2952 = vrot.lane.b32.xlu0 %v2947, 126
        %v2953 = vpop.permute.xlu0 %2952
        %2954 = vrot.lane.b32.xlu0 %v2949, 126
        %v2955 = vpop.permute.xlu0 %2954
        %2956 = vrot.lane.b32.xlu0 %v2951, 126
        %v2957 = vpop.permute.xlu0 %2956
        %2958 = vrot.lane.b32.xlu0 %v2950, 126
        %v2959 = vpop.permute.xlu0 %2958
        %v2964 = vadd.f32 %v2931, %v2953
        %v2965 = vadd.f32 %v2932, %v2955
        %v2966 = vadd.f32 %v2933, %v2957
        %v2967 = vadd.f32 %v2934, %v2959
        %s2968 = sld [smem:[#allocation2 + $0x45]]
        %v2969 = vstv %s2968
        %v2970 = vmul.f32 %v387, %v2969
        %v2971 = vmul.f32 %v388, %v2969
        %v2972 = vmul.f32 %v389, %v2969
        %v2973 = vmul.f32 %v390, %v2969
        %v2978 = vrot.slane %v2970, 2
        %v2979 = vrot.slane %v2971, 2
        %v2980 = vsel %vm611, %v2978, %v2979
        %v2981 = vrot.slane %v2972, 2
        %v2982 = vsel %vm611, %v2979, %v2981
        %v2983 = vrot.slane %v2973, 2
        %v2984 = vsel %vm611, %v2981, %v2983
        %v2989 = vadd.f32 %v2964, %v2980
        %v2990 = vadd.f32 %v2965, %v2982
        %v2991 = vadd.f32 %v2966, %v2984
        %v2992 = vadd.f32 %v2967, %v2983
        %s2993 = sld [smem:[#allocation2 + $0x46]]
        %v2994 = vstv %s2993
        %v2995 = vmul.f32 %v387, %v2994
        %v2996 = vmul.f32 %v388, %v2994
        %v2997 = vmul.f32 %v389, %v2994
        %v2998 = vmul.f32 %v390, %v2994
        %v3003 = vrot.slane %v2995, 2
        %v3004 = vrot.slane %v2996, 2
        %v3005 = vsel %vm611, %v3003, %v3004
        %v3006 = vrot.slane %v2997, 2
        %v3007 = vsel %vm611, %v3004, %v3006
        %v3008 = vrot.slane %v2998, 2
        %v3009 = vsel %vm611, %v3006, %v3008
        %3010 = vrot.lane.b32.xlu0 %v3005, 127
        %v3011 = vpop.permute.xlu0 %3010
        %3012 = vrot.lane.b32.xlu0 %v3007, 127
        %v3013 = vpop.permute.xlu0 %3012
        %3014 = vrot.lane.b32.xlu0 %v3009, 127
        %v3015 = vpop.permute.xlu0 %3014
        %3016 = vrot.lane.b32.xlu0 %v3008, 127
        %v3017 = vpop.permute.xlu0 %3016
        %v3022 = vadd.f32 %v2989, %v3011
        %v3023 = vadd.f32 %v2990, %v3013
        %v3024 = vadd.f32 %v2991, %v3015
        %v3025 = vadd.f32 %v2992, %v3017
        %s3026 = sld [smem:[#allocation2 + $0x47]]
        %v3027 = vstv %s3026
        %v3028 = vmul.f32 %v387, %v3027
        %v3029 = vmul.f32 %v388, %v3027
        %v3030 = vmul.f32 %v389, %v3027
        %v3031 = vmul.f32 %v390, %v3027
        %v3036 = vrot.slane %v3028, 2
        %v3037 = vrot.slane %v3029, 2
        %v3038 = vsel %vm611, %v3036, %v3037
        %v3039 = vrot.slane %v3030, 2
        %v3040 = vsel %vm611, %v3037, %v3039
        %v3041 = vrot.slane %v3031, 2
        %v3042 = vsel %vm611, %v3039, %v3041
        %3043 = vrot.lane.b32.xlu0 %v3038, 126
        %v3044 = vpop.permute.xlu0 %3043
        %3045 = vrot.lane.b32.xlu0 %v3040, 126
        %v3046 = vpop.permute.xlu0 %3045
        %3047 = vrot.lane.b32.xlu0 %v3042, 126
        %v3048 = vpop.permute.xlu0 %3047
        %3049 = vrot.lane.b32.xlu0 %v3041, 126
        %v3050 = vpop.permute.xlu0 %3049
        %v3055 = vadd.f32 %v3022, %v3044
        %v3056 = vadd.f32 %v3023, %v3046
        %v3057 = vadd.f32 %v3024, %v3048
        %v3058 = vadd.f32 %v3025, %v3050
        %s3059 = sld [smem:[#allocation2 + $0x48]]
        %v3060 = vstv %s3059
        %v3061 = vmul.f32 %v392, %v3060
        %v3062 = vmul.f32 %v393, %v3060
        %v3063 = vmul.f32 %v394, %v3060
        %v3064 = vmul.f32 %v395, %v3060
        %v3065 = vadd.f32 %v3055, %v3061
        %v3066 = vadd.f32 %v3056, %v3062
        %v3067 = vadd.f32 %v3057, %v3063
        %v3068 = vadd.f32 %v3058, %v3064
        %s3069 = sld [smem:[#allocation2 + $0x49]]
        %v3070 = vstv %s3069
        %v3071 = vmul.f32 %v392, %v3070
        %v3072 = vmul.f32 %v393, %v3070
        %v3073 = vmul.f32 %v394, %v3070
        %v3074 = vmul.f32 %v395, %v3070
        %3079 = vrot.lane.b32.xlu0 %v3071, 127
        %v3080 = vpop.permute.xlu0 %3079
        %3081 = vrot.lane.b32.xlu0 %v3072, 127
        %v3082 = vpop.permute.xlu0 %3081
        %3083 = vrot.lane.b32.xlu0 %v3073, 127
        %v3084 = vpop.permute.xlu0 %3083
        %3085 = vrot.lane.b32.xlu0 %v3074, 127
        %v3086 = vpop.permute.xlu0 %3085
        %v3091 = vadd.f32 %v3065, %v3080
        %v3092 = vadd.f32 %v3066, %v3082
        %v3093 = vadd.f32 %v3067, %v3084
        %v3094 = vadd.f32 %v3068, %v3086
        %s3095 = sld [smem:[#allocation2 + $0x4a]]
        %v3096 = vstv %s3095
        %v3097 = vmul.f32 %v392, %v3096
        %v3098 = vmul.f32 %v393, %v3096
        %v3099 = vmul.f32 %v394, %v3096
        %v3100 = vmul.f32 %v395, %v3096
        %3105 = vrot.lane.b32.xlu0 %v3097, 126
        %v3106 = vpop.permute.xlu0 %3105
        %3107 = vrot.lane.b32.xlu0 %v3098, 126
        %v3108 = vpop.permute.xlu0 %3107
        %3109 = vrot.lane.b32.xlu0 %v3099, 126
        %v3110 = vpop.permute.xlu0 %3109
        %3111 = vrot.lane.b32.xlu0 %v3100, 126
        %v3112 = vpop.permute.xlu0 %3111
        %v3117 = vadd.f32 %v3091, %v3106
        %v3118 = vadd.f32 %v3092, %v3108
        %v3119 = vadd.f32 %v3093, %v3110
        %v3120 = vadd.f32 %v3094, %v3112
        %s3121 = sld [smem:[#allocation2 + $0x4b]]
        %v3122 = vstv %s3121
        %v3123 = vmul.f32 %v392, %v3122
        %v3124 = vmul.f32 %v393, %v3122
        %v3125 = vmul.f32 %v394, %v3122
        %v3126 = vmul.f32 %v395, %v3122
        %v3131 = vrot.slane %v3123, 1
        %v3132 = vrot.slane %v3124, 1
        %v3133 = vsel %vm519, %v3131, %v3132
        %v3134 = vrot.slane %v3125, 1
        %v3135 = vsel %vm519, %v3132, %v3134
        %v3136 = vrot.slane %v3126, 1
        %v3137 = vsel %vm519, %v3134, %v3136
        %v3142 = vadd.f32 %v3117, %v3133
        %v3143 = vadd.f32 %v3118, %v3135
        %v3144 = vadd.f32 %v3119, %v3137
        %v3145 = vadd.f32 %v3120, %v3136
        %s3146 = sld [smem:[#allocation2 + $0x4c]]
        %v3147 = vstv %s3146
        %v3148 = vmul.f32 %v392, %v3147
        %v3149 = vmul.f32 %v393, %v3147
        %v3150 = vmul.f32 %v394, %v3147
        %v3151 = vmul.f32 %v395, %v3147
        %v3156 = vrot.slane %v3148, 1
        %v3157 = vrot.slane %v3149, 1
        %v3158 = vsel %vm519, %v3156, %v3157
        %v3159 = vrot.slane %v3150, 1
        %v3160 = vsel %vm519, %v3157, %v3159
        %v3161 = vrot.slane %v3151, 1
        %v3162 = vsel %vm519, %v3159, %v3161
        %3163 = vrot.lane.b32.xlu0 %v3158, 127
        %v3164 = vpop.permute.xlu0 %3163
        %3165 = vrot.lane.b32.xlu0 %v3160, 127
        %v3166 = vpop.permute.xlu0 %3165
        %3167 = vrot.lane.b32.xlu0 %v3162, 127
        %v3168 = vpop.permute.xlu0 %3167
        %3169 = vrot.lane.b32.xlu0 %v3161, 127
        %v3170 = vpop.permute.xlu0 %3169
        %v3175 = vadd.f32 %v3142, %v3164
        %v3176 = vadd.f32 %v3143, %v3166
        %v3177 = vadd.f32 %v3144, %v3168
        %v3178 = vadd.f32 %v3145, %v3170
        %s3179 = sld [smem:[#allocation2 + $0x4d]]
        %v3180 = vstv %s3179
        %v3181 = vmul.f32 %v392, %v3180
        %v3182 = vmul.f32 %v393, %v3180
        %v3183 = vmul.f32 %v394, %v3180
        %v3184 = vmul.f32 %v395, %v3180
        %v3189 = vrot.slane %v3181, 1
        %v3190 = vrot.slane %v3182, 1
        %v3191 = vsel %vm519, %v3189, %v3190
        %v3192 = vrot.slane %v3183, 1
        %v3193 = vsel %vm519, %v3190, %v3192
        %v3194 = vrot.slane %v3184, 1
        %v3195 = vsel %vm519, %v3192, %v3194
        %3196 = vrot.lane.b32.xlu0 %v3191, 126
        %v3197 = vpop.permute.xlu0 %3196
        %3198 = vrot.lane.b32.xlu0 %v3193, 126
        %v3199 = vpop.permute.xlu0 %3198
        %3200 = vrot.lane.b32.xlu0 %v3195, 126
        %v3201 = vpop.permute.xlu0 %3200
        %3202 = vrot.lane.b32.xlu0 %v3194, 126
        %v3203 = vpop.permute.xlu0 %3202
        %v3208 = vadd.f32 %v3175, %v3197
        %v3209 = vadd.f32 %v3176, %v3199
        %v3210 = vadd.f32 %v3177, %v3201
        %v3211 = vadd.f32 %v3178, %v3203
        %s3212 = sld [smem:[#allocation2 + $0x4e]]
        %v3213 = vstv %s3212
        %v3214 = vmul.f32 %v392, %v3213
        %v3215 = vmul.f32 %v393, %v3213
        %v3216 = vmul.f32 %v394, %v3213
        %v3217 = vmul.f32 %v395, %v3213
        %v3222 = vrot.slane %v3214, 2
        %v3223 = vrot.slane %v3215, 2
        %v3224 = vsel %vm611, %v3222, %v3223
        %v3225 = vrot.slane %v3216, 2
        %v3226 = vsel %vm611, %v3223, %v3225
        %v3227 = vrot.slane %v3217, 2
        %v3228 = vsel %vm611, %v3225, %v3227
        %v3233 = vadd.f32 %v3208, %v3224
        %v3234 = vadd.f32 %v3209, %v3226
        %v3235 = vadd.f32 %v3210, %v3228
        %v3236 = vadd.f32 %v3211, %v3227
        %s3237 = sld [smem:[#allocation2 + $0x4f]]
        %v3238 = vstv %s3237
        %v3239 = vmul.f32 %v392, %v3238
        %v3240 = vmul.f32 %v393, %v3238
        %v3241 = vmul.f32 %v394, %v3238
        %v3242 = vmul.f32 %v395, %v3238
        %v3247 = vrot.slane %v3239, 2
        %v3248 = vrot.slane %v3240, 2
        %v3249 = vsel %vm611, %v3247, %v3248
        %v3250 = vrot.slane %v3241, 2
        %v3251 = vsel %vm611, %v3248, %v3250
        %v3252 = vrot.slane %v3242, 2
        %v3253 = vsel %vm611, %v3250, %v3252
        %3254 = vrot.lane.b32.xlu0 %v3249, 127
        %v3255 = vpop.permute.xlu0 %3254
        %3256 = vrot.lane.b32.xlu0 %v3251, 127
        %v3257 = vpop.permute.xlu0 %3256
        %3258 = vrot.lane.b32.xlu0 %v3253, 127
        %v3259 = vpop.permute.xlu0 %3258
        %3260 = vrot.lane.b32.xlu0 %v3252, 127
        %v3261 = vpop.permute.xlu0 %3260
        %v3266 = vadd.f32 %v3233, %v3255
        %v3267 = vadd.f32 %v3234, %v3257
        %v3268 = vadd.f32 %v3235, %v3259
        %v3269 = vadd.f32 %v3236, %v3261
        %s3270 = sld [smem:[#allocation2 + $0x50]]
        %v3271 = vstv %s3270
        %v3272 = vmul.f32 %v392, %v3271
        %v3273 = vmul.f32 %v393, %v3271
        %v3274 = vmul.f32 %v394, %v3271
        %v3275 = vmul.f32 %v395, %v3271
        %v3280 = vrot.slane %v3272, 2
        %v3281 = vrot.slane %v3273, 2
        %v3282 = vsel %vm611, %v3280, %v3281
        %v3283 = vrot.slane %v3274, 2
        %v3284 = vsel %vm611, %v3281, %v3283
        %v3285 = vrot.slane %v3275, 2
        %v3286 = vsel %vm611, %v3283, %v3285
        %3287 = vrot.lane.b32.xlu0 %v3282, 126
        %v3288 = vpop.permute.xlu0 %3287
        %3289 = vrot.lane.b32.xlu0 %v3284, 126
        %v3290 = vpop.permute.xlu0 %3289
        %3291 = vrot.lane.b32.xlu0 %v3286, 126
        %v3292 = vpop.permute.xlu0 %3291
        %3293 = vrot.lane.b32.xlu0 %v3285, 126
        %v3294 = vpop.permute.xlu0 %3293
        %v3299 = vadd.f32 %v3266, %v3288
        %v3300 = vadd.f32 %v3267, %v3290
        %v3301 = vadd.f32 %v3268, %v3292
        %v3302 = vadd.f32 %v3269, %v3294
        %v3303 = vmax.f32 %v3299, 0.0
        %v3304 = vmax.f32 %v3300, 0.0
        %v3305 = vmax.f32 %v3301, 0.0
        %v3306 = vmax.f32 %v3302, 0.0
        %v3308 = vsel %vm1192, %v3306, 0
        %3310 = vmatprep.subr.mxu0 0.0
        %3311 = vmatpush1.msra.mxu0 %v3303
        %3312 = vmatprep.subr.mxu0 0.0
        %3313 = vmatpush1.msra.mxu0 %v3304
        %3314 = vmatprep.subr.mxu0 0.0
        %3315 = vmatpush1.msra.mxu0 %v3305
        %3316 = vmatprep.subr.mxu0 0.0
        %3317 = vmatpush1.msra.mxu0 %v3308
        %3318 = vmatprep.subr.mxu0 0.0
        %3319 = vmatpush1.msra.mxu0 0.0
        %3320 = vmatprep.subr.mxu0 0.0
        %3321 = vmatpush1.msra.mxu0 0.0
        %3322 = vmatprep.subr.mxu0 0.0
        %3323 = vmatpush1.msra.mxu0 0.0
        %3324 = vmatprep.subr.mxu0 0.0
        %3325 = vmatpush1.msra.mxu0 0.0
        %3326 = vmatprep.subr.mxu0 0.0
        %3327 = vmatpush1.msra.mxu0 0.0
        %3328 = vmatprep.subr.mxu0 0.0
        %3329 = vmatpush1.msra.mxu0 0.0
        %3330 = vmatprep.subr.mxu0 0.0
        %3331 = vmatpush1.msra.mxu0 0.0
        %3332 = vmatprep.subr.mxu0 0.0
        %3333 = vmatpush1.msra.mxu0 0.0
        %3334 = vmatprep.subr.mxu0 0.0
        %3335 = vmatpush1.msra.mxu0 0.0
        %3336 = vmatprep.subr.mxu0 0.0
        %3337 = vmatpush1.msra.mxu0 0.0
        %3338 = vmatprep.subr.mxu0 0.0
        %3339 = vmatpush1.msra.mxu0 0.0
        %3340 = vmatprep.subr.mxu0 0.0
        %3341 = vmatpush1.msra.mxu0 0.0
        %3342 = vmatprep.subr.mxu0 0.0
        %3343 = vmatpush1.msra.mxu0 0.0
        %3344 = vmatprep.subr.mxu0 0.0
        %3345 = vmatpush1.msra.mxu0 0.0
        %3346 = vmatprep.subr.mxu0 0.0
        %3347 = vmatpush1.msra.mxu0 0.0
        %3348 = vmatprep.subr.mxu0 0.0
        %3349 = vmatpush1.msra.mxu0 0.0
        %3350 = vmatprep.subr.mxu0 0.0
        %3351 = vmatpush1.msra.mxu0 0.0
        %3352 = vmatprep.subr.mxu0 0.0
        %3353 = vmatpush1.msra.mxu0 0.0
        %3354 = vmatprep.subr.mxu0 0.0
        %3355 = vmatpush1.msra.mxu0 0.0
        %3356 = vmatprep.subr.mxu0 0.0
        %3357 = vmatpush1.msra.mxu0 0.0
        %3358 = vmatprep.subr.mxu0 0.0
        %3359 = vmatpush1.msra.mxu0 0.0
        %3360 = vmatprep.subr.mxu0 0.0
        %3361 = vmatpush1.msra.mxu0 0.0
        %3362 = vmatprep.subr.mxu0 0.0
        %3363 = vmatpush1.msra.mxu0 0.0
        %3364 = vmatprep.subr.mxu0 0.0
        %3365 = vmatpush1.msra.mxu0 0.0
        %3366 = vmatprep.subr.mxu0 0.0
        %3367 = vmatpush1.msra.mxu0 0.0
        %3368 = vmatprep.subr.mxu0 0.0
        %3369 = vmatpush1.msra.mxu0 0.0
        %3370 = vmatprep.subr.mxu0 0.0
        %3371 = vmatpush1.msra.mxu0 0.0
        %3372 = vmatprep.subr.mxu0 0.0
        %3373 = vmatpush1.msra.mxu0 0.0
        %3374 = vmatprep.mubr.f32.mxu0 0.0
        %3375 = vmatmul.mubr.f32.gmra.mrb[0].mxu0 %v1187
        %v3376 = vpop.f32.mrb[0].mxu0
        %v3377 = vadd.f32 0.0, %v3376
        %v3378 = vpop.f32.mrb[0].mxu0
        %3379 = vmatprep.mubr.f32.mxu0 0.0
        %3380 = vmatmul.mubr.f32.gmra.mrb[0].mxu0 %v1190
        %v3381 = vpop.f32.mrb[0].mxu0
        %v3382 = vadd.f32 0.0, %v3381
        %v3383 = vpop.f32.mrb[0].mxu0
        %3384 = vdwg.mxu0
        %3385 = vmatprep.subr.mxu0 0.0
        %3386 = vmatpush1.msra.mxu0 %v3303
        %3387 = vmatprep.subr.mxu0 0.0
        %3388 = vmatpush1.msra.mxu0 %v3304
        %3389 = vmatprep.subr.mxu0 0.0
        %3390 = vmatpush1.msra.mxu0 %v3305
        %3391 = vmatprep.subr.mxu0 0.0
        %3392 = vmatpush1.msra.mxu0 %v3308
        %3393 = vmatprep.subr.mxu0 0.0
        %3394 = vmatpush1.msra.mxu0 0.0
        %3395 = vmatprep.subr.mxu0 0.0
        %3396 = vmatpush1.msra.mxu0 0.0
        %3397 = vmatprep.subr.mxu0 0.0
        %3398 = vmatpush1.msra.mxu0 0.0
        %3399 = vmatprep.subr.mxu0 0.0
        %3400 = vmatpush1.msra.mxu0 0.0
        %3401 = vmatprep.subr.mxu0 0.0
        %3402 = vmatpush1.msra.mxu0 0.0
        %3403 = vmatprep.subr.mxu0 0.0
        %3404 = vmatpush1.msra.mxu0 0.0
        %3405 = vmatprep.subr.mxu0 0.0
        %3406 = vmatpush1.msra.mxu0 0.0
        %3407 = vmatprep.subr.mxu0 0.0
        %3408 = vmatpush1.msra.mxu0 0.0
        %3409 = vmatprep.subr.mxu0 0.0
        %3410 = vmatpush1.msra.mxu0 0.0
        %3411 = vmatprep.subr.mxu0 0.0
        %3412 = vmatpush1.msra.mxu0 0.0
        %3413 = vmatprep.subr.mxu0 0.0
        %3414 = vmatpush1.msra.mxu0 0.0
        %3415 = vmatprep.subr.mxu0 0.0
        %3416 = vmatpush1.msra.mxu0 0.0
        %3417 = vmatprep.subr.mxu0 0.0
        %3418 = vmatpush1.msra.mxu0 0.0
        %3419 = vmatprep.subr.mxu0 0.0
        %3420 = vmatpush1.msra.mxu0 0.0
        %3421 = vmatprep.subr.mxu0 0.0
        %3422 = vmatpush1.msra.mxu0 0.0
        %3423 = vmatprep.subr.mxu0 0.0
        %3424 = vmatpush1.msra.mxu0 0.0
        %3425 = vmatprep.subr.mxu0 0.0
        %3426 = vmatpush1.msra.mxu0 0.0
        %3427 = vmatprep.subr.mxu0 0.0
        %3428 = vmatpush1.msra.mxu0 0.0
        %3429 = vmatprep.subr.mxu0 0.0
        %3430 = vmatpush1.msra.mxu0 0.0
        %3431 = vmatprep.subr.mxu0 0.0
        %3432 = vmatpush1.msra.mxu0 0.0
        %3433 = vmatprep.subr.mxu0 0.0
        %3434 = vmatpush1.msra.mxu0 0.0
        %3435 = vmatprep.subr.mxu0 0.0
        %3436 = vmatpush1.msra.mxu0 0.0
        %3437 = vmatprep.subr.mxu0 0.0
        %3438 = vmatpush1.msra.mxu0 0.0
        %3439 = vmatprep.subr.mxu0 0.0
        %3440 = vmatpush1.msra.mxu0 0.0
        %3441 = vmatprep.subr.mxu0 0.0
        %3442 = vmatpush1.msra.mxu0 0.0
        %3443 = vmatprep.subr.mxu0 0.0
        %3444 = vmatpush1.msra.mxu0 0.0
        %3445 = vmatprep.subr.mxu0 0.0
        %3446 = vmatpush1.msra.mxu0 0.0
        %3447 = vmatprep.subr.mxu0 0.0
        %3448 = vmatpush1.msra.mxu0 0.0
        %3449 = vmatprep.mubr.f32.mxu0 0.0
        %3450 = vmatmul.mubr.f32.gmra.mrb[0].mxu0 %v1272
        %v3451 = vpop.f32.mrb[0].mxu0
        %v3452 = vadd.f32 0.0, %v3451
        %v3453 = vpop.f32.mrb[0].mxu0
        %3454 = vmatprep.mubr.f32.mxu0 0.0
        %3455 = vmatmul.mubr.f32.gmra.mrb[0].mxu0 %v1275
        %v3456 = vpop.f32.mrb[0].mxu0
        %v3457 = vadd.f32 0.0, %v3456
        %v3458 = vpop.f32.mrb[0].mxu0
        %3459 = vdwg.mxu0
        %v3460 = vmax.f32 %v3377, %v3452
        %v3461 = vmax.f32 %v3382, %v3457
        %v3463 = vsel %vm1185, %v3460, 0
        %v3466 = vsel %vm1185, %v3461, 0
        %3468 = vmatprep.subr.mxu0 0.0
        %3469 = vmatpush1.msra.mxu0 %v428
        %3470 = vmatprep.subr.mxu0 0.0
        %3471 = vmatpush1.msra.mxu0 %v429
        %3472 = vmatprep.subr.mxu0 0.0
        %3473 = vmatpush1.msra.mxu0 %v430
        %3474 = vmatprep.subr.mxu0 0.0
        %3475 = vmatpush1.msra.mxu0 %v1361
        %3476 = vmatprep.subr.mxu0 0.0
        %3477 = vmatpush1.msra.mxu0 0.0
        %3478 = vmatprep.subr.mxu0 0.0
        %3479 = vmatpush1.msra.mxu0 0.0
        %3480 = vmatprep.subr.mxu0 0.0
        %3481 = vmatpush1.msra.mxu0 0.0
        %3482 = vmatprep.subr.mxu0 0.0
        %3483 = vmatpush1.msra.mxu0 0.0
        %3484 = vmatprep.subr.mxu0 0.0
        %3485 = vmatpush1.msra.mxu0 0.0
        %3486 = vmatprep.subr.mxu0 0.0
        %3487 = vmatpush1.msra.mxu0 0.0
        %3488 = vmatprep.subr.mxu0 0.0
        %3489 = vmatpush1.msra.mxu0 0.0
        %3490 = vmatprep.subr.mxu0 0.0
        %3491 = vmatpush1.msra.mxu0 0.0
        %3492 = vmatprep.subr.mxu0 0.0
        %3493 = vmatpush1.msra.mxu0 0.0
        %3494 = vmatprep.subr.mxu0 0.0
        %3495 = vmatpush1.msra.mxu0 0.0
        %3496 = vmatprep.subr.mxu0 0.0
        %3497 = vmatpush1.msra.mxu0 0.0
        %3498 = vmatprep.subr.mxu0 0.0
        %3499 = vmatpush1.msra.mxu0 0.0
        %3500 = vmatprep.subr.mxu0 0.0
        %3501 = vmatpush1.msra.mxu0 0.0
        %3502 = vmatprep.subr.mxu0 0.0
        %3503 = vmatpush1.msra.mxu0 0.0
        %3504 = vmatprep.subr.mxu0 0.0
        %3505 = vmatpush1.msra.mxu0 0.0
        %3506 = vmatprep.subr.mxu0 0.0
        %3507 = vmatpush1.msra.mxu0 0.0
        %3508 = vmatprep.subr.mxu0 0.0
        %3509 = vmatpush1.msra.mxu0 0.0
        %3510 = vmatprep.subr.mxu0 0.0
        %3511 = vmatpush1.msra.mxu0 0.0
        %3512 = vmatprep.subr.mxu0 0.0
        %3513 = vmatpush1.msra.mxu0 0.0
        %3514 = vmatprep.subr.mxu0 0.0
        %3515 = vmatpush1.msra.mxu0 0.0
        %3516 = vmatprep.subr.mxu0 0.0
        %3517 = vmatpush1.msra.mxu0 0.0
        %3518 = vmatprep.subr.mxu0 0.0
        %3519 = vmatpush1.msra.mxu0 0.0
        %3520 = vmatprep.subr.mxu0 0.0
        %3521 = vmatpush1.msra.mxu0 0.0
        %3522 = vmatprep.subr.mxu0 0.0
        %3523 = vmatpush1.msra.mxu0 0.0
        %3524 = vmatprep.subr.mxu0 0.0
        %3525 = vmatpush1.msra.mxu0 0.0
        %3526 = vmatprep.subr.mxu0 0.0
        %3527 = vmatpush1.msra.mxu0 0.0
        %3528 = vmatprep.subr.mxu0 0.0
        %3529 = vmatpush1.msra.mxu0 0.0
        %3530 = vmatprep.subr.mxu0 0.0
        %3531 = vmatpush1.msra.mxu0 0.0
        %3532 = vmatprep.mubr.f32.mxu0 0.0
        %3533 = vmatmul.mubr.f32.gmra.mrb[0].mxu0 %v3463
        %v3534 = vpop.f32.mrb[0].mxu0
        %v3535 = vadd.f32 0.0, %v3534
        %v3536 = vpop.f32.mrb[0].mxu0
        %3537 = vmatprep.mubr.f32.mxu0 0.0
        %3538 = vmatmul.mubr.f32.gmra.mrb[0].mxu0 %v3466
        %v3539 = vpop.f32.mrb[0].mxu0
        %v3540 = vadd.f32 0.0, %v3539
        %v3541 = vpop.f32.mrb[0].mxu0
        %3542 = vdwg.mxu0
        %3543 = vmatprep.subr.mxu0 0.0
        %3544 = vmatpush1.msra.mxu0 %v441
        %3545 = vmatprep.subr.mxu0 0.0
        %3546 = vmatpush1.msra.mxu0 %v442
        %3547 = vmatprep.subr.mxu0 0.0
        %3548 = vmatpush1.msra.mxu0 %v443
        %3549 = vmatprep.subr.mxu0 0.0
        %3550 = vmatpush1.msra.mxu0 %v1439
        %3551 = vmatprep.subr.mxu0 0.0
        %3552 = vmatpush1.msra.mxu0 0.0
        %3553 = vmatprep.subr.mxu0 0.0
        %3554 = vmatpush1.msra.mxu0 0.0
        %3555 = vmatprep.subr.mxu0 0.0
        %3556 = vmatpush1.msra.mxu0 0.0
        %3557 = vmatprep.subr.mxu0 0.0
        %3558 = vmatpush1.msra.mxu0 0.0
        %3559 = vmatprep.subr.mxu0 0.0
        %3560 = vmatpush1.msra.mxu0 0.0
        %3561 = vmatprep.subr.mxu0 0.0
        %3562 = vmatpush1.msra.mxu0 0.0
        %3563 = vmatprep.subr.mxu0 0.0
        %3564 = vmatpush1.msra.mxu0 0.0
        %3565 = vmatprep.subr.mxu0 0.0
        %3566 = vmatpush1.msra.mxu0 0.0
        %3567 = vmatprep.subr.mxu0 0.0
        %3568 = vmatpush1.msra.mxu0 0.0
        %3569 = vmatprep.subr.mxu0 0.0
        %3570 = vmatpush1.msra.mxu0 0.0
        %3571 = vmatprep.subr.mxu0 0.0
        %3572 = vmatpush1.msra.mxu0 0.0
        %3573 = vmatprep.subr.mxu0 0.0
        %3574 = vmatpush1.msra.mxu0 0.0
        %3575 = vmatprep.subr.mxu0 0.0
        %3576 = vmatpush1.msra.mxu0 0.0
        %3577 = vmatprep.subr.mxu0 0.0
        %3578 = vmatpush1.msra.mxu0 0.0
        %3579 = vmatprep.subr.mxu0 0.0
        %3580 = vmatpush1.msra.mxu0 0.0
        %3581 = vmatprep.subr.mxu0 0.0
        %3582 = vmatpush1.msra.mxu0 0.0
        %3583 = vmatprep.subr.mxu0 0.0
        %3584 = vmatpush1.msra.mxu0 0.0
        %3585 = vmatprep.subr.mxu0 0.0
        %3586 = vmatpush1.msra.mxu0 0.0
        %3587 = vmatprep.subr.mxu0 0.0
        %3588 = vmatpush1.msra.mxu0 0.0
        %3589 = vmatprep.subr.mxu0 0.0
        %3590 = vmatpush1.msra.mxu0 0.0
        %3591 = vmatprep.subr.mxu0 0.0
        %3592 = vmatpush1.msra.mxu0 0.0
        %3593 = vmatprep.subr.mxu0 0.0
        %3594 = vmatpush1.msra.mxu0 0.0
        %3595 = vmatprep.subr.mxu0 0.0
        %3596 = vmatpush1.msra.mxu0 0.0
        %3597 = vmatprep.subr.mxu0 0.0
        %3598 = vmatpush1.msra.mxu0 0.0
        %3599 = vmatprep.subr.mxu0 0.0
        %3600 = vmatpush1.msra.mxu0 0.0
        %3601 = vmatprep.subr.mxu0 0.0
        %3602 = vmatpush1.msra.mxu0 0.0
        %3603 = vmatprep.subr.mxu0 0.0
        %3604 = vmatpush1.msra.mxu0 0.0
        %3605 = vmatprep.subr.mxu0 0.0
        %3606 = vmatpush1.msra.mxu0 0.0
        %3607 = vmatprep.mubr.f32.mxu0 0.0
        %3608 = vmatmul.mubr.f32.gmra.mrb[0].mxu0 %v3463
        %v3609 = vpop.f32.mrb[0].mxu0
        %v3610 = vadd.f32 0.0, %v3609
        %v3611 = vpop.f32.mrb[0].mxu0
        %3612 = vmatprep.mubr.f32.mxu0 0.0
        %3613 = vmatmul.mubr.f32.gmra.mrb[0].mxu0 %v3466
        %v3614 = vpop.f32.mrb[0].mxu0
        %v3615 = vadd.f32 0.0, %v3614
        %v3616 = vpop.f32.mrb[0].mxu0
        %3617 = vdwg.mxu0
        %v3618 = vmax.f32 %v3535, %v3610
        %v3619 = vmax.f32 %v3540, %v3615
        %s3620 = sld [smem:[#allocation5 + $0x3]]
        %v3621 = vstv %s3620
        %s3622 = sld [smem:[#allocation2 + $0x51]]
        %v3623 = vstv %s3622
        %v3624 = vmul.f32 %v382, %v3623
        %v3625 = vmul.f32 %v383, %v3623
        %v3626 = vmul.f32 %v384, %v3623
        %v3627 = vmul.f32 %v385, %v3623
        %v3628 = vadd.f32 %v3621, %v3624
        %v3629 = vadd.f32 %v3621, %v3625
        %v3630 = vadd.f32 %v3621, %v3626
        %v3631 = vadd.f32 %v3621, %v3627
        %s3632 = sld [smem:[#allocation2 + $0x52]]
        %v3633 = vstv %s3632
        %v3634 = vmul.f32 %v382, %v3633
        %v3635 = vmul.f32 %v383, %v3633
        %v3636 = vmul.f32 %v384, %v3633
        %v3637 = vmul.f32 %v385, %v3633
        %3642 = vrot.lane.b32.xlu0 %v3634, 127
        %v3643 = vpop.permute.xlu0 %3642
        %3644 = vrot.lane.b32.xlu0 %v3635, 127
        %v3645 = vpop.permute.xlu0 %3644
        %3646 = vrot.lane.b32.xlu0 %v3636, 127
        %v3647 = vpop.permute.xlu0 %3646
        %3648 = vrot.lane.b32.xlu0 %v3637, 127
        %v3649 = vpop.permute.xlu0 %3648
        %v3654 = vadd.f32 %v3628, %v3643
        %v3655 = vadd.f32 %v3629, %v3645
        %v3656 = vadd.f32 %v3630, %v3647
        %v3657 = vadd.f32 %v3631, %v3649
        %s3658 = sld [smem:[#allocation2 + $0x53]]
        %v3659 = vstv %s3658
        %v3660 = vmul.f32 %v382, %v3659
        %v3661 = vmul.f32 %v383, %v3659
        %v3662 = vmul.f32 %v384, %v3659
        %v3663 = vmul.f32 %v385, %v3659
        %3668 = vrot.lane.b32.xlu0 %v3660, 126
        %v3669 = vpop.permute.xlu0 %3668
        %3670 = vrot.lane.b32.xlu0 %v3661, 126
        %v3671 = vpop.permute.xlu0 %3670
        %3672 = vrot.lane.b32.xlu0 %v3662, 126
        %v3673 = vpop.permute.xlu0 %3672
        %3674 = vrot.lane.b32.xlu0 %v3663, 126
        %v3675 = vpop.permute.xlu0 %3674
        %v3680 = vadd.f32 %v3654, %v3669
        %v3681 = vadd.f32 %v3655, %v3671
        %v3682 = vadd.f32 %v3656, %v3673
        %v3683 = vadd.f32 %v3657, %v3675
        %s3684 = sld [smem:[#allocation2 + $0x54]]
        %v3685 = vstv %s3684
        %v3686 = vmul.f32 %v382, %v3685
        %v3687 = vmul.f32 %v383, %v3685
        %v3688 = vmul.f32 %v384, %v3685
        %v3689 = vmul.f32 %v385, %v3685
        %v3694 = vrot.slane %v3686, 1
        %v3695 = vrot.slane %v3687, 1
        %v3696 = vsel %vm519, %v3694, %v3695
        %v3697 = vrot.slane %v3688, 1
        %v3698 = vsel %vm519, %v3695, %v3697
        %v3699 = vrot.slane %v3689, 1
        %v3700 = vsel %vm519, %v3697, %v3699
        %v3705 = vadd.f32 %v3680, %v3696
        %v3706 = vadd.f32 %v3681, %v3698
        %v3707 = vadd.f32 %v3682, %v3700
        %v3708 = vadd.f32 %v3683, %v3699
        %s3709 = sld [smem:[#allocation2 + $0x55]]
        %v3710 = vstv %s3709
        %v3711 = vmul.f32 %v382, %v3710
        %v3712 = vmul.f32 %v383, %v3710
        %v3713 = vmul.f32 %v384, %v3710
        %v3714 = vmul.f32 %v385, %v3710
        %v3719 = vrot.slane %v3711, 1
        %v3720 = vrot.slane %v3712, 1
        %v3721 = vsel %vm519, %v3719, %v3720
        %v3722 = vrot.slane %v3713, 1
        %v3723 = vsel %vm519, %v3720, %v3722
        %v3724 = vrot.slane %v3714, 1
        %v3725 = vsel %vm519, %v3722, %v3724
        %3726 = vrot.lane.b32.xlu0 %v3721, 127
        %v3727 = vpop.permute.xlu0 %3726
        %3728 = vrot.lane.b32.xlu0 %v3723, 127
        %v3729 = vpop.permute.xlu0 %3728
        %3730 = vrot.lane.b32.xlu0 %v3725, 127
        %v3731 = vpop.permute.xlu0 %3730
        %3732 = vrot.lane.b32.xlu0 %v3724, 127
        %v3733 = vpop.permute.xlu0 %3732
        %v3738 = vadd.f32 %v3705, %v3727
        %v3739 = vadd.f32 %v3706, %v3729
        %v3740 = vadd.f32 %v3707, %v3731
        %v3741 = vadd.f32 %v3708, %v3733
        %s3742 = sld [smem:[#allocation2 + $0x56]]
        %v3743 = vstv %s3742
        %v3744 = vmul.f32 %v382, %v3743
        %v3745 = vmul.f32 %v383, %v3743
        %v3746 = vmul.f32 %v384, %v3743
        %v3747 = vmul.f32 %v385, %v3743
        %v3752 = vrot.slane %v3744, 1
        %v3753 = vrot.slane %v3745, 1
        %v3754 = vsel %vm519, %v3752, %v3753
        %v3755 = vrot.slane %v3746, 1
        %v3756 = vsel %vm519, %v3753, %v3755
        %v3757 = vrot.slane %v3747, 1
        %v3758 = vsel %vm519, %v3755, %v3757
        %3759 = vrot.lane.b32.xlu0 %v3754, 126
        %v3760 = vpop.permute.xlu0 %3759
        %3761 = vrot.lane.b32.xlu0 %v3756, 126
        %v3762 = vpop.permute.xlu0 %3761
        %3763 = vrot.lane.b32.xlu0 %v3758, 126
        %v3764 = vpop.permute.xlu0 %3763
        %3765 = vrot.lane.b32.xlu0 %v3757, 126
        %v3766 = vpop.permute.xlu0 %3765
        %v3771 = vadd.f32 %v3738, %v3760
        %v3772 = vadd.f32 %v3739, %v3762
        %v3773 = vadd.f32 %v3740, %v3764
        %v3774 = vadd.f32 %v3741, %v3766
        %s3775 = sld [smem:[#allocation2 + $0x57]]
        %v3776 = vstv %s3775
        %v3777 = vmul.f32 %v382, %v3776
        %v3778 = vmul.f32 %v383, %v3776
        %v3779 = vmul.f32 %v384, %v3776
        %v3780 = vmul.f32 %v385, %v3776
        %v3785 = vrot.slane %v3777, 2
        %v3786 = vrot.slane %v3778, 2
        %v3787 = vsel %vm611, %v3785, %v3786
        %v3788 = vrot.slane %v3779, 2
        %v3789 = vsel %vm611, %v3786, %v3788
        %v3790 = vrot.slane %v3780, 2
        %v3791 = vsel %vm611, %v3788, %v3790
        %v3796 = vadd.f32 %v3771, %v3787
        %v3797 = vadd.f32 %v3772, %v3789
        %v3798 = vadd.f32 %v3773, %v3791
        %v3799 = vadd.f32 %v3774, %v3790
        %s3800 = sld [smem:[#allocation2 + $0x58]]
        %v3801 = vstv %s3800
        %v3802 = vmul.f32 %v382, %v3801
        %v3803 = vmul.f32 %v383, %v3801
        %v3804 = vmul.f32 %v384, %v3801
        %v3805 = vmul.f32 %v385, %v3801
        %v3810 = vrot.slane %v3802, 2
        %v3811 = vrot.slane %v3803, 2
        %v3812 = vsel %vm611, %v3810, %v3811
        %v3813 = vrot.slane %v3804, 2
        %v3814 = vsel %vm611, %v3811, %v3813
        %v3815 = vrot.slane %v3805, 2
        %v3816 = vsel %vm611, %v3813, %v3815
        %3817 = vrot.lane.b32.xlu0 %v3812, 127
        %v3818 = vpop.permute.xlu0 %3817
        %3819 = vrot.lane.b32.xlu0 %v3814, 127
        %v3820 = vpop.permute.xlu0 %3819
        %3821 = vrot.lane.b32.xlu0 %v3816, 127
        %v3822 = vpop.permute.xlu0 %3821
        %3823 = vrot.lane.b32.xlu0 %v3815, 127
        %v3824 = vpop.permute.xlu0 %3823
        %v3829 = vadd.f32 %v3796, %v3818
        %v3830 = vadd.f32 %v3797, %v3820
        %v3831 = vadd.f32 %v3798, %v3822
        %v3832 = vadd.f32 %v3799, %v3824
        %s3833 = sld [smem:[#allocation2 + $0x59]]
        %v3834 = vstv %s3833
        %v3835 = vmul.f32 %v382, %v3834
        %v3836 = vmul.f32 %v383, %v3834
        %v3837 = vmul.f32 %v384, %v3834
        %v3838 = vmul.f32 %v385, %v3834
        %v3843 = vrot.slane %v3835, 2
        %v3844 = vrot.slane %v3836, 2
        %v3845 = vsel %vm611, %v3843, %v3844
        %v3846 = vrot.slane %v3837, 2
        %v3847 = vsel %vm611, %v3844, %v3846
        %v3848 = vrot.slane %v3838, 2
        %v3849 = vsel %vm611, %v3846, %v3848
        %3850 = vrot.lane.b32.xlu0 %v3845, 126
        %v3851 = vpop.permute.xlu0 %3850
        %3852 = vrot.lane.b32.xlu0 %v3847, 126
        %v3853 = vpop.permute.xlu0 %3852
        %3854 = vrot.lane.b32.xlu0 %v3849, 126
        %v3855 = vpop.permute.xlu0 %3854
        %3856 = vrot.lane.b32.xlu0 %v3848, 126
        %v3857 = vpop.permute.xlu0 %3856
        %v3862 = vadd.f32 %v3829, %v3851
        %v3863 = vadd.f32 %v3830, %v3853
        %v3864 = vadd.f32 %v3831, %v3855
        %v3865 = vadd.f32 %v3832, %v3857
        %s3866 = sld [smem:[#allocation2 + $0x5a]]
        %v3867 = vstv %s3866
        %v3868 = vmul.f32 %v387, %v3867
        %v3869 = vmul.f32 %v388, %v3867
        %v3870 = vmul.f32 %v389, %v3867
        %v3871 = vmul.f32 %v390, %v3867
        %v3872 = vadd.f32 %v3862, %v3868
        %v3873 = vadd.f32 %v3863, %v3869
        %v3874 = vadd.f32 %v3864, %v3870
        %v3875 = vadd.f32 %v3865, %v3871
        %s3876 = sld [smem:[#allocation2 + $0x5b]]
        %v3877 = vstv %s3876
        %v3878 = vmul.f32 %v387, %v3877
        %v3879 = vmul.f32 %v388, %v3877
        %v3880 = vmul.f32 %v389, %v3877
        %v3881 = vmul.f32 %v390, %v3877
        %3886 = vrot.lane.b32.xlu0 %v3878, 127
        %v3887 = vpop.permute.xlu0 %3886
        %3888 = vrot.lane.b32.xlu0 %v3879, 127
        %v3889 = vpop.permute.xlu0 %3888
        %3890 = vrot.lane.b32.xlu0 %v3880, 127
        %v3891 = vpop.permute.xlu0 %3890
        %3892 = vrot.lane.b32.xlu0 %v3881, 127
        %v3893 = vpop.permute.xlu0 %3892
        %v3898 = vadd.f32 %v3872, %v3887
        %v3899 = vadd.f32 %v3873, %v3889
        %v3900 = vadd.f32 %v3874, %v3891
        %v3901 = vadd.f32 %v3875, %v3893
        %s3902 = sld [smem:[#allocation2 + $0x5c]]
        %v3903 = vstv %s3902
        %v3904 = vmul.f32 %v387, %v3903
        %v3905 = vmul.f32 %v388, %v3903
        %v3906 = vmul.f32 %v389, %v3903
        %v3907 = vmul.f32 %v390, %v3903
        %3912 = vrot.lane.b32.xlu0 %v3904, 126
        %v3913 = vpop.permute.xlu0 %3912
        %3914 = vrot.lane.b32.xlu0 %v3905, 126
        %v3915 = vpop.permute.xlu0 %3914
        %3916 = vrot.lane.b32.xlu0 %v3906, 126
        %v3917 = vpop.permute.xlu0 %3916
        %3918 = vrot.lane.b32.xlu0 %v3907, 126
        %v3919 = vpop.permute.xlu0 %3918
        %v3924 = vadd.f32 %v3898, %v3913
        %v3925 = vadd.f32 %v3899, %v3915
        %v3926 = vadd.f32 %v3900, %v3917
        %v3927 = vadd.f32 %v3901, %v3919
        %s3928 = sld [smem:[#allocation2 + $0x5d]]
        %v3929 = vstv %s3928
        %v3930 = vmul.f32 %v387, %v3929
        %v3931 = vmul.f32 %v388, %v3929
        %v3932 = vmul.f32 %v389, %v3929
        %v3933 = vmul.f32 %v390, %v3929
        %v3938 = vrot.slane %v3930, 1
        %v3939 = vrot.slane %v3931, 1
        %v3940 = vsel %vm519, %v3938, %v3939
        %v3941 = vrot.slane %v3932, 1
        %v3942 = vsel %vm519, %v3939, %v3941
        %v3943 = vrot.slane %v3933, 1
        %v3944 = vsel %vm519, %v3941, %v3943
        %v3949 = vadd.f32 %v3924, %v3940
        %v3950 = vadd.f32 %v3925, %v3942
        %v3951 = vadd.f32 %v3926, %v3944
        %v3952 = vadd.f32 %v3927, %v3943
        %s3953 = sld [smem:[#allocation2 + $0x5e]]
        %v3954 = vstv %s3953
        %v3955 = vmul.f32 %v387, %v3954
        %v3956 = vmul.f32 %v388, %v3954
        %v3957 = vmul.f32 %v389, %v3954
        %v3958 = vmul.f32 %v390, %v3954
        %v3963 = vrot.slane %v3955, 1
        %v3964 = vrot.slane %v3956, 1
        %v3965 = vsel %vm519, %v3963, %v3964
        %v3966 = vrot.slane %v3957, 1
        %v3967 = vsel %vm519, %v3964, %v3966
        %v3968 = vrot.slane %v3958, 1
        %v3969 = vsel %vm519, %v3966, %v3968
        %3970 = vrot.lane.b32.xlu0 %v3965, 127
        %v3971 = vpop.permute.xlu0 %3970
        %3972 = vrot.lane.b32.xlu0 %v3967, 127
        %v3973 = vpop.permute.xlu0 %3972
        %3974 = vrot.lane.b32.xlu0 %v3969, 127
        %v3975 = vpop.permute.xlu0 %3974
        %3976 = vrot.lane.b32.xlu0 %v3968, 127
        %v3977 = vpop.permute.xlu0 %3976
        %v3982 = vadd.f32 %v3949, %v3971
        %v3983 = vadd.f32 %v3950, %v3973
        %v3984 = vadd.f32 %v3951, %v3975
        %v3985 = vadd.f32 %v3952, %v3977
        %s3986 = sld [smem:[#allocation2 + $0x5f]]
        %v3987 = vstv %s3986
        %v3988 = vmul.f32 %v387, %v3987
        %v3989 = vmul.f32 %v388, %v3987
        %v3990 = vmul.f32 %v389, %v3987
        %v3991 = vmul.f32 %v390, %v3987
        %v3996 = vrot.slane %v3988, 1
        %v3997 = vrot.slane %v3989, 1
        %v3998 = vsel %vm519, %v3996, %v3997
        %v3999 = vrot.slane %v3990, 1
        %v4000 = vsel %vm519, %v3997, %v3999
        %v4001 = vrot.slane %v3991, 1
        %v4002 = vsel %vm519, %v3999, %v4001
        %4003 = vrot.lane.b32.xlu0 %v3998, 126
        %v4004 = vpop.permute.xlu0 %4003
        %4005 = vrot.lane.b32.xlu0 %v4000, 126
        %v4006 = vpop.permute.xlu0 %4005
        %4007 = vrot.lane.b32.xlu0 %v4002, 126
        %v4008 = vpop.permute.xlu0 %4007
        %4009 = vrot.lane.b32.xlu0 %v4001, 126
        %v4010 = vpop.permute.xlu0 %4009
        %v4015 = vadd.f32 %v3982, %v4004
        %v4016 = vadd.f32 %v3983, %v4006
        %v4017 = vadd.f32 %v3984, %v4008
        %v4018 = vadd.f32 %v3985, %v4010
        %s4019 = sld [smem:[#allocation2 + $0x60]]
        %v4020 = vstv %s4019
        %v4021 = vmul.f32 %v387, %v4020
        %v4022 = vmul.f32 %v388, %v4020
        %v4023 = vmul.f32 %v389, %v4020
        %v4024 = vmul.f32 %v390, %v4020
        %v4029 = vrot.slane %v4021, 2
        %v4030 = vrot.slane %v4022, 2
        %v4031 = vsel %vm611, %v4029, %v4030
        %v4032 = vrot.slane %v4023, 2
        %v4033 = vsel %vm611, %v4030, %v4032
        %v4034 = vrot.slane %v4024, 2
        %v4035 = vsel %vm611, %v4032, %v4034
        %v4040 = vadd.f32 %v4015, %v4031
        %v4041 = vadd.f32 %v4016, %v4033
        %v4042 = vadd.f32 %v4017, %v4035
        %v4043 = vadd.f32 %v4018, %v4034
        %s4044 = sld [smem:[#allocation2 + $0x61]]
        %v4045 = vstv %s4044
        %v4046 = vmul.f32 %v387, %v4045
        %v4047 = vmul.f32 %v388, %v4045
        %v4048 = vmul.f32 %v389, %v4045
        %v4049 = vmul.f32 %v390, %v4045
        %v4054 = vrot.slane %v4046, 2
        %v4055 = vrot.slane %v4047, 2
        %v4056 = vsel %vm611, %v4054, %v4055
        %v4057 = vrot.slane %v4048, 2
        %v4058 = vsel %vm611, %v4055, %v4057
        %v4059 = vrot.slane %v4049, 2
        %v4060 = vsel %vm611, %v4057, %v4059
        %4061 = vrot.lane.b32.xlu0 %v4056, 127
        %v4062 = vpop.permute.xlu0 %4061
        %4063 = vrot.lane.b32.xlu0 %v4058, 127
        %v4064 = vpop.permute.xlu0 %4063
        %4065 = vrot.lane.b32.xlu0 %v4060, 127
        %v4066 = vpop.permute.xlu0 %4065
        %4067 = vrot.lane.b32.xlu0 %v4059, 127
        %v4068 = vpop.permute.xlu0 %4067
        %v4073 = vadd.f32 %v4040, %v4062
        %v4074 = vadd.f32 %v4041, %v4064
        %v4075 = vadd.f32 %v4042, %v4066
        %v4076 = vadd.f32 %v4043, %v4068
        %s4077 = sld [smem:[#allocation2 + $0x62]]
        %v4078 = vstv %s4077
        %v4079 = vmul.f32 %v387, %v4078
        %v4080 = vmul.f32 %v388, %v4078
        %v4081 = vmul.f32 %v389, %v4078
        %v4082 = vmul.f32 %v390, %v4078
        %v4087 = vrot.slane %v4079, 2
        %v4088 = vrot.slane %v4080, 2
        %v4089 = vsel %vm611, %v4087, %v4088
        %v4090 = vrot.slane %v4081, 2
        %v4091 = vsel %vm611, %v4088, %v4090
        %v4092 = vrot.slane %v4082, 2
        %v4093 = vsel %vm611, %v4090, %v4092
        %4094 = vrot.lane.b32.xlu0 %v4089, 126
        %v4095 = vpop.permute.xlu0 %4094
        %4096 = vrot.lane.b32.xlu0 %v4091, 126
        %v4097 = vpop.permute.xlu0 %4096
        %4098 = vrot.lane.b32.xlu0 %v4093, 126
        %v4099 = vpop.permute.xlu0 %4098
        %4100 = vrot.lane.b32.xlu0 %v4092, 126
        %v4101 = vpop.permute.xlu0 %4100
        %v4106 = vadd.f32 %v4073, %v4095
        %v4107 = vadd.f32 %v4074, %v4097
        %v4108 = vadd.f32 %v4075, %v4099
        %v4109 = vadd.f32 %v4076, %v4101
        %s4110 = sld [smem:[#allocation2 + $0x63]]
        %v4111 = vstv %s4110
        %v4112 = vmul.f32 %v392, %v4111
        %v4113 = vmul.f32 %v393, %v4111
        %v4114 = vmul.f32 %v394, %v4111
        %v4115 = vmul.f32 %v395, %v4111
        %v4116 = vadd.f32 %v4106, %v4112
        %v4117 = vadd.f32 %v4107, %v4113
        %v4118 = vadd.f32 %v4108, %v4114
        %v4119 = vadd.f32 %v4109, %v4115
        %s4120 = sld [smem:[#allocation2 + $0x64]]
        %v4121 = vstv %s4120
        %v4122 = vmul.f32 %v392, %v4121
        %v4123 = vmul.f32 %v393, %v4121
        %v4124 = vmul.f32 %v394, %v4121
        %v4125 = vmul.f32 %v395, %v4121
        %4130 = vrot.lane.b32.xlu0 %v4122, 127
        %v4131 = vpop.permute.xlu0 %4130
        %4132 = vrot.lane.b32.xlu0 %v4123, 127
        %v4133 = vpop.permute.xlu0 %4132
        %4134 = vrot.lane.b32.xlu0 %v4124, 127
        %v4135 = vpop.permute.xlu0 %4134
        %4136 = vrot.lane.b32.xlu0 %v4125, 127
        %v4137 = vpop.permute.xlu0 %4136
        %v4142 = vadd.f32 %v4116, %v4131
        %v4143 = vadd.f32 %v4117, %v4133
        %v4144 = vadd.f32 %v4118, %v4135
        %v4145 = vadd.f32 %v4119, %v4137
        %s4146 = sld [smem:[#allocation2 + $0x65]]
        %v4147 = vstv %s4146
        %v4148 = vmul.f32 %v392, %v4147
        %v4149 = vmul.f32 %v393, %v4147
        %v4150 = vmul.f32 %v394, %v4147
        %v4151 = vmul.f32 %v395, %v4147
        %4156 = vrot.lane.b32.xlu0 %v4148, 126
        %v4157 = vpop.permute.xlu0 %4156
        %4158 = vrot.lane.b32.xlu0 %v4149, 126
        %v4159 = vpop.permute.xlu0 %4158
        %4160 = vrot.lane.b32.xlu0 %v4150, 126
        %v4161 = vpop.permute.xlu0 %4160
        %4162 = vrot.lane.b32.xlu0 %v4151, 126
        %v4163 = vpop.permute.xlu0 %4162
        %v4168 = vadd.f32 %v4142, %v4157
        %v4169 = vadd.f32 %v4143, %v4159
        %v4170 = vadd.f32 %v4144, %v4161
        %v4171 = vadd.f32 %v4145, %v4163
        %s4172 = sld [smem:[#allocation2 + $0x66]]
        %v4173 = vstv %s4172
        %v4174 = vmul.f32 %v392, %v4173
        %v4175 = vmul.f32 %v393, %v4173
        %v4176 = vmul.f32 %v394, %v4173
        %v4177 = vmul.f32 %v395, %v4173
        %v4182 = vrot.slane %v4174, 1
        %v4183 = vrot.slane %v4175, 1
        %v4184 = vsel %vm519, %v4182, %v4183
        %v4185 = vrot.slane %v4176, 1
        %v4186 = vsel %vm519, %v4183, %v4185
        %v4187 = vrot.slane %v4177, 1
        %v4188 = vsel %vm519, %v4185, %v4187
        %v4193 = vadd.f32 %v4168, %v4184
        %v4194 = vadd.f32 %v4169, %v4186
        %v4195 = vadd.f32 %v4170, %v4188
        %v4196 = vadd.f32 %v4171, %v4187
        %s4197 = sld [smem:[#allocation2 + $0x67]]
        %v4198 = vstv %s4197
        %v4199 = vmul.f32 %v392, %v4198
        %v4200 = vmul.f32 %v393, %v4198
        %v4201 = vmul.f32 %v394, %v4198
        %v4202 = vmul.f32 %v395, %v4198
        %v4207 = vrot.slane %v4199, 1
        %v4208 = vrot.slane %v4200, 1
        %v4209 = vsel %vm519, %v4207, %v4208
        %v4210 = vrot.slane %v4201, 1
        %v4211 = vsel %vm519, %v4208, %v4210
        %v4212 = vrot.slane %v4202, 1
        %v4213 = vsel %vm519, %v4210, %v4212
        %4214 = vrot.lane.b32.xlu0 %v4209, 127
        %v4215 = vpop.permute.xlu0 %4214
        %4216 = vrot.lane.b32.xlu0 %v4211, 127
        %v4217 = vpop.permute.xlu0 %4216
        %4218 = vrot.lane.b32.xlu0 %v4213, 127
        %v4219 = vpop.permute.xlu0 %4218
        %4220 = vrot.lane.b32.xlu0 %v4212, 127
        %v4221 = vpop.permute.xlu0 %4220
        %v4226 = vadd.f32 %v4193, %v4215
        %v4227 = vadd.f32 %v4194, %v4217
        %v4228 = vadd.f32 %v4195, %v4219
        %v4229 = vadd.f32 %v4196, %v4221
        %s4230 = sld [smem:[#allocation2 + $0x68]]
        %v4231 = vstv %s4230
        %v4232 = vmul.f32 %v392, %v4231
        %v4233 = vmul.f32 %v393, %v4231
        %v4234 = vmul.f32 %v394, %v4231
        %v4235 = vmul.f32 %v395, %v4231
        %v4240 = vrot.slane %v4232, 1
        %v4241 = vrot.slane %v4233, 1
        %v4242 = vsel %vm519, %v4240, %v4241
        %v4243 = vrot.slane %v4234, 1
        %v4244 = vsel %vm519, %v4241, %v4243
        %v4245 = vrot.slane %v4235, 1
        %v4246 = vsel %vm519, %v4243, %v4245
        %4247 = vrot.lane.b32.xlu0 %v4242, 126
        %v4248 = vpop.permute.xlu0 %4247
        %4249 = vrot.lane.b32.xlu0 %v4244, 126
        %v4250 = vpop.permute.xlu0 %4249
        %4251 = vrot.lane.b32.xlu0 %v4246, 126
        %v4252 = vpop.permute.xlu0 %4251
        %4253 = vrot.lane.b32.xlu0 %v4245, 126
        %v4254 = vpop.permute.xlu0 %4253
        %v4259 = vadd.f32 %v4226, %v4248
        %v4260 = vadd.f32 %v4227, %v4250
        %v4261 = vadd.f32 %v4228, %v4252
        %v4262 = vadd.f32 %v4229, %v4254
        %s4263 = sld [smem:[#allocation2 + $0x69]]
        %v4264 = vstv %s4263
        %v4265 = vmul.f32 %v392, %v4264
        %v4266 = vmul.f32 %v393, %v4264
        %v4267 = vmul.f32 %v394, %v4264
        %v4268 = vmul.f32 %v395, %v4264
        %v4273 = vrot.slane %v4265, 2
        %v4274 = vrot.slane %v4266, 2
        %v4275 = vsel %vm611, %v4273, %v4274
        %v4276 = vrot.slane %v4267, 2
        %v4277 = vsel %vm611, %v4274, %v4276
        %v4278 = vrot.slane %v4268, 2
        %v4279 = vsel %vm611, %v4276, %v4278
        %v4284 = vadd.f32 %v4259, %v4275
        %v4285 = vadd.f32 %v4260, %v4277
        %v4286 = vadd.f32 %v4261, %v4279
        %v4287 = vadd.f32 %v4262, %v4278
        %s4288 = sld [smem:[#allocation2 + $0x6a]]
        %v4289 = vstv %s4288
        %v4290 = vmul.f32 %v392, %v4289
        %v4291 = vmul.f32 %v393, %v4289
        %v4292 = vmul.f32 %v394, %v4289
        %v4293 = vmul.f32 %v395, %v4289
        %v4298 = vrot.slane %v4290, 2
        %v4299 = vrot.slane %v4291, 2
        %v4300 = vsel %vm611, %v4298, %v4299
        %v4301 = vrot.slane %v4292, 2
        %v4302 = vsel %vm611, %v4299, %v4301
        %v4303 = vrot.slane %v4293, 2
        %v4304 = vsel %vm611, %v4301, %v4303
        %4305 = vrot.lane.b32.xlu0 %v4300, 127
        %v4306 = vpop.permute.xlu0 %4305
        %4307 = vrot.lane.b32.xlu0 %v4302, 127
        %v4308 = vpop.permute.xlu0 %4307
        %4309 = vrot.lane.b32.xlu0 %v4304, 127
        %v4310 = vpop.permute.xlu0 %4309
        %4311 = vrot.lane.b32.xlu0 %v4303, 127
        %v4312 = vpop.permute.xlu0 %4311
        %v4317 = vadd.f32 %v4284, %v4306
        %v4318 = vadd.f32 %v4285, %v4308
        %v4319 = vadd.f32 %v4286, %v4310
        %v4320 = vadd.f32 %v4287, %v4312
        %s4321 = sld [smem:[#allocation2 + $0x6b]]
        %v4322 = vstv %s4321
        %v4323 = vmul.f32 %v392, %v4322
        %v4324 = vmul.f32 %v393, %v4322
        %v4325 = vmul.f32 %v394, %v4322
        %v4326 = vmul.f32 %v395, %v4322
        %v4331 = vrot.slane %v4323, 2
        %v4332 = vrot.slane %v4324, 2
        %v4333 = vsel %vm611, %v4331, %v4332
        %v4334 = vrot.slane %v4325, 2
        %v4335 = vsel %vm611, %v4332, %v4334
        %v4336 = vrot.slane %v4326, 2
        %v4337 = vsel %vm611, %v4334, %v4336
        %4338 = vrot.lane.b32.xlu0 %v4333, 126
        %v4339 = vpop.permute.xlu0 %4338
        %4340 = vrot.lane.b32.xlu0 %v4335, 126
        %v4341 = vpop.permute.xlu0 %4340
        %4342 = vrot.lane.b32.xlu0 %v4337, 126
        %v4343 = vpop.permute.xlu0 %4342
        %4344 = vrot.lane.b32.xlu0 %v4336, 126
        %v4345 = vpop.permute.xlu0 %4344
        %v4350 = vadd.f32 %v4317, %v4339
        %v4351 = vadd.f32 %v4318, %v4341
        %v4352 = vadd.f32 %v4319, %v4343
        %v4353 = vadd.f32 %v4320, %v4345
        %v4354 = vmax.f32 %v4350, 0.0
        %v4355 = vmax.f32 %v4351, 0.0
        %v4356 = vmax.f32 %v4352, 0.0
        %v4357 = vmax.f32 %v4353, 0.0
        %v4359 = vsel %vm1192, %v4357, 0
        %4361 = vmatprep.subr.mxu0 0.0
        %4362 = vmatpush1.msra.mxu0 %v4354
        %4363 = vmatprep.subr.mxu0 0.0
        %4364 = vmatpush1.msra.mxu0 %v4355
        %4365 = vmatprep.subr.mxu0 0.0
        %4366 = vmatpush1.msra.mxu0 %v4356
        %4367 = vmatprep.subr.mxu0 0.0
        %4368 = vmatpush1.msra.mxu0 %v4359
        %4369 = vmatprep.subr.mxu0 0.0
        %4370 = vmatpush1.msra.mxu0 0.0
        %4371 = vmatprep.subr.mxu0 0.0
        %4372 = vmatpush1.msra.mxu0 0.0
        %4373 = vmatprep.subr.mxu0 0.0
        %4374 = vmatpush1.msra.mxu0 0.0
        %4375 = vmatprep.subr.mxu0 0.0
        %4376 = vmatpush1.msra.mxu0 0.0
        %4377 = vmatprep.subr.mxu0 0.0
        %4378 = vmatpush1.msra.mxu0 0.0
        %4379 = vmatprep.subr.mxu0 0.0
        %4380 = vmatpush1.msra.mxu0 0.0
        %4381 = vmatprep.subr.mxu0 0.0
        %4382 = vmatpush1.msra.mxu0 0.0
        %4383 = vmatprep.subr.mxu0 0.0
        %4384 = vmatpush1.msra.mxu0 0.0
        %4385 = vmatprep.subr.mxu0 0.0
        %4386 = vmatpush1.msra.mxu0 0.0
        %4387 = vmatprep.subr.mxu0 0.0
        %4388 = vmatpush1.msra.mxu0 0.0
        %4389 = vmatprep.subr.mxu0 0.0
        %4390 = vmatpush1.msra.mxu0 0.0
        %4391 = vmatprep.subr.mxu0 0.0
        %4392 = vmatpush1.msra.mxu0 0.0
        %4393 = vmatprep.subr.mxu0 0.0
        %4394 = vmatpush1.msra.mxu0 0.0
        %4395 = vmatprep.subr.mxu0 0.0
        %4396 = vmatpush1.msra.mxu0 0.0
        %4397 = vmatprep.subr.mxu0 0.0
        %4398 = vmatpush1.msra.mxu0 0.0
        %4399 = vmatprep.subr.mxu0 0.0
        %4400 = vmatpush1.msra.mxu0 0.0
        %4401 = vmatprep.subr.mxu0 0.0
        %4402 = vmatpush1.msra.mxu0 0.0
        %4403 = vmatprep.subr.mxu0 0.0
        %4404 = vmatpush1.msra.mxu0 0.0
        %4405 = vmatprep.subr.mxu0 0.0
        %4406 = vmatpush1.msra.mxu0 0.0
        %4407 = vmatprep.subr.mxu0 0.0
        %4408 = vmatpush1.msra.mxu0 0.0
        %4409 = vmatprep.subr.mxu0 0.0
        %4410 = vmatpush1.msra.mxu0 0.0
        %4411 = vmatprep.subr.mxu0 0.0
        %4412 = vmatpush1.msra.mxu0 0.0
        %4413 = vmatprep.subr.mxu0 0.0
        %4414 = vmatpush1.msra.mxu0 0.0
        %4415 = vmatprep.subr.mxu0 0.0
        %4416 = vmatpush1.msra.mxu0 0.0
        %4417 = vmatprep.subr.mxu0 0.0
        %4418 = vmatpush1.msra.mxu0 0.0
        %4419 = vmatprep.subr.mxu0 0.0
        %4420 = vmatpush1.msra.mxu0 0.0
        %4421 = vmatprep.subr.mxu0 0.0
        %4422 = vmatpush1.msra.mxu0 0.0
        %4423 = vmatprep.subr.mxu0 0.0
        %4424 = vmatpush1.msra.mxu0 0.0
        %4425 = vmatprep.mubr.f32.mxu0 0.0
        %4426 = vmatmul.mubr.f32.gmra.mrb[0].mxu0 %v1187
        %v4427 = vpop.f32.mrb[0].mxu0
        %v4428 = vadd.f32 0.0, %v4427
        %v4429 = vpop.f32.mrb[0].mxu0
        %4430 = vmatprep.mubr.f32.mxu0 0.0
        %4431 = vmatmul.mubr.f32.gmra.mrb[0].mxu0 %v1190
        %v4432 = vpop.f32.mrb[0].mxu0
        %v4433 = vadd.f32 0.0, %v4432
        %v4434 = vpop.f32.mrb[0].mxu0
        %4435 = vdwg.mxu0
        %4436 = vmatprep.subr.mxu0 0.0
        %4437 = vmatpush1.msra.mxu0 %v4354
        %4438 = vmatprep.subr.mxu0 0.0
        %4439 = vmatpush1.msra.mxu0 %v4355
        %4440 = vmatprep.subr.mxu0 0.0
        %4441 = vmatpush1.msra.mxu0 %v4356
        %4442 = vmatprep.subr.mxu0 0.0
        %4443 = vmatpush1.msra.mxu0 %v4359
        %4444 = vmatprep.subr.mxu0 0.0
        %4445 = vmatpush1.msra.mxu0 0.0
        %4446 = vmatprep.subr.mxu0 0.0
        %4447 = vmatpush1.msra.mxu0 0.0
        %4448 = vmatprep.subr.mxu0 0.0
        %4449 = vmatpush1.msra.mxu0 0.0
        %4450 = vmatprep.subr.mxu0 0.0
        %4451 = vmatpush1.msra.mxu0 0.0
        %4452 = vmatprep.subr.mxu0 0.0
        %4453 = vmatpush1.msra.mxu0 0.0
        %4454 = vmatprep.subr.mxu0 0.0
        %4455 = vmatpush1.msra.mxu0 0.0
        %4456 = vmatprep.subr.mxu0 0.0
        %4457 = vmatpush1.msra.mxu0 0.0
        %4458 = vmatprep.subr.mxu0 0.0
        %4459 = vmatpush1.msra.mxu0 0.0
        %4460 = vmatprep.subr.mxu0 0.0
        %4461 = vmatpush1.msra.mxu0 0.0
        %4462 = vmatprep.subr.mxu0 0.0
        %4463 = vmatpush1.msra.mxu0 0.0
        %4464 = vmatprep.subr.mxu0 0.0
        %4465 = vmatpush1.msra.mxu0 0.0
        %4466 = vmatprep.subr.mxu0 0.0
        %4467 = vmatpush1.msra.mxu0 0.0
        %4468 = vmatprep.subr.mxu0 0.0
        %4469 = vmatpush1.msra.mxu0 0.0
        %4470 = vmatprep.subr.mxu0 0.0
        %4471 = vmatpush1.msra.mxu0 0.0
        %4472 = vmatprep.subr.mxu0 0.0
        %4473 = vmatpush1.msra.mxu0 0.0
        %4474 = vmatprep.subr.mxu0 0.0
        %4475 = vmatpush1.msra.mxu0 0.0
        %4476 = vmatprep.subr.mxu0 0.0
        %4477 = vmatpush1.msra.mxu0 0.0
        %4478 = vmatprep.subr.mxu0 0.0
        %4479 = vmatpush1.msra.mxu0 0.0
        %4480 = vmatprep.subr.mxu0 0.0
        %4481 = vmatpush1.msra.mxu0 0.0
        %4482 = vmatprep.subr.mxu0 0.0
        %4483 = vmatpush1.msra.mxu0 0.0
        %4484 = vmatprep.subr.mxu0 0.0
        %4485 = vmatpush1.msra.mxu0 0.0
        %4486 = vmatprep.subr.mxu0 0.0
        %4487 = vmatpush1.msra.mxu0 0.0
        %4488 = vmatprep.subr.mxu0 0.0
        %4489 = vmatpush1.msra.mxu0 0.0
        %4490 = vmatprep.subr.mxu0 0.0
        %4491 = vmatpush1.msra.mxu0 0.0
        %4492 = vmatprep.subr.mxu0 0.0
        %4493 = vmatpush1.msra.mxu0 0.0
        %4494 = vmatprep.subr.mxu0 0.0
        %4495 = vmatpush1.msra.mxu0 0.0
        %4496 = vmatprep.subr.mxu0 0.0
        %4497 = vmatpush1.msra.mxu0 0.0
        %4498 = vmatprep.subr.mxu0 0.0
        %4499 = vmatpush1.msra.mxu0 0.0
        %4500 = vmatprep.mubr.f32.mxu0 0.0
        %4501 = vmatmul.mubr.f32.gmra.mrb[0].mxu0 %v1272
        %v4502 = vpop.f32.mrb[0].mxu0
        %v4503 = vadd.f32 0.0, %v4502
        %v4504 = vpop.f32.mrb[0].mxu0
        %4505 = vmatprep.mubr.f32.mxu0 0.0
        %4506 = vmatmul.mubr.f32.gmra.mrb[0].mxu0 %v1275
        %v4507 = vpop.f32.mrb[0].mxu0
        %v4508 = vadd.f32 0.0, %v4507
        %v4509 = vpop.f32.mrb[0].mxu0
        %4510 = vdwg.mxu0
        %v4511 = vmax.f32 %v4428, %v4503
        %v4512 = vmax.f32 %v4433, %v4508
        %v4514 = vsel %vm1185, %v4511, 0
        %v4517 = vsel %vm1185, %v4512, 0
        %4519 = vmatprep.subr.mxu0 0.0
        %4520 = vmatpush1.msra.mxu0 %v428
        %4521 = vmatprep.subr.mxu0 0.0
        %4522 = vmatpush1.msra.mxu0 %v429
        %4523 = vmatprep.subr.mxu0 0.0
        %4524 = vmatpush1.msra.mxu0 %v430
        %4525 = vmatprep.subr.mxu0 0.0
        %4526 = vmatpush1.msra.mxu0 %v1361
        %4527 = vmatprep.subr.mxu0 0.0
        %4528 = vmatpush1.msra.mxu0 0.0
        %4529 = vmatprep.subr.mxu0 0.0
        %4530 = vmatpush1.msra.mxu0 0.0
        %4531 = vmatprep.subr.mxu0 0.0
        %4532 = vmatpush1.msra.mxu0 0.0
        %4533 = vmatprep.subr.mxu0 0.0
        %4534 = vmatpush1.msra.mxu0 0.0
        %4535 = vmatprep.subr.mxu0 0.0
        %4536 = vmatpush1.msra.mxu0 0.0
        %4537 = vmatprep.subr.mxu0 0.0
        %4538 = vmatpush1.msra.mxu0 0.0
        %4539 = vmatprep.subr.mxu0 0.0
        %4540 = vmatpush1.msra.mxu0 0.0
        %4541 = vmatprep.subr.mxu0 0.0
        %4542 = vmatpush1.msra.mxu0 0.0
        %4543 = vmatprep.subr.mxu0 0.0
        %4544 = vmatpush1.msra.mxu0 0.0
        %4545 = vmatprep.subr.mxu0 0.0
        %4546 = vmatpush1.msra.mxu0 0.0
        %4547 = vmatprep.subr.mxu0 0.0
        %4548 = vmatpush1.msra.mxu0 0.0
        %4549 = vmatprep.subr.mxu0 0.0
        %4550 = vmatpush1.msra.mxu0 0.0
        %4551 = vmatprep.subr.mxu0 0.0
        %4552 = vmatpush1.msra.mxu0 0.0
        %4553 = vmatprep.subr.mxu0 0.0
        %4554 = vmatpush1.msra.mxu0 0.0
        %4555 = vmatprep.subr.mxu0 0.0
        %4556 = vmatpush1.msra.mxu0 0.0
        %4557 = vmatprep.subr.mxu0 0.0
        %4558 = vmatpush1.msra.mxu0 0.0
        %4559 = vmatprep.subr.mxu0 0.0
        %4560 = vmatpush1.msra.mxu0 0.0
        %4561 = vmatprep.subr.mxu0 0.0
        %4562 = vmatpush1.msra.mxu0 0.0
        %4563 = vmatprep.subr.mxu0 0.0
        %4564 = vmatpush1.msra.mxu0 0.0
        %4565 = vmatprep.subr.mxu0 0.0
        %4566 = vmatpush1.msra.mxu0 0.0
        %4567 = vmatprep.subr.mxu0 0.0
        %4568 = vmatpush1.msra.mxu0 0.0
        %4569 = vmatprep.subr.mxu0 0.0
        %4570 = vmatpush1.msra.mxu0 0.0
        %4571 = vmatprep.subr.mxu0 0.0
        %4572 = vmatpush1.msra.mxu0 0.0
        %4573 = vmatprep.subr.mxu0 0.0
        %4574 = vmatpush1.msra.mxu0 0.0
        %4575 = vmatprep.subr.mxu0 0.0
        %4576 = vmatpush1.msra.mxu0 0.0
        %4577 = vmatprep.subr.mxu0 0.0
        %4578 = vmatpush1.msra.mxu0 0.0
        %4579 = vmatprep.subr.mxu0 0.0
        %4580 = vmatpush1.msra.mxu0 0.0
        %4581 = vmatprep.subr.mxu0 0.0
        %4582 = vmatpush1.msra.mxu0 0.0
        %4583 = vmatprep.mubr.f32.mxu0 0.0
        %4584 = vmatmul.mubr.f32.gmra.mrb[0].mxu0 %v4514
        %v4585 = vpop.f32.mrb[0].mxu0
        %v4586 = vadd.f32 0.0, %v4585
        %v4587 = vpop.f32.mrb[0].mxu0
        %4588 = vmatprep.mubr.f32.mxu0 0.0
        %4589 = vmatmul.mubr.f32.gmra.mrb[0].mxu0 %v4517
        %v4590 = vpop.f32.mrb[0].mxu0
        %v4591 = vadd.f32 0.0, %v4590
        %v4592 = vpop.f32.mrb[0].mxu0
        %4593 = vdwg.mxu0
        %4594 = vmatprep.subr.mxu0 0.0
        %4595 = vmatpush1.msra.mxu0 %v441
        %4596 = vmatprep.subr.mxu0 0.0
        %4597 = vmatpush1.msra.mxu0 %v442
        %4598 = vmatprep.subr.mxu0 0.0
        %4599 = vmatpush1.msra.mxu0 %v443
        %4600 = vmatprep.subr.mxu0 0.0
        %4601 = vmatpush1.msra.mxu0 %v1439
        %4602 = vmatprep.subr.mxu0 0.0
        %4603 = vmatpush1.msra.mxu0 0.0
        %4604 = vmatprep.subr.mxu0 0.0
        %4605 = vmatpush1.msra.mxu0 0.0
        %4606 = vmatprep.subr.mxu0 0.0
        %4607 = vmatpush1.msra.mxu0 0.0
        %4608 = vmatprep.subr.mxu0 0.0
        %4609 = vmatpush1.msra.mxu0 0.0
        %4610 = vmatprep.subr.mxu0 0.0
        %4611 = vmatpush1.msra.mxu0 0.0
        %4612 = vmatprep.subr.mxu0 0.0
        %4613 = vmatpush1.msra.mxu0 0.0
        %4614 = vmatprep.subr.mxu0 0.0
        %4615 = vmatpush1.msra.mxu0 0.0
        %4616 = vmatprep.subr.mxu0 0.0
        %4617 = vmatpush1.msra.mxu0 0.0
        %4618 = vmatprep.subr.mxu0 0.0
        %4619 = vmatpush1.msra.mxu0 0.0
        %4620 = vmatprep.subr.mxu0 0.0
        %4621 = vmatpush1.msra.mxu0 0.0
        %4622 = vmatprep.subr.mxu0 0.0
        %4623 = vmatpush1.msra.mxu0 0.0
        %4624 = vmatprep.subr.mxu0 0.0
        %4625 = vmatpush1.msra.mxu0 0.0
        %4626 = vmatprep.subr.mxu0 0.0
        %4627 = vmatpush1.msra.mxu0 0.0
        %4628 = vmatprep.subr.mxu0 0.0
        %4629 = vmatpush1.msra.mxu0 0.0
        %4630 = vmatprep.subr.mxu0 0.0
        %4631 = vmatpush1.msra.mxu0 0.0
        %4632 = vmatprep.subr.mxu0 0.0
        %4633 = vmatpush1.msra.mxu0 0.0
        %4634 = vmatprep.subr.mxu0 0.0
        %4635 = vmatpush1.msra.mxu0 0.0
        %4636 = vmatprep.subr.mxu0 0.0
        %4637 = vmatpush1.msra.mxu0 0.0
        %4638 = vmatprep.subr.mxu0 0.0
        %4639 = vmatpush1.msra.mxu0 0.0
        %4640 = vmatprep.subr.mxu0 0.0
        %4641 = vmatpush1.msra.mxu0 0.0
        %4642 = vmatprep.subr.mxu0 0.0
        %4643 = vmatpush1.msra.mxu0 0.0
        %4644 = vmatprep.subr.mxu0 0.0
        %4645 = vmatpush1.msra.mxu0 0.0
        %4646 = vmatprep.subr.mxu0 0.0
        %4647 = vmatpush1.msra.mxu0 0.0
        %4648 = vmatprep.subr.mxu0 0.0
        %4649 = vmatpush1.msra.mxu0 0.0
        %4650 = vmatprep.subr.mxu0 0.0
        %4651 = vmatpush1.msra.mxu0 0.0
        %4652 = vmatprep.subr.mxu0 0.0
        %4653 = vmatpush1.msra.mxu0 0.0
        %4654 = vmatprep.subr.mxu0 0.0
        %4655 = vmatpush1.msra.mxu0 0.0
        %4656 = vmatprep.subr.mxu0 0.0
        %4657 = vmatpush1.msra.mxu0 0.0
        %4658 = vmatprep.mubr.f32.mxu0 0.0
        %4659 = vmatmul.mubr.f32.gmra.mrb[0].mxu0 %v4514
        %v4660 = vpop.f32.mrb[0].mxu0
        %v4661 = vadd.f32 0.0, %v4660
        %v4662 = vpop.f32.mrb[0].mxu0
        %4663 = vmatprep.mubr.f32.mxu0 0.0
        %4664 = vmatmul.mubr.f32.gmra.mrb[0].mxu0 %v4517
        %v4665 = vpop.f32.mrb[0].mxu0
        %v4666 = vadd.f32 0.0, %v4665
        %v4667 = vpop.f32.mrb[0].mxu0
        %4668 = vdwg.mxu0
        %v4669 = vmax.f32 %v4586, %v4661
        %v4670 = vmax.f32 %v4591, %v4666
        %s4671 = sld [smem:[#allocation8]]
        %v4672 = vstv %s4671
        %s4673 = sld [smem:[#allocation7]]
        %v4674 = vstv %s4673
        %v4675 = vmul.f32 %v1516, %v4674
        %v4676 = vmul.f32 %v1517, %v4674
        %v4677 = vadd.f32 %v4672, %v4675
        %v4678 = vadd.f32 %v4672, %v4676
        %s4679 = sld [smem:[#allocation7 + $0x1]]
        %v4680 = vstv %s4679
        %v4681 = vmul.f32 %v1516, %v4680
        %v4682 = vmul.f32 %v1517, %v4680
        %4685 = vrot.lane.b32.xlu0 %v4681, 127
        %v4686 = vpop.permute.xlu0 %4685
        %4687 = vrot.lane.b32.xlu0 %v4682, 127
        %v4688 = vpop.permute.xlu0 %4687
        %v4691 = vadd.f32 %v4677, %v4686
        %v4692 = vadd.f32 %v4678, %v4688
        %s4693 = sld [smem:[#allocation7 + $0x2]]
        %v4694 = vstv %s4693
        %v4695 = vmul.f32 %v1516, %v4694
        %v4696 = vmul.f32 %v1517, %v4694
        %4699 = vrot.lane.b32.xlu0 %v4695, 126
        %v4700 = vpop.permute.xlu0 %4699
        %4701 = vrot.lane.b32.xlu0 %v4696, 126
        %v4702 = vpop.permute.xlu0 %4701
        %v4705 = vadd.f32 %v4691, %v4700
        %v4706 = vadd.f32 %v4692, %v4702
        %s4707 = sld [smem:[#allocation7 + $0x3]]
        %v4708 = vstv %s4707
        %v4709 = vmul.f32 %v1516, %v4708
        %v4710 = vmul.f32 %v1517, %v4708
        %v4713 = vrot.slane %v4709, 1
        %v4714 = vrot.slane %v4710, 1
        %v4715 = vsel %vm519, %v4713, %v4714
        %v4718 = vadd.f32 %v4705, %v4715
        %v4719 = vadd.f32 %v4706, %v4714
        %s4720 = sld [smem:[#allocation7 + $0x4]]
        %v4721 = vstv %s4720
        %v4722 = vmul.f32 %v1516, %v4721
        %v4723 = vmul.f32 %v1517, %v4721
        %v4726 = vrot.slane %v4722, 1
        %v4727 = vrot.slane %v4723, 1
        %v4728 = vsel %vm519, %v4726, %v4727
        %4729 = vrot.lane.b32.xlu0 %v4728, 127
        %v4730 = vpop.permute.xlu0 %4729
        %4731 = vrot.lane.b32.xlu0 %v4727, 127
        %v4732 = vpop.permute.xlu0 %4731
        %v4735 = vadd.f32 %v4718, %v4730
        %v4736 = vadd.f32 %v4719, %v4732
        %s4737 = sld [smem:[#allocation7 + $0x5]]
        %v4738 = vstv %s4737
        %v4739 = vmul.f32 %v1516, %v4738
        %v4740 = vmul.f32 %v1517, %v4738
        %v4743 = vrot.slane %v4739, 1
        %v4744 = vrot.slane %v4740, 1
        %v4745 = vsel %vm519, %v4743, %v4744
        %4746 = vrot.lane.b32.xlu0 %v4745, 126
        %v4747 = vpop.permute.xlu0 %4746
        %4748 = vrot.lane.b32.xlu0 %v4744, 126
        %v4749 = vpop.permute.xlu0 %4748
        %v4752 = vadd.f32 %v4735, %v4747
        %v4753 = vadd.f32 %v4736, %v4749
        %s4754 = sld [smem:[#allocation7 + $0x6]]
        %v4755 = vstv %s4754
        %v4756 = vmul.f32 %v1516, %v4755
        %v4757 = vmul.f32 %v1517, %v4755
        %v4760 = vrot.slane %v4756, 2
        %v4761 = vrot.slane %v4757, 2
        %v4762 = vsel %vm611, %v4760, %v4761
        %v4765 = vadd.f32 %v4752, %v4762
        %v4766 = vadd.f32 %v4753, %v4761
        %s4767 = sld [smem:[#allocation7 + $0x7]]
        %v4768 = vstv %s4767
        %v4769 = vmul.f32 %v1516, %v4768
        %v4770 = vmul.f32 %v1517, %v4768
        %v4773 = vrot.slane %v4769, 2
        %v4774 = vrot.slane %v4770, 2
        %v4775 = vsel %vm611, %v4773, %v4774
        %4776 = vrot.lane.b32.xlu0 %v4775, 127
        %v4777 = vpop.permute.xlu0 %4776
        %4778 = vrot.lane.b32.xlu0 %v4774, 127
        %v4779 = vpop.permute.xlu0 %4778
        %v4782 = vadd.f32 %v4765, %v4777
        %v4783 = vadd.f32 %v4766, %v4779
        %s4784 = sld [smem:[#allocation7 + $0x8]]
        %v4785 = vstv %s4784
        %v4786 = vmul.f32 %v1516, %v4785
        %v4787 = vmul.f32 %v1517, %v4785
        %v4790 = vrot.slane %v4786, 2
        %v4791 = vrot.slane %v4787, 2
        %v4792 = vsel %vm611, %v4790, %v4791
        %4793 = vrot.lane.b32.xlu0 %v4792, 126
        %v4794 = vpop.permute.xlu0 %4793
        %4795 = vrot.lane.b32.xlu0 %v4791, 126
        %v4796 = vpop.permute.xlu0 %4795
        %v4799 = vadd.f32 %v4782, %v4794
        %v4800 = vadd.f32 %v4783, %v4796
        %s4801 = sld [smem:[#allocation7 + $0x9]]
        %v4802 = vstv %s4801
        %v4803 = vmul.f32 %v2567, %v4802
        %v4804 = vmul.f32 %v2568, %v4802
        %v4805 = vadd.f32 %v4799, %v4803
        %v4806 = vadd.f32 %v4800, %v4804
        %s4807 = sld [smem:[#allocation7 + $0xa]]
        %v4808 = vstv %s4807
        %v4809 = vmul.f32 %v2567, %v4808
        %v4810 = vmul.f32 %v2568, %v4808
        %4813 = vrot.lane.b32.xlu0 %v4809, 127
        %v4814 = vpop.permute.xlu0 %4813
        %4815 = vrot.lane.b32.xlu0 %v4810, 127
        %v4816 = vpop.permute.xlu0 %4815
        %v4819 = vadd.f32 %v4805, %v4814
        %v4820 = vadd.f32 %v4806, %v4816
        %s4821 = sld [smem:[#allocation7 + $0xb]]
        %v4822 = vstv %s4821
        %v4823 = vmul.f32 %v2567, %v4822
        %v4824 = vmul.f32 %v2568, %v4822
        %4827 = vrot.lane.b32.xlu0 %v4823, 126
        %v4828 = vpop.permute.xlu0 %4827
        %4829 = vrot.lane.b32.xlu0 %v4824, 126
        %v4830 = vpop.permute.xlu0 %4829
        %v4833 = vadd.f32 %v4819, %v4828
        %v4834 = vadd.f32 %v4820, %v4830
        %s4835 = sld [smem:[#allocation7 + $0xc]]
        %v4836 = vstv %s4835
        %v4837 = vmul.f32 %v2567, %v4836
        %v4838 = vmul.f32 %v2568, %v4836
        %v4841 = vrot.slane %v4837, 1
        %v4842 = vrot.slane %v4838, 1
        %v4843 = vsel %vm519, %v4841, %v4842
        %v4846 = vadd.f32 %v4833, %v4843
        %v4847 = vadd.f32 %v4834, %v4842
        %s4848 = sld [smem:[#allocation7 + $0xd]]
        %v4849 = vstv %s4848
        %v4850 = vmul.f32 %v2567, %v4849
        %v4851 = vmul.f32 %v2568, %v4849
        %v4854 = vrot.slane %v4850, 1
        %v4855 = vrot.slane %v4851, 1
        %v4856 = vsel %vm519, %v4854, %v4855
        %4857 = vrot.lane.b32.xlu0 %v4856, 127
        %v4858 = vpop.permute.xlu0 %4857
        %4859 = vrot.lane.b32.xlu0 %v4855, 127
        %v4860 = vpop.permute.xlu0 %4859
        %v4863 = vadd.f32 %v4846, %v4858
        %v4864 = vadd.f32 %v4847, %v4860
        %s4865 = sld [smem:[#allocation7 + $0xe]]
        %v4866 = vstv %s4865
        %v4867 = vmul.f32 %v2567, %v4866
        %v4868 = vmul.f32 %v2568, %v4866
        %v4871 = vrot.slane %v4867, 1
        %v4872 = vrot.slane %v4868, 1
        %v4873 = vsel %vm519, %v4871, %v4872
        %4874 = vrot.lane.b32.xlu0 %v4873, 126
        %v4875 = vpop.permute.xlu0 %4874
        %4876 = vrot.lane.b32.xlu0 %v4872, 126
        %v4877 = vpop.permute.xlu0 %4876
        %v4880 = vadd.f32 %v4863, %v4875
        %v4881 = vadd.f32 %v4864, %v4877
        %s4882 = sld [smem:[#allocation7 + $0xf]]
        %v4883 = vstv %s4882
        %v4884 = vmul.f32 %v2567, %v4883
        %v4885 = vmul.f32 %v2568, %v4883
        %v4888 = vrot.slane %v4884, 2
        %v4889 = vrot.slane %v4885, 2
        %v4890 = vsel %vm611, %v4888, %v4889
        %v4893 = vadd.f32 %v4880, %v4890
        %v4894 = vadd.f32 %v4881, %v4889
        %s4895 = sld [smem:[#allocation7 + $0x10]]
        %v4896 = vstv %s4895
        %v4897 = vmul.f32 %v2567, %v4896
        %v4898 = vmul.f32 %v2568, %v4896
        %v4901 = vrot.slane %v4897, 2
        %v4902 = vrot.slane %v4898, 2
        %v4903 = vsel %vm611, %v4901, %v4902
        %4904 = vrot.lane.b32.xlu0 %v4903, 127
        %v4905 = vpop.permute.xlu0 %4904
        %4906 = vrot.lane.b32.xlu0 %v4902, 127
        %v4907 = vpop.permute.xlu0 %4906
        %v4910 = vadd.f32 %v4893, %v4905
        %v4911 = vadd.f32 %v4894, %v4907
        %s4912 = sld [smem:[#allocation7 + $0x11]]
        %v4913 = vstv %s4912
        %v4914 = vmul.f32 %v2567, %v4913
        %v4915 = vmul.f32 %v2568, %v4913
        %v4918 = vrot.slane %v4914, 2
        %v4919 = vrot.slane %v4915, 2
        %v4920 = vsel %vm611, %v4918, %v4919
        %4921 = vrot.lane.b32.xlu0 %v4920, 126
        %v4922 = vpop.permute.xlu0 %4921
        %4923 = vrot.lane.b32.xlu0 %v4919, 126
        %v4924 = vpop.permute.xlu0 %4923
        %v4927 = vadd.f32 %v4910, %v4922
        %v4928 = vadd.f32 %v4911, %v4924
        %s4929 = sld [smem:[#allocation7 + $0x12]]
        %v4930 = vstv %s4929
        %v4931 = vmul.f32 %v3618, %v4930
        %v4932 = vmul.f32 %v3619, %v4930
        %v4933 = vadd.f32 %v4927, %v4931
        %v4934 = vadd.f32 %v4928, %v4932
        %s4935 = sld [smem:[#allocation7 + $0x13]]
        %v4936 = vstv %s4935
        %v4937 = vmul.f32 %v3618, %v4936
        %v4938 = vmul.f32 %v3619, %v4936
        %4941 = vrot.lane.b32.xlu0 %v4937, 127
        %v4942 = vpop.permute.xlu0 %4941
        %4943 = vrot.lane.b32.xlu0 %v4938, 127
        %v4944 = vpop.permute.xlu0 %4943
        %v4947 = vadd.f32 %v4933, %v4942
        %v4948 = vadd.f32 %v4934, %v4944
        %s4949 = sld [smem:[#allocation7 + $0x14]]
        %v4950 = vstv %s4949
        %v4951 = vmul.f32 %v3618, %v4950
        %v4952 = vmul.f32 %v3619, %v4950
        %4955 = vrot.lane.b32.xlu0 %v4951, 126
        %v4956 = vpop.permute.xlu0 %4955
        %4957 = vrot.lane.b32.xlu0 %v4952, 126
        %v4958 = vpop.permute.xlu0 %4957
        %v4961 = vadd.f32 %v4947, %v4956
        %v4962 = vadd.f32 %v4948, %v4958
        %s4963 = sld [smem:[#allocation7 + $0x15]]
        %v4964 = vstv %s4963
        %v4965 = vmul.f32 %v3618, %v4964
        %v4966 = vmul.f32 %v3619, %v4964
        %v4969 = vrot.slane %v4965, 1
        %v4970 = vrot.slane %v4966, 1
        %v4971 = vsel %vm519, %v4969, %v4970
        %v4974 = vadd.f32 %v4961, %v4971
        %v4975 = vadd.f32 %v4962, %v4970
        %s4976 = sld [smem:[#allocation7 + $0x16]]
        %v4977 = vstv %s4976
        %v4978 = vmul.f32 %v3618, %v4977
        %v4979 = vmul.f32 %v3619, %v4977
        %v4982 = vrot.slane %v4978, 1
        %v4983 = vrot.slane %v4979, 1
        %v4984 = vsel %vm519, %v4982, %v4983
        %4985 = vrot.lane.b32.xlu0 %v4984, 127
        %v4986 = vpop.permute.xlu0 %4985
        %4987 = vrot.lane.b32.xlu0 %v4983, 127
        %v4988 = vpop.permute.xlu0 %4987
        %v4991 = vadd.f32 %v4974, %v4986
        %v4992 = vadd.f32 %v4975, %v4988
        %s4993 = sld [smem:[#allocation7 + $0x17]]
        %v4994 = vstv %s4993
        %v4995 = vmul.f32 %v3618, %v4994
        %v4996 = vmul.f32 %v3619, %v4994
        %v4999 = vrot.slane %v4995, 1
        %v5000 = vrot.slane %v4996, 1
        %v5001 = vsel %vm519, %v4999, %v5000
        %5002 = vrot.lane.b32.xlu0 %v5001, 126
        %v5003 = vpop.permute.xlu0 %5002
        %5004 = vrot.lane.b32.xlu0 %v5000, 126
        %v5005 = vpop.permute.xlu0 %5004
        %v5008 = vadd.f32 %v4991, %v5003
        %v5009 = vadd.f32 %v4992, %v5005
        %s5010 = sld [smem:[#allocation7 + $0x18]]
        %v5011 = vstv %s5010
        %v5012 = vmul.f32 %v3618, %v5011
        %v5013 = vmul.f32 %v3619, %v5011
        %v5016 = vrot.slane %v5012, 2
        %v5017 = vrot.slane %v5013, 2
        %v5018 = vsel %vm611, %v5016, %v5017
        %v5021 = vadd.f32 %v5008, %v5018
        %v5022 = vadd.f32 %v5009, %v5017
        %s5023 = sld [smem:[#allocation7 + $0x19]]
        %v5024 = vstv %s5023
        %v5025 = vmul.f32 %v3618, %v5024
        %v5026 = vmul.f32 %v3619, %v5024
        %v5029 = vrot.slane %v5025, 2
        %v5030 = vrot.slane %v5026, 2
        %v5031 = vsel %vm611, %v5029, %v5030
        %5032 = vrot.lane.b32.xlu0 %v5031, 127
        %v5033 = vpop.permute.xlu0 %5032
        %5034 = vrot.lane.b32.xlu0 %v5030, 127
        %v5035 = vpop.permute.xlu0 %5034
        %v5038 = vadd.f32 %v5021, %v5033
        %v5039 = vadd.f32 %v5022, %v5035
        %s5040 = sld [smem:[#allocation7 + $0x1a]]
        %v5041 = vstv %s5040
        %v5042 = vmul.f32 %v3618, %v5041
        %v5043 = vmul.f32 %v3619, %v5041
        %v5046 = vrot.slane %v5042, 2
        %v5047 = vrot.slane %v5043, 2
        %v5048 = vsel %vm611, %v5046, %v5047
        %5049 = vrot.lane.b32.xlu0 %v5048, 126
        %v5050 = vpop.permute.xlu0 %5049
        %5051 = vrot.lane.b32.xlu0 %v5047, 126
        %v5052 = vpop.permute.xlu0 %5051
        %v5055 = vadd.f32 %v5038, %v5050
        %v5056 = vadd.f32 %v5039, %v5052
        %s5057 = sld [smem:[#allocation7 + $0x1b]]
        %v5058 = vstv %s5057
        %v5059 = vmul.f32 %v4669, %v5058
        %v5060 = vmul.f32 %v4670, %v5058
        %v5061 = vadd.f32 %v5055, %v5059
        %v5062 = vadd.f32 %v5056, %v5060
        %s5063 = sld [smem:[#allocation7 + $0x1c]]
        %v5064 = vstv %s5063
        %v5065 = vmul.f32 %v4669, %v5064
        %v5066 = vmul.f32 %v4670, %v5064
        %5069 = vrot.lane.b32.xlu0 %v5065, 127
        %v5070 = vpop.permute.xlu0 %5069
        %5071 = vrot.lane.b32.xlu0 %v5066, 127
        %v5072 = vpop.permute.xlu0 %5071
        %v5075 = vadd.f32 %v5061, %v5070
        %v5076 = vadd.f32 %v5062, %v5072
        %s5077 = sld [smem:[#allocation7 + $0x1d]]
        %v5078 = vstv %s5077
        %v5079 = vmul.f32 %v4669, %v5078
        %v5080 = vmul.f32 %v4670, %v5078
        %5083 = vrot.lane.b32.xlu0 %v5079, 126
        %v5084 = vpop.permute.xlu0 %5083
        %5085 = vrot.lane.b32.xlu0 %v5080, 126
        %v5086 = vpop.permute.xlu0 %5085
        %v5089 = vadd.f32 %v5075, %v5084
        %v5090 = vadd.f32 %v5076, %v5086
        %s5091 = sld [smem:[#allocation7 + $0x1e]]
        %v5092 = vstv %s5091
        %v5093 = vmul.f32 %v4669, %v5092
        %v5094 = vmul.f32 %v4670, %v5092
        %v5097 = vrot.slane %v5093, 1
        %v5098 = vrot.slane %v5094, 1
        %v5099 = vsel %vm519, %v5097, %v5098
        %v5102 = vadd.f32 %v5089, %v5099
        %v5103 = vadd.f32 %v5090, %v5098
        %s5104 = sld [smem:[#allocation7 + $0x1f]]
        %v5105 = vstv %s5104
        %v5106 = vmul.f32 %v4669, %v5105
        %v5107 = vmul.f32 %v4670, %v5105
        %v5110 = vrot.slane %v5106, 1
        %v5111 = vrot.slane %v5107, 1
        %v5112 = vsel %vm519, %v5110, %v5111
        %5113 = vrot.lane.b32.xlu0 %v5112, 127
        %v5114 = vpop.permute.xlu0 %5113
        %5115 = vrot.lane.b32.xlu0 %v5111, 127
        %v5116 = vpop.permute.xlu0 %5115
        %v5119 = vadd.f32 %v5102, %v5114
        %v5120 = vadd.f32 %v5103, %v5116
        %s5121 = sld [smem:[#allocation7 + $0x20]]
        %v5122 = vstv %s5121
        %v5123 = vmul.f32 %v4669, %v5122
        %v5124 = vmul.f32 %v4670, %v5122
        %v5127 = vrot.slane %v5123, 1
        %v5128 = vrot.slane %v5124, 1
        %v5129 = vsel %vm519, %v5127, %v5128
        %5130 = vrot.lane.b32.xlu0 %v5129, 126
        %v5131 = vpop.permute.xlu0 %5130
        %5132 = vrot.lane.b32.xlu0 %v5128, 126
        %v5133 = vpop.permute.xlu0 %5132
        %v5136 = vadd.f32 %v5119, %v5131
        %v5137 = vadd.f32 %v5120, %v5133
        %s5138 = sld [smem:[#allocation7 + $0x21]]
        %v5139 = vstv %s5138
        %v5140 = vmul.f32 %v4669, %v5139
        %v5141 = vmul.f32 %v4670, %v5139
        %v5144 = vrot.slane %v5140, 2
        %v5145 = vrot.slane %v5141, 2
        %v5146 = vsel %vm611, %v5144, %v5145
        %v5149 = vadd.f32 %v5136, %v5146
        %v5150 = vadd.f32 %v5137, %v5145
        %s5151 = sld [smem:[#allocation7 + $0x22]]
        %v5152 = vstv %s5151
        %v5153 = vmul.f32 %v4669, %v5152
        %v5154 = vmul.f32 %v4670, %v5152
        %v5157 = vrot.slane %v5153, 2
        %v5158 = vrot.slane %v5154, 2
        %v5159 = vsel %vm611, %v5157, %v5158
        %5160 = vrot.lane.b32.xlu0 %v5159, 127
        %v5161 = vpop.permute.xlu0 %5160
        %5162 = vrot.lane.b32.xlu0 %v5158, 127
        %v5163 = vpop.permute.xlu0 %5162
        %v5166 = vadd.f32 %v5149, %v5161
        %v5167 = vadd.f32 %v5150, %v5163
        %s5168 = sld [smem:[#allocation7 + $0x23]]
        %v5169 = vstv %s5168
        %v5170 = vmul.f32 %v4669, %v5169
        %v5171 = vmul.f32 %v4670, %v5169
        %v5174 = vrot.slane %v5170, 2
        %v5175 = vrot.slane %v5171, 2
        %v5176 = vsel %vm611, %v5174, %v5175
        %5177 = vrot.lane.b32.xlu0 %v5176, 126
        %v5178 = vpop.permute.xlu0 %5177
        %5179 = vrot.lane.b32.xlu0 %v5175, 126
        %v5180 = vpop.permute.xlu0 %5179
        %v5183 = vadd.f32 %v5166, %v5178
        %v5184 = vadd.f32 %v5167, %v5180
        %v5185 = vmax.f32 %v5183, 0.0
        %v5186 = vmax.f32 %v5184, 0.0
        %vm5187 = vcmask 89088
        %v5188 = vsel %vm5187, %v407, 0
        %vm5190 = vcmask 1042432
        %v5192 = vsel %vm5190, %v5186, 0
        %5194 = vmatprep.subr.mxu0 0.0
        %5195 = vmatpush1.msra.mxu0 %v5185
        %5196 = vmatprep.subr.mxu0 0.0
        %5197 = vmatpush1.msra.mxu0 %v5192
        %5198 = vmatprep.subr.mxu0 0.0
        %5199 = vmatpush1.msra.mxu0 0.0
        %5200 = vmatprep.subr.mxu0 0.0
        %5201 = vmatpush1.msra.mxu0 0.0
        %5202 = vmatprep.subr.mxu0 0.0
        %5203 = vmatpush1.msra.mxu0 0.0
        %5204 = vmatprep.subr.mxu0 0.0
        %5205 = vmatpush1.msra.mxu0 0.0
        %5206 = vmatprep.subr.mxu0 0.0
        %5207 = vmatpush1.msra.mxu0 0.0
        %5208 = vmatprep.subr.mxu0 0.0
        %5209 = vmatpush1.msra.mxu0 0.0
        %5210 = vmatprep.subr.mxu0 0.0
        %5211 = vmatpush1.msra.mxu0 0.0
        %5212 = vmatprep.subr.mxu0 0.0
        %5213 = vmatpush1.msra.mxu0 0.0
        %5214 = vmatprep.subr.mxu0 0.0
        %5215 = vmatpush1.msra.mxu0 0.0
        %5216 = vmatprep.subr.mxu0 0.0
        %5217 = vmatpush1.msra.mxu0 0.0
        %5218 = vmatprep.subr.mxu0 0.0
        %5219 = vmatpush1.msra.mxu0 0.0
        %5220 = vmatprep.subr.mxu0 0.0
        %5221 = vmatpush1.msra.mxu0 0.0
        %5222 = vmatprep.subr.mxu0 0.0
        %5223 = vmatpush1.msra.mxu0 0.0
        %5224 = vmatprep.subr.mxu0 0.0
        %5225 = vmatpush1.msra.mxu0 0.0
        %5226 = vmatprep.subr.mxu0 0.0
        %5227 = vmatpush1.msra.mxu0 0.0
        %5228 = vmatprep.subr.mxu0 0.0
        %5229 = vmatpush1.msra.mxu0 0.0
        %5230 = vmatprep.subr.mxu0 0.0
        %5231 = vmatpush1.msra.mxu0 0.0
        %5232 = vmatprep.subr.mxu0 0.0
        %5233 = vmatpush1.msra.mxu0 0.0
        %5234 = vmatprep.subr.mxu0 0.0
        %5235 = vmatpush1.msra.mxu0 0.0
        %5236 = vmatprep.subr.mxu0 0.0
        %5237 = vmatpush1.msra.mxu0 0.0
        %5238 = vmatprep.subr.mxu0 0.0
        %5239 = vmatpush1.msra.mxu0 0.0
        %5240 = vmatprep.subr.mxu0 0.0
        %5241 = vmatpush1.msra.mxu0 0.0
        %5242 = vmatprep.subr.mxu0 0.0
        %5243 = vmatpush1.msra.mxu0 0.0
        %5244 = vmatprep.subr.mxu0 0.0
        %5245 = vmatpush1.msra.mxu0 0.0
        %5246 = vmatprep.subr.mxu0 0.0
        %5247 = vmatpush1.msra.mxu0 0.0
        %5248 = vmatprep.subr.mxu0 0.0
        %5249 = vmatpush1.msra.mxu0 0.0
        %5250 = vmatprep.subr.mxu0 0.0
        %5251 = vmatpush1.msra.mxu0 0.0
        %5252 = vmatprep.subr.mxu0 0.0
        %5253 = vmatpush1.msra.mxu0 0.0
        %5254 = vmatprep.subr.mxu0 0.0
        %5255 = vmatpush1.msra.mxu0 0.0
        %5256 = vmatprep.subr.mxu0 0.0
        %5257 = vmatpush1.msra.mxu0 0.0
        %5258 = vmatprep.mubr.f32.mxu0 0.0
        %5259 = vmatmul.mubr.f32.gmra.mrb[0].mxu0 %v5188
        %v5260 = vpop.f32.mrb[0].mxu0
        %v5261 = vadd.f32 0.0, %v5260
        %v5262 = vpop.f32.mrb[0].mxu0
        %5263 = vdwg.mxu0
        %v5264 = vsel %vm5187, %v415, 0
        %5266 = vmatprep.subr.mxu0 0.0
        %5267 = vmatpush1.msra.mxu0 %v5185
        %5268 = vmatprep.subr.mxu0 0.0
        %5269 = vmatpush1.msra.mxu0 %v5192
        %5270 = vmatprep.subr.mxu0 0.0
        %5271 = vmatpush1.msra.mxu0 0.0
        %5272 = vmatprep.subr.mxu0 0.0
        %5273 = vmatpush1.msra.mxu0 0.0
        %5274 = vmatprep.subr.mxu0 0.0
        %5275 = vmatpush1.msra.mxu0 0.0
        %5276 = vmatprep.subr.mxu0 0.0
        %5277 = vmatpush1.msra.mxu0 0.0
        %5278 = vmatprep.subr.mxu0 0.0
        %5279 = vmatpush1.msra.mxu0 0.0
        %5280 = vmatprep.subr.mxu0 0.0
        %5281 = vmatpush1.msra.mxu0 0.0
        %5282 = vmatprep.subr.mxu0 0.0
        %5283 = vmatpush1.msra.mxu0 0.0
        %5284 = vmatprep.subr.mxu0 0.0
        %5285 = vmatpush1.msra.mxu0 0.0
        %5286 = vmatprep.subr.mxu0 0.0
        %5287 = vmatpush1.msra.mxu0 0.0
        %5288 = vmatprep.subr.mxu0 0.0
        %5289 = vmatpush1.msra.mxu0 0.0
        %5290 = vmatprep.subr.mxu0 0.0
        %5291 = vmatpush1.msra.mxu0 0.0
        %5292 = vmatprep.subr.mxu0 0.0
        %5293 = vmatpush1.msra.mxu0 0.0
        %5294 = vmatprep.subr.mxu0 0.0
        %5295 = vmatpush1.msra.mxu0 0.0
        %5296 = vmatprep.subr.mxu0 0.0
        %5297 = vmatpush1.msra.mxu0 0.0
        %5298 = vmatprep.subr.mxu0 0.0
        %5299 = vmatpush1.msra.mxu0 0.0
        %5300 = vmatprep.subr.mxu0 0.0
        %5301 = vmatpush1.msra.mxu0 0.0
        %5302 = vmatprep.subr.mxu0 0.0
        %5303 = vmatpush1.msra.mxu0 0.0
        %5304 = vmatprep.subr.mxu0 0.0
        %5305 = vmatpush1.msra.mxu0 0.0
        %5306 = vmatprep.subr.mxu0 0.0
        %5307 = vmatpush1.msra.mxu0 0.0
        %5308 = vmatprep.subr.mxu0 0.0
        %5309 = vmatpush1.msra.mxu0 0.0
        %5310 = vmatprep.subr.mxu0 0.0
        %5311 = vmatpush1.msra.mxu0 0.0
        %5312 = vmatprep.subr.mxu0 0.0
        %5313 = vmatpush1.msra.mxu0 0.0
        %5314 = vmatprep.subr.mxu0 0.0
        %5315 = vmatpush1.msra.mxu0 0.0
        %5316 = vmatprep.subr.mxu0 0.0
        %5317 = vmatpush1.msra.mxu0 0.0
        %5318 = vmatprep.subr.mxu0 0.0
        %5319 = vmatpush1.msra.mxu0 0.0
        %5320 = vmatprep.subr.mxu0 0.0
        %5321 = vmatpush1.msra.mxu0 0.0
        %5322 = vmatprep.subr.mxu0 0.0
        %5323 = vmatpush1.msra.mxu0 0.0
        %5324 = vmatprep.subr.mxu0 0.0
        %5325 = vmatpush1.msra.mxu0 0.0
        %5326 = vmatprep.subr.mxu0 0.0
        %5327 = vmatpush1.msra.mxu0 0.0
        %5328 = vmatprep.subr.mxu0 0.0
        %5329 = vmatpush1.msra.mxu0 0.0
        %5330 = vmatprep.mubr.f32.mxu0 0.0
        %5331 = vmatmul.mubr.f32.gmra.mrb[0].mxu0 %v5264
        %v5332 = vpop.f32.mrb[0].mxu0
        %v5333 = vadd.f32 0.0, %v5332
        %v5334 = vpop.f32.mrb[0].mxu0
        %5335 = vdwg.mxu0
        %v5336 = vmax.f32 %v5261, %v5333
        %v5338 = vsel %vm5187, %v5336, 0
        %v5341 = vsel %vm5190, %v429, 0
        %5343 = vmatprep.subr.mxu0 0.0
        %5344 = vmatpush1.msra.mxu0 %v428
        %5345 = vmatprep.subr.mxu0 0.0
        %5346 = vmatpush1.msra.mxu0 %v5341
        %5347 = vmatprep.subr.mxu0 0.0
        %5348 = vmatpush1.msra.mxu0 0.0
        %5349 = vmatprep.subr.mxu0 0.0
        %5350 = vmatpush1.msra.mxu0 0.0
        %5351 = vmatprep.subr.mxu0 0.0
        %5352 = vmatpush1.msra.mxu0 0.0
        %5353 = vmatprep.subr.mxu0 0.0
        %5354 = vmatpush1.msra.mxu0 0.0
        %5355 = vmatprep.subr.mxu0 0.0
        %5356 = vmatpush1.msra.mxu0 0.0
        %5357 = vmatprep.subr.mxu0 0.0
        %5358 = vmatpush1.msra.mxu0 0.0
        %5359 = vmatprep.subr.mxu0 0.0
        %5360 = vmatpush1.msra.mxu0 0.0
        %5361 = vmatprep.subr.mxu0 0.0
        %5362 = vmatpush1.msra.mxu0 0.0
        %5363 = vmatprep.subr.mxu0 0.0
        %5364 = vmatpush1.msra.mxu0 0.0
        %5365 = vmatprep.subr.mxu0 0.0
        %5366 = vmatpush1.msra.mxu0 0.0
        %5367 = vmatprep.subr.mxu0 0.0
        %5368 = vmatpush1.msra.mxu0 0.0
        %5369 = vmatprep.subr.mxu0 0.0
        %5370 = vmatpush1.msra.mxu0 0.0
        %5371 = vmatprep.subr.mxu0 0.0
        %5372 = vmatpush1.msra.mxu0 0.0
        %5373 = vmatprep.subr.mxu0 0.0
        %5374 = vmatpush1.msra.mxu0 0.0
        %5375 = vmatprep.subr.mxu0 0.0
        %5376 = vmatpush1.msra.mxu0 0.0
        %5377 = vmatprep.subr.mxu0 0.0
        %5378 = vmatpush1.msra.mxu0 0.0
        %5379 = vmatprep.subr.mxu0 0.0
        %5380 = vmatpush1.msra.mxu0 0.0
        %5381 = vmatprep.subr.mxu0 0.0
        %5382 = vmatpush1.msra.mxu0 0.0
        %5383 = vmatprep.subr.mxu0 0.0
        %5384 = vmatpush1.msra.mxu0 0.0
        %5385 = vmatprep.subr.mxu0 0.0
        %5386 = vmatpush1.msra.mxu0 0.0
        %5387 = vmatprep.subr.mxu0 0.0
        %5388 = vmatpush1.msra.mxu0 0.0
        %5389 = vmatprep.subr.mxu0 0.0
        %5390 = vmatpush1.msra.mxu0 0.0
        %5391 = vmatprep.subr.mxu0 0.0
        %5392 = vmatpush1.msra.mxu0 0.0
        %5393 = vmatprep.subr.mxu0 0.0
        %5394 = vmatpush1.msra.mxu0 0.0
        %5395 = vmatprep.subr.mxu0 0.0
        %5396 = vmatpush1.msra.mxu0 0.0
        %5397 = vmatprep.subr.mxu0 0.0
        %5398 = vmatpush1.msra.mxu0 0.0
        %5399 = vmatprep.subr.mxu0 0.0
        %5400 = vmatpush1.msra.mxu0 0.0
        %5401 = vmatprep.subr.mxu0 0.0
        %5402 = vmatpush1.msra.mxu0 0.0
        %5403 = vmatprep.subr.mxu0 0.0
        %5404 = vmatpush1.msra.mxu0 0.0
        %5405 = vmatprep.subr.mxu0 0.0
        %5406 = vmatpush1.msra.mxu0 0.0
        %5407 = vmatprep.mubr.f32.mxu0 0.0
        %5408 = vmatmul.mubr.f32.gmra.mrb[0].mxu0 %v5338
        %v5409 = vpop.f32.mrb[0].mxu0
        %v5410 = vadd.f32 0.0, %v5409
        %v5411 = vpop.f32.mrb[0].mxu0
        %5412 = vdwg.mxu0
        %v5414 = vsel %vm5190, %v442, 0
        %5416 = vmatprep.subr.mxu0 0.0
        %5417 = vmatpush1.msra.mxu0 %v441
        %5418 = vmatprep.subr.mxu0 0.0
        %5419 = vmatpush1.msra.mxu0 %v5414
        %5420 = vmatprep.subr.mxu0 0.0
        %5421 = vmatpush1.msra.mxu0 0.0
        %5422 = vmatprep.subr.mxu0 0.0
        %5423 = vmatpush1.msra.mxu0 0.0
        %5424 = vmatprep.subr.mxu0 0.0
        %5425 = vmatpush1.msra.mxu0 0.0
        %5426 = vmatprep.subr.mxu0 0.0
        %5427 = vmatpush1.msra.mxu0 0.0
        %5428 = vmatprep.subr.mxu0 0.0
        %5429 = vmatpush1.msra.mxu0 0.0
        %5430 = vmatprep.subr.mxu0 0.0
        %5431 = vmatpush1.msra.mxu0 0.0
        %5432 = vmatprep.subr.mxu0 0.0
        %5433 = vmatpush1.msra.mxu0 0.0
        %5434 = vmatprep.subr.mxu0 0.0
        %5435 = vmatpush1.msra.mxu0 0.0
        %5436 = vmatprep.subr.mxu0 0.0
        %5437 = vmatpush1.msra.mxu0 0.0
        %5438 = vmatprep.subr.mxu0 0.0
        %5439 = vmatpush1.msra.mxu0 0.0
        %5440 = vmatprep.subr.mxu0 0.0
        %5441 = vmatpush1.msra.mxu0 0.0
        %5442 = vmatprep.subr.mxu0 0.0
        %5443 = vmatpush1.msra.mxu0 0.0
        %5444 = vmatprep.subr.mxu0 0.0
        %5445 = vmatpush1.msra.mxu0 0.0
        %5446 = vmatprep.subr.mxu0 0.0
        %5447 = vmatpush1.msra.mxu0 0.0
        %5448 = vmatprep.subr.mxu0 0.0
        %5449 = vmatpush1.msra.mxu0 0.0
        %5450 = vmatprep.subr.mxu0 0.0
        %5451 = vmatpush1.msra.mxu0 0.0
        %5452 = vmatprep.subr.mxu0 0.0
        %5453 = vmatpush1.msra.mxu0 0.0
        %5454 = vmatprep.subr.mxu0 0.0
        %5455 = vmatpush1.msra.mxu0 0.0
        %5456 = vmatprep.subr.mxu0 0.0
        %5457 = vmatpush1.msra.mxu0 0.0
        %5458 = vmatprep.subr.mxu0 0.0
        %5459 = vmatpush1.msra.mxu0 0.0
        %5460 = vmatprep.subr.mxu0 0.0
        %5461 = vmatpush1.msra.mxu0 0.0
        %5462 = vmatprep.subr.mxu0 0.0
        %5463 = vmatpush1.msra.mxu0 0.0
        %5464 = vmatprep.subr.mxu0 0.0
        %5465 = vmatpush1.msra.mxu0 0.0
        %5466 = vmatprep.subr.mxu0 0.0
        %5467 = vmatpush1.msra.mxu0 0.0
        %5468 = vmatprep.subr.mxu0 0.0
        %5469 = vmatpush1.msra.mxu0 0.0
        %5470 = vmatprep.subr.mxu0 0.0
        %5471 = vmatpush1.msra.mxu0 0.0
        %5472 = vmatprep.subr.mxu0 0.0
        %5473 = vmatpush1.msra.mxu0 0.0
        %5474 = vmatprep.subr.mxu0 0.0
        %5475 = vmatpush1.msra.mxu0 0.0
        %5476 = vmatprep.subr.mxu0 0.0
        %5477 = vmatpush1.msra.mxu0 0.0
        %5478 = vmatprep.subr.mxu0 0.0
        %5479 = vmatpush1.msra.mxu0 0.0
        %5480 = vmatprep.mubr.f32.mxu0 0.0
        %5481 = vmatmul.mubr.f32.gmra.mrb[0].mxu0 %v5338
        %v5482 = vpop.f32.mrb[0].mxu0
        %v5483 = vadd.f32 0.0, %v5482
        %v5484 = vpop.f32.mrb[0].mxu0
        %5485 = vdwg.mxu0
        %v5486 = vmax.f32 %v5410, %v5483
        %s5487 = sld [smem:[#allocation8 + $0x1]]
        %v5488 = vstv %s5487
        %s5489 = sld [smem:[#allocation7 + $0x24]]
        %v5490 = vstv %s5489
        %v5491 = vmul.f32 %v1516, %v5490
        %v5492 = vmul.f32 %v1517, %v5490
        %v5493 = vadd.f32 %v5488, %v5491
        %v5494 = vadd.f32 %v5488, %v5492
        %s5495 = sld [smem:[#allocation7 + $0x25]]
        %v5496 = vstv %s5495
        %v5497 = vmul.f32 %v1516, %v5496
        %v5498 = vmul.f32 %v1517, %v5496
        %5501 = vrot.lane.b32.xlu0 %v5497, 127
        %v5502 = vpop.permute.xlu0 %5501
        %5503 = vrot.lane.b32.xlu0 %v5498, 127
        %v5504 = vpop.permute.xlu0 %5503
        %v5507 = vadd.f32 %v5493, %v5502
        %v5508 = vadd.f32 %v5494, %v5504
        %s5509 = sld [smem:[#allocation7 + $0x26]]
        %v5510 = vstv %s5509
        %v5511 = vmul.f32 %v1516, %v5510
        %v5512 = vmul.f32 %v1517, %v5510
        %5515 = vrot.lane.b32.xlu0 %v5511, 126
        %v5516 = vpop.permute.xlu0 %5515
        %5517 = vrot.lane.b32.xlu0 %v5512, 126
        %v5518 = vpop.permute.xlu0 %5517
        %v5521 = vadd.f32 %v5507, %v5516
        %v5522 = vadd.f32 %v5508, %v5518
        %s5523 = sld [smem:[#allocation7 + $0x27]]
        %v5524 = vstv %s5523
        %v5525 = vmul.f32 %v1516, %v5524
        %v5526 = vmul.f32 %v1517, %v5524
        %v5529 = vrot.slane %v5525, 1
        %v5530 = vrot.slane %v5526, 1
        %v5531 = vsel %vm519, %v5529, %v5530
        %v5534 = vadd.f32 %v5521, %v5531
        %v5535 = vadd.f32 %v5522, %v5530
        %s5536 = sld [smem:[#allocation7 + $0x28]]
        %v5537 = vstv %s5536
        %v5538 = vmul.f32 %v1516, %v5537
        %v5539 = vmul.f32 %v1517, %v5537
        %v5542 = vrot.slane %v5538, 1
        %v5543 = vrot.slane %v5539, 1
        %v5544 = vsel %vm519, %v5542, %v5543
        %5545 = vrot.lane.b32.xlu0 %v5544, 127
        %v5546 = vpop.permute.xlu0 %5545
        %5547 = vrot.lane.b32.xlu0 %v5543, 127
        %v5548 = vpop.permute.xlu0 %5547
        %v5551 = vadd.f32 %v5534, %v5546
        %v5552 = vadd.f32 %v5535, %v5548
        %s5553 = sld [smem:[#allocation7 + $0x29]]
        %v5554 = vstv %s5553
        %v5555 = vmul.f32 %v1516, %v5554
        %v5556 = vmul.f32 %v1517, %v5554
        %v5559 = vrot.slane %v5555, 1
        %v5560 = vrot.slane %v5556, 1
        %v5561 = vsel %vm519, %v5559, %v5560
        %5562 = vrot.lane.b32.xlu0 %v5561, 126
        %v5563 = vpop.permute.xlu0 %5562
        %5564 = vrot.lane.b32.xlu0 %v5560, 126
        %v5565 = vpop.permute.xlu0 %5564
        %v5568 = vadd.f32 %v5551, %v5563
        %v5569 = vadd.f32 %v5552, %v5565
        %s5570 = sld [smem:[#allocation7 + $0x2a]]
        %v5571 = vstv %s5570
        %v5572 = vmul.f32 %v1516, %v5571
        %v5573 = vmul.f32 %v1517, %v5571
        %v5576 = vrot.slane %v5572, 2
        %v5577 = vrot.slane %v5573, 2
        %v5578 = vsel %vm611, %v5576, %v5577
        %v5581 = vadd.f32 %v5568, %v5578
        %v5582 = vadd.f32 %v5569, %v5577
        %s5583 = sld [smem:[#allocation7 + $0x2b]]
        %v5584 = vstv %s5583
        %v5585 = vmul.f32 %v1516, %v5584
        %v5586 = vmul.f32 %v1517, %v5584
        %v5589 = vrot.slane %v5585, 2
        %v5590 = vrot.slane %v5586, 2
        %v5591 = vsel %vm611, %v5589, %v5590
        %5592 = vrot.lane.b32.xlu0 %v5591, 127
        %v5593 = vpop.permute.xlu0 %5592
        %5594 = vrot.lane.b32.xlu0 %v5590, 127
        %v5595 = vpop.permute.xlu0 %5594
        %v5598 = vadd.f32 %v5581, %v5593
        %v5599 = vadd.f32 %v5582, %v5595
        %s5600 = sld [smem:[#allocation7 + $0x2c]]
        %v5601 = vstv %s5600
        %v5602 = vmul.f32 %v1516, %v5601
        %v5603 = vmul.f32 %v1517, %v5601
        %v5606 = vrot.slane %v5602, 2
        %v5607 = vrot.slane %v5603, 2
        %v5608 = vsel %vm611, %v5606, %v5607
        %5609 = vrot.lane.b32.xlu0 %v5608, 126
        %v5610 = vpop.permute.xlu0 %5609
        %5611 = vrot.lane.b32.xlu0 %v5607, 126
        %v5612 = vpop.permute.xlu0 %5611
        %v5615 = vadd.f32 %v5598, %v5610
        %v5616 = vadd.f32 %v5599, %v5612
        %s5617 = sld [smem:[#allocation7 + $0x2d]]
        %v5618 = vstv %s5617
        %v5619 = vmul.f32 %v2567, %v5618
        %v5620 = vmul.f32 %v2568, %v5618
        %v5621 = vadd.f32 %v5615, %v5619
        %v5622 = vadd.f32 %v5616, %v5620
        %s5623 = sld [smem:[#allocation7 + $0x2e]]
        %v5624 = vstv %s5623
        %v5625 = vmul.f32 %v2567, %v5624
        %v5626 = vmul.f32 %v2568, %v5624
        %5629 = vrot.lane.b32.xlu0 %v5625, 127
        %v5630 = vpop.permute.xlu0 %5629
        %5631 = vrot.lane.b32.xlu0 %v5626, 127
        %v5632 = vpop.permute.xlu0 %5631
        %v5635 = vadd.f32 %v5621, %v5630
        %v5636 = vadd.f32 %v5622, %v5632
        %s5637 = sld [smem:[#allocation7 + $0x2f]]
        %v5638 = vstv %s5637
        %v5639 = vmul.f32 %v2567, %v5638
        %v5640 = vmul.f32 %v2568, %v5638
        %5643 = vrot.lane.b32.xlu0 %v5639, 126
        %v5644 = vpop.permute.xlu0 %5643
        %5645 = vrot.lane.b32.xlu0 %v5640, 126
        %v5646 = vpop.permute.xlu0 %5645
        %v5649 = vadd.f32 %v5635, %v5644
        %v5650 = vadd.f32 %v5636, %v5646
        %s5651 = sld [smem:[#allocation7 + $0x30]]
        %v5652 = vstv %s5651
        %v5653 = vmul.f32 %v2567, %v5652
        %v5654 = vmul.f32 %v2568, %v5652
        %v5657 = vrot.slane %v5653, 1
        %v5658 = vrot.slane %v5654, 1
        %v5659 = vsel %vm519, %v5657, %v5658
        %v5662 = vadd.f32 %v5649, %v5659
        %v5663 = vadd.f32 %v5650, %v5658
        %s5664 = sld [smem:[#allocation7 + $0x31]]
        %v5665 = vstv %s5664
        %v5666 = vmul.f32 %v2567, %v5665
        %v5667 = vmul.f32 %v2568, %v5665
        %v5670 = vrot.slane %v5666, 1
        %v5671 = vrot.slane %v5667, 1
        %v5672 = vsel %vm519, %v5670, %v5671
        %5673 = vrot.lane.b32.xlu0 %v5672, 127
        %v5674 = vpop.permute.xlu0 %5673
        %5675 = vrot.lane.b32.xlu0 %v5671, 127
        %v5676 = vpop.permute.xlu0 %5675
        %v5679 = vadd.f32 %v5662, %v5674
        %v5680 = vadd.f32 %v5663, %v5676
        %s5681 = sld [smem:[#allocation7 + $0x32]]
        %v5682 = vstv %s5681
        %v5683 = vmul.f32 %v2567, %v5682
        %v5684 = vmul.f32 %v2568, %v5682
        %v5687 = vrot.slane %v5683, 1
        %v5688 = vrot.slane %v5684, 1
        %v5689 = vsel %vm519, %v5687, %v5688
        %5690 = vrot.lane.b32.xlu0 %v5689, 126
        %v5691 = vpop.permute.xlu0 %5690
        %5692 = vrot.lane.b32.xlu0 %v5688, 126
        %v5693 = vpop.permute.xlu0 %5692
        %v5696 = vadd.f32 %v5679, %v5691
        %v5697 = vadd.f32 %v5680, %v5693
        %s5698 = sld [smem:[#allocation7 + $0x33]]
        %v5699 = vstv %s5698
        %v5700 = vmul.f32 %v2567, %v5699
        %v5701 = vmul.f32 %v2568, %v5699
        %v5704 = vrot.slane %v5700, 2
        %v5705 = vrot.slane %v5701, 2
        %v5706 = vsel %vm611, %v5704, %v5705
        %v5709 = vadd.f32 %v5696, %v5706
        %v5710 = vadd.f32 %v5697, %v5705
        %s5711 = sld [smem:[#allocation7 + $0x34]]
        %v5712 = vstv %s5711
        %v5713 = vmul.f32 %v2567, %v5712
        %v5714 = vmul.f32 %v2568, %v5712
        %v5717 = vrot.slane %v5713, 2
        %v5718 = vrot.slane %v5714, 2
        %v5719 = vsel %vm611, %v5717, %v5718
        %5720 = vrot.lane.b32.xlu0 %v5719, 127
        %v5721 = vpop.permute.xlu0 %5720
        %5722 = vrot.lane.b32.xlu0 %v5718, 127
        %v5723 = vpop.permute.xlu0 %5722
        %v5726 = vadd.f32 %v5709, %v5721
        %v5727 = vadd.f32 %v5710, %v5723
        %s5728 = sld [smem:[#allocation7 + $0x35]]
        %v5729 = vstv %s5728
        %v5730 = vmul.f32 %v2567, %v5729
        %v5731 = vmul.f32 %v2568, %v5729
        %v5734 = vrot.slane %v5730, 2
        %v5735 = vrot.slane %v5731, 2
        %v5736 = vsel %vm611, %v5734, %v5735
        %5737 = vrot.lane.b32.xlu0 %v5736, 126
        %v5738 = vpop.permute.xlu0 %5737
        %5739 = vrot.lane.b32.xlu0 %v5735, 126
        %v5740 = vpop.permute.xlu0 %5739
        %v5743 = vadd.f32 %v5726, %v5738
        %v5744 = vadd.f32 %v5727, %v5740
        %s5745 = sld [smem:[#allocation7 + $0x36]]
        %v5746 = vstv %s5745
        %v5747 = vmul.f32 %v3618, %v5746
        %v5748 = vmul.f32 %v3619, %v5746
        %v5749 = vadd.f32 %v5743, %v5747
        %v5750 = vadd.f32 %v5744, %v5748
        %s5751 = sld [smem:[#allocation7 + $0x37]]
        %v5752 = vstv %s5751
        %v5753 = vmul.f32 %v3618, %v5752
        %v5754 = vmul.f32 %v3619, %v5752
        %5757 = vrot.lane.b32.xlu0 %v5753, 127
        %v5758 = vpop.permute.xlu0 %5757
        %5759 = vrot.lane.b32.xlu0 %v5754, 127
        %v5760 = vpop.permute.xlu0 %5759
        %v5763 = vadd.f32 %v5749, %v5758
        %v5764 = vadd.f32 %v5750, %v5760
        %s5765 = sld [smem:[#allocation7 + $0x38]]
        %v5766 = vstv %s5765
        %v5767 = vmul.f32 %v3618, %v5766
        %v5768 = vmul.f32 %v3619, %v5766
        %5771 = vrot.lane.b32.xlu0 %v5767, 126
        %v5772 = vpop.permute.xlu0 %5771
        %5773 = vrot.lane.b32.xlu0 %v5768, 126
        %v5774 = vpop.permute.xlu0 %5773
        %v5777 = vadd.f32 %v5763, %v5772
        %v5778 = vadd.f32 %v5764, %v5774
        %s5779 = sld [smem:[#allocation7 + $0x39]]
        %v5780 = vstv %s5779
        %v5781 = vmul.f32 %v3618, %v5780
        %v5782 = vmul.f32 %v3619, %v5780
        %v5785 = vrot.slane %v5781, 1
        %v5786 = vrot.slane %v5782, 1
        %v5787 = vsel %vm519, %v5785, %v5786
        %v5790 = vadd.f32 %v5777, %v5787
        %v5791 = vadd.f32 %v5778, %v5786
        %s5792 = sld [smem:[#allocation7 + $0x3a]]
        %v5793 = vstv %s5792
        %v5794 = vmul.f32 %v3618, %v5793
        %v5795 = vmul.f32 %v3619, %v5793
        %v5798 = vrot.slane %v5794, 1
        %v5799 = vrot.slane %v5795, 1
        %v5800 = vsel %vm519, %v5798, %v5799
        %5801 = vrot.lane.b32.xlu0 %v5800, 127
        %v5802 = vpop.permute.xlu0 %5801
        %5803 = vrot.lane.b32.xlu0 %v5799, 127
        %v5804 = vpop.permute.xlu0 %5803
        %v5807 = vadd.f32 %v5790, %v5802
        %v5808 = vadd.f32 %v5791, %v5804
        %s5809 = sld [smem:[#allocation7 + $0x3b]]
        %v5810 = vstv %s5809
        %v5811 = vmul.f32 %v3618, %v5810
        %v5812 = vmul.f32 %v3619, %v5810
        %v5815 = vrot.slane %v5811, 1
        %v5816 = vrot.slane %v5812, 1
        %v5817 = vsel %vm519, %v5815, %v5816
        %5818 = vrot.lane.b32.xlu0 %v5817, 126
        %v5819 = vpop.permute.xlu0 %5818
        %5820 = vrot.lane.b32.xlu0 %v5816, 126
        %v5821 = vpop.permute.xlu0 %5820
        %v5824 = vadd.f32 %v5807, %v5819
        %v5825 = vadd.f32 %v5808, %v5821
        %s5826 = sld [smem:[#allocation7 + $0x3c]]
        %v5827 = vstv %s5826
        %v5828 = vmul.f32 %v3618, %v5827
        %v5829 = vmul.f32 %v3619, %v5827
        %v5832 = vrot.slane %v5828, 2
        %v5833 = vrot.slane %v5829, 2
        %v5834 = vsel %vm611, %v5832, %v5833
        %v5837 = vadd.f32 %v5824, %v5834
        %v5838 = vadd.f32 %v5825, %v5833
        %s5839 = sld [smem:[#allocation7 + $0x3d]]
        %v5840 = vstv %s5839
        %v5841 = vmul.f32 %v3618, %v5840
        %v5842 = vmul.f32 %v3619, %v5840
        %v5845 = vrot.slane %v5841, 2
        %v5846 = vrot.slane %v5842, 2
        %v5847 = vsel %vm611, %v5845, %v5846
        %5848 = vrot.lane.b32.xlu0 %v5847, 127
        %v5849 = vpop.permute.xlu0 %5848
        %5850 = vrot.lane.b32.xlu0 %v5846, 127
        %v5851 = vpop.permute.xlu0 %5850
        %v5854 = vadd.f32 %v5837, %v5849
        %v5855 = vadd.f32 %v5838, %v5851
        %s5856 = sld [smem:[#allocation7 + $0x3e]]
        %v5857 = vstv %s5856
        %v5858 = vmul.f32 %v3618, %v5857
        %v5859 = vmul.f32 %v3619, %v5857
        %v5862 = vrot.slane %v5858, 2
        %v5863 = vrot.slane %v5859, 2
        %v5864 = vsel %vm611, %v5862, %v5863
        %5865 = vrot.lane.b32.xlu0 %v5864, 126
        %v5866 = vpop.permute.xlu0 %5865
        %5867 = vrot.lane.b32.xlu0 %v5863, 126
        %v5868 = vpop.permute.xlu0 %5867
        %v5871 = vadd.f32 %v5854, %v5866
        %v5872 = vadd.f32 %v5855, %v5868
        %s5873 = sld [smem:[#allocation7 + $0x3f]]
        %v5874 = vstv %s5873
        %v5875 = vmul.f32 %v4669, %v5874
        %v5876 = vmul.f32 %v4670, %v5874
        %v5877 = vadd.f32 %v5871, %v5875
        %v5878 = vadd.f32 %v5872, %v5876
        %s5879 = sld [smem:[#allocation7 + $0x40]]
        %v5880 = vstv %s5879
        %v5881 = vmul.f32 %v4669, %v5880
        %v5882 = vmul.f32 %v4670, %v5880
        %5885 = vrot.lane.b32.xlu0 %v5881, 127
        %v5886 = vpop.permute.xlu0 %5885
        %5887 = vrot.lane.b32.xlu0 %v5882, 127
        %v5888 = vpop.permute.xlu0 %5887
        %v5891 = vadd.f32 %v5877, %v5886
        %v5892 = vadd.f32 %v5878, %v5888
        %s5893 = sld [smem:[#allocation7 + $0x41]]
        %v5894 = vstv %s5893
        %v5895 = vmul.f32 %v4669, %v5894
        %v5896 = vmul.f32 %v4670, %v5894
        %5899 = vrot.lane.b32.xlu0 %v5895, 126
        %v5900 = vpop.permute.xlu0 %5899
        %5901 = vrot.lane.b32.xlu0 %v5896, 126
        %v5902 = vpop.permute.xlu0 %5901
        %v5905 = vadd.f32 %v5891, %v5900
        %v5906 = vadd.f32 %v5892, %v5902
        %s5907 = sld [smem:[#allocation7 + $0x42]]
        %v5908 = vstv %s5907
        %v5909 = vmul.f32 %v4669, %v5908
        %v5910 = vmul.f32 %v4670, %v5908
        %v5913 = vrot.slane %v5909, 1
        %v5914 = vrot.slane %v5910, 1
        %v5915 = vsel %vm519, %v5913, %v5914
        %v5918 = vadd.f32 %v5905, %v5915
        %v5919 = vadd.f32 %v5906, %v5914
        %s5920 = sld [smem:[#allocation7 + $0x43]]
        %v5921 = vstv %s5920
        %v5922 = vmul.f32 %v4669, %v5921
        %v5923 = vmul.f32 %v4670, %v5921
        %v5926 = vrot.slane %v5922, 1
        %v5927 = vrot.slane %v5923, 1
        %v5928 = vsel %vm519, %v5926, %v5927
        %5929 = vrot.lane.b32.xlu0 %v5928, 127
        %v5930 = vpop.permute.xlu0 %5929
        %5931 = vrot.lane.b32.xlu0 %v5927, 127
        %v5932 = vpop.permute.xlu0 %5931
        %v5935 = vadd.f32 %v5918, %v5930
        %v5936 = vadd.f32 %v5919, %v5932
        %s5937 = sld [smem:[#allocation7 + $0x44]]
        %v5938 = vstv %s5937
        %v5939 = vmul.f32 %v4669, %v5938
        %v5940 = vmul.f32 %v4670, %v5938
        %v5943 = vrot.slane %v5939, 1
        %v5944 = vrot.slane %v5940, 1
        %v5945 = vsel %vm519, %v5943, %v5944
        %5946 = vrot.lane.b32.xlu0 %v5945, 126
        %v5947 = vpop.permute.xlu0 %5946
        %5948 = vrot.lane.b32.xlu0 %v5944, 126
        %v5949 = vpop.permute.xlu0 %5948
        %v5952 = vadd.f32 %v5935, %v5947
        %v5953 = vadd.f32 %v5936, %v5949
        %s5954 = sld [smem:[#allocation7 + $0x45]]
        %v5955 = vstv %s5954
        %v5956 = vmul.f32 %v4669, %v5955
        %v5957 = vmul.f32 %v4670, %v5955
        %v5960 = vrot.slane %v5956, 2
        %v5961 = vrot.slane %v5957, 2
        %v5962 = vsel %vm611, %v5960, %v5961
        %v5965 = vadd.f32 %v5952, %v5962
        %v5966 = vadd.f32 %v5953, %v5961
        %s5967 = sld [smem:[#allocation7 + $0x46]]
        %v5968 = vstv %s5967
        %v5969 = vmul.f32 %v4669, %v5968
        %v5970 = vmul.f32 %v4670, %v5968
        %v5973 = vrot.slane %v5969, 2
        %v5974 = vrot.slane %v5970, 2
        %v5975 = vsel %vm611, %v5973, %v5974
        %5976 = vrot.lane.b32.xlu0 %v5975, 127
        %v5977 = vpop.permute.xlu0 %5976
        %5978 = vrot.lane.b32.xlu0 %v5974, 127
        %v5979 = vpop.permute.xlu0 %5978
        %v5982 = vadd.f32 %v5965, %v5977
        %v5983 = vadd.f32 %v5966, %v5979
        %s5984 = sld [smem:[#allocation7 + $0x47]]
        %v5985 = vstv %s5984
        %v5986 = vmul.f32 %v4669, %v5985
        %v5987 = vmul.f32 %v4670, %v5985
        %v5990 = vrot.slane %v5986, 2
        %v5991 = vrot.slane %v5987, 2
        %v5992 = vsel %vm611, %v5990, %v5991
        %5993 = vrot.lane.b32.xlu0 %v5992, 126
        %v5994 = vpop.permute.xlu0 %5993
        %5995 = vrot.lane.b32.xlu0 %v5991, 126
        %v5996 = vpop.permute.xlu0 %5995
        %v5999 = vadd.f32 %v5982, %v5994
        %v6000 = vadd.f32 %v5983, %v5996
        %v6001 = vmax.f32 %v5999, 0.0
        %v6002 = vmax.f32 %v6000, 0.0
        %v6004 = vsel %vm5190, %v6002, 0
        %6006 = vmatprep.subr.mxu0 0.0
        %6007 = vmatpush1.msra.mxu0 %v6001
        %6008 = vmatprep.subr.mxu0 0.0
        %6009 = vmatpush1.msra.mxu0 %v6004
        %6010 = vmatprep.subr.mxu0 0.0
        %6011 = vmatpush1.msra.mxu0 0.0
        %6012 = vmatprep.subr.mxu0 0.0
        %6013 = vmatpush1.msra.mxu0 0.0
        %6014 = vmatprep.subr.mxu0 0.0
        %6015 = vmatpush1.msra.mxu0 0.0
        %6016 = vmatprep.subr.mxu0 0.0
        %6017 = vmatpush1.msra.mxu0 0.0
        %6018 = vmatprep.subr.mxu0 0.0
        %6019 = vmatpush1.msra.mxu0 0.0
        %6020 = vmatprep.subr.mxu0 0.0
        %6021 = vmatpush1.msra.mxu0 0.0
        %6022 = vmatprep.subr.mxu0 0.0
        %6023 = vmatpush1.msra.mxu0 0.0
        %6024 = vmatprep.subr.mxu0 0.0
        %6025 = vmatpush1.msra.mxu0 0.0
        %6026 = vmatprep.subr.mxu0 0.0
        %6027 = vmatpush1.msra.mxu0 0.0
        %6028 = vmatprep.subr.mxu0 0.0
        %6029 = vmatpush1.msra.mxu0 0.0
        %6030 = vmatprep.subr.mxu0 0.0
        %6031 = vmatpush1.msra.mxu0 0.0
        %6032 = vmatprep.subr.mxu0 0.0
        %6033 = vmatpush1.msra.mxu0 0.0
        %6034 = vmatprep.subr.mxu0 0.0
        %6035 = vmatpush1.msra.mxu0 0.0
        %6036 = vmatprep.subr.mxu0 0.0
        %6037 = vmatpush1.msra.mxu0 0.0
        %6038 = vmatprep.subr.mxu0 0.0
        %6039 = vmatpush1.msra.mxu0 0.0
        %6040 = vmatprep.subr.mxu0 0.0
        %6041 = vmatpush1.msra.mxu0 0.0
        %6042 = vmatprep.subr.mxu0 0.0
        %6043 = vmatpush1.msra.mxu0 0.0
        %6044 = vmatprep.subr.mxu0 0.0
        %6045 = vmatpush1.msra.mxu0 0.0
        %6046 = vmatprep.subr.mxu0 0.0
        %6047 = vmatpush1.msra.mxu0 0.0
        %6048 = vmatprep.subr.mxu0 0.0
        %6049 = vmatpush1.msra.mxu0 0.0
        %6050 = vmatprep.subr.mxu0 0.0
        %6051 = vmatpush1.msra.mxu0 0.0
        %6052 = vmatprep.subr.mxu0 0.0
        %6053 = vmatpush1.msra.mxu0 0.0
        %6054 = vmatprep.subr.mxu0 0.0
        %6055 = vmatpush1.msra.mxu0 0.0
        %6056 = vmatprep.subr.mxu0 0.0
        %6057 = vmatpush1.msra.mxu0 0.0
        %6058 = vmatprep.subr.mxu0 0.0
        %6059 = vmatpush1.msra.mxu0 0.0
        %6060 = vmatprep.subr.mxu0 0.0
        %6061 = vmatpush1.msra.mxu0 0.0
        %6062 = vmatprep.subr.mxu0 0.0
        %6063 = vmatpush1.msra.mxu0 0.0
        %6064 = vmatprep.subr.mxu0 0.0
        %6065 = vmatpush1.msra.mxu0 0.0
        %6066 = vmatprep.subr.mxu0 0.0
        %6067 = vmatpush1.msra.mxu0 0.0
        %6068 = vmatprep.subr.mxu0 0.0
        %6069 = vmatpush1.msra.mxu0 0.0
        %6070 = vmatprep.mubr.f32.mxu0 0.0
        %6071 = vmatmul.mubr.f32.gmra.mrb[0].mxu0 %v5188
        %v6072 = vpop.f32.mrb[0].mxu0
        %v6073 = vadd.f32 0.0, %v6072
        %v6074 = vpop.f32.mrb[0].mxu0
        %6075 = vdwg.mxu0
        %6076 = vmatprep.subr.mxu0 0.0
        %6077 = vmatpush1.msra.mxu0 %v6001
        %6078 = vmatprep.subr.mxu0 0.0
        %6079 = vmatpush1.msra.mxu0 %v6004
        %6080 = vmatprep.subr.mxu0 0.0
        %6081 = vmatpush1.msra.mxu0 0.0
        %6082 = vmatprep.subr.mxu0 0.0
        %6083 = vmatpush1.msra.mxu0 0.0
        %6084 = vmatprep.subr.mxu0 0.0
        %6085 = vmatpush1.msra.mxu0 0.0
        %6086 = vmatprep.subr.mxu0 0.0
        %6087 = vmatpush1.msra.mxu0 0.0
        %6088 = vmatprep.subr.mxu0 0.0
        %6089 = vmatpush1.msra.mxu0 0.0
        %6090 = vmatprep.subr.mxu0 0.0
        %6091 = vmatpush1.msra.mxu0 0.0
        %6092 = vmatprep.subr.mxu0 0.0
        %6093 = vmatpush1.msra.mxu0 0.0
        %6094 = vmatprep.subr.mxu0 0.0
        %6095 = vmatpush1.msra.mxu0 0.0
        %6096 = vmatprep.subr.mxu0 0.0
        %6097 = vmatpush1.msra.mxu0 0.0
        %6098 = vmatprep.subr.mxu0 0.0
        %6099 = vmatpush1.msra.mxu0 0.0
        %6100 = vmatprep.subr.mxu0 0.0
        %6101 = vmatpush1.msra.mxu0 0.0
        %6102 = vmatprep.subr.mxu0 0.0
        %6103 = vmatpush1.msra.mxu0 0.0
        %6104 = vmatprep.subr.mxu0 0.0
        %6105 = vmatpush1.msra.mxu0 0.0
        %6106 = vmatprep.subr.mxu0 0.0
        %6107 = vmatpush1.msra.mxu0 0.0
        %6108 = vmatprep.subr.mxu0 0.0
        %6109 = vmatpush1.msra.mxu0 0.0
        %6110 = vmatprep.subr.mxu0 0.0
        %6111 = vmatpush1.msra.mxu0 0.0
        %6112 = vmatprep.subr.mxu0 0.0
        %6113 = vmatpush1.msra.mxu0 0.0
        %6114 = vmatprep.subr.mxu0 0.0
        %6115 = vmatpush1.msra.mxu0 0.0
        %6116 = vmatprep.subr.mxu0 0.0
        %6117 = vmatpush1.msra.mxu0 0.0
        %6118 = vmatprep.subr.mxu0 0.0
        %6119 = vmatpush1.msra.mxu0 0.0
        %6120 = vmatprep.subr.mxu0 0.0
        %6121 = vmatpush1.msra.mxu0 0.0
        %6122 = vmatprep.subr.mxu0 0.0
        %6123 = vmatpush1.msra.mxu0 0.0
        %6124 = vmatprep.subr.mxu0 0.0
        %6125 = vmatpush1.msra.mxu0 0.0
        %6126 = vmatprep.subr.mxu0 0.0
        %6127 = vmatpush1.msra.mxu0 0.0
        %6128 = vmatprep.subr.mxu0 0.0
        %6129 = vmatpush1.msra.mxu0 0.0
        %6130 = vmatprep.subr.mxu0 0.0
        %6131 = vmatpush1.msra.mxu0 0.0
        %6132 = vmatprep.subr.mxu0 0.0
        %6133 = vmatpush1.msra.mxu0 0.0
        %6134 = vmatprep.subr.mxu0 0.0
        %6135 = vmatpush1.msra.mxu0 0.0
        %6136 = vmatprep.subr.mxu0 0.0
        %6137 = vmatpush1.msra.mxu0 0.0
        %6138 = vmatprep.subr.mxu0 0.0
        %6139 = vmatpush1.msra.mxu0 0.0
        %6140 = vmatprep.mubr.f32.mxu0 0.0
        %6141 = vmatmul.mubr.f32.gmra.mrb[0].mxu0 %v5264
        %v6142 = vpop.f32.mrb[0].mxu0
        %v6143 = vadd.f32 0.0, %v6142
        %v6144 = vpop.f32.mrb[0].mxu0
        %6145 = vdwg.mxu0
        %v6146 = vmax.f32 %v6073, %v6143
        %v6148 = vsel %vm5187, %v6146, 0
        %6150 = vmatprep.subr.mxu0 0.0
        %6151 = vmatpush1.msra.mxu0 %v428
        %6152 = vmatprep.subr.mxu0 0.0
        %6153 = vmatpush1.msra.mxu0 %v5341
        %6154 = vmatprep.subr.mxu0 0.0
        %6155 = vmatpush1.msra.mxu0 0.0
        %6156 = vmatprep.subr.mxu0 0.0
        %6157 = vmatpush1.msra.mxu0 0.0
        %6158 = vmatprep.subr.mxu0 0.0
        %6159 = vmatpush1.msra.mxu0 0.0
        %6160 = vmatprep.subr.mxu0 0.0
        %6161 = vmatpush1.msra.mxu0 0.0
        %6162 = vmatprep.subr.mxu0 0.0
        %6163 = vmatpush1.msra.mxu0 0.0
        %6164 = vmatprep.subr.mxu0 0.0
        %6165 = vmatpush1.msra.mxu0 0.0
        %6166 = vmatprep.subr.mxu0 0.0
        %6167 = vmatpush1.msra.mxu0 0.0
        %6168 = vmatprep.subr.mxu0 0.0
        %6169 = vmatpush1.msra.mxu0 0.0
        %6170 = vmatprep.subr.mxu0 0.0
        %6171 = vmatpush1.msra.mxu0 0.0
        %6172 = vmatprep.subr.mxu0 0.0
        %6173 = vmatpush1.msra.mxu0 0.0
        %6174 = vmatprep.subr.mxu0 0.0
        %6175 = vmatpush1.msra.mxu0 0.0
        %6176 = vmatprep.subr.mxu0 0.0
        %6177 = vmatpush1.msra.mxu0 0.0
        %6178 = vmatprep.subr.mxu0 0.0
        %6179 = vmatpush1.msra.mxu0 0.0
        %6180 = vmatprep.subr.mxu0 0.0
        %6181 = vmatpush1.msra.mxu0 0.0
        %6182 = vmatprep.subr.mxu0 0.0
        %6183 = vmatpush1.msra.mxu0 0.0
        %6184 = vmatprep.subr.mxu0 0.0
        %6185 = vmatpush1.msra.mxu0 0.0
        %6186 = vmatprep.subr.mxu0 0.0
        %6187 = vmatpush1.msra.mxu0 0.0
        %6188 = vmatprep.subr.mxu0 0.0
        %6189 = vmatpush1.msra.mxu0 0.0
        %6190 = vmatprep.subr.mxu0 0.0
        %6191 = vmatpush1.msra.mxu0 0.0
        %6192 = vmatprep.subr.mxu0 0.0
        %6193 = vmatpush1.msra.mxu0 0.0
        %6194 = vmatprep.subr.mxu0 0.0
        %6195 = vmatpush1.msra.mxu0 0.0
        %6196 = vmatprep.subr.mxu0 0.0
        %6197 = vmatpush1.msra.mxu0 0.0
        %6198 = vmatprep.subr.mxu0 0.0
        %6199 = vmatpush1.msra.mxu0 0.0
        %6200 = vmatprep.subr.mxu0 0.0
        %6201 = vmatpush1.msra.mxu0 0.0
        %6202 = vmatprep.subr.mxu0 0.0
        %6203 = vmatpush1.msra.mxu0 0.0
        %6204 = vmatprep.subr.mxu0 0.0
        %6205 = vmatpush1.msra.mxu0 0.0
        %6206 = vmatprep.subr.mxu0 0.0
        %6207 = vmatpush1.msra.mxu0 0.0
        %6208 = vmatprep.subr.mxu0 0.0
        %6209 = vmatpush1.msra.mxu0 0.0
        %6210 = vmatprep.subr.mxu0 0.0
        %6211 = vmatpush1.msra.mxu0 0.0
        %6212 = vmatprep.subr.mxu0 0.0
        %6213 = vmatpush1.msra.mxu0 0.0
        %6214 = vmatprep.mubr.f32.mxu0 0.0
        %6215 = vmatmul.mubr.f32.gmra.mrb[0].mxu0 %v6148
        %v6216 = vpop.f32.mrb[0].mxu0
        %v6217 = vadd.f32 0.0, %v6216
        %v6218 = vpop.f32.mrb[0].mxu0
        %6219 = vdwg.mxu0
        %6220 = vmatprep.subr.mxu0 0.0
        %6221 = vmatpush1.msra.mxu0 %v441
        %6222 = vmatprep.subr.mxu0 0.0
        %6223 = vmatpush1.msra.mxu0 %v5414
        %6224 = vmatprep.subr.mxu0 0.0
        %6225 = vmatpush1.msra.mxu0 0.0
        %6226 = vmatprep.subr.mxu0 0.0
        %6227 = vmatpush1.msra.mxu0 0.0
        %6228 = vmatprep.subr.mxu0 0.0
        %6229 = vmatpush1.msra.mxu0 0.0
        %6230 = vmatprep.subr.mxu0 0.0
        %6231 = vmatpush1.msra.mxu0 0.0
        %6232 = vmatprep.subr.mxu0 0.0
        %6233 = vmatpush1.msra.mxu0 0.0
        %6234 = vmatprep.subr.mxu0 0.0
        %6235 = vmatpush1.msra.mxu0 0.0
        %6236 = vmatprep.subr.mxu0 0.0
        %6237 = vmatpush1.msra.mxu0 0.0
        %6238 = vmatprep.subr.mxu0 0.0
        %6239 = vmatpush1.msra.mxu0 0.0
        %6240 = vmatprep.subr.mxu0 0.0
        %6241 = vmatpush1.msra.mxu0 0.0
        %6242 = vmatprep.subr.mxu0 0.0
        %6243 = vmatpush1.msra.mxu0 0.0
        %6244 = vmatprep.subr.mxu0 0.0
        %6245 = vmatpush1.msra.mxu0 0.0
        %6246 = vmatprep.subr.mxu0 0.0
        %6247 = vmatpush1.msra.mxu0 0.0
        %6248 = vmatprep.subr.mxu0 0.0
        %6249 = vmatpush1.msra.mxu0 0.0
        %6250 = vmatprep.subr.mxu0 0.0
        %6251 = vmatpush1.msra.mxu0 0.0
        %6252 = vmatprep.subr.mxu0 0.0
        %6253 = vmatpush1.msra.mxu0 0.0
        %6254 = vmatprep.subr.mxu0 0.0
        %6255 = vmatpush1.msra.mxu0 0.0
        %6256 = vmatprep.subr.mxu0 0.0
        %6257 = vmatpush1.msra.mxu0 0.0
        %6258 = vmatprep.subr.mxu0 0.0
        %6259 = vmatpush1.msra.mxu0 0.0
        %6260 = vmatprep.subr.mxu0 0.0
        %6261 = vmatpush1.msra.mxu0 0.0
        %6262 = vmatprep.subr.mxu0 0.0
        %6263 = vmatpush1.msra.mxu0 0.0
        %6264 = vmatprep.subr.mxu0 0.0
        %6265 = vmatpush1.msra.mxu0 0.0
        %6266 = vmatprep.subr.mxu0 0.0
        %6267 = vmatpush1.msra.mxu0 0.0
        %6268 = vmatprep.subr.mxu0 0.0
        %6269 = vmatpush1.msra.mxu0 0.0
        %6270 = vmatprep.subr.mxu0 0.0
        %6271 = vmatpush1.msra.mxu0 0.0
        %6272 = vmatprep.subr.mxu0 0.0
        %6273 = vmatpush1.msra.mxu0 0.0
        %6274 = vmatprep.subr.mxu0 0.0
        %6275 = vmatpush1.msra.mxu0 0.0
        %6276 = vmatprep.subr.mxu0 0.0
        %6277 = vmatpush1.msra.mxu0 0.0
        %6278 = vmatprep.subr.mxu0 0.0
        %6279 = vmatpush1.msra.mxu0 0.0
        %6280 = vmatprep.subr.mxu0 0.0
        %6281 = vmatpush1.msra.mxu0 0.0
        %6282 = vmatprep.subr.mxu0 0.0
        %6283 = vmatpush1.msra.mxu0 0.0
        %6284 = vmatprep.mubr.f32.mxu0 0.0
        %6285 = vmatmul.mubr.f32.gmra.mrb[0].mxu0 %v6148
        %v6286 = vpop.f32.mrb[0].mxu0
        %v6287 = vadd.f32 0.0, %v6286
        %v6288 = vpop.f32.mrb[0].mxu0
        %6289 = vdwg.mxu0
        %v6290 = vmax.f32 %v6217, %v6287
        %s6291 = sld [smem:[#allocation8 + $0x2]]
        %v6292 = vstv %s6291
        %s6293 = sld [smem:[#allocation7 + $0x48]]
        %v6294 = vstv %s6293
        %v6295 = vmul.f32 %v1516, %v6294
        %v6296 = vmul.f32 %v1517, %v6294
        %v6297 = vadd.f32 %v6292, %v6295
        %v6298 = vadd.f32 %v6292, %v6296
        %s6299 = sld [smem:[#allocation7 + $0x49]]
        %v6300 = vstv %s6299
        %v6301 = vmul.f32 %v1516, %v6300
        %v6302 = vmul.f32 %v1517, %v6300
        %6305 = vrot.lane.b32.xlu0 %v6301, 127
        %v6306 = vpop.permute.xlu0 %6305
        %6307 = vrot.lane.b32.xlu0 %v6302, 127
        %v6308 = vpop.permute.xlu0 %6307
        %v6311 = vadd.f32 %v6297, %v6306
        %v6312 = vadd.f32 %v6298, %v6308
        %s6313 = sld [smem:[#allocation7 + $0x4a]]
        %v6314 = vstv %s6313
        %v6315 = vmul.f32 %v1516, %v6314
        %v6316 = vmul.f32 %v1517, %v6314
        %6319 = vrot.lane.b32.xlu0 %v6315, 126
        %v6320 = vpop.permute.xlu0 %6319
        %6321 = vrot.lane.b32.xlu0 %v6316, 126
        %v6322 = vpop.permute.xlu0 %6321
        %v6325 = vadd.f32 %v6311, %v6320
        %v6326 = vadd.f32 %v6312, %v6322
        %s6327 = sld [smem:[#allocation7 + $0x4b]]
        %v6328 = vstv %s6327
        %v6329 = vmul.f32 %v1516, %v6328
        %v6330 = vmul.f32 %v1517, %v6328
        %v6333 = vrot.slane %v6329, 1
        %v6334 = vrot.slane %v6330, 1
        %v6335 = vsel %vm519, %v6333, %v6334
        %v6338 = vadd.f32 %v6325, %v6335
        %v6339 = vadd.f32 %v6326, %v6334
        %s6340 = sld [smem:[#allocation7 + $0x4c]]
        %v6341 = vstv %s6340
        %v6342 = vmul.f32 %v1516, %v6341
        %v6343 = vmul.f32 %v1517, %v6341
        %v6346 = vrot.slane %v6342, 1
        %v6347 = vrot.slane %v6343, 1
        %v6348 = vsel %vm519, %v6346, %v6347
        %6349 = vrot.lane.b32.xlu0 %v6348, 127
        %v6350 = vpop.permute.xlu0 %6349
        %6351 = vrot.lane.b32.xlu0 %v6347, 127
        %v6352 = vpop.permute.xlu0 %6351
        %v6355 = vadd.f32 %v6338, %v6350
        %v6356 = vadd.f32 %v6339, %v6352
        %s6357 = sld [smem:[#allocation7 + $0x4d]]
        %v6358 = vstv %s6357
        %v6359 = vmul.f32 %v1516, %v6358
        %v6360 = vmul.f32 %v1517, %v6358
        %v6363 = vrot.slane %v6359, 1
        %v6364 = vrot.slane %v6360, 1
        %v6365 = vsel %vm519, %v6363, %v6364
        %6366 = vrot.lane.b32.xlu0 %v6365, 126
        %v6367 = vpop.permute.xlu0 %6366
        %6368 = vrot.lane.b32.xlu0 %v6364, 126
        %v6369 = vpop.permute.xlu0 %6368
        %v6372 = vadd.f32 %v6355, %v6367
        %v6373 = vadd.f32 %v6356, %v6369
        %s6374 = sld [smem:[#allocation7 + $0x4e]]
        %v6375 = vstv %s6374
        %v6376 = vmul.f32 %v1516, %v6375
        %v6377 = vmul.f32 %v1517, %v6375
        %v6380 = vrot.slane %v6376, 2
        %v6381 = vrot.slane %v6377, 2
        %v6382 = vsel %vm611, %v6380, %v6381
        %v6385 = vadd.f32 %v6372, %v6382
        %v6386 = vadd.f32 %v6373, %v6381
        %s6387 = sld [smem:[#allocation7 + $0x4f]]
        %v6388 = vstv %s6387
        %v6389 = vmul.f32 %v1516, %v6388
        %v6390 = vmul.f32 %v1517, %v6388
        %v6393 = vrot.slane %v6389, 2
        %v6394 = vrot.slane %v6390, 2
        %v6395 = vsel %vm611, %v6393, %v6394
        %6396 = vrot.lane.b32.xlu0 %v6395, 127
        %v6397 = vpop.permute.xlu0 %6396
        %6398 = vrot.lane.b32.xlu0 %v6394, 127
        %v6399 = vpop.permute.xlu0 %6398
        %v6402 = vadd.f32 %v6385, %v6397
        %v6403 = vadd.f32 %v6386, %v6399
        %s6404 = sld [smem:[#allocation7 + $0x50]]
        %v6405 = vstv %s6404
        %v6406 = vmul.f32 %v1516, %v6405
        %v6407 = vmul.f32 %v1517, %v6405
        %v6410 = vrot.slane %v6406, 2
        %v6411 = vrot.slane %v6407, 2
        %v6412 = vsel %vm611, %v6410, %v6411
        %6413 = vrot.lane.b32.xlu0 %v6412, 126
        %v6414 = vpop.permute.xlu0 %6413
        %6415 = vrot.lane.b32.xlu0 %v6411, 126
        %v6416 = vpop.permute.xlu0 %6415
        %v6419 = vadd.f32 %v6402, %v6414
        %v6420 = vadd.f32 %v6403, %v6416
        %s6421 = sld [smem:[#allocation7 + $0x51]]
        %v6422 = vstv %s6421
        %v6423 = vmul.f32 %v2567, %v6422
        %v6424 = vmul.f32 %v2568, %v6422
        %v6425 = vadd.f32 %v6419, %v6423
        %v6426 = vadd.f32 %v6420, %v6424
        %s6427 = sld [smem:[#allocation7 + $0x52]]
        %v6428 = vstv %s6427
        %v6429 = vmul.f32 %v2567, %v6428
        %v6430 = vmul.f32 %v2568, %v6428
        %6433 = vrot.lane.b32.xlu0 %v6429, 127
        %v6434 = vpop.permute.xlu0 %6433
        %6435 = vrot.lane.b32.xlu0 %v6430, 127
        %v6436 = vpop.permute.xlu0 %6435
        %v6439 = vadd.f32 %v6425, %v6434
        %v6440 = vadd.f32 %v6426, %v6436
        %s6441 = sld [smem:[#allocation7 + $0x53]]
        %v6442 = vstv %s6441
        %v6443 = vmul.f32 %v2567, %v6442
        %v6444 = vmul.f32 %v2568, %v6442
        %6447 = vrot.lane.b32.xlu0 %v6443, 126
        %v6448 = vpop.permute.xlu0 %6447
        %6449 = vrot.lane.b32.xlu0 %v6444, 126
        %v6450 = vpop.permute.xlu0 %6449
        %v6453 = vadd.f32 %v6439, %v6448
        %v6454 = vadd.f32 %v6440, %v6450
        %s6455 = sld [smem:[#allocation7 + $0x54]]
        %v6456 = vstv %s6455
        %v6457 = vmul.f32 %v2567, %v6456
        %v6458 = vmul.f32 %v2568, %v6456
        %v6461 = vrot.slane %v6457, 1
        %v6462 = vrot.slane %v6458, 1
        %v6463 = vsel %vm519, %v6461, %v6462
        %v6466 = vadd.f32 %v6453, %v6463
        %v6467 = vadd.f32 %v6454, %v6462
        %s6468 = sld [smem:[#allocation7 + $0x55]]
        %v6469 = vstv %s6468
        %v6470 = vmul.f32 %v2567, %v6469
        %v6471 = vmul.f32 %v2568, %v6469
        %v6474 = vrot.slane %v6470, 1
        %v6475 = vrot.slane %v6471, 1
        %v6476 = vsel %vm519, %v6474, %v6475
        %6477 = vrot.lane.b32.xlu0 %v6476, 127
        %v6478 = vpop.permute.xlu0 %6477
        %6479 = vrot.lane.b32.xlu0 %v6475, 127
        %v6480 = vpop.permute.xlu0 %6479
        %v6483 = vadd.f32 %v6466, %v6478
        %v6484 = vadd.f32 %v6467, %v6480
        %s6485 = sld [smem:[#allocation7 + $0x56]]
        %v6486 = vstv %s6485
        %v6487 = vmul.f32 %v2567, %v6486
        %v6488 = vmul.f32 %v2568, %v6486
        %v6491 = vrot.slane %v6487, 1
        %v6492 = vrot.slane %v6488, 1
        %v6493 = vsel %vm519, %v6491, %v6492
        %6494 = vrot.lane.b32.xlu0 %v6493, 126
        %v6495 = vpop.permute.xlu0 %6494
        %6496 = vrot.lane.b32.xlu0 %v6492, 126
        %v6497 = vpop.permute.xlu0 %6496
        %v6500 = vadd.f32 %v6483, %v6495
        %v6501 = vadd.f32 %v6484, %v6497
        %s6502 = sld [smem:[#allocation7 + $0x57]]
        %v6503 = vstv %s6502
        %v6504 = vmul.f32 %v2567, %v6503
        %v6505 = vmul.f32 %v2568, %v6503
        %v6508 = vrot.slane %v6504, 2
        %v6509 = vrot.slane %v6505, 2
        %v6510 = vsel %vm611, %v6508, %v6509
        %v6513 = vadd.f32 %v6500, %v6510
        %v6514 = vadd.f32 %v6501, %v6509
        %s6515 = sld [smem:[#allocation7 + $0x58]]
        %v6516 = vstv %s6515
        %v6517 = vmul.f32 %v2567, %v6516
        %v6518 = vmul.f32 %v2568, %v6516
        %v6521 = vrot.slane %v6517, 2
        %v6522 = vrot.slane %v6518, 2
        %v6523 = vsel %vm611, %v6521, %v6522
        %6524 = vrot.lane.b32.xlu0 %v6523, 127
        %v6525 = vpop.permute.xlu0 %6524
        %6526 = vrot.lane.b32.xlu0 %v6522, 127
        %v6527 = vpop.permute.xlu0 %6526
        %v6530 = vadd.f32 %v6513, %v6525
        %v6531 = vadd.f32 %v6514, %v6527
        %s6532 = sld [smem:[#allocation7 + $0x59]]
        %v6533 = vstv %s6532
        %v6534 = vmul.f32 %v2567, %v6533
        %v6535 = vmul.f32 %v2568, %v6533
        %v6538 = vrot.slane %v6534, 2
        %v6539 = vrot.slane %v6535, 2
        %v6540 = vsel %vm611, %v6538, %v6539
        %6541 = vrot.lane.b32.xlu0 %v6540, 126
        %v6542 = vpop.permute.xlu0 %6541
        %6543 = vrot.lane.b32.xlu0 %v6539, 126
        %v6544 = vpop.permute.xlu0 %6543
        %v6547 = vadd.f32 %v6530, %v6542
        %v6548 = vadd.f32 %v6531, %v6544
        %s6549 = sld [smem:[#allocation7 + $0x5a]]
        %v6550 = vstv %s6549
        %v6551 = vmul.f32 %v3618, %v6550
        %v6552 = vmul.f32 %v3619, %v6550
        %v6553 = vadd.f32 %v6547, %v6551
        %v6554 = vadd.f32 %v6548, %v6552
        %s6555 = sld [smem:[#allocation7 + $0x5b]]
        %v6556 = vstv %s6555
        %v6557 = vmul.f32 %v3618, %v6556
        %v6558 = vmul.f32 %v3619, %v6556
        %6561 = vrot.lane.b32.xlu0 %v6557, 127
        %v6562 = vpop.permute.xlu0 %6561
        %6563 = vrot.lane.b32.xlu0 %v6558, 127
        %v6564 = vpop.permute.xlu0 %6563
        %v6567 = vadd.f32 %v6553, %v6562
        %v6568 = vadd.f32 %v6554, %v6564
        %s6569 = sld [smem:[#allocation7 + $0x5c]]
        %v6570 = vstv %s6569
        %v6571 = vmul.f32 %v3618, %v6570
        %v6572 = vmul.f32 %v3619, %v6570
        %6575 = vrot.lane.b32.xlu0 %v6571, 126
        %v6576 = vpop.permute.xlu0 %6575
        %6577 = vrot.lane.b32.xlu0 %v6572, 126
        %v6578 = vpop.permute.xlu0 %6577
        %v6581 = vadd.f32 %v6567, %v6576
        %v6582 = vadd.f32 %v6568, %v6578
        %s6583 = sld [smem:[#allocation7 + $0x5d]]
        %v6584 = vstv %s6583
        %v6585 = vmul.f32 %v3618, %v6584
        %v6586 = vmul.f32 %v3619, %v6584
        %v6589 = vrot.slane %v6585, 1
        %v6590 = vrot.slane %v6586, 1
        %v6591 = vsel %vm519, %v6589, %v6590
        %v6594 = vadd.f32 %v6581, %v6591
        %v6595 = vadd.f32 %v6582, %v6590
        %s6596 = sld [smem:[#allocation7 + $0x5e]]
        %v6597 = vstv %s6596
        %v6598 = vmul.f32 %v3618, %v6597
        %v6599 = vmul.f32 %v3619, %v6597
        %v6602 = vrot.slane %v6598, 1
        %v6603 = vrot.slane %v6599, 1
        %v6604 = vsel %vm519, %v6602, %v6603
        %6605 = vrot.lane.b32.xlu0 %v6604, 127
        %v6606 = vpop.permute.xlu0 %6605
        %6607 = vrot.lane.b32.xlu0 %v6603, 127
        %v6608 = vpop.permute.xlu0 %6607
        %v6611 = vadd.f32 %v6594, %v6606
        %v6612 = vadd.f32 %v6595, %v6608
        %s6613 = sld [smem:[#allocation7 + $0x5f]]
        %v6614 = vstv %s6613
        %v6615 = vmul.f32 %v3618, %v6614
        %v6616 = vmul.f32 %v3619, %v6614
        %v6619 = vrot.slane %v6615, 1
        %v6620 = vrot.slane %v6616, 1
        %v6621 = vsel %vm519, %v6619, %v6620
        %6622 = vrot.lane.b32.xlu0 %v6621, 126
        %v6623 = vpop.permute.xlu0 %6622
        %6624 = vrot.lane.b32.xlu0 %v6620, 126
        %v6625 = vpop.permute.xlu0 %6624
        %v6628 = vadd.f32 %v6611, %v6623
        %v6629 = vadd.f32 %v6612, %v6625
        %s6630 = sld [smem:[#allocation7 + $0x60]]
        %v6631 = vstv %s6630
        %v6632 = vmul.f32 %v3618, %v6631
        %v6633 = vmul.f32 %v3619, %v6631
        %v6636 = vrot.slane %v6632, 2
        %v6637 = vrot.slane %v6633, 2
        %v6638 = vsel %vm611, %v6636, %v6637
        %v6641 = vadd.f32 %v6628, %v6638
        %v6642 = vadd.f32 %v6629, %v6637
        %s6643 = sld [smem:[#allocation7 + $0x61]]
        %v6644 = vstv %s6643
        %v6645 = vmul.f32 %v3618, %v6644
        %v6646 = vmul.f32 %v3619, %v6644
        %v6649 = vrot.slane %v6645, 2
        %v6650 = vrot.slane %v6646, 2
        %v6651 = vsel %vm611, %v6649, %v6650
        %6652 = vrot.lane.b32.xlu0 %v6651, 127
        %v6653 = vpop.permute.xlu0 %6652
        %6654 = vrot.lane.b32.xlu0 %v6650, 127
        %v6655 = vpop.permute.xlu0 %6654
        %v6658 = vadd.f32 %v6641, %v6653
        %v6659 = vadd.f32 %v6642, %v6655
        %s6660 = sld [smem:[#allocation7 + $0x62]]
        %v6661 = vstv %s6660
        %v6662 = vmul.f32 %v3618, %v6661
        %v6663 = vmul.f32 %v3619, %v6661
        %v6666 = vrot.slane %v6662, 2
        %v6667 = vrot.slane %v6663, 2
        %v6668 = vsel %vm611, %v6666, %v6667
        %6669 = vrot.lane.b32.xlu0 %v6668, 126
        %v6670 = vpop.permute.xlu0 %6669
        %6671 = vrot.lane.b32.xlu0 %v6667, 126
        %v6672 = vpop.permute.xlu0 %6671
        %v6675 = vadd.f32 %v6658, %v6670
        %v6676 = vadd.f32 %v6659, %v6672
        %s6677 = sld [smem:[#allocation7 + $0x63]]
        %v6678 = vstv %s6677
        %v6679 = vmul.f32 %v4669, %v6678
        %v6680 = vmul.f32 %v4670, %v6678
        %v6681 = vadd.f32 %v6675, %v6679
        %v6682 = vadd.f32 %v6676, %v6680
        %s6683 = sld [smem:[#allocation7 + $0x64]]
        %v6684 = vstv %s6683
        %v6685 = vmul.f32 %v4669, %v6684
        %v6686 = vmul.f32 %v4670, %v6684
        %6689 = vrot.lane.b32.xlu0 %v6685, 127
        %v6690 = vpop.permute.xlu0 %6689
        %6691 = vrot.lane.b32.xlu0 %v6686, 127
        %v6692 = vpop.permute.xlu0 %6691
        %v6695 = vadd.f32 %v6681, %v6690
        %v6696 = vadd.f32 %v6682, %v6692
        %s6697 = sld [smem:[#allocation7 + $0x65]]
        %v6698 = vstv %s6697
        %v6699 = vmul.f32 %v4669, %v6698
        %v6700 = vmul.f32 %v4670, %v6698
        %6703 = vrot.lane.b32.xlu0 %v6699, 126
        %v6704 = vpop.permute.xlu0 %6703
        %6705 = vrot.lane.b32.xlu0 %v6700, 126
        %v6706 = vpop.permute.xlu0 %6705
        %v6709 = vadd.f32 %v6695, %v6704
        %v6710 = vadd.f32 %v6696, %v6706
        %s6711 = sld [smem:[#allocation7 + $0x66]]
        %v6712 = vstv %s6711
        %v6713 = vmul.f32 %v4669, %v6712
        %v6714 = vmul.f32 %v4670, %v6712
        %v6717 = vrot.slane %v6713, 1
        %v6718 = vrot.slane %v6714, 1
        %v6719 = vsel %vm519, %v6717, %v6718
        %v6722 = vadd.f32 %v6709, %v6719
        %v6723 = vadd.f32 %v6710, %v6718
        %s6724 = sld [smem:[#allocation7 + $0x67]]
        %v6725 = vstv %s6724
        %v6726 = vmul.f32 %v4669, %v6725
        %v6727 = vmul.f32 %v4670, %v6725
        %v6730 = vrot.slane %v6726, 1
        %v6731 = vrot.slane %v6727, 1
        %v6732 = vsel %vm519, %v6730, %v6731
        %6733 = vrot.lane.b32.xlu0 %v6732, 127
        %v6734 = vpop.permute.xlu0 %6733
        %6735 = vrot.lane.b32.xlu0 %v6731, 127
        %v6736 = vpop.permute.xlu0 %6735
        %v6739 = vadd.f32 %v6722, %v6734
        %v6740 = vadd.f32 %v6723, %v6736
        %s6741 = sld [smem:[#allocation7 + $0x68]]
        %v6742 = vstv %s6741
        %v6743 = vmul.f32 %v4669, %v6742
        %v6744 = vmul.f32 %v4670, %v6742
        %v6747 = vrot.slane %v6743, 1
        %v6748 = vrot.slane %v6744, 1
        %v6749 = vsel %vm519, %v6747, %v6748
        %6750 = vrot.lane.b32.xlu0 %v6749, 126
        %v6751 = vpop.permute.xlu0 %6750
        %6752 = vrot.lane.b32.xlu0 %v6748, 126
        %v6753 = vpop.permute.xlu0 %6752
        %v6756 = vadd.f32 %v6739, %v6751
        %v6757 = vadd.f32 %v6740, %v6753
        %s6758 = sld [smem:[#allocation7 + $0x69]]
        %v6759 = vstv %s6758
        %v6760 = vmul.f32 %v4669, %v6759
        %v6761 = vmul.f32 %v4670, %v6759
        %v6764 = vrot.slane %v6760, 2
        %v6765 = vrot.slane %v6761, 2
        %v6766 = vsel %vm611, %v6764, %v6765
        %v6769 = vadd.f32 %v6756, %v6766
        %v6770 = vadd.f32 %v6757, %v6765
        %s6771 = sld [smem:[#allocation7 + $0x6a]]
        %v6772 = vstv %s6771
        %v6773 = vmul.f32 %v4669, %v6772
        %v6774 = vmul.f32 %v4670, %v6772
        %v6777 = vrot.slane %v6773, 2
        %v6778 = vrot.slane %v6774, 2
        %v6779 = vsel %vm611, %v6777, %v6778
        %6780 = vrot.lane.b32.xlu0 %v6779, 127
        %v6781 = vpop.permute.xlu0 %6780
        %6782 = vrot.lane.b32.xlu0 %v6778, 127
        %v6783 = vpop.permute.xlu0 %6782
        %v6786 = vadd.f32 %v6769, %v6781
        %v6787 = vadd.f32 %v6770, %v6783
        %s6788 = sld [smem:[#allocation7 + $0x6b]]
        %v6789 = vstv %s6788
        %v6790 = vmul.f32 %v4669, %v6789
        %v6791 = vmul.f32 %v4670, %v6789
        %v6794 = vrot.slane %v6790, 2
        %v6795 = vrot.slane %v6791, 2
        %v6796 = vsel %vm611, %v6794, %v6795
        %6797 = vrot.lane.b32.xlu0 %v6796, 126
        %v6798 = vpop.permute.xlu0 %6797
        %6799 = vrot.lane.b32.xlu0 %v6795, 126
        %v6800 = vpop.permute.xlu0 %6799
        %v6803 = vadd.f32 %v6786, %v6798
        %v6804 = vadd.f32 %v6787, %v6800
        %v6805 = vmax.f32 %v6803, 0.0
        %v6806 = vmax.f32 %v6804, 0.0
        %v6808 = vsel %vm5190, %v6806, 0
        %6810 = vmatprep.subr.mxu0 0.0
        %6811 = vmatpush1.msra.mxu0 %v6805
        %6812 = vmatprep.subr.mxu0 0.0
        %6813 = vmatpush1.msra.mxu0 %v6808
        %6814 = vmatprep.subr.mxu0 0.0
        %6815 = vmatpush1.msra.mxu0 0.0
        %6816 = vmatprep.subr.mxu0 0.0
        %6817 = vmatpush1.msra.mxu0 0.0
        %6818 = vmatprep.subr.mxu0 0.0
        %6819 = vmatpush1.msra.mxu0 0.0
        %6820 = vmatprep.subr.mxu0 0.0
        %6821 = vmatpush1.msra.mxu0 0.0
        %6822 = vmatprep.subr.mxu0 0.0
        %6823 = vmatpush1.msra.mxu0 0.0
        %6824 = vmatprep.subr.mxu0 0.0
        %6825 = vmatpush1.msra.mxu0 0.0
        %6826 = vmatprep.subr.mxu0 0.0
        %6827 = vmatpush1.msra.mxu0 0.0
        %6828 = vmatprep.subr.mxu0 0.0
        %6829 = vmatpush1.msra.mxu0 0.0
        %6830 = vmatprep.subr.mxu0 0.0
        %6831 = vmatpush1.msra.mxu0 0.0
        %6832 = vmatprep.subr.mxu0 0.0
        %6833 = vmatpush1.msra.mxu0 0.0
        %6834 = vmatprep.subr.mxu0 0.0
        %6835 = vmatpush1.msra.mxu0 0.0
        %6836 = vmatprep.subr.mxu0 0.0
        %6837 = vmatpush1.msra.mxu0 0.0
        %6838 = vmatprep.subr.mxu0 0.0
        %6839 = vmatpush1.msra.mxu0 0.0
        %6840 = vmatprep.subr.mxu0 0.0
        %6841 = vmatpush1.msra.mxu0 0.0
        %6842 = vmatprep.subr.mxu0 0.0
        %6843 = vmatpush1.msra.mxu0 0.0
        %6844 = vmatprep.subr.mxu0 0.0
        %6845 = vmatpush1.msra.mxu0 0.0
        %6846 = vmatprep.subr.mxu0 0.0
        %6847 = vmatpush1.msra.mxu0 0.0
        %6848 = vmatprep.subr.mxu0 0.0
        %6849 = vmatpush1.msra.mxu0 0.0
        %6850 = vmatprep.subr.mxu0 0.0
        %6851 = vmatpush1.msra.mxu0 0.0
        %6852 = vmatprep.subr.mxu0 0.0
        %6853 = vmatpush1.msra.mxu0 0.0
        %6854 = vmatprep.subr.mxu0 0.0
        %6855 = vmatpush1.msra.mxu0 0.0
        %6856 = vmatprep.subr.mxu0 0.0
        %6857 = vmatpush1.msra.mxu0 0.0
        %6858 = vmatprep.subr.mxu0 0.0
        %6859 = vmatpush1.msra.mxu0 0.0
        %6860 = vmatprep.subr.mxu0 0.0
        %6861 = vmatpush1.msra.mxu0 0.0
        %6862 = vmatprep.subr.mxu0 0.0
        %6863 = vmatpush1.msra.mxu0 0.0
        %6864 = vmatprep.subr.mxu0 0.0
        %6865 = vmatpush1.msra.mxu0 0.0
        %6866 = vmatprep.subr.mxu0 0.0
        %6867 = vmatpush1.msra.mxu0 0.0
        %6868 = vmatprep.subr.mxu0 0.0
        %6869 = vmatpush1.msra.mxu0 0.0
        %6870 = vmatprep.subr.mxu0 0.0
        %6871 = vmatpush1.msra.mxu0 0.0
        %6872 = vmatprep.subr.mxu0 0.0
        %6873 = vmatpush1.msra.mxu0 0.0
        %6874 = vmatprep.mubr.f32.mxu0 0.0
        %6875 = vmatmul.mubr.f32.gmra.mrb[0].mxu0 %v5188
        %v6876 = vpop.f32.mrb[0].mxu0
        %v6877 = vadd.f32 0.0, %v6876
        %v6878 = vpop.f32.mrb[0].mxu0
        %6879 = vdwg.mxu0
        %6880 = vmatprep.subr.mxu0 0.0
        %6881 = vmatpush1.msra.mxu0 %v6805
        %6882 = vmatprep.subr.mxu0 0.0
        %6883 = vmatpush1.msra.mxu0 %v6808
        %6884 = vmatprep.subr.mxu0 0.0
        %6885 = vmatpush1.msra.mxu0 0.0
        %6886 = vmatprep.subr.mxu0 0.0
        %6887 = vmatpush1.msra.mxu0 0.0
        %6888 = vmatprep.subr.mxu0 0.0
        %6889 = vmatpush1.msra.mxu0 0.0
        %6890 = vmatprep.subr.mxu0 0.0
        %6891 = vmatpush1.msra.mxu0 0.0
        %6892 = vmatprep.subr.mxu0 0.0
        %6893 = vmatpush1.msra.mxu0 0.0
        %6894 = vmatprep.subr.mxu0 0.0
        %6895 = vmatpush1.msra.mxu0 0.0
        %6896 = vmatprep.subr.mxu0 0.0
        %6897 = vmatpush1.msra.mxu0 0.0
        %6898 = vmatprep.subr.mxu0 0.0
        %6899 = vmatpush1.msra.mxu0 0.0
        %6900 = vmatprep.subr.mxu0 0.0
        %6901 = vmatpush1.msra.mxu0 0.0
        %6902 = vmatprep.subr.mxu0 0.0
        %6903 = vmatpush1.msra.mxu0 0.0
        %6904 = vmatprep.subr.mxu0 0.0
        %6905 = vmatpush1.msra.mxu0 0.0
        %6906 = vmatprep.subr.mxu0 0.0
        %6907 = vmatpush1.msra.mxu0 0.0
        %6908 = vmatprep.subr.mxu0 0.0
        %6909 = vmatpush1.msra.mxu0 0.0
        %6910 = vmatprep.subr.mxu0 0.0
        %6911 = vmatpush1.msra.mxu0 0.0
        %6912 = vmatprep.subr.mxu0 0.0
        %6913 = vmatpush1.msra.mxu0 0.0
        %6914 = vmatprep.subr.mxu0 0.0
        %6915 = vmatpush1.msra.mxu0 0.0
        %6916 = vmatprep.subr.mxu0 0.0
        %6917 = vmatpush1.msra.mxu0 0.0
        %6918 = vmatprep.subr.mxu0 0.0
        %6919 = vmatpush1.msra.mxu0 0.0
        %6920 = vmatprep.subr.mxu0 0.0
        %6921 = vmatpush1.msra.mxu0 0.0
        %6922 = vmatprep.subr.mxu0 0.0
        %6923 = vmatpush1.msra.mxu0 0.0
        %6924 = vmatprep.subr.mxu0 0.0
        %6925 = vmatpush1.msra.mxu0 0.0
        %6926 = vmatprep.subr.mxu0 0.0
        %6927 = vmatpush1.msra.mxu0 0.0
        %6928 = vmatprep.subr.mxu0 0.0
        %6929 = vmatpush1.msra.mxu0 0.0
        %6930 = vmatprep.subr.mxu0 0.0
        %6931 = vmatpush1.msra.mxu0 0.0
        %6932 = vmatprep.subr.mxu0 0.0
        %6933 = vmatpush1.msra.mxu0 0.0
        %6934 = vmatprep.subr.mxu0 0.0
        %6935 = vmatpush1.msra.mxu0 0.0
        %6936 = vmatprep.subr.mxu0 0.0
        %6937 = vmatpush1.msra.mxu0 0.0
        %6938 = vmatprep.subr.mxu0 0.0
        %6939 = vmatpush1.msra.mxu0 0.0
        %6940 = vmatprep.subr.mxu0 0.0
        %6941 = vmatpush1.msra.mxu0 0.0
        %6942 = vmatprep.subr.mxu0 0.0
        %6943 = vmatpush1.msra.mxu0 0.0
        %6944 = vmatprep.mubr.f32.mxu0 0.0
        %6945 = vmatmul.mubr.f32.gmra.mrb[0].mxu0 %v5264
        %v6946 = vpop.f32.mrb[0].mxu0
        %v6947 = vadd.f32 0.0, %v6946
        %v6948 = vpop.f32.mrb[0].mxu0
        %6949 = vdwg.mxu0
        %v6950 = vmax.f32 %v6877, %v6947
        %v6952 = vsel %vm5187, %v6950, 0
        %6954 = vmatprep.subr.mxu0 0.0
        %6955 = vmatpush1.msra.mxu0 %v428
        %6956 = vmatprep.subr.mxu0 0.0
        %6957 = vmatpush1.msra.mxu0 %v5341
        %6958 = vmatprep.subr.mxu0 0.0
        %6959 = vmatpush1.msra.mxu0 0.0
        %6960 = vmatprep.subr.mxu0 0.0
        %6961 = vmatpush1.msra.mxu0 0.0
        %6962 = vmatprep.subr.mxu0 0.0
        %6963 = vmatpush1.msra.mxu0 0.0
        %6964 = vmatprep.subr.mxu0 0.0
        %6965 = vmatpush1.msra.mxu0 0.0
        %6966 = vmatprep.subr.mxu0 0.0
        %6967 = vmatpush1.msra.mxu0 0.0
        %6968 = vmatprep.subr.mxu0 0.0
        %6969 = vmatpush1.msra.mxu0 0.0
        %6970 = vmatprep.subr.mxu0 0.0
        %6971 = vmatpush1.msra.mxu0 0.0
        %6972 = vmatprep.subr.mxu0 0.0
        %6973 = vmatpush1.msra.mxu0 0.0
        %6974 = vmatprep.subr.mxu0 0.0
        %6975 = vmatpush1.msra.mxu0 0.0
        %6976 = vmatprep.subr.mxu0 0.0
        %6977 = vmatpush1.msra.mxu0 0.0
        %6978 = vmatprep.subr.mxu0 0.0
        %6979 = vmatpush1.msra.mxu0 0.0
        %6980 = vmatprep.subr.mxu0 0.0
        %6981 = vmatpush1.msra.mxu0 0.0
        %6982 = vmatprep.subr.mxu0 0.0
        %6983 = vmatpush1.msra.mxu0 0.0
        %6984 = vmatprep.subr.mxu0 0.0
        %6985 = vmatpush1.msra.mxu0 0.0
        %6986 = vmatprep.subr.mxu0 0.0
        %6987 = vmatpush1.msra.mxu0 0.0
        %6988 = vmatprep.subr.mxu0 0.0
        %6989 = vmatpush1.msra.mxu0 0.0
        %6990 = vmatprep.subr.mxu0 0.0
        %6991 = vmatpush1.msra.mxu0 0.0
        %6992 = vmatprep.subr.mxu0 0.0
        %6993 = vmatpush1.msra.mxu0 0.0
        %6994 = vmatprep.subr.mxu0 0.0
        %6995 = vmatpush1.msra.mxu0 0.0
        %6996 = vmatprep.subr.mxu0 0.0
        %6997 = vmatpush1.msra.mxu0 0.0
        %6998 = vmatprep.subr.mxu0 0.0
        %6999 = vmatpush1.msra.mxu0 0.0
        %7000 = vmatprep.subr.mxu0 0.0
        %7001 = vmatpush1.msra.mxu0 0.0
        %7002 = vmatprep.subr.mxu0 0.0
        %7003 = vmatpush1.msra.mxu0 0.0
        %7004 = vmatprep.subr.mxu0 0.0
        %7005 = vmatpush1.msra.mxu0 0.0
        %7006 = vmatprep.subr.mxu0 0.0
        %7007 = vmatpush1.msra.mxu0 0.0
        %7008 = vmatprep.subr.mxu0 0.0
        %7009 = vmatpush1.msra.mxu0 0.0
        %7010 = vmatprep.subr.mxu0 0.0
        %7011 = vmatpush1.msra.mxu0 0.0
        %7012 = vmatprep.subr.mxu0 0.0
        %7013 = vmatpush1.msra.mxu0 0.0
        %7014 = vmatprep.subr.mxu0 0.0
        %7015 = vmatpush1.msra.mxu0 0.0
        %7016 = vmatprep.subr.mxu0 0.0
        %7017 = vmatpush1.msra.mxu0 0.0
        %7018 = vmatprep.mubr.f32.mxu0 0.0
        %7019 = vmatmul.mubr.f32.gmra.mrb[0].mxu0 %v6952
        %v7020 = vpop.f32.mrb[0].mxu0
        %v7021 = vadd.f32 0.0, %v7020
        %v7022 = vpop.f32.mrb[0].mxu0
        %7023 = vdwg.mxu0
        %7024 = vmatprep.subr.mxu0 0.0
        %7025 = vmatpush1.msra.mxu0 %v441
        %7026 = vmatprep.subr.mxu0 0.0
        %7027 = vmatpush1.msra.mxu0 %v5414
        %7028 = vmatprep.subr.mxu0 0.0
        %7029 = vmatpush1.msra.mxu0 0.0
        %7030 = vmatprep.subr.mxu0 0.0
        %7031 = vmatpush1.msra.mxu0 0.0
        %7032 = vmatprep.subr.mxu0 0.0
        %7033 = vmatpush1.msra.mxu0 0.0
        %7034 = vmatprep.subr.mxu0 0.0
        %7035 = vmatpush1.msra.mxu0 0.0
        %7036 = vmatprep.subr.mxu0 0.0
        %7037 = vmatpush1.msra.mxu0 0.0
        %7038 = vmatprep.subr.mxu0 0.0
        %7039 = vmatpush1.msra.mxu0 0.0
        %7040 = vmatprep.subr.mxu0 0.0
        %7041 = vmatpush1.msra.mxu0 0.0
        %7042 = vmatprep.subr.mxu0 0.0
        %7043 = vmatpush1.msra.mxu0 0.0
        %7044 = vmatprep.subr.mxu0 0.0
        %7045 = vmatpush1.msra.mxu0 0.0
        %7046 = vmatprep.subr.mxu0 0.0
        %7047 = vmatpush1.msra.mxu0 0.0
        %7048 = vmatprep.subr.mxu0 0.0
        %7049 = vmatpush1.msra.mxu0 0.0
        %7050 = vmatprep.subr.mxu0 0.0
        %7051 = vmatpush1.msra.mxu0 0.0
        %7052 = vmatprep.subr.mxu0 0.0
        %7053 = vmatpush1.msra.mxu0 0.0
        %7054 = vmatprep.subr.mxu0 0.0
        %7055 = vmatpush1.msra.mxu0 0.0
        %7056 = vmatprep.subr.mxu0 0.0
        %7057 = vmatpush1.msra.mxu0 0.0
        %7058 = vmatprep.subr.mxu0 0.0
        %7059 = vmatpush1.msra.mxu0 0.0
        %7060 = vmatprep.subr.mxu0 0.0
        %7061 = vmatpush1.msra.mxu0 0.0
        %7062 = vmatprep.subr.mxu0 0.0
        %7063 = vmatpush1.msra.mxu0 0.0
        %7064 = vmatprep.subr.mxu0 0.0
        %7065 = vmatpush1.msra.mxu0 0.0
        %7066 = vmatprep.subr.mxu0 0.0
        %7067 = vmatpush1.msra.mxu0 0.0
        %7068 = vmatprep.subr.mxu0 0.0
        %7069 = vmatpush1.msra.mxu0 0.0
        %7070 = vmatprep.subr.mxu0 0.0
        %7071 = vmatpush1.msra.mxu0 0.0
        %7072 = vmatprep.subr.mxu0 0.0
        %7073 = vmatpush1.msra.mxu0 0.0
        %7074 = vmatprep.subr.mxu0 0.0
        %7075 = vmatpush1.msra.mxu0 0.0
        %7076 = vmatprep.subr.mxu0 0.0
        %7077 = vmatpush1.msra.mxu0 0.0
        %7078 = vmatprep.subr.mxu0 0.0
        %7079 = vmatpush1.msra.mxu0 0.0
        %7080 = vmatprep.subr.mxu0 0.0
        %7081 = vmatpush1.msra.mxu0 0.0
        %7082 = vmatprep.subr.mxu0 0.0
        %7083 = vmatpush1.msra.mxu0 0.0
        %7084 = vmatprep.subr.mxu0 0.0
        %7085 = vmatpush1.msra.mxu0 0.0
        %7086 = vmatprep.subr.mxu0 0.0
        %7087 = vmatpush1.msra.mxu0 0.0
        %7088 = vmatprep.mubr.f32.mxu0 0.0
        %7089 = vmatmul.mubr.f32.gmra.mrb[0].mxu0 %v6952
        %v7090 = vpop.f32.mrb[0].mxu0
        %v7091 = vadd.f32 0.0, %v7090
        %v7092 = vpop.f32.mrb[0].mxu0
        %7093 = vdwg.mxu0
        %v7094 = vmax.f32 %v7021, %v7091
        %s7095 = sld [smem:[#allocation8 + $0x3]]
        %v7096 = vstv %s7095
        %s7097 = sld [smem:[#allocation7 + $0x6c]]
        %v7098 = vstv %s7097
        %v7099 = vmul.f32 %v1516, %v7098
        %v7100 = vmul.f32 %v1517, %v7098
        %v7101 = vadd.f32 %v7096, %v7099
        %v7102 = vadd.f32 %v7096, %v7100
        %s7103 = sld [smem:[#allocation7 + $0x6d]]
        %v7104 = vstv %s7103
        %v7105 = vmul.f32 %v1516, %v7104
        %v7106 = vmul.f32 %v1517, %v7104
        %7109 = vrot.lane.b32.xlu0 %v7105, 127
        %v7110 = vpop.permute.xlu0 %7109
        %7111 = vrot.lane.b32.xlu0 %v7106, 127
        %v7112 = vpop.permute.xlu0 %7111
        %v7115 = vadd.f32 %v7101, %v7110
        %v7116 = vadd.f32 %v7102, %v7112
        %s7117 = sld [smem:[#allocation7 + $0x6e]]
        %v7118 = vstv %s7117
        %v7119 = vmul.f32 %v1516, %v7118
        %v7120 = vmul.f32 %v1517, %v7118
        %7123 = vrot.lane.b32.xlu0 %v7119, 126
        %v7124 = vpop.permute.xlu0 %7123
        %7125 = vrot.lane.b32.xlu0 %v7120, 126
        %v7126 = vpop.permute.xlu0 %7125
        %v7129 = vadd.f32 %v7115, %v7124
        %v7130 = vadd.f32 %v7116, %v7126
        %s7131 = sld [smem:[#allocation7 + $0x6f]]
        %v7132 = vstv %s7131
        %v7133 = vmul.f32 %v1516, %v7132
        %v7134 = vmul.f32 %v1517, %v7132
        %v7137 = vrot.slane %v7133, 1
        %v7138 = vrot.slane %v7134, 1
        %v7139 = vsel %vm519, %v7137, %v7138
        %v7142 = vadd.f32 %v7129, %v7139
        %v7143 = vadd.f32 %v7130, %v7138
        %s7144 = sld [smem:[#allocation7 + $0x70]]
        %v7145 = vstv %s7144
        %v7146 = vmul.f32 %v1516, %v7145
        %v7147 = vmul.f32 %v1517, %v7145
        %v7150 = vrot.slane %v7146, 1
        %v7151 = vrot.slane %v7147, 1
        %v7152 = vsel %vm519, %v7150, %v7151
        %7153 = vrot.lane.b32.xlu0 %v7152, 127
        %v7154 = vpop.permute.xlu0 %7153
        %7155 = vrot.lane.b32.xlu0 %v7151, 127
        %v7156 = vpop.permute.xlu0 %7155
        %v7159 = vadd.f32 %v7142, %v7154
        %v7160 = vadd.f32 %v7143, %v7156
        %s7161 = sld [smem:[#allocation7 + $0x71]]
        %v7162 = vstv %s7161
        %v7163 = vmul.f32 %v1516, %v7162
        %v7164 = vmul.f32 %v1517, %v7162
        %v7167 = vrot.slane %v7163, 1
        %v7168 = vrot.slane %v7164, 1
        %v7169 = vsel %vm519, %v7167, %v7168
        %7170 = vrot.lane.b32.xlu0 %v7169, 126
        %v7171 = vpop.permute.xlu0 %7170
        %7172 = vrot.lane.b32.xlu0 %v7168, 126
        %v7173 = vpop.permute.xlu0 %7172
        %v7176 = vadd.f32 %v7159, %v7171
        %v7177 = vadd.f32 %v7160, %v7173
        %s7178 = sld [smem:[#allocation7 + $0x72]]
        %v7179 = vstv %s7178
        %v7180 = vmul.f32 %v1516, %v7179
        %v7181 = vmul.f32 %v1517, %v7179
        %v7184 = vrot.slane %v7180, 2
        %v7185 = vrot.slane %v7181, 2
        %v7186 = vsel %vm611, %v7184, %v7185
        %v7189 = vadd.f32 %v7176, %v7186
        %v7190 = vadd.f32 %v7177, %v7185
        %s7191 = sld [smem:[#allocation7 + $0x73]]
        %v7192 = vstv %s7191
        %v7193 = vmul.f32 %v1516, %v7192
        %v7194 = vmul.f32 %v1517, %v7192
        %v7197 = vrot.slane %v7193, 2
        %v7198 = vrot.slane %v7194, 2
        %v7199 = vsel %vm611, %v7197, %v7198
        %7200 = vrot.lane.b32.xlu0 %v7199, 127
        %v7201 = vpop.permute.xlu0 %7200
        %7202 = vrot.lane.b32.xlu0 %v7198, 127
        %v7203 = vpop.permute.xlu0 %7202
        %v7206 = vadd.f32 %v7189, %v7201
        %v7207 = vadd.f32 %v7190, %v7203
        %s7208 = sld [smem:[#allocation7 + $0x74]]
        %v7209 = vstv %s7208
        %v7210 = vmul.f32 %v1516, %v7209
        %v7211 = vmul.f32 %v1517, %v7209
        %v7214 = vrot.slane %v7210, 2
        %v7215 = vrot.slane %v7211, 2
        %v7216 = vsel %vm611, %v7214, %v7215
        %7217 = vrot.lane.b32.xlu0 %v7216, 126
        %v7218 = vpop.permute.xlu0 %7217
        %7219 = vrot.lane.b32.xlu0 %v7215, 126
        %v7220 = vpop.permute.xlu0 %7219
        %v7223 = vadd.f32 %v7206, %v7218
        %v7224 = vadd.f32 %v7207, %v7220
        %s7225 = sld [smem:[#allocation7 + $0x75]]
        %v7226 = vstv %s7225
        %v7227 = vmul.f32 %v2567, %v7226
        %v7228 = vmul.f32 %v2568, %v7226
        %v7229 = vadd.f32 %v7223, %v7227
        %v7230 = vadd.f32 %v7224, %v7228
        %s7231 = sld [smem:[#allocation7 + $0x76]]
        %v7232 = vstv %s7231
        %v7233 = vmul.f32 %v2567, %v7232
        %v7234 = vmul.f32 %v2568, %v7232
        %7237 = vrot.lane.b32.xlu0 %v7233, 127
        %v7238 = vpop.permute.xlu0 %7237
        %7239 = vrot.lane.b32.xlu0 %v7234, 127
        %v7240 = vpop.permute.xlu0 %7239
        %v7243 = vadd.f32 %v7229, %v7238
        %v7244 = vadd.f32 %v7230, %v7240
        %s7245 = sld [smem:[#allocation7 + $0x77]]
        %v7246 = vstv %s7245
        %v7247 = vmul.f32 %v2567, %v7246
        %v7248 = vmul.f32 %v2568, %v7246
        %7251 = vrot.lane.b32.xlu0 %v7247, 126
        %v7252 = vpop.permute.xlu0 %7251
        %7253 = vrot.lane.b32.xlu0 %v7248, 126
        %v7254 = vpop.permute.xlu0 %7253
        %v7257 = vadd.f32 %v7243, %v7252
        %v7258 = vadd.f32 %v7244, %v7254
        %s7259 = sld [smem:[#allocation7 + $0x78]]
        %v7260 = vstv %s7259
        %v7261 = vmul.f32 %v2567, %v7260
        %v7262 = vmul.f32 %v2568, %v7260
        %v7265 = vrot.slane %v7261, 1
        %v7266 = vrot.slane %v7262, 1
        %v7267 = vsel %vm519, %v7265, %v7266
        %v7270 = vadd.f32 %v7257, %v7267
        %v7271 = vadd.f32 %v7258, %v7266
        %s7272 = sld [smem:[#allocation7 + $0x79]]
        %v7273 = vstv %s7272
        %v7274 = vmul.f32 %v2567, %v7273
        %v7275 = vmul.f32 %v2568, %v7273
        %v7278 = vrot.slane %v7274, 1
        %v7279 = vrot.slane %v7275, 1
        %v7280 = vsel %vm519, %v7278, %v7279
        %7281 = vrot.lane.b32.xlu0 %v7280, 127
        %v7282 = vpop.permute.xlu0 %7281
        %7283 = vrot.lane.b32.xlu0 %v7279, 127
        %v7284 = vpop.permute.xlu0 %7283
        %v7287 = vadd.f32 %v7270, %v7282
        %v7288 = vadd.f32 %v7271, %v7284
        %s7289 = sld [smem:[#allocation7 + $0x7a]]
        %v7290 = vstv %s7289
        %v7291 = vmul.f32 %v2567, %v7290
        %v7292 = vmul.f32 %v2568, %v7290
        %v7295 = vrot.slane %v7291, 1
        %v7296 = vrot.slane %v7292, 1
        %v7297 = vsel %vm519, %v7295, %v7296
        %7298 = vrot.lane.b32.xlu0 %v7297, 126
        %v7299 = vpop.permute.xlu0 %7298
        %7300 = vrot.lane.b32.xlu0 %v7296, 126
        %v7301 = vpop.permute.xlu0 %7300
        %v7304 = vadd.f32 %v7287, %v7299
        %v7305 = vadd.f32 %v7288, %v7301
        %s7306 = sld [smem:[#allocation7 + $0x7b]]
        %v7307 = vstv %s7306
        %v7308 = vmul.f32 %v2567, %v7307
        %v7309 = vmul.f32 %v2568, %v7307
        %v7312 = vrot.slane %v7308, 2
        %v7313 = vrot.slane %v7309, 2
        %v7314 = vsel %vm611, %v7312, %v7313
        %v7317 = vadd.f32 %v7304, %v7314
        %v7318 = vadd.f32 %v7305, %v7313
        %s7319 = sld [smem:[#allocation7 + $0x7c]]
        %v7320 = vstv %s7319
        %v7321 = vmul.f32 %v2567, %v7320
        %v7322 = vmul.f32 %v2568, %v7320
        %v7325 = vrot.slane %v7321, 2
        %v7326 = vrot.slane %v7322, 2
        %v7327 = vsel %vm611, %v7325, %v7326
        %7328 = vrot.lane.b32.xlu0 %v7327, 127
        %v7329 = vpop.permute.xlu0 %7328
        %7330 = vrot.lane.b32.xlu0 %v7326, 127
        %v7331 = vpop.permute.xlu0 %7330
        %v7334 = vadd.f32 %v7317, %v7329
        %v7335 = vadd.f32 %v7318, %v7331
        %s7336 = sld [smem:[#allocation7 + $0x7d]]
        %v7337 = vstv %s7336
        %v7338 = vmul.f32 %v2567, %v7337
        %v7339 = vmul.f32 %v2568, %v7337
        %v7342 = vrot.slane %v7338, 2
        %v7343 = vrot.slane %v7339, 2
        %v7344 = vsel %vm611, %v7342, %v7343
        %7345 = vrot.lane.b32.xlu0 %v7344, 126
        %v7346 = vpop.permute.xlu0 %7345
        %7347 = vrot.lane.b32.xlu0 %v7343, 126
        %v7348 = vpop.permute.xlu0 %7347
        %v7351 = vadd.f32 %v7334, %v7346
        %v7352 = vadd.f32 %v7335, %v7348
        %s7353 = sld [smem:[#allocation7 + $0x7e]]
        %v7354 = vstv %s7353
        %v7355 = vmul.f32 %v3618, %v7354
        %v7356 = vmul.f32 %v3619, %v7354
        %v7357 = vadd.f32 %v7351, %v7355
        %v7358 = vadd.f32 %v7352, %v7356
        %s7359 = sld [smem:[#allocation7 + $0x7f]]
        %v7360 = vstv %s7359
        %v7361 = vmul.f32 %v3618, %v7360
        %v7362 = vmul.f32 %v3619, %v7360
        %7365 = vrot.lane.b32.xlu0 %v7361, 127
        %v7366 = vpop.permute.xlu0 %7365
        %7367 = vrot.lane.b32.xlu0 %v7362, 127
        %v7368 = vpop.permute.xlu0 %7367
        %v7371 = vadd.f32 %v7357, %v7366
        %v7372 = vadd.f32 %v7358, %v7368
        %s7373 = sld [smem:[#allocation7 + $0x80]]
        %v7374 = vstv %s7373
        %v7375 = vmul.f32 %v3618, %v7374
        %v7376 = vmul.f32 %v3619, %v7374
        %7379 = vrot.lane.b32.xlu0 %v7375, 126
        %v7380 = vpop.permute.xlu0 %7379
        %7381 = vrot.lane.b32.xlu0 %v7376, 126
        %v7382 = vpop.permute.xlu0 %7381
        %v7385 = vadd.f32 %v7371, %v7380
        %v7386 = vadd.f32 %v7372, %v7382
        %s7387 = sld [smem:[#allocation7 + $0x81]]
        %v7388 = vstv %s7387
        %v7389 = vmul.f32 %v3618, %v7388
        %v7390 = vmul.f32 %v3619, %v7388
        %v7393 = vrot.slane %v7389, 1
        %v7394 = vrot.slane %v7390, 1
        %v7395 = vsel %vm519, %v7393, %v7394
        %v7398 = vadd.f32 %v7385, %v7395
        %v7399 = vadd.f32 %v7386, %v7394
        %s7400 = sld [smem:[#allocation7 + $0x82]]
        %v7401 = vstv %s7400
        %v7402 = vmul.f32 %v3618, %v7401
        %v7403 = vmul.f32 %v3619, %v7401
        %v7406 = vrot.slane %v7402, 1
        %v7407 = vrot.slane %v7403, 1
        %v7408 = vsel %vm519, %v7406, %v7407
        %7409 = vrot.lane.b32.xlu0 %v7408, 127
        %v7410 = vpop.permute.xlu0 %7409
        %7411 = vrot.lane.b32.xlu0 %v7407, 127
        %v7412 = vpop.permute.xlu0 %7411
        %v7415 = vadd.f32 %v7398, %v7410
        %v7416 = vadd.f32 %v7399, %v7412
        %s7417 = sld [smem:[#allocation7 + $0x83]]
        %v7418 = vstv %s7417
        %v7419 = vmul.f32 %v3618, %v7418
        %v7420 = vmul.f32 %v3619, %v7418
        %v7423 = vrot.slane %v7419, 1
        %v7424 = vrot.slane %v7420, 1
        %v7425 = vsel %vm519, %v7423, %v7424
        %7426 = vrot.lane.b32.xlu0 %v7425, 126
        %v7427 = vpop.permute.xlu0 %7426
        %7428 = vrot.lane.b32.xlu0 %v7424, 126
        %v7429 = vpop.permute.xlu0 %7428
        %v7432 = vadd.f32 %v7415, %v7427
        %v7433 = vadd.f32 %v7416, %v7429
        %s7434 = sld [smem:[#allocation7 + $0x84]]
        %v7435 = vstv %s7434
        %v7436 = vmul.f32 %v3618, %v7435
        %v7437 = vmul.f32 %v3619, %v7435
        %v7440 = vrot.slane %v7436, 2
        %v7441 = vrot.slane %v7437, 2
        %v7442 = vsel %vm611, %v7440, %v7441
        %v7445 = vadd.f32 %v7432, %v7442
        %v7446 = vadd.f32 %v7433, %v7441
        %s7447 = sld [smem:[#allocation7 + $0x85]]
        %v7448 = vstv %s7447
        %v7449 = vmul.f32 %v3618, %v7448
        %v7450 = vmul.f32 %v3619, %v7448
        %v7453 = vrot.slane %v7449, 2
        %v7454 = vrot.slane %v7450, 2
        %v7455 = vsel %vm611, %v7453, %v7454
        %7456 = vrot.lane.b32.xlu0 %v7455, 127
        %v7457 = vpop.permute.xlu0 %7456
        %7458 = vrot.lane.b32.xlu0 %v7454, 127
        %v7459 = vpop.permute.xlu0 %7458
        %v7462 = vadd.f32 %v7445, %v7457
        %v7463 = vadd.f32 %v7446, %v7459
        %s7464 = sld [smem:[#allocation7 + $0x86]]
        %v7465 = vstv %s7464
        %v7466 = vmul.f32 %v3618, %v7465
        %v7467 = vmul.f32 %v3619, %v7465
        %v7470 = vrot.slane %v7466, 2
        %v7471 = vrot.slane %v7467, 2
        %v7472 = vsel %vm611, %v7470, %v7471
        %7473 = vrot.lane.b32.xlu0 %v7472, 126
        %v7474 = vpop.permute.xlu0 %7473
        %7475 = vrot.lane.b32.xlu0 %v7471, 126
        %v7476 = vpop.permute.xlu0 %7475
        %v7479 = vadd.f32 %v7462, %v7474
        %v7480 = vadd.f32 %v7463, %v7476
        %s7481 = sld [smem:[#allocation7 + $0x87]]
        %v7482 = vstv %s7481
        %v7483 = vmul.f32 %v4669, %v7482
        %v7484 = vmul.f32 %v4670, %v7482
        %v7485 = vadd.f32 %v7479, %v7483
        %v7486 = vadd.f32 %v7480, %v7484
        %s7487 = sld [smem:[#allocation7 + $0x88]]
        %v7488 = vstv %s7487
        %v7489 = vmul.f32 %v4669, %v7488
        %v7490 = vmul.f32 %v4670, %v7488
        %7493 = vrot.lane.b32.xlu0 %v7489, 127
        %v7494 = vpop.permute.xlu0 %7493
        %7495 = vrot.lane.b32.xlu0 %v7490, 127
        %v7496 = vpop.permute.xlu0 %7495
        %v7499 = vadd.f32 %v7485, %v7494
        %v7500 = vadd.f32 %v7486, %v7496
        %s7501 = sld [smem:[#allocation7 + $0x89]]
        %v7502 = vstv %s7501
        %v7503 = vmul.f32 %v4669, %v7502
        %v7504 = vmul.f32 %v4670, %v7502
        %7507 = vrot.lane.b32.xlu0 %v7503, 126
        %v7508 = vpop.permute.xlu0 %7507
        %7509 = vrot.lane.b32.xlu0 %v7504, 126
        %v7510 = vpop.permute.xlu0 %7509
        %v7513 = vadd.f32 %v7499, %v7508
        %v7514 = vadd.f32 %v7500, %v7510
        %s7515 = sld [smem:[#allocation7 + $0x8a]]
        %v7516 = vstv %s7515
        %v7517 = vmul.f32 %v4669, %v7516
        %v7518 = vmul.f32 %v4670, %v7516
        %v7521 = vrot.slane %v7517, 1
        %v7522 = vrot.slane %v7518, 1
        %v7523 = vsel %vm519, %v7521, %v7522
        %v7526 = vadd.f32 %v7513, %v7523
        %v7527 = vadd.f32 %v7514, %v7522
        %s7528 = sld [smem:[#allocation7 + $0x8b]]
        %v7529 = vstv %s7528
        %v7530 = vmul.f32 %v4669, %v7529
        %v7531 = vmul.f32 %v4670, %v7529
        %v7534 = vrot.slane %v7530, 1
        %v7535 = vrot.slane %v7531, 1
        %v7536 = vsel %vm519, %v7534, %v7535
        %7537 = vrot.lane.b32.xlu0 %v7536, 127
        %v7538 = vpop.permute.xlu0 %7537
        %7539 = vrot.lane.b32.xlu0 %v7535, 127
        %v7540 = vpop.permute.xlu0 %7539
        %v7543 = vadd.f32 %v7526, %v7538
        %v7544 = vadd.f32 %v7527, %v7540
        %s7545 = sld [smem:[#allocation7 + $0x8c]]
        %v7546 = vstv %s7545
        %v7547 = vmul.f32 %v4669, %v7546
        %v7548 = vmul.f32 %v4670, %v7546
        %v7551 = vrot.slane %v7547, 1
        %v7552 = vrot.slane %v7548, 1
        %v7553 = vsel %vm519, %v7551, %v7552
        %7554 = vrot.lane.b32.xlu0 %v7553, 126
        %v7555 = vpop.permute.xlu0 %7554
        %7556 = vrot.lane.b32.xlu0 %v7552, 126
        %v7557 = vpop.permute.xlu0 %7556
        %v7560 = vadd.f32 %v7543, %v7555
        %v7561 = vadd.f32 %v7544, %v7557
        %s7562 = sld [smem:[#allocation7 + $0x8d]]
        %v7563 = vstv %s7562
        %v7564 = vmul.f32 %v4669, %v7563
        %v7565 = vmul.f32 %v4670, %v7563
        %v7568 = vrot.slane %v7564, 2
        %v7569 = vrot.slane %v7565, 2
        %v7570 = vsel %vm611, %v7568, %v7569
        %v7573 = vadd.f32 %v7560, %v7570
        %v7574 = vadd.f32 %v7561, %v7569
        %s7575 = sld [smem:[#allocation7 + $0x8e]]
        %v7576 = vstv %s7575
        %v7577 = vmul.f32 %v4669, %v7576
        %v7578 = vmul.f32 %v4670, %v7576
        %v7581 = vrot.slane %v7577, 2
        %v7582 = vrot.slane %v7578, 2
        %v7583 = vsel %vm611, %v7581, %v7582
        %7584 = vrot.lane.b32.xlu0 %v7583, 127
        %v7585 = vpop.permute.xlu0 %7584
        %7586 = vrot.lane.b32.xlu0 %v7582, 127
        %v7587 = vpop.permute.xlu0 %7586
        %v7590 = vadd.f32 %v7573, %v7585
        %v7591 = vadd.f32 %v7574, %v7587
        %s7592 = sld [smem:[#allocation7 + $0x8f]]
        %v7593 = vstv %s7592
        %v7594 = vmul.f32 %v4669, %v7593
        %v7595 = vmul.f32 %v4670, %v7593
        %v7598 = vrot.slane %v7594, 2
        %v7599 = vrot.slane %v7595, 2
        %v7600 = vsel %vm611, %v7598, %v7599
        %7601 = vrot.lane.b32.xlu0 %v7600, 126
        %v7602 = vpop.permute.xlu0 %7601
        %7603 = vrot.lane.b32.xlu0 %v7599, 126
        %v7604 = vpop.permute.xlu0 %7603
        %v7607 = vadd.f32 %v7590, %v7602
        %v7608 = vadd.f32 %v7591, %v7604
        %v7609 = vmax.f32 %v7607, 0.0
        %v7610 = vmax.f32 %v7608, 0.0
        %v7612 = vsel %vm5190, %v7610, 0
        %7614 = vmatprep.subr.mxu0 0.0
        %7615 = vmatpush1.msra.mxu0 %v7609
        %7616 = vmatprep.subr.mxu0 0.0
        %7617 = vmatpush1.msra.mxu0 %v7612
        %7618 = vmatprep.subr.mxu0 0.0
        %7619 = vmatpush1.msra.mxu0 0.0
        %7620 = vmatprep.subr.mxu0 0.0
        %7621 = vmatpush1.msra.mxu0 0.0
        %7622 = vmatprep.subr.mxu0 0.0
        %7623 = vmatpush1.msra.mxu0 0.0
        %7624 = vmatprep.subr.mxu0 0.0
        %7625 = vmatpush1.msra.mxu0 0.0
        %7626 = vmatprep.subr.mxu0 0.0
        %7627 = vmatpush1.msra.mxu0 0.0
        %7628 = vmatprep.subr.mxu0 0.0
        %7629 = vmatpush1.msra.mxu0 0.0
        %7630 = vmatprep.subr.mxu0 0.0
        %7631 = vmatpush1.msra.mxu0 0.0
        %7632 = vmatprep.subr.mxu0 0.0
        %7633 = vmatpush1.msra.mxu0 0.0
        %7634 = vmatprep.subr.mxu0 0.0
        %7635 = vmatpush1.msra.mxu0 0.0
        %7636 = vmatprep.subr.mxu0 0.0
        %7637 = vmatpush1.msra.mxu0 0.0
        %7638 = vmatprep.subr.mxu0 0.0
        %7639 = vmatpush1.msra.mxu0 0.0
        %7640 = vmatprep.subr.mxu0 0.0
        %7641 = vmatpush1.msra.mxu0 0.0
        %7642 = vmatprep.subr.mxu0 0.0
        %7643 = vmatpush1.msra.mxu0 0.0
        %7644 = vmatprep.subr.mxu0 0.0
        %7645 = vmatpush1.msra.mxu0 0.0
        %7646 = vmatprep.subr.mxu0 0.0
        %7647 = vmatpush1.msra.mxu0 0.0
        %7648 = vmatprep.subr.mxu0 0.0
        %7649 = vmatpush1.msra.mxu0 0.0
        %7650 = vmatprep.subr.mxu0 0.0
        %7651 = vmatpush1.msra.mxu0 0.0
        %7652 = vmatprep.subr.mxu0 0.0
        %7653 = vmatpush1.msra.mxu0 0.0
        %7654 = vmatprep.subr.mxu0 0.0
        %7655 = vmatpush1.msra.mxu0 0.0
        %7656 = vmatprep.subr.mxu0 0.0
        %7657 = vmatpush1.msra.mxu0 0.0
        %7658 = vmatprep.subr.mxu0 0.0
        %7659 = vmatpush1.msra.mxu0 0.0
        %7660 = vmatprep.subr.mxu0 0.0
        %7661 = vmatpush1.msra.mxu0 0.0
        %7662 = vmatprep.subr.mxu0 0.0
        %7663 = vmatpush1.msra.mxu0 0.0
        %7664 = vmatprep.subr.mxu0 0.0
        %7665 = vmatpush1.msra.mxu0 0.0
        %7666 = vmatprep.subr.mxu0 0.0
        %7667 = vmatpush1.msra.mxu0 0.0
        %7668 = vmatprep.subr.mxu0 0.0
        %7669 = vmatpush1.msra.mxu0 0.0
        %7670 = vmatprep.subr.mxu0 0.0
        %7671 = vmatpush1.msra.mxu0 0.0
        %7672 = vmatprep.subr.mxu0 0.0
        %7673 = vmatpush1.msra.mxu0 0.0
        %7674 = vmatprep.subr.mxu0 0.0
        %7675 = vmatpush1.msra.mxu0 0.0
        %7676 = vmatprep.subr.mxu0 0.0
        %7677 = vmatpush1.msra.mxu0 0.0
        %7678 = vmatprep.mubr.f32.mxu0 0.0
        %7679 = vmatmul.mubr.f32.gmra.mrb[0].mxu0 %v5188
        %v7680 = vpop.f32.mrb[0].mxu0
        %v7681 = vadd.f32 0.0, %v7680
        %v7682 = vpop.f32.mrb[0].mxu0
        %7683 = vdwg.mxu0
        %7684 = vmatprep.subr.mxu0 0.0
        %7685 = vmatpush1.msra.mxu0 %v7609
        %7686 = vmatprep.subr.mxu0 0.0
        %7687 = vmatpush1.msra.mxu0 %v7612
        %7688 = vmatprep.subr.mxu0 0.0
        %7689 = vmatpush1.msra.mxu0 0.0
        %7690 = vmatprep.subr.mxu0 0.0
        %7691 = vmatpush1.msra.mxu0 0.0
        %7692 = vmatprep.subr.mxu0 0.0
        %7693 = vmatpush1.msra.mxu0 0.0
        %7694 = vmatprep.subr.mxu0 0.0
        %7695 = vmatpush1.msra.mxu0 0.0
        %7696 = vmatprep.subr.mxu0 0.0
        %7697 = vmatpush1.msra.mxu0 0.0
        %7698 = vmatprep.subr.mxu0 0.0
        %7699 = vmatpush1.msra.mxu0 0.0
        %7700 = vmatprep.subr.mxu0 0.0
        %7701 = vmatpush1.msra.mxu0 0.0
        %7702 = vmatprep.subr.mxu0 0.0
        %7703 = vmatpush1.msra.mxu0 0.0
        %7704 = vmatprep.subr.mxu0 0.0
        %7705 = vmatpush1.msra.mxu0 0.0
        %7706 = vmatprep.subr.mxu0 0.0
        %7707 = vmatpush1.msra.mxu0 0.0
        %7708 = vmatprep.subr.mxu0 0.0
        %7709 = vmatpush1.msra.mxu0 0.0
        %7710 = vmatprep.subr.mxu0 0.0
        %7711 = vmatpush1.msra.mxu0 0.0
        %7712 = vmatprep.subr.mxu0 0.0
        %7713 = vmatpush1.msra.mxu0 0.0
        %7714 = vmatprep.subr.mxu0 0.0
        %7715 = vmatpush1.msra.mxu0 0.0
        %7716 = vmatprep.subr.mxu0 0.0
        %7717 = vmatpush1.msra.mxu0 0.0
        %7718 = vmatprep.subr.mxu0 0.0
        %7719 = vmatpush1.msra.mxu0 0.0
        %7720 = vmatprep.subr.mxu0 0.0
        %7721 = vmatpush1.msra.mxu0 0.0
        %7722 = vmatprep.subr.mxu0 0.0
        %7723 = vmatpush1.msra.mxu0 0.0
        %7724 = vmatprep.subr.mxu0 0.0
        %7725 = vmatpush1.msra.mxu0 0.0
        %7726 = vmatprep.subr.mxu0 0.0
        %7727 = vmatpush1.msra.mxu0 0.0
        %7728 = vmatprep.subr.mxu0 0.0
        %7729 = vmatpush1.msra.mxu0 0.0
        %7730 = vmatprep.subr.mxu0 0.0
        %7731 = vmatpush1.msra.mxu0 0.0
        %7732 = vmatprep.subr.mxu0 0.0
        %7733 = vmatpush1.msra.mxu0 0.0
        %7734 = vmatprep.subr.mxu0 0.0
        %7735 = vmatpush1.msra.mxu0 0.0
        %7736 = vmatprep.subr.mxu0 0.0
        %7737 = vmatpush1.msra.mxu0 0.0
        %7738 = vmatprep.subr.mxu0 0.0
        %7739 = vmatpush1.msra.mxu0 0.0
        %7740 = vmatprep.subr.mxu0 0.0
        %7741 = vmatpush1.msra.mxu0 0.0
        %7742 = vmatprep.subr.mxu0 0.0
        %7743 = vmatpush1.msra.mxu0 0.0
        %7744 = vmatprep.subr.mxu0 0.0
        %7745 = vmatpush1.msra.mxu0 0.0
        %7746 = vmatprep.subr.mxu0 0.0
        %7747 = vmatpush1.msra.mxu0 0.0
        %7748 = vmatprep.mubr.f32.mxu0 0.0
        %7749 = vmatmul.mubr.f32.gmra.mrb[0].mxu0 %v5264
        %v7750 = vpop.f32.mrb[0].mxu0
        %v7751 = vadd.f32 0.0, %v7750
        %v7752 = vpop.f32.mrb[0].mxu0
        %7753 = vdwg.mxu0
        %v7754 = vmax.f32 %v7681, %v7751
        %v7756 = vsel %vm5187, %v7754, 0
        %7758 = vmatprep.subr.mxu0 0.0
        %7759 = vmatpush1.msra.mxu0 %v428
        %7760 = vmatprep.subr.mxu0 0.0
        %7761 = vmatpush1.msra.mxu0 %v5341
        %7762 = vmatprep.subr.mxu0 0.0
        %7763 = vmatpush1.msra.mxu0 0.0
        %7764 = vmatprep.subr.mxu0 0.0
        %7765 = vmatpush1.msra.mxu0 0.0
        %7766 = vmatprep.subr.mxu0 0.0
        %7767 = vmatpush1.msra.mxu0 0.0
        %7768 = vmatprep.subr.mxu0 0.0
        %7769 = vmatpush1.msra.mxu0 0.0
        %7770 = vmatprep.subr.mxu0 0.0
        %7771 = vmatpush1.msra.mxu0 0.0
        %7772 = vmatprep.subr.mxu0 0.0
        %7773 = vmatpush1.msra.mxu0 0.0
        %7774 = vmatprep.subr.mxu0 0.0
        %7775 = vmatpush1.msra.mxu0 0.0
        %7776 = vmatprep.subr.mxu0 0.0
        %7777 = vmatpush1.msra.mxu0 0.0
        %7778 = vmatprep.subr.mxu0 0.0
        %7779 = vmatpush1.msra.mxu0 0.0
        %7780 = vmatprep.subr.mxu0 0.0
        %7781 = vmatpush1.msra.mxu0 0.0
        %7782 = vmatprep.subr.mxu0 0.0
        %7783 = vmatpush1.msra.mxu0 0.0
        %7784 = vmatprep.subr.mxu0 0.0
        %7785 = vmatpush1.msra.mxu0 0.0
        %7786 = vmatprep.subr.mxu0 0.0
        %7787 = vmatpush1.msra.mxu0 0.0
        %7788 = vmatprep.subr.mxu0 0.0
        %7789 = vmatpush1.msra.mxu0 0.0
        %7790 = vmatprep.subr.mxu0 0.0
        %7791 = vmatpush1.msra.mxu0 0.0
        %7792 = vmatprep.subr.mxu0 0.0
        %7793 = vmatpush1.msra.mxu0 0.0
        %7794 = vmatprep.subr.mxu0 0.0
        %7795 = vmatpush1.msra.mxu0 0.0
        %7796 = vmatprep.subr.mxu0 0.0
        %7797 = vmatpush1.msra.mxu0 0.0
        %7798 = vmatprep.subr.mxu0 0.0
        %7799 = vmatpush1.msra.mxu0 0.0
        %7800 = vmatprep.subr.mxu0 0.0
        %7801 = vmatpush1.msra.mxu0 0.0
        %7802 = vmatprep.subr.mxu0 0.0
        %7803 = vmatpush1.msra.mxu0 0.0
        %7804 = vmatprep.subr.mxu0 0.0
        %7805 = vmatpush1.msra.mxu0 0.0
        %7806 = vmatprep.subr.mxu0 0.0
        %7807 = vmatpush1.msra.mxu0 0.0
        %7808 = vmatprep.subr.mxu0 0.0
        %7809 = vmatpush1.msra.mxu0 0.0
        %7810 = vmatprep.subr.mxu0 0.0
        %7811 = vmatpush1.msra.mxu0 0.0
        %7812 = vmatprep.subr.mxu0 0.0
        %7813 = vmatpush1.msra.mxu0 0.0
        %7814 = vmatprep.subr.mxu0 0.0
        %7815 = vmatpush1.msra.mxu0 0.0
        %7816 = vmatprep.subr.mxu0 0.0
        %7817 = vmatpush1.msra.mxu0 0.0
        %7818 = vmatprep.subr.mxu0 0.0
        %7819 = vmatpush1.msra.mxu0 0.0
        %7820 = vmatprep.subr.mxu0 0.0
        %7821 = vmatpush1.msra.mxu0 0.0
        %7822 = vmatprep.mubr.f32.mxu0 0.0
        %7823 = vmatmul.mubr.f32.gmra.mrb[0].mxu0 %v7756
        %v7824 = vpop.f32.mrb[0].mxu0
        %v7825 = vadd.f32 0.0, %v7824
        %v7826 = vpop.f32.mrb[0].mxu0
        %7827 = vdwg.mxu0
        %7828 = vmatprep.subr.mxu0 0.0
        %7829 = vmatpush1.msra.mxu0 %v441
        %7830 = vmatprep.subr.mxu0 0.0
        %7831 = vmatpush1.msra.mxu0 %v5414
        %7832 = vmatprep.subr.mxu0 0.0
        %7833 = vmatpush1.msra.mxu0 0.0
        %7834 = vmatprep.subr.mxu0 0.0
        %7835 = vmatpush1.msra.mxu0 0.0
        %7836 = vmatprep.subr.mxu0 0.0
        %7837 = vmatpush1.msra.mxu0 0.0
        %7838 = vmatprep.subr.mxu0 0.0
        %7839 = vmatpush1.msra.mxu0 0.0
        %7840 = vmatprep.subr.mxu0 0.0
        %7841 = vmatpush1.msra.mxu0 0.0
        %7842 = vmatprep.subr.mxu0 0.0
        %7843 = vmatpush1.msra.mxu0 0.0
        %7844 = vmatprep.subr.mxu0 0.0
        %7845 = vmatpush1.msra.mxu0 0.0
        %7846 = vmatprep.subr.mxu0 0.0
        %7847 = vmatpush1.msra.mxu0 0.0
        %7848 = vmatprep.subr.mxu0 0.0
        %7849 = vmatpush1.msra.mxu0 0.0
        %7850 = vmatprep.subr.mxu0 0.0
        %7851 = vmatpush1.msra.mxu0 0.0
        %7852 = vmatprep.subr.mxu0 0.0
        %7853 = vmatpush1.msra.mxu0 0.0
        %7854 = vmatprep.subr.mxu0 0.0
        %7855 = vmatpush1.msra.mxu0 0.0
        %7856 = vmatprep.subr.mxu0 0.0
        %7857 = vmatpush1.msra.mxu0 0.0
        %7858 = vmatprep.subr.mxu0 0.0
        %7859 = vmatpush1.msra.mxu0 0.0
        %7860 = vmatprep.subr.mxu0 0.0
        %7861 = vmatpush1.msra.mxu0 0.0
        %7862 = vmatprep.subr.mxu0 0.0
        %7863 = vmatpush1.msra.mxu0 0.0
        %7864 = vmatprep.subr.mxu0 0.0
        %7865 = vmatpush1.msra.mxu0 0.0
        %7866 = vmatprep.subr.mxu0 0.0
        %7867 = vmatpush1.msra.mxu0 0.0
        %7868 = vmatprep.subr.mxu0 0.0
        %7869 = vmatpush1.msra.mxu0 0.0
        %7870 = vmatprep.subr.mxu0 0.0
        %7871 = vmatpush1.msra.mxu0 0.0
        %7872 = vmatprep.subr.mxu0 0.0
        %7873 = vmatpush1.msra.mxu0 0.0
        %7874 = vmatprep.subr.mxu0 0.0
        %7875 = vmatpush1.msra.mxu0 0.0
        %7876 = vmatprep.subr.mxu0 0.0
        %7877 = vmatpush1.msra.mxu0 0.0
        %7878 = vmatprep.subr.mxu0 0.0
        %7879 = vmatpush1.msra.mxu0 0.0
        %7880 = vmatprep.subr.mxu0 0.0
        %7881 = vmatpush1.msra.mxu0 0.0
        %7882 = vmatprep.subr.mxu0 0.0
        %7883 = vmatpush1.msra.mxu0 0.0
        %7884 = vmatprep.subr.mxu0 0.0
        %7885 = vmatpush1.msra.mxu0 0.0
        %7886 = vmatprep.subr.mxu0 0.0
        %7887 = vmatpush1.msra.mxu0 0.0
        %7888 = vmatprep.subr.mxu0 0.0
        %7889 = vmatpush1.msra.mxu0 0.0
        %7890 = vmatprep.subr.mxu0 0.0
        %7891 = vmatpush1.msra.mxu0 0.0
        %7892 = vmatprep.mubr.f32.mxu0 0.0
        %7893 = vmatmul.mubr.f32.gmra.mrb[0].mxu0 %v7756
        %v7894 = vpop.f32.mrb[0].mxu0
        %v7895 = vadd.f32 0.0, %v7894
        %v7896 = vpop.f32.mrb[0].mxu0
        %7897 = vdwg.mxu0
        %v7898 = vmax.f32 %v7825, %v7895
        %v7899 = vld [vmem:[%s6] sm:$0x1]
        %v7900 = vld [vmem:[%s5] sm:$0x1f]
        %vm7901 = vcmask 39936
        %v7903 = vsel %vm7901, %v5486, 0
        %vm7905 = vcmask 1044480
        %v7907 = vsel %vm7905, %v7900, 0
        %7909 = vmatprep.subr.mxu0 0.0
        %7910 = vmatpush1.msra.mxu0 %v7907
        %7911 = vmatprep.subr.mxu0 0.0
        %7912 = vmatpush1.msra.mxu0 0.0
        %7913 = vmatprep.subr.mxu0 0.0
        %7914 = vmatpush1.msra.mxu0 0.0
        %7915 = vmatprep.subr.mxu0 0.0
        %7916 = vmatpush1.msra.mxu0 0.0
        %7917 = vmatprep.subr.mxu0 0.0
        %7918 = vmatpush1.msra.mxu0 0.0
        %7919 = vmatprep.subr.mxu0 0.0
        %7920 = vmatpush1.msra.mxu0 0.0
        %7921 = vmatprep.subr.mxu0 0.0
        %7922 = vmatpush1.msra.mxu0 0.0
        %7923 = vmatprep.subr.mxu0 0.0
        %7924 = vmatpush1.msra.mxu0 0.0
        %7925 = vmatprep.subr.mxu0 0.0
        %7926 = vmatpush1.msra.mxu0 0.0
        %7927 = vmatprep.subr.mxu0 0.0
        %7928 = vmatpush1.msra.mxu0 0.0
        %7929 = vmatprep.subr.mxu0 0.0
        %7930 = vmatpush1.msra.mxu0 0.0
        %7931 = vmatprep.subr.mxu0 0.0
        %7932 = vmatpush1.msra.mxu0 0.0
        %7933 = vmatprep.subr.mxu0 0.0
        %7934 = vmatpush1.msra.mxu0 0.0
        %7935 = vmatprep.subr.mxu0 0.0
        %7936 = vmatpush1.msra.mxu0 0.0
        %7937 = vmatprep.subr.mxu0 0.0
        %7938 = vmatpush1.msra.mxu0 0.0
        %7939 = vmatprep.subr.mxu0 0.0
        %7940 = vmatpush1.msra.mxu0 0.0
        %7941 = vmatprep.subr.mxu0 0.0
        %7942 = vmatpush1.msra.mxu0 0.0
        %7943 = vmatprep.subr.mxu0 0.0
        %7944 = vmatpush1.msra.mxu0 0.0
        %7945 = vmatprep.subr.mxu0 0.0
        %7946 = vmatpush1.msra.mxu0 0.0
        %7947 = vmatprep.subr.mxu0 0.0
        %7948 = vmatpush1.msra.mxu0 0.0
        %7949 = vmatprep.subr.mxu0 0.0
        %7950 = vmatpush1.msra.mxu0 0.0
        %7951 = vmatprep.subr.mxu0 0.0
        %7952 = vmatpush1.msra.mxu0 0.0
        %7953 = vmatprep.subr.mxu0 0.0
        %7954 = vmatpush1.msra.mxu0 0.0
        %7955 = vmatprep.subr.mxu0 0.0
        %7956 = vmatpush1.msra.mxu0 0.0
        %7957 = vmatprep.subr.mxu0 0.0
        %7958 = vmatpush1.msra.mxu0 0.0
        %7959 = vmatprep.subr.mxu0 0.0
        %7960 = vmatpush1.msra.mxu0 0.0
        %7961 = vmatprep.subr.mxu0 0.0
        %7962 = vmatpush1.msra.mxu0 0.0
        %7963 = vmatprep.subr.mxu0 0.0
        %7964 = vmatpush1.msra.mxu0 0.0
        %7965 = vmatprep.subr.mxu0 0.0
        %7966 = vmatpush1.msra.mxu0 0.0
        %7967 = vmatprep.subr.mxu0 0.0
        %7968 = vmatpush1.msra.mxu0 0.0
        %7969 = vmatprep.subr.mxu0 0.0
        %7970 = vmatpush1.msra.mxu0 0.0
        %7971 = vmatprep.subr.mxu0 0.0
        %7972 = vmatpush1.msra.mxu0 0.0
        %7973 = vmatprep.mubr.f32.mxu0 0.0
        %7974 = vmatmul.mubr.f32.gmra.mrb[0].mxu0 %v7903
        %v7975 = vpop.f32.mrb[0].mxu0
        %v7976 = vadd.f32 0.0, %v7975
        %v7977 = vpop.f32.mrb[0].mxu0
        %7978 = vdwg.mxu0
        %v7979 = vadd.f32 %v7899, %v7976
        %v7980 = vld [vmem:[%s5 + $0x5] sm:$0x1f]
        %v7981 = vrot.slane %v5486, 1
        %v7982 = vsel %vm7901, %v7981, 0
        %v7985 = vsel %vm7905, %v7980, 0
        %7987 = vmatprep.subr.mxu0 0.0
        %7988 = vmatpush1.msra.mxu0 %v7985
        %7989 = vmatprep.subr.mxu0 0.0
        %7990 = vmatpush1.msra.mxu0 0.0
        %7991 = vmatprep.subr.mxu0 0.0
        %7992 = vmatpush1.msra.mxu0 0.0
        %7993 = vmatprep.subr.mxu0 0.0
        %7994 = vmatpush1.msra.mxu0 0.0
        %7995 = vmatprep.subr.mxu0 0.0
        %7996 = vmatpush1.msra.mxu0 0.0
        %7997 = vmatprep.subr.mxu0 0.0
        %7998 = vmatpush1.msra.mxu0 0.0
        %7999 = vmatprep.subr.mxu0 0.0
        %8000 = vmatpush1.msra.mxu0 0.0
        %8001 = vmatprep.subr.mxu0 0.0
        %8002 = vmatpush1.msra.mxu0 0.0
        %8003 = vmatprep.subr.mxu0 0.0
        %8004 = vmatpush1.msra.mxu0 0.0
        %8005 = vmatprep.subr.mxu0 0.0
        %8006 = vmatpush1.msra.mxu0 0.0
        %8007 = vmatprep.subr.mxu0 0.0
        %8008 = vmatpush1.msra.mxu0 0.0
        %8009 = vmatprep.subr.mxu0 0.0
        %8010 = vmatpush1.msra.mxu0 0.0
        %8011 = vmatprep.subr.mxu0 0.0
        %8012 = vmatpush1.msra.mxu0 0.0
        %8013 = vmatprep.subr.mxu0 0.0
        %8014 = vmatpush1.msra.mxu0 0.0
        %8015 = vmatprep.subr.mxu0 0.0
        %8016 = vmatpush1.msra.mxu0 0.0
        %8017 = vmatprep.subr.mxu0 0.0
        %8018 = vmatpush1.msra.mxu0 0.0
        %8019 = vmatprep.subr.mxu0 0.0
        %8020 = vmatpush1.msra.mxu0 0.0
        %8021 = vmatprep.subr.mxu0 0.0
        %8022 = vmatpush1.msra.mxu0 0.0
        %8023 = vmatprep.subr.mxu0 0.0
        %8024 = vmatpush1.msra.mxu0 0.0
        %8025 = vmatprep.subr.mxu0 0.0
        %8026 = vmatpush1.msra.mxu0 0.0
        %8027 = vmatprep.subr.mxu0 0.0
        %8028 = vmatpush1.msra.mxu0 0.0
        %8029 = vmatprep.subr.mxu0 0.0
        %8030 = vmatpush1.msra.mxu0 0.0
        %8031 = vmatprep.subr.mxu0 0.0
        %8032 = vmatpush1.msra.mxu0 0.0
        %8033 = vmatprep.subr.mxu0 0.0
        %8034 = vmatpush1.msra.mxu0 0.0
        %8035 = vmatprep.subr.mxu0 0.0
        %8036 = vmatpush1.msra.mxu0 0.0
        %8037 = vmatprep.subr.mxu0 0.0
        %8038 = vmatpush1.msra.mxu0 0.0
        %8039 = vmatprep.subr.mxu0 0.0
        %8040 = vmatpush1.msra.mxu0 0.0
        %8041 = vmatprep.subr.mxu0 0.0
        %8042 = vmatpush1.msra.mxu0 0.0
        %8043 = vmatprep.subr.mxu0 0.0
        %8044 = vmatpush1.msra.mxu0 0.0
        %8045 = vmatprep.subr.mxu0 0.0
        %8046 = vmatpush1.msra.mxu0 0.0
        %8047 = vmatprep.subr.mxu0 0.0
        %8048 = vmatpush1.msra.mxu0 0.0
        %8049 = vmatprep.subr.mxu0 0.0
        %8050 = vmatpush1.msra.mxu0 0.0
        %8051 = vmatprep.mubr.f32.mxu0 0.0
        %8052 = vmatmul.mubr.f32.gmra.mrb[0].mxu0 %v7982
        %v8053 = vpop.f32.mrb[0].mxu0
        %v8054 = vadd.f32 0.0, %v8053
        %v8055 = vpop.f32.mrb[0].mxu0
        %8056 = vdwg.mxu0
        %v8057 = vadd.f32 %v7979, %v8054
        %v8058 = vld [vmem:[%s5 + $0xa] sm:$0x1f]
        %v8059 = vrot.slane %v5486, 2
        %v8060 = vsel %vm7901, %v8059, 0
        %v8063 = vsel %vm7905, %v8058, 0
        %8065 = vmatprep.subr.mxu0 0.0
        %8066 = vmatpush1.msra.mxu0 %v8063
        %8067 = vmatprep.subr.mxu0 0.0
        %8068 = vmatpush1.msra.mxu0 0.0
        %8069 = vmatprep.subr.mxu0 0.0
        %8070 = vmatpush1.msra.mxu0 0.0
        %8071 = vmatprep.subr.mxu0 0.0
        %8072 = vmatpush1.msra.mxu0 0.0
        %8073 = vmatprep.subr.mxu0 0.0
        %8074 = vmatpush1.msra.mxu0 0.0
        %8075 = vmatprep.subr.mxu0 0.0
        %8076 = vmatpush1.msra.mxu0 0.0
        %8077 = vmatprep.subr.mxu0 0.0
        %8078 = vmatpush1.msra.mxu0 0.0
        %8079 = vmatprep.subr.mxu0 0.0
        %8080 = vmatpush1.msra.mxu0 0.0
        %8081 = vmatprep.subr.mxu0 0.0
        %8082 = vmatpush1.msra.mxu0 0.0
        %8083 = vmatprep.subr.mxu0 0.0
        %8084 = vmatpush1.msra.mxu0 0.0
        %8085 = vmatprep.subr.mxu0 0.0
        %8086 = vmatpush1.msra.mxu0 0.0
        %8087 = vmatprep.subr.mxu0 0.0
        %8088 = vmatpush1.msra.mxu0 0.0
        %8089 = vmatprep.subr.mxu0 0.0
        %8090 = vmatpush1.msra.mxu0 0.0
        %8091 = vmatprep.subr.mxu0 0.0
        %8092 = vmatpush1.msra.mxu0 0.0
        %8093 = vmatprep.subr.mxu0 0.0
        %8094 = vmatpush1.msra.mxu0 0.0
        %8095 = vmatprep.subr.mxu0 0.0
        %8096 = vmatpush1.msra.mxu0 0.0
        %8097 = vmatprep.subr.mxu0 0.0
        %8098 = vmatpush1.msra.mxu0 0.0
        %8099 = vmatprep.subr.mxu0 0.0
        %8100 = vmatpush1.msra.mxu0 0.0
        %8101 = vmatprep.subr.mxu0 0.0
        %8102 = vmatpush1.msra.mxu0 0.0
        %8103 = vmatprep.subr.mxu0 0.0
        %8104 = vmatpush1.msra.mxu0 0.0
        %8105 = vmatprep.subr.mxu0 0.0
        %8106 = vmatpush1.msra.mxu0 0.0
        %8107 = vmatprep.subr.mxu0 0.0
        %8108 = vmatpush1.msra.mxu0 0.0
        %8109 = vmatprep.subr.mxu0 0.0
        %8110 = vmatpush1.msra.mxu0 0.0
        %8111 = vmatprep.subr.mxu0 0.0
        %8112 = vmatpush1.msra.mxu0 0.0
        %8113 = vmatprep.subr.mxu0 0.0
        %8114 = vmatpush1.msra.mxu0 0.0
        %8115 = vmatprep.subr.mxu0 0.0
        %8116 = vmatpush1.msra.mxu0 0.0
        %8117 = vmatprep.subr.mxu0 0.0
        %8118 = vmatpush1.msra.mxu0 0.0
        %8119 = vmatprep.subr.mxu0 0.0
        %8120 = vmatpush1.msra.mxu0 0.0
        %8121 = vmatprep.subr.mxu0 0.0
        %8122 = vmatpush1.msra.mxu0 0.0
        %8123 = vmatprep.subr.mxu0 0.0
        %8124 = vmatpush1.msra.mxu0 0.0
        %8125 = vmatprep.subr.mxu0 0.0
        %8126 = vmatpush1.msra.mxu0 0.0
        %8127 = vmatprep.subr.mxu0 0.0
        %8128 = vmatpush1.msra.mxu0 0.0
        %8129 = vmatprep.mubr.f32.mxu0 0.0
        %8130 = vmatmul.mubr.f32.gmra.mrb[0].mxu0 %v8060
        %v8131 = vpop.f32.mrb[0].mxu0
        %v8132 = vadd.f32 0.0, %v8131
        %v8133 = vpop.f32.mrb[0].mxu0
        %8134 = vdwg.mxu0
        %v8135 = vadd.f32 %v8057, %v8132
        %v8136 = vld [vmem:[%s5 + $0xf] sm:$0x1f]
        %v8137 = vrot.slane %v5486, 3
        %v8138 = vsel %vm7901, %v8137, 0
        %v8141 = vsel %vm7905, %v8136, 0
        %8143 = vmatprep.subr.mxu0 0.0
        %8144 = vmatpush1.msra.mxu0 %v8141
        %8145 = vmatprep.subr.mxu0 0.0
        %8146 = vmatpush1.msra.mxu0 0.0
        %8147 = vmatprep.subr.mxu0 0.0
        %8148 = vmatpush1.msra.mxu0 0.0
        %8149 = vmatprep.subr.mxu0 0.0
        %8150 = vmatpush1.msra.mxu0 0.0
        %8151 = vmatprep.subr.mxu0 0.0
        %8152 = vmatpush1.msra.mxu0 0.0
        %8153 = vmatprep.subr.mxu0 0.0
        %8154 = vmatpush1.msra.mxu0 0.0
        %8155 = vmatprep.subr.mxu0 0.0
        %8156 = vmatpush1.msra.mxu0 0.0
        %8157 = vmatprep.subr.mxu0 0.0
        %8158 = vmatpush1.msra.mxu0 0.0
        %8159 = vmatprep.subr.mxu0 0.0
        %8160 = vmatpush1.msra.mxu0 0.0
        %8161 = vmatprep.subr.mxu0 0.0
        %8162 = vmatpush1.msra.mxu0 0.0
        %8163 = vmatprep.subr.mxu0 0.0
        %8164 = vmatpush1.msra.mxu0 0.0
        %8165 = vmatprep.subr.mxu0 0.0
        %8166 = vmatpush1.msra.mxu0 0.0
        %8167 = vmatprep.subr.mxu0 0.0
        %8168 = vmatpush1.msra.mxu0 0.0
        %8169 = vmatprep.subr.mxu0 0.0
        %8170 = vmatpush1.msra.mxu0 0.0
        %8171 = vmatprep.subr.mxu0 0.0
        %8172 = vmatpush1.msra.mxu0 0.0
        %8173 = vmatprep.subr.mxu0 0.0
        %8174 = vmatpush1.msra.mxu0 0.0
        %8175 = vmatprep.subr.mxu0 0.0
        %8176 = vmatpush1.msra.mxu0 0.0
        %8177 = vmatprep.subr.mxu0 0.0
        %8178 = vmatpush1.msra.mxu0 0.0
        %8179 = vmatprep.subr.mxu0 0.0
        %8180 = vmatpush1.msra.mxu0 0.0
        %8181 = vmatprep.subr.mxu0 0.0
        %8182 = vmatpush1.msra.mxu0 0.0
        %8183 = vmatprep.subr.mxu0 0.0
        %8184 = vmatpush1.msra.mxu0 0.0
        %8185 = vmatprep.subr.mxu0 0.0
        %8186 = vmatpush1.msra.mxu0 0.0
        %8187 = vmatprep.subr.mxu0 0.0
        %8188 = vmatpush1.msra.mxu0 0.0
        %8189 = vmatprep.subr.mxu0 0.0
        %8190 = vmatpush1.msra.mxu0 0.0
        %8191 = vmatprep.subr.mxu0 0.0
        %8192 = vmatpush1.msra.mxu0 0.0
        %8193 = vmatprep.subr.mxu0 0.0
        %8194 = vmatpush1.msra.mxu0 0.0
        %8195 = vmatprep.subr.mxu0 0.0
        %8196 = vmatpush1.msra.mxu0 0.0
        %8197 = vmatprep.subr.mxu0 0.0
        %8198 = vmatpush1.msra.mxu0 0.0
        %8199 = vmatprep.subr.mxu0 0.0
        %8200 = vmatpush1.msra.mxu0 0.0
        %8201 = vmatprep.subr.mxu0 0.0
        %8202 = vmatpush1.msra.mxu0 0.0
        %8203 = vmatprep.subr.mxu0 0.0
        %8204 = vmatpush1.msra.mxu0 0.0
        %8205 = vmatprep.subr.mxu0 0.0
        %8206 = vmatpush1.msra.mxu0 0.0
        %8207 = vmatprep.mubr.f32.mxu0 0.0
        %8208 = vmatmul.mubr.f32.gmra.mrb[0].mxu0 %v8138
        %v8209 = vpop.f32.mrb[0].mxu0
        %v8210 = vadd.f32 0.0, %v8209
        %v8211 = vpop.f32.mrb[0].mxu0
        %8212 = vdwg.mxu0
        %v8213 = vadd.f32 %v8135, %v8210
        %v8214 = vld [vmem:[%s5 + $0x14] sm:$0x1f]
        %v8215 = vrot.slane %v5486, 4
        %v8216 = vsel %vm7901, %v8215, 0
        %v8219 = vsel %vm7905, %v8214, 0
        %8221 = vmatprep.subr.mxu0 0.0
        %8222 = vmatpush1.msra.mxu0 %v8219
        %8223 = vmatprep.subr.mxu0 0.0
        %8224 = vmatpush1.msra.mxu0 0.0
        %8225 = vmatprep.subr.mxu0 0.0
        %8226 = vmatpush1.msra.mxu0 0.0
        %8227 = vmatprep.subr.mxu0 0.0
        %8228 = vmatpush1.msra.mxu0 0.0
        %8229 = vmatprep.subr.mxu0 0.0
        %8230 = vmatpush1.msra.mxu0 0.0
        %8231 = vmatprep.subr.mxu0 0.0
        %8232 = vmatpush1.msra.mxu0 0.0
        %8233 = vmatprep.subr.mxu0 0.0
        %8234 = vmatpush1.msra.mxu0 0.0
        %8235 = vmatprep.subr.mxu0 0.0
        %8236 = vmatpush1.msra.mxu0 0.0
        %8237 = vmatprep.subr.mxu0 0.0
        %8238 = vmatpush1.msra.mxu0 0.0
        %8239 = vmatprep.subr.mxu0 0.0
        %8240 = vmatpush1.msra.mxu0 0.0
        %8241 = vmatprep.subr.mxu0 0.0
        %8242 = vmatpush1.msra.mxu0 0.0
        %8243 = vmatprep.subr.mxu0 0.0
        %8244 = vmatpush1.msra.mxu0 0.0
        %8245 = vmatprep.subr.mxu0 0.0
        %8246 = vmatpush1.msra.mxu0 0.0
        %8247 = vmatprep.subr.mxu0 0.0
        %8248 = vmatpush1.msra.mxu0 0.0
        %8249 = vmatprep.subr.mxu0 0.0
        %8250 = vmatpush1.msra.mxu0 0.0
        %8251 = vmatprep.subr.mxu0 0.0
        %8252 = vmatpush1.msra.mxu0 0.0
        %8253 = vmatprep.subr.mxu0 0.0
        %8254 = vmatpush1.msra.mxu0 0.0
        %8255 = vmatprep.subr.mxu0 0.0
        %8256 = vmatpush1.msra.mxu0 0.0
        %8257 = vmatprep.subr.mxu0 0.0
        %8258 = vmatpush1.msra.mxu0 0.0
        %8259 = vmatprep.subr.mxu0 0.0
        %8260 = vmatpush1.msra.mxu0 0.0
        %8261 = vmatprep.subr.mxu0 0.0
        %8262 = vmatpush1.msra.mxu0 0.0
        %8263 = vmatprep.subr.mxu0 0.0
        %8264 = vmatpush1.msra.mxu0 0.0
        %8265 = vmatprep.subr.mxu0 0.0
        %8266 = vmatpush1.msra.mxu0 0.0
        %8267 = vmatprep.subr.mxu0 0.0
        %8268 = vmatpush1.msra.mxu0 0.0
        %8269 = vmatprep.subr.mxu0 0.0
        %8270 = vmatpush1.msra.mxu0 0.0
        %8271 = vmatprep.subr.mxu0 0.0
        %8272 = vmatpush1.msra.mxu0 0.0
        %8273 = vmatprep.subr.mxu0 0.0
        %8274 = vmatpush1.msra.mxu0 0.0
        %8275 = vmatprep.subr.mxu0 0.0
        %8276 = vmatpush1.msra.mxu0 0.0
        %8277 = vmatprep.subr.mxu0 0.0
        %8278 = vmatpush1.msra.mxu0 0.0
        %8279 = vmatprep.subr.mxu0 0.0
        %8280 = vmatpush1.msra.mxu0 0.0
        %8281 = vmatprep.subr.mxu0 0.0
        %8282 = vmatpush1.msra.mxu0 0.0
        %8283 = vmatprep.subr.mxu0 0.0
        %8284 = vmatpush1.msra.mxu0 0.0
        %8285 = vmatprep.mubr.f32.mxu0 0.0
        %8286 = vmatmul.mubr.f32.gmra.mrb[0].mxu0 %v8216
        %v8287 = vpop.f32.mrb[0].mxu0
        %v8288 = vadd.f32 0.0, %v8287
        %v8289 = vpop.f32.mrb[0].mxu0
        %8290 = vdwg.mxu0
        %v8291 = vadd.f32 %v8213, %v8288
        %v8292 = vld [vmem:[%s5 + $0x19] sm:$0x1f]
        %v8294 = vsel %vm7901, %v6290, 0
        %v8297 = vsel %vm7905, %v8292, 0
        %8299 = vmatprep.subr.mxu0 0.0
        %8300 = vmatpush1.msra.mxu0 %v8297
        %8301 = vmatprep.subr.mxu0 0.0
        %8302 = vmatpush1.msra.mxu0 0.0
        %8303 = vmatprep.subr.mxu0 0.0
        %8304 = vmatpush1.msra.mxu0 0.0
        %8305 = vmatprep.subr.mxu0 0.0
        %8306 = vmatpush1.msra.mxu0 0.0
        %8307 = vmatprep.subr.mxu0 0.0
        %8308 = vmatpush1.msra.mxu0 0.0
        %8309 = vmatprep.subr.mxu0 0.0
        %8310 = vmatpush1.msra.mxu0 0.0
        %8311 = vmatprep.subr.mxu0 0.0
        %8312 = vmatpush1.msra.mxu0 0.0
        %8313 = vmatprep.subr.mxu0 0.0
        %8314 = vmatpush1.msra.mxu0 0.0
        %8315 = vmatprep.subr.mxu0 0.0
        %8316 = vmatpush1.msra.mxu0 0.0
        %8317 = vmatprep.subr.mxu0 0.0
        %8318 = vmatpush1.msra.mxu0 0.0
        %8319 = vmatprep.subr.mxu0 0.0
        %8320 = vmatpush1.msra.mxu0 0.0
        %8321 = vmatprep.subr.mxu0 0.0
        %8322 = vmatpush1.msra.mxu0 0.0
        %8323 = vmatprep.subr.mxu0 0.0
        %8324 = vmatpush1.msra.mxu0 0.0
        %8325 = vmatprep.subr.mxu0 0.0
        %8326 = vmatpush1.msra.mxu0 0.0
        %8327 = vmatprep.subr.mxu0 0.0
        %8328 = vmatpush1.msra.mxu0 0.0
        %8329 = vmatprep.subr.mxu0 0.0
        %8330 = vmatpush1.msra.mxu0 0.0
        %8331 = vmatprep.subr.mxu0 0.0
        %8332 = vmatpush1.msra.mxu0 0.0
        %8333 = vmatprep.subr.mxu0 0.0
        %8334 = vmatpush1.msra.mxu0 0.0
        %8335 = vmatprep.subr.mxu0 0.0
        %8336 = vmatpush1.msra.mxu0 0.0
        %8337 = vmatprep.subr.mxu0 0.0
        %8338 = vmatpush1.msra.mxu0 0.0
        %8339 = vmatprep.subr.mxu0 0.0
        %8340 = vmatpush1.msra.mxu0 0.0
        %8341 = vmatprep.subr.mxu0 0.0
        %8342 = vmatpush1.msra.mxu0 0.0
        %8343 = vmatprep.subr.mxu0 0.0
        %8344 = vmatpush1.msra.mxu0 0.0
        %8345 = vmatprep.subr.mxu0 0.0
        %8346 = vmatpush1.msra.mxu0 0.0
        %8347 = vmatprep.subr.mxu0 0.0
        %8348 = vmatpush1.msra.mxu0 0.0
        %8349 = vmatprep.subr.mxu0 0.0
        %8350 = vmatpush1.msra.mxu0 0.0
        %8351 = vmatprep.subr.mxu0 0.0
        %8352 = vmatpush1.msra.mxu0 0.0
        %8353 = vmatprep.subr.mxu0 0.0
        %8354 = vmatpush1.msra.mxu0 0.0
        %8355 = vmatprep.subr.mxu0 0.0
        %8356 = vmatpush1.msra.mxu0 0.0
        %8357 = vmatprep.subr.mxu0 0.0
        %8358 = vmatpush1.msra.mxu0 0.0
        %8359 = vmatprep.subr.mxu0 0.0
        %8360 = vmatpush1.msra.mxu0 0.0
        %8361 = vmatprep.subr.mxu0 0.0
        %8362 = vmatpush1.msra.mxu0 0.0
        %8363 = vmatprep.mubr.f32.mxu0 0.0
        %8364 = vmatmul.mubr.f32.gmra.mrb[0].mxu0 %v8294
        %v8365 = vpop.f32.mrb[0].mxu0
        %v8366 = vadd.f32 0.0, %v8365
        %v8367 = vpop.f32.mrb[0].mxu0
        %8368 = vdwg.mxu0
        %v8369 = vadd.f32 %v8291, %v8366
        %v8370 = vld [vmem:[%s5 + $0x1e] sm:$0x1f]
        %v8371 = vrot.slane %v6290, 1
        %v8372 = vsel %vm7901, %v8371, 0
        %v8375 = vsel %vm7905, %v8370, 0
        %8377 = vmatprep.subr.mxu0 0.0
        %8378 = vmatpush1.msra.mxu0 %v8375
        %8379 = vmatprep.subr.mxu0 0.0
        %8380 = vmatpush1.msra.mxu0 0.0
        %8381 = vmatprep.subr.mxu0 0.0
        %8382 = vmatpush1.msra.mxu0 0.0
        %8383 = vmatprep.subr.mxu0 0.0
        %8384 = vmatpush1.msra.mxu0 0.0
        %8385 = vmatprep.subr.mxu0 0.0
        %8386 = vmatpush1.msra.mxu0 0.0
        %8387 = vmatprep.subr.mxu0 0.0
        %8388 = vmatpush1.msra.mxu0 0.0
        %8389 = vmatprep.subr.mxu0 0.0
        %8390 = vmatpush1.msra.mxu0 0.0
        %8391 = vmatprep.subr.mxu0 0.0
        %8392 = vmatpush1.msra.mxu0 0.0
        %8393 = vmatprep.subr.mxu0 0.0
        %8394 = vmatpush1.msra.mxu0 0.0
        %8395 = vmatprep.subr.mxu0 0.0
        %8396 = vmatpush1.msra.mxu0 0.0
        %8397 = vmatprep.subr.mxu0 0.0
        %8398 = vmatpush1.msra.mxu0 0.0
        %8399 = vmatprep.subr.mxu0 0.0
        %8400 = vmatpush1.msra.mxu0 0.0
        %8401 = vmatprep.subr.mxu0 0.0
        %8402 = vmatpush1.msra.mxu0 0.0
        %8403 = vmatprep.subr.mxu0 0.0
        %8404 = vmatpush1.msra.mxu0 0.0
        %8405 = vmatprep.subr.mxu0 0.0
        %8406 = vmatpush1.msra.mxu0 0.0
        %8407 = vmatprep.subr.mxu0 0.0
        %8408 = vmatpush1.msra.mxu0 0.0
        %8409 = vmatprep.subr.mxu0 0.0
        %8410 = vmatpush1.msra.mxu0 0.0
        %8411 = vmatprep.subr.mxu0 0.0
        %8412 = vmatpush1.msra.mxu0 0.0
        %8413 = vmatprep.subr.mxu0 0.0
        %8414 = vmatpush1.msra.mxu0 0.0
        %8415 = vmatprep.subr.mxu0 0.0
        %8416 = vmatpush1.msra.mxu0 0.0
        %8417 = vmatprep.subr.mxu0 0.0
        %8418 = vmatpush1.msra.mxu0 0.0
        %8419 = vmatprep.subr.mxu0 0.0
        %8420 = vmatpush1.msra.mxu0 0.0
        %8421 = vmatprep.subr.mxu0 0.0
        %8422 = vmatpush1.msra.mxu0 0.0
        %8423 = vmatprep.subr.mxu0 0.0
        %8424 = vmatpush1.msra.mxu0 0.0
        %8425 = vmatprep.subr.mxu0 0.0
        %8426 = vmatpush1.msra.mxu0 0.0
        %8427 = vmatprep.subr.mxu0 0.0
        %8428 = vmatpush1.msra.mxu0 0.0
        %8429 = vmatprep.subr.mxu0 0.0
        %8430 = vmatpush1.msra.mxu0 0.0
        %8431 = vmatprep.subr.mxu0 0.0
        %8432 = vmatpush1.msra.mxu0 0.0
        %8433 = vmatprep.subr.mxu0 0.0
        %8434 = vmatpush1.msra.mxu0 0.0
        %8435 = vmatprep.subr.mxu0 0.0
        %8436 = vmatpush1.msra.mxu0 0.0
        %8437 = vmatprep.subr.mxu0 0.0
        %8438 = vmatpush1.msra.mxu0 0.0
        %8439 = vmatprep.subr.mxu0 0.0
        %8440 = vmatpush1.msra.mxu0 0.0
        %8441 = vmatprep.mubr.f32.mxu0 0.0
        %8442 = vmatmul.mubr.f32.gmra.mrb[0].mxu0 %v8372
        %v8443 = vpop.f32.mrb[0].mxu0
        %v8444 = vadd.f32 0.0, %v8443
        %v8445 = vpop.f32.mrb[0].mxu0
        %8446 = vdwg.mxu0
        %v8447 = vadd.f32 %v8369, %v8444
        %v8448 = vld [vmem:[%s5 + $0x23] sm:$0x1f]
        %v8449 = vrot.slane %v6290, 2
        %v8450 = vsel %vm7901, %v8449, 0
        %v8453 = vsel %vm7905, %v8448, 0
        %8455 = vmatprep.subr.mxu0 0.0
        %8456 = vmatpush1.msra.mxu0 %v8453
        %8457 = vmatprep.subr.mxu0 0.0
        %8458 = vmatpush1.msra.mxu0 0.0
        %8459 = vmatprep.subr.mxu0 0.0
        %8460 = vmatpush1.msra.mxu0 0.0
        %8461 = vmatprep.subr.mxu0 0.0
        %8462 = vmatpush1.msra.mxu0 0.0
        %8463 = vmatprep.subr.mxu0 0.0
        %8464 = vmatpush1.msra.mxu0 0.0
        %8465 = vmatprep.subr.mxu0 0.0
        %8466 = vmatpush1.msra.mxu0 0.0
        %8467 = vmatprep.subr.mxu0 0.0
        %8468 = vmatpush1.msra.mxu0 0.0
        %8469 = vmatprep.subr.mxu0 0.0
        %8470 = vmatpush1.msra.mxu0 0.0
        %8471 = vmatprep.subr.mxu0 0.0
        %8472 = vmatpush1.msra.mxu0 0.0
        %8473 = vmatprep.subr.mxu0 0.0
        %8474 = vmatpush1.msra.mxu0 0.0
        %8475 = vmatprep.subr.mxu0 0.0
        %8476 = vmatpush1.msra.mxu0 0.0
        %8477 = vmatprep.subr.mxu0 0.0
        %8478 = vmatpush1.msra.mxu0 0.0
        %8479 = vmatprep.subr.mxu0 0.0
        %8480 = vmatpush1.msra.mxu0 0.0
        %8481 = vmatprep.subr.mxu0 0.0
        %8482 = vmatpush1.msra.mxu0 0.0
        %8483 = vmatprep.subr.mxu0 0.0
        %8484 = vmatpush1.msra.mxu0 0.0
        %8485 = vmatprep.subr.mxu0 0.0
        %8486 = vmatpush1.msra.mxu0 0.0
        %8487 = vmatprep.subr.mxu0 0.0
        %8488 = vmatpush1.msra.mxu0 0.0
        %8489 = vmatprep.subr.mxu0 0.0
        %8490 = vmatpush1.msra.mxu0 0.0
        %8491 = vmatprep.subr.mxu0 0.0
        %8492 = vmatpush1.msra.mxu0 0.0
        %8493 = vmatprep.subr.mxu0 0.0
        %8494 = vmatpush1.msra.mxu0 0.0
        %8495 = vmatprep.subr.mxu0 0.0
        %8496 = vmatpush1.msra.mxu0 0.0
        %8497 = vmatprep.subr.mxu0 0.0
        %8498 = vmatpush1.msra.mxu0 0.0
        %8499 = vmatprep.subr.mxu0 0.0
        %8500 = vmatpush1.msra.mxu0 0.0
        %8501 = vmatprep.subr.mxu0 0.0
        %8502 = vmatpush1.msra.mxu0 0.0
        %8503 = vmatprep.subr.mxu0 0.0
        %8504 = vmatpush1.msra.mxu0 0.0
        %8505 = vmatprep.subr.mxu0 0.0
        %8506 = vmatpush1.msra.mxu0 0.0
        %8507 = vmatprep.subr.mxu0 0.0
        %8508 = vmatpush1.msra.mxu0 0.0
        %8509 = vmatprep.subr.mxu0 0.0
        %8510 = vmatpush1.msra.mxu0 0.0
        %8511 = vmatprep.subr.mxu0 0.0
        %8512 = vmatpush1.msra.mxu0 0.0
        %8513 = vmatprep.subr.mxu0 0.0
        %8514 = vmatpush1.msra.mxu0 0.0
        %8515 = vmatprep.subr.mxu0 0.0
        %8516 = vmatpush1.msra.mxu0 0.0
        %8517 = vmatprep.subr.mxu0 0.0
        %8518 = vmatpush1.msra.mxu0 0.0
        %8519 = vmatprep.mubr.f32.mxu0 0.0
        %8520 = vmatmul.mubr.f32.gmra.mrb[0].mxu0 %v8450
        %v8521 = vpop.f32.mrb[0].mxu0
        %v8522 = vadd.f32 0.0, %v8521
        %v8523 = vpop.f32.mrb[0].mxu0
        %8524 = vdwg.mxu0
        %v8525 = vadd.f32 %v8447, %v8522
        %v8526 = vld [vmem:[%s5 + $0x28] sm:$0x1f]
        %v8527 = vrot.slane %v6290, 3
        %v8528 = vsel %vm7901, %v8527, 0
        %v8531 = vsel %vm7905, %v8526, 0
        %8533 = vmatprep.subr.mxu0 0.0
        %8534 = vmatpush1.msra.mxu0 %v8531
        %8535 = vmatprep.subr.mxu0 0.0
        %8536 = vmatpush1.msra.mxu0 0.0
        %8537 = vmatprep.subr.mxu0 0.0
        %8538 = vmatpush1.msra.mxu0 0.0
        %8539 = vmatprep.subr.mxu0 0.0
        %8540 = vmatpush1.msra.mxu0 0.0
        %8541 = vmatprep.subr.mxu0 0.0
        %8542 = vmatpush1.msra.mxu0 0.0
        %8543 = vmatprep.subr.mxu0 0.0
        %8544 = vmatpush1.msra.mxu0 0.0
        %8545 = vmatprep.subr.mxu0 0.0
        %8546 = vmatpush1.msra.mxu0 0.0
        %8547 = vmatprep.subr.mxu0 0.0
        %8548 = vmatpush1.msra.mxu0 0.0
        %8549 = vmatprep.subr.mxu0 0.0
        %8550 = vmatpush1.msra.mxu0 0.0
        %8551 = vmatprep.subr.mxu0 0.0
        %8552 = vmatpush1.msra.mxu0 0.0
        %8553 = vmatprep.subr.mxu0 0.0
        %8554 = vmatpush1.msra.mxu0 0.0
        %8555 = vmatprep.subr.mxu0 0.0
        %8556 = vmatpush1.msra.mxu0 0.0
        %8557 = vmatprep.subr.mxu0 0.0
        %8558 = vmatpush1.msra.mxu0 0.0
        %8559 = vmatprep.subr.mxu0 0.0
        %8560 = vmatpush1.msra.mxu0 0.0
        %8561 = vmatprep.subr.mxu0 0.0
        %8562 = vmatpush1.msra.mxu0 0.0
        %8563 = vmatprep.subr.mxu0 0.0
        %8564 = vmatpush1.msra.mxu0 0.0
        %8565 = vmatprep.subr.mxu0 0.0
        %8566 = vmatpush1.msra.mxu0 0.0
        %8567 = vmatprep.subr.mxu0 0.0
        %8568 = vmatpush1.msra.mxu0 0.0
        %8569 = vmatprep.subr.mxu0 0.0
        %8570 = vmatpush1.msra.mxu0 0.0
        %8571 = vmatprep.subr.mxu0 0.0
        %8572 = vmatpush1.msra.mxu0 0.0
        %8573 = vmatprep.subr.mxu0 0.0
        %8574 = vmatpush1.msra.mxu0 0.0
        %8575 = vmatprep.subr.mxu0 0.0
        %8576 = vmatpush1.msra.mxu0 0.0
        %8577 = vmatprep.subr.mxu0 0.0
        %8578 = vmatpush1.msra.mxu0 0.0
        %8579 = vmatprep.subr.mxu0 0.0
        %8580 = vmatpush1.msra.mxu0 0.0
        %8581 = vmatprep.subr.mxu0 0.0
        %8582 = vmatpush1.msra.mxu0 0.0
        %8583 = vmatprep.subr.mxu0 0.0
        %8584 = vmatpush1.msra.mxu0 0.0
        %8585 = vmatprep.subr.mxu0 0.0
        %8586 = vmatpush1.msra.mxu0 0.0
        %8587 = vmatprep.subr.mxu0 0.0
        %8588 = vmatpush1.msra.mxu0 0.0
        %8589 = vmatprep.subr.mxu0 0.0
        %8590 = vmatpush1.msra.mxu0 0.0
        %8591 = vmatprep.subr.mxu0 0.0
        %8592 = vmatpush1.msra.mxu0 0.0
        %8593 = vmatprep.subr.mxu0 0.0
        %8594 = vmatpush1.msra.mxu0 0.0
        %8595 = vmatprep.subr.mxu0 0.0
        %8596 = vmatpush1.msra.mxu0 0.0
        %8597 = vmatprep.mubr.f32.mxu0 0.0
        %8598 = vmatmul.mubr.f32.gmra.mrb[0].mxu0 %v8528
        %v8599 = vpop.f32.mrb[0].mxu0
        %v8600 = vadd.f32 0.0, %v8599
        %v8601 = vpop.f32.mrb[0].mxu0
        %8602 = vdwg.mxu0
        %v8603 = vadd.f32 %v8525, %v8600
        %v8604 = vld [vmem:[%s5 + $0x2d] sm:$0x1f]
        %v8605 = vrot.slane %v6290, 4
        %v8606 = vsel %vm7901, %v8605, 0
        %v8609 = vsel %vm7905, %v8604, 0
        %8611 = vmatprep.subr.mxu0 0.0
        %8612 = vmatpush1.msra.mxu0 %v8609
        %8613 = vmatprep.subr.mxu0 0.0
        %8614 = vmatpush1.msra.mxu0 0.0
        %8615 = vmatprep.subr.mxu0 0.0
        %8616 = vmatpush1.msra.mxu0 0.0
        %8617 = vmatprep.subr.mxu0 0.0
        %8618 = vmatpush1.msra.mxu0 0.0
        %8619 = vmatprep.subr.mxu0 0.0
        %8620 = vmatpush1.msra.mxu0 0.0
        %8621 = vmatprep.subr.mxu0 0.0
        %8622 = vmatpush1.msra.mxu0 0.0
        %8623 = vmatprep.subr.mxu0 0.0
        %8624 = vmatpush1.msra.mxu0 0.0
        %8625 = vmatprep.subr.mxu0 0.0
        %8626 = vmatpush1.msra.mxu0 0.0
        %8627 = vmatprep.subr.mxu0 0.0
        %8628 = vmatpush1.msra.mxu0 0.0
        %8629 = vmatprep.subr.mxu0 0.0
        %8630 = vmatpush1.msra.mxu0 0.0
        %8631 = vmatprep.subr.mxu0 0.0
        %8632 = vmatpush1.msra.mxu0 0.0
        %8633 = vmatprep.subr.mxu0 0.0
        %8634 = vmatpush1.msra.mxu0 0.0
        %8635 = vmatprep.subr.mxu0 0.0
        %8636 = vmatpush1.msra.mxu0 0.0
        %8637 = vmatprep.subr.mxu0 0.0
        %8638 = vmatpush1.msra.mxu0 0.0
        %8639 = vmatprep.subr.mxu0 0.0
        %8640 = vmatpush1.msra.mxu0 0.0
        %8641 = vmatprep.subr.mxu0 0.0
        %8642 = vmatpush1.msra.mxu0 0.0
        %8643 = vmatprep.subr.mxu0 0.0
        %8644 = vmatpush1.msra.mxu0 0.0
        %8645 = vmatprep.subr.mxu0 0.0
        %8646 = vmatpush1.msra.mxu0 0.0
        %8647 = vmatprep.subr.mxu0 0.0
        %8648 = vmatpush1.msra.mxu0 0.0
        %8649 = vmatprep.subr.mxu0 0.0
        %8650 = vmatpush1.msra.mxu0 0.0
        %8651 = vmatprep.subr.mxu0 0.0
        %8652 = vmatpush1.msra.mxu0 0.0
        %8653 = vmatprep.subr.mxu0 0.0
        %8654 = vmatpush1.msra.mxu0 0.0
        %8655 = vmatprep.subr.mxu0 0.0
        %8656 = vmatpush1.msra.mxu0 0.0
        %8657 = vmatprep.subr.mxu0 0.0
        %8658 = vmatpush1.msra.mxu0 0.0
        %8659 = vmatprep.subr.mxu0 0.0
        %8660 = vmatpush1.msra.mxu0 0.0
        %8661 = vmatprep.subr.mxu0 0.0
        %8662 = vmatpush1.msra.mxu0 0.0
        %8663 = vmatprep.subr.mxu0 0.0
        %8664 = vmatpush1.msra.mxu0 0.0
        %8665 = vmatprep.subr.mxu0 0.0
        %8666 = vmatpush1.msra.mxu0 0.0
        %8667 = vmatprep.subr.mxu0 0.0
        %8668 = vmatpush1.msra.mxu0 0.0
        %8669 = vmatprep.subr.mxu0 0.0
        %8670 = vmatpush1.msra.mxu0 0.0
        %8671 = vmatprep.subr.mxu0 0.0
        %8672 = vmatpush1.msra.mxu0 0.0
        %8673 = vmatprep.subr.mxu0 0.0
        %8674 = vmatpush1.msra.mxu0 0.0
        %8675 = vmatprep.mubr.f32.mxu0 0.0
        %8676 = vmatmul.mubr.f32.gmra.mrb[0].mxu0 %v8606
        %v8677 = vpop.f32.mrb[0].mxu0
        %v8678 = vadd.f32 0.0, %v8677
        %v8679 = vpop.f32.mrb[0].mxu0
        %8680 = vdwg.mxu0
        %v8681 = vadd.f32 %v8603, %v8678
        %v8682 = vld [vmem:[%s5 + $0x32] sm:$0x1f]
        %v8684 = vsel %vm7901, %v7094, 0
        %v8687 = vsel %vm7905, %v8682, 0
        %8689 = vmatprep.subr.mxu0 0.0
        %8690 = vmatpush1.msra.mxu0 %v8687
        %8691 = vmatprep.subr.mxu0 0.0
        %8692 = vmatpush1.msra.mxu0 0.0
        %8693 = vmatprep.subr.mxu0 0.0
        %8694 = vmatpush1.msra.mxu0 0.0
        %8695 = vmatprep.subr.mxu0 0.0
        %8696 = vmatpush1.msra.mxu0 0.0
        %8697 = vmatprep.subr.mxu0 0.0
        %8698 = vmatpush1.msra.mxu0 0.0
        %8699 = vmatprep.subr.mxu0 0.0
        %8700 = vmatpush1.msra.mxu0 0.0
        %8701 = vmatprep.subr.mxu0 0.0
        %8702 = vmatpush1.msra.mxu0 0.0
        %8703 = vmatprep.subr.mxu0 0.0
        %8704 = vmatpush1.msra.mxu0 0.0
        %8705 = vmatprep.subr.mxu0 0.0
        %8706 = vmatpush1.msra.mxu0 0.0
        %8707 = vmatprep.subr.mxu0 0.0
        %8708 = vmatpush1.msra.mxu0 0.0
        %8709 = vmatprep.subr.mxu0 0.0
        %8710 = vmatpush1.msra.mxu0 0.0
        %8711 = vmatprep.subr.mxu0 0.0
        %8712 = vmatpush1.msra.mxu0 0.0
        %8713 = vmatprep.subr.mxu0 0.0
        %8714 = vmatpush1.msra.mxu0 0.0
        %8715 = vmatprep.subr.mxu0 0.0
        %8716 = vmatpush1.msra.mxu0 0.0
        %8717 = vmatprep.subr.mxu0 0.0
        %8718 = vmatpush1.msra.mxu0 0.0
        %8719 = vmatprep.subr.mxu0 0.0
        %8720 = vmatpush1.msra.mxu0 0.0
        %8721 = vmatprep.subr.mxu0 0.0
        %8722 = vmatpush1.msra.mxu0 0.0
        %8723 = vmatprep.subr.mxu0 0.0
        %8724 = vmatpush1.msra.mxu0 0.0
        %8725 = vmatprep.subr.mxu0 0.0
        %8726 = vmatpush1.msra.mxu0 0.0
        %8727 = vmatprep.subr.mxu0 0.0
        %8728 = vmatpush1.msra.mxu0 0.0
        %8729 = vmatprep.subr.mxu0 0.0
        %8730 = vmatpush1.msra.mxu0 0.0
        %8731 = vmatprep.subr.mxu0 0.0
        %8732 = vmatpush1.msra.mxu0 0.0
        %8733 = vmatprep.subr.mxu0 0.0
        %8734 = vmatpush1.msra.mxu0 0.0
        %8735 = vmatprep.subr.mxu0 0.0
        %8736 = vmatpush1.msra.mxu0 0.0
        %8737 = vmatprep.subr.mxu0 0.0
        %8738 = vmatpush1.msra.mxu0 0.0
        %8739 = vmatprep.subr.mxu0 0.0
        %8740 = vmatpush1.msra.mxu0 0.0
        %8741 = vmatprep.subr.mxu0 0.0
        %8742 = vmatpush1.msra.mxu0 0.0
        %8743 = vmatprep.subr.mxu0 0.0
        %8744 = vmatpush1.msra.mxu0 0.0
        %8745 = vmatprep.subr.mxu0 0.0
        %8746 = vmatpush1.msra.mxu0 0.0
        %8747 = vmatprep.subr.mxu0 0.0
        %8748 = vmatpush1.msra.mxu0 0.0
        %8749 = vmatprep.subr.mxu0 0.0
        %8750 = vmatpush1.msra.mxu0 0.0
        %8751 = vmatprep.subr.mxu0 0.0
        %8752 = vmatpush1.msra.mxu0 0.0
        %8753 = vmatprep.mubr.f32.mxu0 0.0
        %8754 = vmatmul.mubr.f32.gmra.mrb[0].mxu0 %v8684
        %v8755 = vpop.f32.mrb[0].mxu0
        %v8756 = vadd.f32 0.0, %v8755
        %v8757 = vpop.f32.mrb[0].mxu0
        %8758 = vdwg.mxu0
        %v8759 = vadd.f32 %v8681, %v8756
        %v8760 = vld [vmem:[%s5 + $0x37] sm:$0x1f]
        %v8761 = vrot.slane %v7094, 1
        %v8762 = vsel %vm7901, %v8761, 0
        %v8765 = vsel %vm7905, %v8760, 0
        %8767 = vmatprep.subr.mxu0 0.0
        %8768 = vmatpush1.msra.mxu0 %v8765
        %8769 = vmatprep.subr.mxu0 0.0
        %8770 = vmatpush1.msra.mxu0 0.0
        %8771 = vmatprep.subr.mxu0 0.0
        %8772 = vmatpush1.msra.mxu0 0.0
        %8773 = vmatprep.subr.mxu0 0.0
        %8774 = vmatpush1.msra.mxu0 0.0
        %8775 = vmatprep.subr.mxu0 0.0
        %8776 = vmatpush1.msra.mxu0 0.0
        %8777 = vmatprep.subr.mxu0 0.0
        %8778 = vmatpush1.msra.mxu0 0.0
        %8779 = vmatprep.subr.mxu0 0.0
        %8780 = vmatpush1.msra.mxu0 0.0
        %8781 = vmatprep.subr.mxu0 0.0
        %8782 = vmatpush1.msra.mxu0 0.0
        %8783 = vmatprep.subr.mxu0 0.0
        %8784 = vmatpush1.msra.mxu0 0.0
        %8785 = vmatprep.subr.mxu0 0.0
        %8786 = vmatpush1.msra.mxu0 0.0
        %8787 = vmatprep.subr.mxu0 0.0
        %8788 = vmatpush1.msra.mxu0 0.0
        %8789 = vmatprep.subr.mxu0 0.0
        %8790 = vmatpush1.msra.mxu0 0.0
        %8791 = vmatprep.subr.mxu0 0.0
        %8792 = vmatpush1.msra.mxu0 0.0
        %8793 = vmatprep.subr.mxu0 0.0
        %8794 = vmatpush1.msra.mxu0 0.0
        %8795 = vmatprep.subr.mxu0 0.0
        %8796 = vmatpush1.msra.mxu0 0.0
        %8797 = vmatprep.subr.mxu0 0.0
        %8798 = vmatpush1.msra.mxu0 0.0
        %8799 = vmatprep.subr.mxu0 0.0
        %8800 = vmatpush1.msra.mxu0 0.0
        %8801 = vmatprep.subr.mxu0 0.0
        %8802 = vmatpush1.msra.mxu0 0.0
        %8803 = vmatprep.subr.mxu0 0.0
        %8804 = vmatpush1.msra.mxu0 0.0
        %8805 = vmatprep.subr.mxu0 0.0
        %8806 = vmatpush1.msra.mxu0 0.0
        %8807 = vmatprep.subr.mxu0 0.0
        %8808 = vmatpush1.msra.mxu0 0.0
        %8809 = vmatprep.subr.mxu0 0.0
        %8810 = vmatpush1.msra.mxu0 0.0
        %8811 = vmatprep.subr.mxu0 0.0
        %8812 = vmatpush1.msra.mxu0 0.0
        %8813 = vmatprep.subr.mxu0 0.0
        %8814 = vmatpush1.msra.mxu0 0.0
        %8815 = vmatprep.subr.mxu0 0.0
        %8816 = vmatpush1.msra.mxu0 0.0
        %8817 = vmatprep.subr.mxu0 0.0
        %8818 = vmatpush1.msra.mxu0 0.0
        %8819 = vmatprep.subr.mxu0 0.0
        %8820 = vmatpush1.msra.mxu0 0.0
        %8821 = vmatprep.subr.mxu0 0.0
        %8822 = vmatpush1.msra.mxu0 0.0
        %8823 = vmatprep.subr.mxu0 0.0
        %8824 = vmatpush1.msra.mxu0 0.0
        %8825 = vmatprep.subr.mxu0 0.0
        %8826 = vmatpush1.msra.mxu0 0.0
        %8827 = vmatprep.subr.mxu0 0.0
        %8828 = vmatpush1.msra.mxu0 0.0
        %8829 = vmatprep.subr.mxu0 0.0
        %8830 = vmatpush1.msra.mxu0 0.0
        %8831 = vmatprep.mubr.f32.mxu0 0.0
        %8832 = vmatmul.mubr.f32.gmra.mrb[0].mxu0 %v8762
        %v8833 = vpop.f32.mrb[0].mxu0
        %v8834 = vadd.f32 0.0, %v8833
        %v8835 = vpop.f32.mrb[0].mxu0
        %8836 = vdwg.mxu0
        %v8837 = vadd.f32 %v8759, %v8834
        %v8838 = vld [vmem:[%s5 + $0x3c] sm:$0x1f]
        %v8839 = vrot.slane %v7094, 2
        %v8840 = vsel %vm7901, %v8839, 0
        %v8843 = vsel %vm7905, %v8838, 0
        %8845 = vmatprep.subr.mxu0 0.0
        %8846 = vmatpush1.msra.mxu0 %v8843
        %8847 = vmatprep.subr.mxu0 0.0
        %8848 = vmatpush1.msra.mxu0 0.0
        %8849 = vmatprep.subr.mxu0 0.0
        %8850 = vmatpush1.msra.mxu0 0.0
        %8851 = vmatprep.subr.mxu0 0.0
        %8852 = vmatpush1.msra.mxu0 0.0
        %8853 = vmatprep.subr.mxu0 0.0
        %8854 = vmatpush1.msra.mxu0 0.0
        %8855 = vmatprep.subr.mxu0 0.0
        %8856 = vmatpush1.msra.mxu0 0.0
        %8857 = vmatprep.subr.mxu0 0.0
        %8858 = vmatpush1.msra.mxu0 0.0
        %8859 = vmatprep.subr.mxu0 0.0
        %8860 = vmatpush1.msra.mxu0 0.0
        %8861 = vmatprep.subr.mxu0 0.0
        %8862 = vmatpush1.msra.mxu0 0.0
        %8863 = vmatprep.subr.mxu0 0.0
        %8864 = vmatpush1.msra.mxu0 0.0
        %8865 = vmatprep.subr.mxu0 0.0
        %8866 = vmatpush1.msra.mxu0 0.0
        %8867 = vmatprep.subr.mxu0 0.0
        %8868 = vmatpush1.msra.mxu0 0.0
        %8869 = vmatprep.subr.mxu0 0.0
        %8870 = vmatpush1.msra.mxu0 0.0
        %8871 = vmatprep.subr.mxu0 0.0
        %8872 = vmatpush1.msra.mxu0 0.0
        %8873 = vmatprep.subr.mxu0 0.0
        %8874 = vmatpush1.msra.mxu0 0.0
        %8875 = vmatprep.subr.mxu0 0.0
        %8876 = vmatpush1.msra.mxu0 0.0
        %8877 = vmatprep.subr.mxu0 0.0
        %8878 = vmatpush1.msra.mxu0 0.0
        %8879 = vmatprep.subr.mxu0 0.0
        %8880 = vmatpush1.msra.mxu0 0.0
        %8881 = vmatprep.subr.mxu0 0.0
        %8882 = vmatpush1.msra.mxu0 0.0
        %8883 = vmatprep.subr.mxu0 0.0
        %8884 = vmatpush1.msra.mxu0 0.0
        %8885 = vmatprep.subr.mxu0 0.0
        %8886 = vmatpush1.msra.mxu0 0.0
        %8887 = vmatprep.subr.mxu0 0.0
        %8888 = vmatpush1.msra.mxu0 0.0
        %8889 = vmatprep.subr.mxu0 0.0
        %8890 = vmatpush1.msra.mxu0 0.0
        %8891 = vmatprep.subr.mxu0 0.0
        %8892 = vmatpush1.msra.mxu0 0.0
        %8893 = vmatprep.subr.mxu0 0.0
        %8894 = vmatpush1.msra.mxu0 0.0
        %8895 = vmatprep.subr.mxu0 0.0
        %8896 = vmatpush1.msra.mxu0 0.0
        %8897 = vmatprep.subr.mxu0 0.0
        %8898 = vmatpush1.msra.mxu0 0.0
        %8899 = vmatprep.subr.mxu0 0.0
        %8900 = vmatpush1.msra.mxu0 0.0
        %8901 = vmatprep.subr.mxu0 0.0
        %8902 = vmatpush1.msra.mxu0 0.0
        %8903 = vmatprep.subr.mxu0 0.0
        %8904 = vmatpush1.msra.mxu0 0.0
        %8905 = vmatprep.subr.mxu0 0.0
        %8906 = vmatpush1.msra.mxu0 0.0
        %8907 = vmatprep.subr.mxu0 0.0
        %8908 = vmatpush1.msra.mxu0 0.0
        %8909 = vmatprep.mubr.f32.mxu0 0.0
        %8910 = vmatmul.mubr.f32.gmra.mrb[0].mxu0 %v8840
        %v8911 = vpop.f32.mrb[0].mxu0
        %v8912 = vadd.f32 0.0, %v8911
        %v8913 = vpop.f32.mrb[0].mxu0
        %8914 = vdwg.mxu0
        %v8915 = vadd.f32 %v8837, %v8912
        %v8916 = vld [vmem:[%s5 + $0x41] sm:$0x1f]
        %v8917 = vrot.slane %v7094, 3
        %v8918 = vsel %vm7901, %v8917, 0
        %v8921 = vsel %vm7905, %v8916, 0
        %8923 = vmatprep.subr.mxu0 0.0
        %8924 = vmatpush1.msra.mxu0 %v8921
        %8925 = vmatprep.subr.mxu0 0.0
        %8926 = vmatpush1.msra.mxu0 0.0
        %8927 = vmatprep.subr.mxu0 0.0
        %8928 = vmatpush1.msra.mxu0 0.0
        %8929 = vmatprep.subr.mxu0 0.0
        %8930 = vmatpush1.msra.mxu0 0.0
        %8931 = vmatprep.subr.mxu0 0.0
        %8932 = vmatpush1.msra.mxu0 0.0
        %8933 = vmatprep.subr.mxu0 0.0
        %8934 = vmatpush1.msra.mxu0 0.0
        %8935 = vmatprep.subr.mxu0 0.0
        %8936 = vmatpush1.msra.mxu0 0.0
        %8937 = vmatprep.subr.mxu0 0.0
        %8938 = vmatpush1.msra.mxu0 0.0
        %8939 = vmatprep.subr.mxu0 0.0
        %8940 = vmatpush1.msra.mxu0 0.0
        %8941 = vmatprep.subr.mxu0 0.0
        %8942 = vmatpush1.msra.mxu0 0.0
        %8943 = vmatprep.subr.mxu0 0.0
        %8944 = vmatpush1.msra.mxu0 0.0
        %8945 = vmatprep.subr.mxu0 0.0
        %8946 = vmatpush1.msra.mxu0 0.0
        %8947 = vmatprep.subr.mxu0 0.0
        %8948 = vmatpush1.msra.mxu0 0.0
        %8949 = vmatprep.subr.mxu0 0.0
        %8950 = vmatpush1.msra.mxu0 0.0
        %8951 = vmatprep.subr.mxu0 0.0
        %8952 = vmatpush1.msra.mxu0 0.0
        %8953 = vmatprep.subr.mxu0 0.0
        %8954 = vmatpush1.msra.mxu0 0.0
        %8955 = vmatprep.subr.mxu0 0.0
        %8956 = vmatpush1.msra.mxu0 0.0
        %8957 = vmatprep.subr.mxu0 0.0
        %8958 = vmatpush1.msra.mxu0 0.0
        %8959 = vmatprep.subr.mxu0 0.0
        %8960 = vmatpush1.msra.mxu0 0.0
        %8961 = vmatprep.subr.mxu0 0.0
        %8962 = vmatpush1.msra.mxu0 0.0
        %8963 = vmatprep.subr.mxu0 0.0
        %8964 = vmatpush1.msra.mxu0 0.0
        %8965 = vmatprep.subr.mxu0 0.0
        %8966 = vmatpush1.msra.mxu0 0.0
        %8967 = vmatprep.subr.mxu0 0.0
        %8968 = vmatpush1.msra.mxu0 0.0
        %8969 = vmatprep.subr.mxu0 0.0
        %8970 = vmatpush1.msra.mxu0 0.0
        %8971 = vmatprep.subr.mxu0 0.0
        %8972 = vmatpush1.msra.mxu0 0.0
        %8973 = vmatprep.subr.mxu0 0.0
        %8974 = vmatpush1.msra.mxu0 0.0
        %8975 = vmatprep.subr.mxu0 0.0
        %8976 = vmatpush1.msra.mxu0 0.0
        %8977 = vmatprep.subr.mxu0 0.0
        %8978 = vmatpush1.msra.mxu0 0.0
        %8979 = vmatprep.subr.mxu0 0.0
        %8980 = vmatpush1.msra.mxu0 0.0
        %8981 = vmatprep.subr.mxu0 0.0
        %8982 = vmatpush1.msra.mxu0 0.0
        %8983 = vmatprep.subr.mxu0 0.0
        %8984 = vmatpush1.msra.mxu0 0.0
        %8985 = vmatprep.subr.mxu0 0.0
        %8986 = vmatpush1.msra.mxu0 0.0
        %8987 = vmatprep.mubr.f32.mxu0 0.0
        %8988 = vmatmul.mubr.f32.gmra.mrb[0].mxu0 %v8918
        %v8989 = vpop.f32.mrb[0].mxu0
        %v8990 = vadd.f32 0.0, %v8989
        %v8991 = vpop.f32.mrb[0].mxu0
        %8992 = vdwg.mxu0
        %v8993 = vadd.f32 %v8915, %v8990
        %v8994 = vld [vmem:[%s5 + $0x46] sm:$0x1f]
        %v8995 = vrot.slane %v7094, 4
        %v8996 = vsel %vm7901, %v8995, 0
        %v8999 = vsel %vm7905, %v8994, 0
        %9001 = vmatprep.subr.mxu0 0.0
        %9002 = vmatpush1.msra.mxu0 %v8999
        %9003 = vmatprep.subr.mxu0 0.0
        %9004 = vmatpush1.msra.mxu0 0.0
        %9005 = vmatprep.subr.mxu0 0.0
        %9006 = vmatpush1.msra.mxu0 0.0
        %9007 = vmatprep.subr.mxu0 0.0
        %9008 = vmatpush1.msra.mxu0 0.0
        %9009 = vmatprep.subr.mxu0 0.0
        %9010 = vmatpush1.msra.mxu0 0.0
        %9011 = vmatprep.subr.mxu0 0.0
        %9012 = vmatpush1.msra.mxu0 0.0
        %9013 = vmatprep.subr.mxu0 0.0
        %9014 = vmatpush1.msra.mxu0 0.0
        %9015 = vmatprep.subr.mxu0 0.0
        %9016 = vmatpush1.msra.mxu0 0.0
        %9017 = vmatprep.subr.mxu0 0.0
        %9018 = vmatpush1.msra.mxu0 0.0
        %9019 = vmatprep.subr.mxu0 0.0
        %9020 = vmatpush1.msra.mxu0 0.0
        %9021 = vmatprep.subr.mxu0 0.0
        %9022 = vmatpush1.msra.mxu0 0.0
        %9023 = vmatprep.subr.mxu0 0.0
        %9024 = vmatpush1.msra.mxu0 0.0
        %9025 = vmatprep.subr.mxu0 0.0
        %9026 = vmatpush1.msra.mxu0 0.0
        %9027 = vmatprep.subr.mxu0 0.0
        %9028 = vmatpush1.msra.mxu0 0.0
        %9029 = vmatprep.subr.mxu0 0.0
        %9030 = vmatpush1.msra.mxu0 0.0
        %9031 = vmatprep.subr.mxu0 0.0
        %9032 = vmatpush1.msra.mxu0 0.0
        %9033 = vmatprep.subr.mxu0 0.0
        %9034 = vmatpush1.msra.mxu0 0.0
        %9035 = vmatprep.subr.mxu0 0.0
        %9036 = vmatpush1.msra.mxu0 0.0
        %9037 = vmatprep.subr.mxu0 0.0
        %9038 = vmatpush1.msra.mxu0 0.0
        %9039 = vmatprep.subr.mxu0 0.0
        %9040 = vmatpush1.msra.mxu0 0.0
        %9041 = vmatprep.subr.mxu0 0.0
        %9042 = vmatpush1.msra.mxu0 0.0
        %9043 = vmatprep.subr.mxu0 0.0
        %9044 = vmatpush1.msra.mxu0 0.0
        %9045 = vmatprep.subr.mxu0 0.0
        %9046 = vmatpush1.msra.mxu0 0.0
        %9047 = vmatprep.subr.mxu0 0.0
        %9048 = vmatpush1.msra.mxu0 0.0
        %9049 = vmatprep.subr.mxu0 0.0
        %9050 = vmatpush1.msra.mxu0 0.0
        %9051 = vmatprep.subr.mxu0 0.0
        %9052 = vmatpush1.msra.mxu0 0.0
        %9053 = vmatprep.subr.mxu0 0.0
        %9054 = vmatpush1.msra.mxu0 0.0
        %9055 = vmatprep.subr.mxu0 0.0
        %9056 = vmatpush1.msra.mxu0 0.0
        %9057 = vmatprep.subr.mxu0 0.0
        %9058 = vmatpush1.msra.mxu0 0.0
        %9059 = vmatprep.subr.mxu0 0.0
        %9060 = vmatpush1.msra.mxu0 0.0
        %9061 = vmatprep.subr.mxu0 0.0
        %9062 = vmatpush1.msra.mxu0 0.0
        %9063 = vmatprep.subr.mxu0 0.0
        %9064 = vmatpush1.msra.mxu0 0.0
        %9065 = vmatprep.mubr.f32.mxu0 0.0
        %9066 = vmatmul.mubr.f32.gmra.mrb[0].mxu0 %v8996
        %v9067 = vpop.f32.mrb[0].mxu0
        %v9068 = vadd.f32 0.0, %v9067
        %v9069 = vpop.f32.mrb[0].mxu0
        %9070 = vdwg.mxu0
        %v9071 = vadd.f32 %v8993, %v9068
        %v9072 = vld [vmem:[%s5 + $0x4b] sm:$0x1f]
        %v9074 = vsel %vm7901, %v7898, 0
        %v9077 = vsel %vm7905, %v9072, 0
        %9079 = vmatprep.subr.mxu0 0.0
        %9080 = vmatpush1.msra.mxu0 %v9077
        %9081 = vmatprep.subr.mxu0 0.0
        %9082 = vmatpush1.msra.mxu0 0.0
        %9083 = vmatprep.subr.mxu0 0.0
        %9084 = vmatpush1.msra.mxu0 0.0
        %9085 = vmatprep.subr.mxu0 0.0
        %9086 = vmatpush1.msra.mxu0 0.0
        %9087 = vmatprep.subr.mxu0 0.0
        %9088 = vmatpush1.msra.mxu0 0.0
        %9089 = vmatprep.subr.mxu0 0.0
        %9090 = vmatpush1.msra.mxu0 0.0
        %9091 = vmatprep.subr.mxu0 0.0
        %9092 = vmatpush1.msra.mxu0 0.0
        %9093 = vmatprep.subr.mxu0 0.0
        %9094 = vmatpush1.msra.mxu0 0.0
        %9095 = vmatprep.subr.mxu0 0.0
        %9096 = vmatpush1.msra.mxu0 0.0
        %9097 = vmatprep.subr.mxu0 0.0
        %9098 = vmatpush1.msra.mxu0 0.0
        %9099 = vmatprep.subr.mxu0 0.0
        %9100 = vmatpush1.msra.mxu0 0.0
        %9101 = vmatprep.subr.mxu0 0.0
        %9102 = vmatpush1.msra.mxu0 0.0
        %9103 = vmatprep.subr.mxu0 0.0
        %9104 = vmatpush1.msra.mxu0 0.0
        %9105 = vmatprep.subr.mxu0 0.0
        %9106 = vmatpush1.msra.mxu0 0.0
        %9107 = vmatprep.subr.mxu0 0.0
        %9108 = vmatpush1.msra.mxu0 0.0
        %9109 = vmatprep.subr.mxu0 0.0
        %9110 = vmatpush1.msra.mxu0 0.0
        %9111 = vmatprep.subr.mxu0 0.0
        %9112 = vmatpush1.msra.mxu0 0.0
        %9113 = vmatprep.subr.mxu0 0.0
        %9114 = vmatpush1.msra.mxu0 0.0
        %9115 = vmatprep.subr.mxu0 0.0
        %9116 = vmatpush1.msra.mxu0 0.0
        %9117 = vmatprep.subr.mxu0 0.0
        %9118 = vmatpush1.msra.mxu0 0.0
        %9119 = vmatprep.subr.mxu0 0.0
        %9120 = vmatpush1.msra.mxu0 0.0
        %9121 = vmatprep.subr.mxu0 0.0
        %9122 = vmatpush1.msra.mxu0 0.0
        %9123 = vmatprep.subr.mxu0 0.0
        %9124 = vmatpush1.msra.mxu0 0.0
        %9125 = vmatprep.subr.mxu0 0.0
        %9126 = vmatpush1.msra.mxu0 0.0
        %9127 = vmatprep.subr.mxu0 0.0
        %9128 = vmatpush1.msra.mxu0 0.0
        %9129 = vmatprep.subr.mxu0 0.0
        %9130 = vmatpush1.msra.mxu0 0.0
        %9131 = vmatprep.subr.mxu0 0.0
        %9132 = vmatpush1.msra.mxu0 0.0
        %9133 = vmatprep.subr.mxu0 0.0
        %9134 = vmatpush1.msra.mxu0 0.0
        %9135 = vmatprep.subr.mxu0 0.0
        %9136 = vmatpush1.msra.mxu0 0.0
        %9137 = vmatprep.subr.mxu0 0.0
        %9138 = vmatpush1.msra.mxu0 0.0
        %9139 = vmatprep.subr.mxu0 0.0
        %9140 = vmatpush1.msra.mxu0 0.0
        %9141 = vmatprep.subr.mxu0 0.0
        %9142 = vmatpush1.msra.mxu0 0.0
        %9143 = vmatprep.mubr.f32.mxu0 0.0
        %9144 = vmatmul.mubr.f32.gmra.mrb[0].mxu0 %v9074
        %v9145 = vpop.f32.mrb[0].mxu0
        %v9146 = vadd.f32 0.0, %v9145
        %v9147 = vpop.f32.mrb[0].mxu0
        %9148 = vdwg.mxu0
        %v9149 = vadd.f32 %v9071, %v9146
        %v9150 = vld [vmem:[%s5 + $0x50] sm:$0x1f]
        %v9151 = vrot.slane %v7898, 1
        %v9152 = vsel %vm7901, %v9151, 0
        %v9155 = vsel %vm7905, %v9150, 0
        %9157 = vmatprep.subr.mxu0 0.0
        %9158 = vmatpush1.msra.mxu0 %v9155
        %9159 = vmatprep.subr.mxu0 0.0
        %9160 = vmatpush1.msra.mxu0 0.0
        %9161 = vmatprep.subr.mxu0 0.0
        %9162 = vmatpush1.msra.mxu0 0.0
        %9163 = vmatprep.subr.mxu0 0.0
        %9164 = vmatpush1.msra.mxu0 0.0
        %9165 = vmatprep.subr.mxu0 0.0
        %9166 = vmatpush1.msra.mxu0 0.0
        %9167 = vmatprep.subr.mxu0 0.0
        %9168 = vmatpush1.msra.mxu0 0.0
        %9169 = vmatprep.subr.mxu0 0.0
        %9170 = vmatpush1.msra.mxu0 0.0
        %9171 = vmatprep.subr.mxu0 0.0
        %9172 = vmatpush1.msra.mxu0 0.0
        %9173 = vmatprep.subr.mxu0 0.0
        %9174 = vmatpush1.msra.mxu0 0.0
        %9175 = vmatprep.subr.mxu0 0.0
        %9176 = vmatpush1.msra.mxu0 0.0
        %9177 = vmatprep.subr.mxu0 0.0
        %9178 = vmatpush1.msra.mxu0 0.0
        %9179 = vmatprep.subr.mxu0 0.0
        %9180 = vmatpush1.msra.mxu0 0.0
        %9181 = vmatprep.subr.mxu0 0.0
        %9182 = vmatpush1.msra.mxu0 0.0
        %9183 = vmatprep.subr.mxu0 0.0
        %9184 = vmatpush1.msra.mxu0 0.0
        %9185 = vmatprep.subr.mxu0 0.0
        %9186 = vmatpush1.msra.mxu0 0.0
        %9187 = vmatprep.subr.mxu0 0.0
        %9188 = vmatpush1.msra.mxu0 0.0
        %9189 = vmatprep.subr.mxu0 0.0
        %9190 = vmatpush1.msra.mxu0 0.0
        %9191 = vmatprep.subr.mxu0 0.0
        %9192 = vmatpush1.msra.mxu0 0.0
        %9193 = vmatprep.subr.mxu0 0.0
        %9194 = vmatpush1.msra.mxu0 0.0
        %9195 = vmatprep.subr.mxu0 0.0
        %9196 = vmatpush1.msra.mxu0 0.0
        %9197 = vmatprep.subr.mxu0 0.0
        %9198 = vmatpush1.msra.mxu0 0.0
        %9199 = vmatprep.subr.mxu0 0.0
        %9200 = vmatpush1.msra.mxu0 0.0
        %9201 = vmatprep.subr.mxu0 0.0
        %9202 = vmatpush1.msra.mxu0 0.0
        %9203 = vmatprep.subr.mxu0 0.0
        %9204 = vmatpush1.msra.mxu0 0.0
        %9205 = vmatprep.subr.mxu0 0.0
        %9206 = vmatpush1.msra.mxu0 0.0
        %9207 = vmatprep.subr.mxu0 0.0
        %9208 = vmatpush1.msra.mxu0 0.0
        %9209 = vmatprep.subr.mxu0 0.0
        %9210 = vmatpush1.msra.mxu0 0.0
        %9211 = vmatprep.subr.mxu0 0.0
        %9212 = vmatpush1.msra.mxu0 0.0
        %9213 = vmatprep.subr.mxu0 0.0
        %9214 = vmatpush1.msra.mxu0 0.0
        %9215 = vmatprep.subr.mxu0 0.0
        %9216 = vmatpush1.msra.mxu0 0.0
        %9217 = vmatprep.subr.mxu0 0.0
        %9218 = vmatpush1.msra.mxu0 0.0
        %9219 = vmatprep.subr.mxu0 0.0
        %9220 = vmatpush1.msra.mxu0 0.0
        %9221 = vmatprep.mubr.f32.mxu0 0.0
        %9222 = vmatmul.mubr.f32.gmra.mrb[0].mxu0 %v9152
        %v9223 = vpop.f32.mrb[0].mxu0
        %v9224 = vadd.f32 0.0, %v9223
        %v9225 = vpop.f32.mrb[0].mxu0
        %9226 = vdwg.mxu0
        %v9227 = vadd.f32 %v9149, %v9224
        %v9228 = vld [vmem:[%s5 + $0x55] sm:$0x1f]
        %v9229 = vrot.slane %v7898, 2
        %v9230 = vsel %vm7901, %v9229, 0
        %v9233 = vsel %vm7905, %v9228, 0
        %9235 = vmatprep.subr.mxu0 0.0
        %9236 = vmatpush1.msra.mxu0 %v9233
        %9237 = vmatprep.subr.mxu0 0.0
        %9238 = vmatpush1.msra.mxu0 0.0
        %9239 = vmatprep.subr.mxu0 0.0
        %9240 = vmatpush1.msra.mxu0 0.0
        %9241 = vmatprep.subr.mxu0 0.0
        %9242 = vmatpush1.msra.mxu0 0.0
        %9243 = vmatprep.subr.mxu0 0.0
        %9244 = vmatpush1.msra.mxu0 0.0
        %9245 = vmatprep.subr.mxu0 0.0
        %9246 = vmatpush1.msra.mxu0 0.0
        %9247 = vmatprep.subr.mxu0 0.0
        %9248 = vmatpush1.msra.mxu0 0.0
        %9249 = vmatprep.subr.mxu0 0.0
        %9250 = vmatpush1.msra.mxu0 0.0
        %9251 = vmatprep.subr.mxu0 0.0
        %9252 = vmatpush1.msra.mxu0 0.0
        %9253 = vmatprep.subr.mxu0 0.0
        %9254 = vmatpush1.msra.mxu0 0.0
        %9255 = vmatprep.subr.mxu0 0.0
        %9256 = vmatpush1.msra.mxu0 0.0
        %9257 = vmatprep.subr.mxu0 0.0
        %9258 = vmatpush1.msra.mxu0 0.0
        %9259 = vmatprep.subr.mxu0 0.0
        %9260 = vmatpush1.msra.mxu0 0.0
        %9261 = vmatprep.subr.mxu0 0.0
        %9262 = vmatpush1.msra.mxu0 0.0
        %9263 = vmatprep.subr.mxu0 0.0
        %9264 = vmatpush1.msra.mxu0 0.0
        %9265 = vmatprep.subr.mxu0 0.0
        %9266 = vmatpush1.msra.mxu0 0.0
        %9267 = vmatprep.subr.mxu0 0.0
        %9268 = vmatpush1.msra.mxu0 0.0
        %9269 = vmatprep.subr.mxu0 0.0
        %9270 = vmatpush1.msra.mxu0 0.0
        %9271 = vmatprep.subr.mxu0 0.0
        %9272 = vmatpush1.msra.mxu0 0.0
        %9273 = vmatprep.subr.mxu0 0.0
        %9274 = vmatpush1.msra.mxu0 0.0
        %9275 = vmatprep.subr.mxu0 0.0
        %9276 = vmatpush1.msra.mxu0 0.0
        %9277 = vmatprep.subr.mxu0 0.0
        %9278 = vmatpush1.msra.mxu0 0.0
        %9279 = vmatprep.subr.mxu0 0.0
        %9280 = vmatpush1.msra.mxu0 0.0
        %9281 = vmatprep.subr.mxu0 0.0
        %9282 = vmatpush1.msra.mxu0 0.0
        %9283 = vmatprep.subr.mxu0 0.0
        %9284 = vmatpush1.msra.mxu0 0.0
        %9285 = vmatprep.subr.mxu0 0.0
        %9286 = vmatpush1.msra.mxu0 0.0
        %9287 = vmatprep.subr.mxu0 0.0
        %9288 = vmatpush1.msra.mxu0 0.0
        %9289 = vmatprep.subr.mxu0 0.0
        %9290 = vmatpush1.msra.mxu0 0.0
        %9291 = vmatprep.subr.mxu0 0.0
        %9292 = vmatpush1.msra.mxu0 0.0
        %9293 = vmatprep.subr.mxu0 0.0
        %9294 = vmatpush1.msra.mxu0 0.0
        %9295 = vmatprep.subr.mxu0 0.0
        %9296 = vmatpush1.msra.mxu0 0.0
        %9297 = vmatprep.subr.mxu0 0.0
        %9298 = vmatpush1.msra.mxu0 0.0
        %9299 = vmatprep.mubr.f32.mxu0 0.0
        %9300 = vmatmul.mubr.f32.gmra.mrb[0].mxu0 %v9230
        %v9301 = vpop.f32.mrb[0].mxu0
        %v9302 = vadd.f32 0.0, %v9301
        %v9303 = vpop.f32.mrb[0].mxu0
        %9304 = vdwg.mxu0
        %v9305 = vadd.f32 %v9227, %v9302
        %v9306 = vld [vmem:[%s5 + $0x5a] sm:$0x1f]
        %v9307 = vrot.slane %v7898, 3
        %v9308 = vsel %vm7901, %v9307, 0
        %v9311 = vsel %vm7905, %v9306, 0
        %9313 = vmatprep.subr.mxu0 0.0
        %9314 = vmatpush1.msra.mxu0 %v9311
        %9315 = vmatprep.subr.mxu0 0.0
        %9316 = vmatpush1.msra.mxu0 0.0
        %9317 = vmatprep.subr.mxu0 0.0
        %9318 = vmatpush1.msra.mxu0 0.0
        %9319 = vmatprep.subr.mxu0 0.0
        %9320 = vmatpush1.msra.mxu0 0.0
        %9321 = vmatprep.subr.mxu0 0.0
        %9322 = vmatpush1.msra.mxu0 0.0
        %9323 = vmatprep.subr.mxu0 0.0
        %9324 = vmatpush1.msra.mxu0 0.0
        %9325 = vmatprep.subr.mxu0 0.0
        %9326 = vmatpush1.msra.mxu0 0.0
        %9327 = vmatprep.subr.mxu0 0.0
        %9328 = vmatpush1.msra.mxu0 0.0
        %9329 = vmatprep.subr.mxu0 0.0
        %9330 = vmatpush1.msra.mxu0 0.0
        %9331 = vmatprep.subr.mxu0 0.0
        %9332 = vmatpush1.msra.mxu0 0.0
        %9333 = vmatprep.subr.mxu0 0.0
        %9334 = vmatpush1.msra.mxu0 0.0
        %9335 = vmatprep.subr.mxu0 0.0
        %9336 = vmatpush1.msra.mxu0 0.0
        %9337 = vmatprep.subr.mxu0 0.0
        %9338 = vmatpush1.msra.mxu0 0.0
        %9339 = vmatprep.subr.mxu0 0.0
        %9340 = vmatpush1.msra.mxu0 0.0
        %9341 = vmatprep.subr.mxu0 0.0
        %9342 = vmatpush1.msra.mxu0 0.0
        %9343 = vmatprep.subr.mxu0 0.0
        %9344 = vmatpush1.msra.mxu0 0.0
        %9345 = vmatprep.subr.mxu0 0.0
        %9346 = vmatpush1.msra.mxu0 0.0
        %9347 = vmatprep.subr.mxu0 0.0
        %9348 = vmatpush1.msra.mxu0 0.0
        %9349 = vmatprep.subr.mxu0 0.0
        %9350 = vmatpush1.msra.mxu0 0.0
        %9351 = vmatprep.subr.mxu0 0.0
        %9352 = vmatpush1.msra.mxu0 0.0
        %9353 = vmatprep.subr.mxu0 0.0
        %9354 = vmatpush1.msra.mxu0 0.0
        %9355 = vmatprep.subr.mxu0 0.0
        %9356 = vmatpush1.msra.mxu0 0.0
        %9357 = vmatprep.subr.mxu0 0.0
        %9358 = vmatpush1.msra.mxu0 0.0
        %9359 = vmatprep.subr.mxu0 0.0
        %9360 = vmatpush1.msra.mxu0 0.0
        %9361 = vmatprep.subr.mxu0 0.0
        %9362 = vmatpush1.msra.mxu0 0.0
        %9363 = vmatprep.subr.mxu0 0.0
        %9364 = vmatpush1.msra.mxu0 0.0
        %9365 = vmatprep.subr.mxu0 0.0
        %9366 = vmatpush1.msra.mxu0 0.0
        %9367 = vmatprep.subr.mxu0 0.0
        %9368 = vmatpush1.msra.mxu0 0.0
        %9369 = vmatprep.subr.mxu0 0.0
        %9370 = vmatpush1.msra.mxu0 0.0
        %9371 = vmatprep.subr.mxu0 0.0
        %9372 = vmatpush1.msra.mxu0 0.0
        %9373 = vmatprep.subr.mxu0 0.0
        %9374 = vmatpush1.msra.mxu0 0.0
        %9375 = vmatprep.subr.mxu0 0.0
        %9376 = vmatpush1.msra.mxu0 0.0
        %9377 = vmatprep.mubr.f32.mxu0 0.0
        %9378 = vmatmul.mubr.f32.gmra.mrb[0].mxu0 %v9308
        %v9379 = vpop.f32.mrb[0].mxu0
        %v9380 = vadd.f32 0.0, %v9379
        %v9381 = vpop.f32.mrb[0].mxu0
        %9382 = vdwg.mxu0
        %v9383 = vadd.f32 %v9305, %v9380
        %v9384 = vld [vmem:[%s5 + $0x5f] sm:$0x1f]
        %v9385 = vrot.slane %v7898, 4
        %v9386 = vsel %vm7901, %v9385, 0
        %v9389 = vsel %vm7905, %v9384, 0
        %9391 = vmatprep.subr.mxu0 0.0
        %9392 = vmatpush1.msra.mxu0 %v9389
        %9393 = vmatprep.subr.mxu0 0.0
        %9394 = vmatpush1.msra.mxu0 0.0
        %9395 = vmatprep.subr.mxu0 0.0
        %9396 = vmatpush1.msra.mxu0 0.0
        %9397 = vmatprep.subr.mxu0 0.0
        %9398 = vmatpush1.msra.mxu0 0.0
        %9399 = vmatprep.subr.mxu0 0.0
        %9400 = vmatpush1.msra.mxu0 0.0
        %9401 = vmatprep.subr.mxu0 0.0
        %9402 = vmatpush1.msra.mxu0 0.0
        %9403 = vmatprep.subr.mxu0 0.0
        %9404 = vmatpush1.msra.mxu0 0.0
        %9405 = vmatprep.subr.mxu0 0.0
        %9406 = vmatpush1.msra.mxu0 0.0
        %9407 = vmatprep.subr.mxu0 0.0
        %9408 = vmatpush1.msra.mxu0 0.0
        %9409 = vmatprep.subr.mxu0 0.0
        %9410 = vmatpush1.msra.mxu0 0.0
        %9411 = vmatprep.subr.mxu0 0.0
        %9412 = vmatpush1.msra.mxu0 0.0
        %9413 = vmatprep.subr.mxu0 0.0
        %9414 = vmatpush1.msra.mxu0 0.0
        %9415 = vmatprep.subr.mxu0 0.0
        %9416 = vmatpush1.msra.mxu0 0.0
        %9417 = vmatprep.subr.mxu0 0.0
        %9418 = vmatpush1.msra.mxu0 0.0
        %9419 = vmatprep.subr.mxu0 0.0
        %9420 = vmatpush1.msra.mxu0 0.0
        %9421 = vmatprep.subr.mxu0 0.0
        %9422 = vmatpush1.msra.mxu0 0.0
        %9423 = vmatprep.subr.mxu0 0.0
        %9424 = vmatpush1.msra.mxu0 0.0
        %9425 = vmatprep.subr.mxu0 0.0
        %9426 = vmatpush1.msra.mxu0 0.0
        %9427 = vmatprep.subr.mxu0 0.0
        %9428 = vmatpush1.msra.mxu0 0.0
        %9429 = vmatprep.subr.mxu0 0.0
        %9430 = vmatpush1.msra.mxu0 0.0
        %9431 = vmatprep.subr.mxu0 0.0
        %9432 = vmatpush1.msra.mxu0 0.0
        %9433 = vmatprep.subr.mxu0 0.0
        %9434 = vmatpush1.msra.mxu0 0.0
        %9435 = vmatprep.subr.mxu0 0.0
        %9436 = vmatpush1.msra.mxu0 0.0
        %9437 = vmatprep.subr.mxu0 0.0
        %9438 = vmatpush1.msra.mxu0 0.0
        %9439 = vmatprep.subr.mxu0 0.0
        %9440 = vmatpush1.msra.mxu0 0.0
        %9441 = vmatprep.subr.mxu0 0.0
        %9442 = vmatpush1.msra.mxu0 0.0
        %9443 = vmatprep.subr.mxu0 0.0
        %9444 = vmatpush1.msra.mxu0 0.0
        %9445 = vmatprep.subr.mxu0 0.0
        %9446 = vmatpush1.msra.mxu0 0.0
        %9447 = vmatprep.subr.mxu0 0.0
        %9448 = vmatpush1.msra.mxu0 0.0
        %9449 = vmatprep.subr.mxu0 0.0
        %9450 = vmatpush1.msra.mxu0 0.0
        %9451 = vmatprep.subr.mxu0 0.0
        %9452 = vmatpush1.msra.mxu0 0.0
        %9453 = vmatprep.subr.mxu0 0.0
        %9454 = vmatpush1.msra.mxu0 0.0
        %9455 = vmatprep.mubr.f32.mxu0 0.0
        %9456 = vmatmul.mubr.f32.gmra.mrb[0].mxu0 %v9386
        %v9457 = vpop.f32.mrb[0].mxu0
        %v9458 = vadd.f32 0.0, %v9457
        %v9459 = vpop.f32.mrb[0].mxu0
        %9460 = vdwg.mxu0
        %v9461 = vadd.f32 %v9383, %v9458
        %v9462 = vmax.f32 %v9461, 0.0
        %v9463 = vld [vmem:[%s7] sm:$0xff]
        %v9464 = vld [vmem:[%s7 + $0x8] sm:$0xff]
        %v9465 = vld [vmem:[%s7 + $0x10] sm:$0xff]
        %v9466 = vld [vmem:[%s7 + $0x18] sm:$0xff]
        %v9467 = vld [vmem:[%s7 + $0x20] sm:$0xff]
        %v9468 = vld [vmem:[%s7 + $0x28] sm:$0xff]
        %v9469 = vld [vmem:[%s7 + $0x30] sm:$0x3]
        %v9470 = vld [vmem:[%s8] sm:$0x1]
        %vm9471 = vcmask 408576
        %v9473 = vsel %vm9471, %v9462, 0
        %v9476 = vsel %vm1192, %v9469, 0
        %9478 = vmatprep.subr.mxu0 0.0
        %9479 = vmatpush1.msra.mxu0 %v9463
        %9480 = vmatprep.subr.mxu0 0.0
        %9481 = vmatpush1.msra.mxu0 %v9464
        %9482 = vmatprep.subr.mxu0 0.0
        %9483 = vmatpush1.msra.mxu0 %v9465
        %9484 = vmatprep.subr.mxu0 0.0
        %9485 = vmatpush1.msra.mxu0 %v9466
        %9486 = vmatprep.subr.mxu0 0.0
        %9487 = vmatpush1.msra.mxu0 %v9467
        %9488 = vmatprep.subr.mxu0 0.0
        %9489 = vmatpush1.msra.mxu0 %v9468
        %9490 = vmatprep.subr.mxu0 0.0
        %9491 = vmatpush1.msra.mxu0 %v9476
        %9492 = vmatprep.subr.mxu0 0.0
        %9493 = vmatpush1.msra.mxu0 0.0
        %9494 = vmatprep.subr.mxu0 0.0
        %9495 = vmatpush1.msra.mxu0 0.0
        %9496 = vmatprep.subr.mxu0 0.0
        %9497 = vmatpush1.msra.mxu0 0.0
        %9498 = vmatprep.subr.mxu0 0.0
        %9499 = vmatpush1.msra.mxu0 0.0
        %9500 = vmatprep.subr.mxu0 0.0
        %9501 = vmatpush1.msra.mxu0 0.0
        %9502 = vmatprep.subr.mxu0 0.0
        %9503 = vmatpush1.msra.mxu0 0.0
        %9504 = vmatprep.subr.mxu0 0.0
        %9505 = vmatpush1.msra.mxu0 0.0
        %9506 = vmatprep.subr.mxu0 0.0
        %9507 = vmatpush1.msra.mxu0 0.0
        %9508 = vmatprep.subr.mxu0 0.0
        %9509 = vmatpush1.msra.mxu0 0.0
        %9510 = vmatprep.subr.mxu0 0.0
        %9511 = vmatpush1.msra.mxu0 0.0
        %9512 = vmatprep.subr.mxu0 0.0
        %9513 = vmatpush1.msra.mxu0 0.0
        %9514 = vmatprep.subr.mxu0 0.0
        %9515 = vmatpush1.msra.mxu0 0.0
        %9516 = vmatprep.subr.mxu0 0.0
        %9517 = vmatpush1.msra.mxu0 0.0
        %9518 = vmatprep.subr.mxu0 0.0
        %9519 = vmatpush1.msra.mxu0 0.0
        %9520 = vmatprep.subr.mxu0 0.0
        %9521 = vmatpush1.msra.mxu0 0.0
        %9522 = vmatprep.subr.mxu0 0.0
        %9523 = vmatpush1.msra.mxu0 0.0
        %9524 = vmatprep.subr.mxu0 0.0
        %9525 = vmatpush1.msra.mxu0 0.0
        %9526 = vmatprep.subr.mxu0 0.0
        %9527 = vmatpush1.msra.mxu0 0.0
        %9528 = vmatprep.subr.mxu0 0.0
        %9529 = vmatpush1.msra.mxu0 0.0
        %9530 = vmatprep.subr.mxu0 0.0
        %9531 = vmatpush1.msra.mxu0 0.0
        %9532 = vmatprep.subr.mxu0 0.0
        %9533 = vmatpush1.msra.mxu0 0.0
        %9534 = vmatprep.subr.mxu0 0.0
        %9535 = vmatpush1.msra.mxu0 0.0
        %9536 = vmatprep.subr.mxu0 0.0
        %9537 = vmatpush1.msra.mxu0 0.0
        %9538 = vmatprep.subr.mxu0 0.0
        %9539 = vmatpush1.msra.mxu0 0.0
        %9540 = vmatprep.subr.mxu0 0.0
        %9541 = vmatpush1.msra.mxu0 0.0
        %9542 = vmatprep.mubr.f32.mxu0 0.0
        %9543 = vmatmul.mubr.f32.gmra.mrb[0].mxu0 %v9473
        %v9544 = vpop.f32.mrb[0].mxu0
        %v9545 = vadd.f32 %v9470, %v9544
        %v9546 = vpop.f32.mrb[0].mxu0
        %9547 = vdwg.mxu0
        %vm9548 = vcmask 16384
        %9549 = vst.msk [vmem:[%s376] sm:$0x1] %vm9548, %v9545
        %s9550 = sand.u32 %s228, 1
        %s9551 = scalar_lea.sflag [#allocation3], %s9550
        %s9552 = sand.u32 %s228, 1
        %s9553 = scalar_lea.vmem [#allocation10], %s9552
        // Predicated region
        $region73: #{cnn2_forward.1} parent=55 // pred_check
          %p9554 = pneg %p238
        $region74: #{cnn2_forward.1} parent=55 // pred_check_branch
          %9556 = sbr.rel (%p9554) target = $region76
        $region75: #{cnn2_forward.1} parent=55 // pred_region
          %s9558 = ssub.s32 16, 16
          %9559 = vsyncadd %s9551, %s9558
          %s9560 = smul.addr %s26, 16
          %s9561 = scalar_lea.hbm %s9, %s9560
          %s9563 = sshll.u32 %s9553, 4
          %s9564 = int_to_ptr.vmem [resolvable:$true] %s9563
          %9566 = dma.vmem_to_hbm [thread:$0]  %s9564, 16, %s9561, %s9551
        $region76: #{cnn2_forward.1} parent=55 // pred_fallthru
          _
      $region56: #{cnn2_forward.1} parent=5 // pred_fallthru
        _
      %p9567 = scmp.le.s32.totalorder 2, %s21
      // Predicated region
      $region77: #{cnn2_forward.1} parent=5 // pred_check
        %p9568 = pneg %p9567
      $region78: #{cnn2_forward.1} parent=5 // pred_check_branch
        %9570 = sbr.rel (%p9568) target = $region80
      $region79: #{cnn2_forward.1} parent=5 // pred_region
        %s9571 = ssub.s32 %s21, 2
        // Predicated region
        $region81: #{cnn2_forward.1} parent=79 // pred_check
          %p9572 = pneg %p244
        $region82: #{cnn2_forward.1} parent=79 // pred_check_branch
          %9574 = sbr.rel (%p9572) target = $region84
        $region83: #{cnn2_forward.1} parent=79 // pred_region
          %s9575 = sand.u32 %s229, 1
          %s9576 = scalar_lea.sflag [#allocation3], %s9575
          %s9577 = sand.u32 %s229, 1
          %s9578 = scalar_lea.vmem [#allocation10], %s9577
          %9579 = dma.done %s9576, 16
        $region84: #{cnn2_forward.1} parent=79 // pred_fallthru
          _
      $region80: #{cnn2_forward.1} parent=5 // pred_fallthru
        _
    $region6: #{cnn2_forward.1} parent=1 // loop_footer
      %s25 = sadd.s32 1, %s21
    $region7: #{cnn2_forward.1} parent=1 // loop_footer_branch
      %20 = sbr.rel target = $region3
    $region8: #{cnn2_forward.1} parent=1 // loop_exit
      _
    %9580 = vsyncpa [#allocation3], 1
    %s9581 = scalar_lea.sflag [#allocation3], 1
    %9582 = vsyncpa %s9581, 1
    %9583 = vsyncpa [#allocation4], 1
    %s9584 = scalar_lea.sflag [#allocation4], 1
    %9585 = vsyncpa %s9584, 1
    %9586 = vsyncpa [#allocation6], 1
    %9587 = vsyncpa [#allocation9], 1

</llo_original>
